<compile_context>
chip_gen: v7x
topology: tpu7x:2x2x1
jax: 0.10.0
libtpu: 0.0.40
codegen_flags: <defaults>
</compile_context>

<pallas_src>
import functools

import jax
import jax.numpy as jnp
from jax import lax
from jax.experimental import pallas as pl
from jax.experimental.pallas import tpu as pltpu


CFG = dict(input_dim=16, nb_code=64, code_dim=32, down_t=2, stride_t=2,
           width=32, depth=2, dilation_growth_rate=3)

# Conv matmul input dtype (weights + folded tap LHS).  Accumulation is always
# f32 via preferred_element_type; VQ distance math stays f32.
MATMUL_DTYPE = jnp.bfloat16


# ---------------------------------------------------------------------------
# Static layer plan (mirrors T2M-GPT Encoder / Resnet1D / Decoder structure)
# ---------------------------------------------------------------------------

def _build_plan(cfg):
    inp, width, cd = cfg["input_dim"], cfg["width"], cfg["code_dim"]
    depth, dgr = cfg["depth"], cfg["dilation_growth_rate"]
    down_t, st = cfg["down_t"], cfg["stride_t"]
    dil_rev = [dgr ** d for d in range(depth)][::-1]   # Resnet1D reverse_dilation=True
    plan = []

    def conv(cin, cout, K, stride=1, dilation=1, padding=0,
             pre_relu=False, post_relu=False, residual=False):
        plan.append(dict(kind="conv", cin=cin, cout=cout, K=K, stride=stride,
                         dilation=dilation, padding=padding, pre_relu=pre_relu,
                         post_relu=post_relu, residual=residual))

    def resnet1d(ch):
        # ResConv1DBlock: x + conv2(relu(conv1(relu(x))))
        for dil in dil_rev:
            conv(ch, ch, 3, dilation=dil, padding=dil, pre_relu=True, post_relu=True)
            conv(ch, ch, 1, residual=True)

    # --- Encoder ---
    conv(inp, width, 3, padding=1, post_relu=True)
    for _ in range(down_t):
        conv(width, width, 2 * st, stride=st, padding=st // 2)
        resnet1d(width)
    conv(width, cd, 3, padding=1)
    # --- Quantizer ---
    plan.append(dict(kind="vq"))
    # --- Decoder ---
    conv(cd, width, 3, padding=1, post_relu=True)
    for _ in range(down_t):
        resnet1d(width)
        plan.append(dict(kind="upsample", scale=2))
        conv(width, width, 3, padding=1)
    conv(width, width, 3, padding=1, post_relu=True)
    conv(width, inp, 3, padding=1)
    return plan


# ---------------------------------------------------------------------------
# The single fused kernel
# ---------------------------------------------------------------------------

def _fused_vqvae_kernel(*refs, plan, N, T, PM, SLOT, cfg):
    convs = [p for p in plan if p["kind"] == "conv"]
    n_conv = len(convs)

    x_ref = refs[0]
    w_refs = refs[1:1 + 2 * n_conv]                  # folded (K*Cin, Cout) + (1, Cout) bias
    cb_ref = refs[1 + 2 * n_conv]
    o = 2 + 2 * n_conv
    dec_ref, idx_ref, loss_ref, ppl_ref, q_ref = refs[o:o + 5]
    bufs = list(refs[o + 5:o + 8])                   # 3 ping-pong VMEM activation slabs

    f32 = jnp.float32
    cmax = bufs[0].shape[1]
    rows_total = bufs[0].shape[0]

    # ---- one-time zeroing: per-sequence leading pad rows + slab tail --------
    zpad = jnp.zeros((PM, cmax), f32)
    ztail_full = jnp.zeros((rows_total - N * SLOT, cmax), f32)
    for b in bufs:
        for n in range(N):
            b[n * SLOT:n * SLOT + PM, :] = zpad
        b[N * SLOT:rows_total, :] = ztail_full

    def store_batched(bi, big, src_slot, t_len, c):
        """Scatter valid rows of `big` (valid at n*src_slot + [0, t_len)) into the
        data region of buffer `bi` and zero PM trailing pad rows per sequence."""
        zt = jnp.zeros((PM, c), f32)
        for n in range(N):
            r0 = n * SLOT + PM
            bufs[bi][r0:r0 + t_len, :c] = big[n * src_slot:n * src_slot + t_len, :c]
            bufs[bi][r0 + t_len:r0 + t_len + PM, :c] = zt

    def pick_dst(exclude):
        for i in range(len(bufs)):
            if i not in exclude:
                return i
        raise AssertionError("no free activation buffer")

    # ---- load x (channel-last => PyTorch's preprocess permute is a layout no-op)
    cin0 = cfg["input_dim"]
    zt0 = jnp.zeros((PM, cin0), f32)
    for n in range(N):
        r0 = n * SLOT + PM
        bufs[0][r0:r0 + T, :cin0] = x_ref[n].astype(f32)
        bufs[0][r0 + T:r0 + T + PM, :cin0] = zt0

    cur, prev_in = 0, 0          # prev_in = input buffer of the previous layer
    t_cur = T
    wi = 0

    for layer in plan:
        kind = layer["kind"]

        if kind == "conv":
            w2 = w_refs[2 * wi][...]            # (K*Cin, Cout)  MATMUL_DTYPE
            bias = w_refs[2 * wi + 1][...]      # (1, Cout)      f32
            wi += 1
            is_last = (wi == n_conv)
            K, s = layer["K"], layer["stride"]
            d, p = layer["dilation"], layer["padding"]
            cin, cout = layer["cin"], layer["cout"]
            t_out = (t_cur + 2 * p - d * (K - 1) - 1) // s + 1

            # static safety: no read strays more than PM rows before/after data
            assert p <= PM
            assert s * (t_out - 1) - p + (K - 1) * d - (t_cur - 1) <= PM
            assert SLOT % s == 0
            src_slot = SLOT // s
            rows = N * src_slot                 # rows of the batched output matrix

            # K taps read from the padded slab, folded along lanes -> ONE MXU dot
            taps = []
            for k in range(K):
                off = PM - p + k * d
                if s == 1:
                    taps.append(bufs[cur][off:off + rows, :cin])
                else:
                    taps.append(bufs[cur][pl.ds(off, rows, stride=s), :cin])
            xt = taps[0] if K == 1 else jnp.concatenate(taps, axis=-1)  # (rows, K*Cin)
            if layer["pre_relu"]:
                xt = jnp.maximum(xt, 0.0)       # relu(0-pad) == 0-pad, so exact
            acc = jnp.dot(xt.astype(w2.dtype), w2, preferred_element_type=f32)
            acc = acc + bias
            if layer["residual"]:
                acc = acc + bufs[prev_in][PM:PM + rows, :cout]
            if layer["post_relu"]:
                acc = jnp.maximum(acc, 0.0)

            if is_last:
                assert t_out == T
                for n in range(N):
                    dec_ref[n, :, :] = acc[n * src_slot:n * src_slot + t_out, :cout]
                prev_in = cur
            else:
                dst = pick_dst({cur, prev_in})
                store_batched(dst, acc, src_slot, t_out, cout)
                prev_in, cur = cur, dst
            t_cur = t_out

        elif kind == "upsample":
            sc = layer["scale"]
            t_out = sc * t_cur
            c = cfg["width"]
            dst = pick_dst({cur, prev_in})
            # nearest-neighbour x2 as a 0/1 selection matmul (hoisted, per slot)
            row = lax.broadcasted_iota(jnp.int32, (t_out, t_cur), 0)
            col = lax.broadcasted_iota(jnp.int32, (t_out, t_cur), 1)
            up_sel = jnp.logical_and(row >= sc * col, row < sc * (col + 1)).astype(f32)
            zt = jnp.zeros((PM, c), f32)
            for n in range(N):
                r0 = n * SLOT + PM
                h = bufs[cur][r0:r0 + t_cur, :c]
                up = jnp.dot(up_sel, h, preferred_element_type=f32)
                bufs[dst][r0:r0 + t_out, :c] = up
                bufs[dst][r0 + t_out:r0 + t_out + PM, :c] = zt
            prev_in, cur = cur, dst
            t_cur = t_out

        elif kind == "vq":
            D = cfg["code_dim"]
            nb = cfg["nb_code"]
            Tq = t_cur
            cb = cb_ref[...]                                     # (nb, D) f32
            # compact valid rows of all sequences -> one batched VQ
            xs = [bufs[cur][n * SLOT + PM:n * SLOT + PM + Tq, :D] for n in range(N)]
            xx = xs[0] if N == 1 else jnp.concatenate(xs, axis=0)   # (N*Tq, D)
            x2 = jnp.sum(xx * xx, axis=-1, keepdims=True)
            c2 = jnp.sum(cb * cb, axis=-1)[None, :]
            xc = lax.dot_general(xx, cb, (((1,), (1,)), ((), ())),
                                 preferred_element_type=f32)        # (N*Tq, nb) f32
            dist = x2 - 2.0 * xc + c2
            dmin = jnp.min(dist, axis=-1, keepdims=True)
            iota = lax.broadcasted_iota(jnp.int32, dist.shape, 1)
            bigv = jnp.int32(2 ** 30)
            idx = jnp.min(jnp.where(dist <= dmin, iota, bigv),
                          axis=-1, keepdims=True)                   # (N*Tq, 1) int32
            onehot = (iota == idx).astype(f32)                      # (N*Tq, nb)
            q = jnp.dot(onehot, cb, preferred_element_type=f32)     # (N*Tq, D)  exact

            idx_ref[...] = idx                                      # single store
            loss_ref[...] = jnp.sum((q - xx) ** 2, keepdims=True) / float(N * Tq * D)
            counts = jnp.dot(jnp.ones((1, N * Tq), f32), onehot,
                             preferred_element_type=f32)            # (1, nb)
            prob = counts / float(N * Tq)
            ppl_ref[...] = jnp.exp(-jnp.sum(prob * jnp.log(prob + 1e-7),
                                            axis=-1, keepdims=True))

            dst = pick_dst({cur, prev_in})
            zt = jnp.zeros((PM, D), f32)
            for n in range(N):
                qn = q[n * Tq:(n + 1) * Tq, :]
                q_ref[n, :, :] = qn
                r0 = n * SLOT + PM
                bufs[dst][r0:r0 + Tq, :D] = qn      # straight-through value feeds decoder
                bufs[dst][r0 + Tq:r0 + Tq + PM, :D] = zt
            prev_in, cur = cur, dst

        else:
            raise ValueError(kind)


# ---------------------------------------------------------------------------
# Parameters + forward wrapper
# ---------------------------------------------------------------------------

def init_params(key, cfg):
    plan = _build_plan(cfg)
    convs_cfg = [p for p in plan if p["kind"] == "conv"]
    keys = jax.random.split(key, 2 * len(convs_cfg) + 1)
    convs = []
    for i, p in enumerate(convs_cfg):
        K, cin, cout = p["K"], p["cin"], p["cout"]
        scale = (cin * K) ** -0.5
        w = jax.random.normal(keys[2 * i], (K, cin, cout), jnp.float32) * scale
        b = jax.random.normal(keys[2 * i + 1], (cout,), jnp.float32) * 0.01
        convs.append((w, b))
    cb = jax.random.normal(keys[-1], (cfg["nb_code"], cfg["code_dim"]), jnp.float32)
    return {"convs": convs, "codebook": cb}


def vqvae_forward(params, x, cfg=CFG):
    """x: (N, T, input_dim) -> (decoded, code_idx, commit_loss, perplexity, quantized)."""
    N, T, _ = x.shape
    plan = _build_plan(cfg)
    convs = [p for p in plan if p["kind"] == "conv"]
    assert len(convs) == len(params["convs"])
    down = cfg["stride_t"] ** cfg["down_t"]
    assert T % down == 0, "T must be divisible by the total down-sampling factor"
    assert T % 8 == 0, "T should be a multiple of 8 for sublane-aligned slots"
    Tq = T // down

    padmax = max(p["padding"] for p in convs)
    PM = max(8, ((padmax + 7) // 8) * 8)            # sublane-aligned pad offset
    SLOT = ((T + 2 * PM + 7) // 8) * 8              # per-sequence slot stride
    for p in convs:
        if p["stride"] != 1:
            assert SLOT % p["stride"] == 0
    cmax = max(cfg["input_dim"], cfg["width"], cfg["code_dim"])
    ROWS = N * SLOT + 2 * PM                        # slab rows (tail stays zero)

    flat = [x.astype(jnp.float32)]
    for (w, b), p in zip(params["convs"], convs):
        K, cin, cout = w.shape
        assert (K, cin, cout) == (p["K"], p["cin"], p["cout"])
        flat.append(w.reshape(K * cin, cout).astype(MATMUL_DTYPE))   # folded weight
        flat.append(b.reshape(1, cout).astype(jnp.float32))
    flat.append(params["codebook"].astype(jnp.float32))

    out_shape = (
        jax.ShapeDtypeStruct((N, T, cfg["input_dim"]), jnp.float32),   # decoded motion
        jax.ShapeDtypeStruct((N * Tq, 1), jnp.int32),                  # code indices (flat)
        jax.ShapeDtypeStruct((1, 1), jnp.float32),                     # commit loss
        jax.ShapeDtypeStruct((1, 1), jnp.float32),                     # perplexity
        jax.ShapeDtypeStruct((N, Tq, cfg["code_dim"]), jnp.float32),   # quantized motion
    )

    # explicit VMEM budget (scratch + resident weights + in/out, no grid => no
    # double buffering).  TODO(synk): switch to weight/activation streaming
    # (emit_pipeline / memory_space=pl.ANY) for real T2M-GPT widths.
    est = 3 * ROWS * cmax * 4
    est += sum(int(a.size) * a.dtype.itemsize for a in flat)
    est += N * T * cfg["input_dim"] * 4 + N * Tq * 4 + 8 + N * Tq * cfg["code_dim"] * 4
    assert est < 40 * 1024 * 1024, "config too large for the fully-resident kernel"

    kern = functools.partial(_fused_vqvae_kernel, plan=plan, N=N, T=T,
                             PM=PM, SLOT=SLOT, cfg=cfg)
    dec, idx, loss, ppl, q = pl.pallas_call(
        kern,
        out_shape=out_shape,
        scratch_shapes=[pltpu.VMEM((ROWS, cmax), jnp.float32) for _ in range(3)],
        compiler_params=pltpu.CompilerParams(vmem_limit_bytes=48 * 1024 * 1024),
    )(*flat)
    return dec, idx.reshape(N, Tq), loss[0, 0], ppl[0, 0], q


if __name__ == "__main__":
    key = jax.random.PRNGKey(0)
    pkey, xkey = jax.random.split(key)
    params = init_params(pkey, CFG)

    N, T = 2, 32                      # T divisible by stride_t**down_t = 4
    x = jax.random.normal(xkey, (N, T, CFG["input_dim"]), jnp.float32)

    fwd = jax.jit(functools.partial(vqvae_forward, cfg=CFG))
    decoded, indices, commit_loss, perplexity, quantized = fwd(params, x)
    jax.block_until_ready((decoded, indices, commit_loss, perplexity, quantized))

    assert decoded.shape == (N, T, CFG["input_dim"])
    assert indices.shape == (N, T // 4)
    assert quantized.shape == (N, T // 4, CFG["code_dim"])
    assert commit_loss.shape == () and perplexity.shape == ()
    assert bool(jnp.all(jnp.isfinite(decoded)))
    assert bool(jnp.all(jnp.isfinite(quantized)))
    assert bool(jnp.isfinite(commit_loss)) and bool(jnp.isfinite(perplexity))
    assert bool(jnp.all((indices >= 0) & (indices < CFG["nb_code"])))
    print("KERNEL_OK")
</pallas_src>

<mosaic_0001>
module attributes {stable_mosaic.version = 11 : i64} {
  func.func @_fused_vqvae_kernel(%arg0: memref<2x32x16xf32, #tpu.memory_space<vmem>>, %arg1: memref<48x32xbf16, #tpu.memory_space<vmem>>, %arg2: memref<1x32xf32, #tpu.memory_space<vmem>>, %arg3: memref<128x32xbf16, #tpu.memory_space<vmem>>, %arg4: memref<1x32xf32, #tpu.memory_space<vmem>>, %arg5: memref<96x32xbf16, #tpu.memory_space<vmem>>, %arg6: memref<1x32xf32, #tpu.memory_space<vmem>>, %arg7: memref<32x32xbf16, #tpu.memory_space<vmem>>, %arg8: memref<1x32xf32, #tpu.memory_space<vmem>>, %arg9: memref<96x32xbf16, #tpu.memory_space<vmem>>, %arg10: memref<1x32xf32, #tpu.memory_space<vmem>>, %arg11: memref<32x32xbf16, #tpu.memory_space<vmem>>, %arg12: memref<1x32xf32, #tpu.memory_space<vmem>>, %arg13: memref<128x32xbf16, #tpu.memory_space<vmem>>, %arg14: memref<1x32xf32, #tpu.memory_space<vmem>>, %arg15: memref<96x32xbf16, #tpu.memory_space<vmem>>, %arg16: memref<1x32xf32, #tpu.memory_space<vmem>>, %arg17: memref<32x32xbf16, #tpu.memory_space<vmem>>, %arg18: memref<1x32xf32, #tpu.memory_space<vmem>>, %arg19: memref<96x32xbf16, #tpu.memory_space<vmem>>, %arg20: memref<1x32xf32, #tpu.memory_space<vmem>>, %arg21: memref<32x32xbf16, #tpu.memory_space<vmem>>, %arg22: memref<1x32xf32, #tpu.memory_space<vmem>>, %arg23: memref<96x32xbf16, #tpu.memory_space<vmem>>, %arg24: memref<1x32xf32, #tpu.memory_space<vmem>>, %arg25: memref<96x32xbf16, #tpu.memory_space<vmem>>, %arg26: memref<1x32xf32, #tpu.memory_space<vmem>>, %arg27: memref<96x32xbf16, #tpu.memory_space<vmem>>, %arg28: memref<1x32xf32, #tpu.memory_space<vmem>>, %arg29: memref<32x32xbf16, #tpu.memory_space<vmem>>, %arg30: memref<1x32xf32, #tpu.memory_space<vmem>>, %arg31: memref<96x32xbf16, #tpu.memory_space<vmem>>, %arg32: memref<1x32xf32, #tpu.memory_space<vmem>>, %arg33: memref<32x32xbf16, #tpu.memory_space<vmem>>, %arg34: memref<1x32xf32, #tpu.memory_space<vmem>>, %arg35: memref<96x32xbf16, #tpu.memory_space<vmem>>, %arg36: memref<1x32xf32, #tpu.memory_space<vmem>>, %arg37: memref<96x32xbf16, #tpu.memory_space<vmem>>, %arg38: memref<1x32xf32, #tpu.memory_space<vmem>>, %arg39: memref<32x32xbf16, #tpu.memory_space<vmem>>, %arg40: memref<1x32xf32, #tpu.memory_space<vmem>>, %arg41: memref<96x32xbf16, #tpu.memory_space<vmem>>, %arg42: memref<1x32xf32, #tpu.memory_space<vmem>>, %arg43: memref<32x32xbf16, #tpu.memory_space<vmem>>, %arg44: memref<1x32xf32, #tpu.memory_space<vmem>>, %arg45: memref<96x32xbf16, #tpu.memory_space<vmem>>, %arg46: memref<1x32xf32, #tpu.memory_space<vmem>>, %arg47: memref<96x32xbf16, #tpu.memory_space<vmem>>, %arg48: memref<1x32xf32, #tpu.memory_space<vmem>>, %arg49: memref<96x16xbf16, #tpu.memory_space<vmem>>, %arg50: memref<1x16xf32, #tpu.memory_space<vmem>>, %arg51: memref<64x32xf32, #tpu.memory_space<vmem>>, %arg52: memref<2x32x16xf32, #tpu.memory_space<vmem>>, %arg53: memref<16x1xi32, #tpu.memory_space<vmem>>, %arg54: memref<1x1xf32, #tpu.memory_space<vmem>>, %arg55: memref<1x1xf32, #tpu.memory_space<vmem>>, %arg56: memref<2x8x32xf32, #tpu.memory_space<vmem>>, %arg57: memref<112x32xf32, #tpu.memory_space<vmem>>, %arg58: memref<112x32xf32, #tpu.memory_space<vmem>>, %arg59: memref<112x32xf32, #tpu.memory_space<vmem>>) attributes {dimension_semantics = [], scalar_prefetch = 0 : i64, scratch_operands = 3 : i64, tpu.core_type = #tpu.core_type<tc>} {
    %cst = arith.constant 0.000000e+00 : f32
    %0 = vector.broadcast %cst : f32 to vector<8x32xf32>
    %cst_0 = arith.constant 0.000000e+00 : f32
    %1 = vector.broadcast %cst_0 : f32 to vector<16x32xf32>
    %c0 = arith.constant 0 : index
    %c0_1 = arith.constant 0 : index
    %2 = vector.load %arg57[%c0, %c0_1] : memref<112x32xf32, #tpu.memory_space<vmem>>, vector<8x32xf32>
    tpu.vector_store %arg57[%c0, %c0_1], %0 {strides = array<i32>} : memref<112x32xf32, #tpu.memory_space<vmem>>, vector<8x32xf32>,
    %c48 = arith.constant 48 : index
    %c0_2 = arith.constant 0 : index
    %3 = vector.load %arg57[%c48, %c0_2] : memref<112x32xf32, #tpu.memory_space<vmem>>, vector<8x32xf32>
    tpu.vector_store %arg57[%c48, %c0_2], %0 {strides = array<i32>} : memref<112x32xf32, #tpu.memory_space<vmem>>, vector<8x32xf32>,
    %c96 = arith.constant 96 : index
    %c0_3 = arith.constant 0 : index
    %4 = vector.load %arg57[%c96, %c0_3] : memref<112x32xf32, #tpu.memory_space<vmem>>, vector<16x32xf32>
    tpu.vector_store %arg57[%c96, %c0_3], %1 {strides = array<i32>} : memref<112x32xf32, #tpu.memory_space<vmem>>, vector<16x32xf32>,
    %c0_4 = arith.constant 0 : index
    %c0_5 = arith.constant 0 : index
    %5 = vector.load %arg58[%c0_4, %c0_5] : memref<112x32xf32, #tpu.memory_space<vmem>>, vector<8x32xf32>
    tpu.vector_store %arg58[%c0_4, %c0_5], %0 {strides = array<i32>} : memref<112x32xf32, #tpu.memory_space<vmem>>, vector<8x32xf32>,
    %c48_6 = arith.constant 48 : index
    %c0_7 = arith.constant 0 : index
    %6 = vector.load %arg58[%c48_6, %c0_7] : memref<112x32xf32, #tpu.memory_space<vmem>>, vector<8x32xf32>
    tpu.vector_store %arg58[%c48_6, %c0_7], %0 {strides = array<i32>} : memref<112x32xf32, #tpu.memory_space<vmem>>, vector<8x32xf32>,
    %c96_8 = arith.constant 96 : index
    %c0_9 = arith.constant 0 : index
    %7 = vector.load %arg58[%c96_8, %c0_9] : memref<112x32xf32, #tpu.memory_space<vmem>>, vector<16x32xf32>
    tpu.vector_store %arg58[%c96_8, %c0_9], %1 {strides = array<i32>} : memref<112x32xf32, #tpu.memory_space<vmem>>, vector<16x32xf32>,
    %c0_10 = arith.constant 0 : index
    %c0_11 = arith.constant 0 : index
    %8 = vector.load %arg59[%c0_10, %c0_11] : memref<112x32xf32, #tpu.memory_space<vmem>>, vector<8x32xf32>
    tpu.vector_store %arg59[%c0_10, %c0_11], %0 {strides = array<i32>} : memref<112x32xf32, #tpu.memory_space<vmem>>, vector<8x32xf32>,
    %c48_12 = arith.constant 48 : index
    %c0_13 = arith.constant 0 : index
    %9 = vector.load %arg59[%c48_12, %c0_13] : memref<112x32xf32, #tpu.memory_space<vmem>>, vector<8x32xf32>
    tpu.vector_store %arg59[%c48_12, %c0_13], %0 {strides = array<i32>} : memref<112x32xf32, #tpu.memory_space<vmem>>, vector<8x32xf32>,
    %c96_14 = arith.constant 96 : index
    %c0_15 = arith.constant 0 : index
    %10 = vector.load %arg59[%c96_14, %c0_15] : memref<112x32xf32, #tpu.memory_space<vmem>>, vector<16x32xf32>
    tpu.vector_store %arg59[%c96_14, %c0_15], %1 {strides = array<i32>} : memref<112x32xf32, #tpu.memory_space<vmem>>, vector<16x32xf32>,
    %cst_16 = arith.constant 0.000000e+00 : f32
    %11 = vector.broadcast %cst_16 : f32 to vector<8x16xf32>
    %c0_17 = arith.constant 0 : index
    %c0_18 = arith.constant 0 : index
    %c0_19 = arith.constant 0 : index
    %12 = vector.load %arg0[%c0_17, %c0_18, %c0_19] : memref<2x32x16xf32, #tpu.memory_space<vmem>>, vector<1x32x16xf32>
    %13 = vector.shape_cast %12 : vector<1x32x16xf32> to vector<32x16xf32>
    %c8 = arith.constant 8 : index
    %c0_20 = arith.constant 0 : index
    %14 = vector.load %arg57[%c8, %c0_20] : memref<112x32xf32, #tpu.memory_space<vmem>>, vector<32x16xf32>
    tpu.vector_store %arg57[%c8, %c0_20], %13 {strides = array<i32>} : memref<112x32xf32, #tpu.memory_space<vmem>>, vector<32x16xf32>,
    %c40 = arith.constant 40 : index
    %c0_21 = arith.constant 0 : index
    %15 = vector.load %arg57[%c40, %c0_21] : memref<112x32xf32, #tpu.memory_space<vmem>>, vector<8x16xf32>
    tpu.vector_store %arg57[%c40, %c0_21], %11 {strides = array<i32>} : memref<112x32xf32, #tpu.memory_space<vmem>>, vector<8x16xf32>,
    %c1 = arith.constant 1 : index
    %c0_22 = arith.constant 0 : index
    %c0_23 = arith.constant 0 : index
    %16 = vector.load %arg0[%c1, %c0_22, %c0_23] : memref<2x32x16xf32, #tpu.memory_space<vmem>>, vector<1x32x16xf32>
    %17 = vector.shape_cast %16 : vector<1x32x16xf32> to vector<32x16xf32>
    %c56 = arith.constant 56 : index
    %c0_24 = arith.constant 0 : index
    %18 = vector.load %arg57[%c56, %c0_24] : memref<112x32xf32, #tpu.memory_space<vmem>>, vector<32x16xf32>
    tpu.vector_store %arg57[%c56, %c0_24], %17 {strides = array<i32>} : memref<112x32xf32, #tpu.memory_space<vmem>>, vector<32x16xf32>,
    %c88 = arith.constant 88 : index
    %c0_25 = arith.constant 0 : index
    %19 = vector.load %arg57[%c88, %c0_25] : memref<112x32xf32, #tpu.memory_space<vmem>>, vector<8x16xf32>
    tpu.vector_store %arg57[%c88, %c0_25], %11 {strides = array<i32>} : memref<112x32xf32, #tpu.memory_space<vmem>>, vector<8x16xf32>,
    %c0_26 = arith.constant 0 : index
    %c0_27 = arith.constant 0 : index
    %20 = vector.load %arg1[%c0_26, %c0_27] : memref<48x32xbf16, #tpu.memory_space<vmem>>, vector<48x32xbf16>
    %c0_28 = arith.constant 0 : index
    %c0_29 = arith.constant 0 : index
    %21 = vector.load %arg2[%c0_28, %c0_29] : memref<1x32xf32, #tpu.memory_space<vmem>>, vector<1x32xf32>
    %c7 = arith.constant 7 : index
    %c0_30 = arith.constant 0 : index
    %22 = vector.load %arg57[%c7, %c0_30] : memref<112x32xf32, #tpu.memory_space<vmem>>, vector<96x16xf32>
    %c8_31 = arith.constant 8 : index
    %c0_32 = arith.constant 0 : index
    %23 = vector.load %arg57[%c8_31, %c0_32] : memref<112x32xf32, #tpu.memory_space<vmem>>, vector<96x16xf32>
    %c9 = arith.constant 9 : index
    %c0_33 = arith.constant 0 : index
    %24 = vector.load %arg57[%c9, %c0_33] : memref<112x32xf32, #tpu.memory_space<vmem>>, vector<96x16xf32>
    %25 = tpu.concatenate %22, %23, %24 in 1 : vector<96x16xf32>, vector<96x16xf32>, vector<96x16xf32> -> vector<96x48xf32>
    %26 = arith.truncf %25 : vector<96x48xf32> to vector<96x48xbf16>
    %cst_34 = arith.constant dense<0.000000e+00> : vector<96x32xf32>
    %27 = tpu.matmul %26, %20, %cst_34 {dimension_numbers = #tpu.dot_dimension_numbers<[1], [0], [0], [1], [0, 0, 1, 1], [], []>} : vector<96x48xbf16>, vector<48x32xbf16>, vector<96x32xf32> -> vector<96x32xf32>
    %28 = vector.broadcast %21 : vector<1x32xf32> to vector<96x32xf32>
    %29 = arith.addf %27, %28 : vector<96x32xf32>
    %cst_35 = arith.constant 0.000000e+00 : f32
    %30 = vector.broadcast %cst_35 : f32 to vector<96x32xf32>
    %31 = arith.maximumf %29, %30 : vector<96x32xf32>
    %cst_36 = arith.constant 0.000000e+00 : f32
    %32 = vector.broadcast %cst_36 : f32 to vector<8x32xf32>
    %33 = vector.extract_strided_slice %31 {offsets = [0, 0], sizes = [32, 32], strides = [1, 1]} : vector<96x32xf32> to vector<32x32xf32>
    %c8_37 = arith.constant 8 : index
    %c0_38 = arith.constant 0 : index
    %34 = vector.load %arg58[%c8_37, %c0_38] : memref<112x32xf32, #tpu.memory_space<vmem>>, vector<32x32xf32>
    tpu.vector_store %arg58[%c8_37, %c0_38], %33 {strides = array<i32>} : memref<112x32xf32, #tpu.memory_space<vmem>>, vector<32x32xf32>,
    %c40_39 = arith.constant 40 : index
    %c0_40 = arith.constant 0 : index
    %35 = vector.load %arg58[%c40_39, %c0_40] : memref<112x32xf32, #tpu.memory_space<vmem>>, vector<8x32xf32>
    tpu.vector_store %arg58[%c40_39, %c0_40], %32 {strides = array<i32>} : memref<112x32xf32, #tpu.memory_space<vmem>>, vector<8x32xf32>,
    %36 = vector.extract_strided_slice %31 {offsets = [48, 0], sizes = [32, 32], strides = [1, 1]} : vector<96x32xf32> to vector<32x32xf32>
    %c56_41 = arith.constant 56 : index
    %c0_42 = arith.constant 0 : index
    %37 = vector.load %arg58[%c56_41, %c0_42] : memref<112x32xf32, #tpu.memory_space<vmem>>, vector<32x32xf32>
    tpu.vector_store %arg58[%c56_41, %c0_42], %36 {strides = array<i32>} : memref<112x32xf32, #tpu.memory_space<vmem>>, vector<32x32xf32>,
    %c88_43 = arith.constant 88 : index
    %c0_44 = arith.constant 0 : index
    %38 = vector.load %arg58[%c88_43, %c0_44] : memref<112x32xf32, #tpu.memory_space<vmem>>, vector<8x32xf32>
    tpu.vector_store %arg58[%c88_43, %c0_44], %32 {strides = array<i32>} : memref<112x32xf32, #tpu.memory_space<vmem>>, vector<8x32xf32>,
    %c0_45 = arith.constant 0 : index
    %c0_46 = arith.constant 0 : index
    %39 = vector.load %arg3[%c0_45, %c0_46] : memref<128x32xbf16, #tpu.memory_space<vmem>>, vector<128x32xbf16>
    %c0_47 = arith.constant 0 : index
    %c0_48 = arith.constant 0 : index
    %40 = vector.load %arg4[%c0_47, %c0_48] : memref<1x32xf32, #tpu.memory_space<vmem>>, vector<1x32xf32>
    %c7_49 = arith.constant 7 : index
    %c0_50 = arith.constant 0 : index
    %41 = tpu.strided_load %arg58[%c7_49, %c0_50] {strides = array<i32: 2, 1>} : memref<112x32xf32, #tpu.memory_space<vmem>>, vector<48x32xf32>
    %c8_51 = arith.constant 8 : index
    %c0_52 = arith.constant 0 : index
    %42 = tpu.strided_load %arg58[%c8_51, %c0_52] {strides = array<i32: 2, 1>} : memref<112x32xf32, #tpu.memory_space<vmem>>, vector<48x32xf32>
    %c9_53 = arith.constant 9 : index
    %c0_54 = arith.constant 0 : index
    %43 = tpu.strided_load %arg58[%c9_53, %c0_54] {strides = array<i32: 2, 1>} : memref<112x32xf32, #tpu.memory_space<vmem>>, vector<48x32xf32>
    %c10 = arith.constant 10 : index
    %c0_55 = arith.constant 0 : index
    %44 = tpu.strided_load %arg58[%c10, %c0_55] {strides = array<i32: 2, 1>} : memref<112x32xf32, #tpu.memory_space<vmem>>, vector<48x32xf32>
    %45 = tpu.concatenate %41, %42, %43, %44 in 1 : vector<48x32xf32>, vector<48x32xf32>, vector<48x32xf32>, vector<48x32xf32> -> vector<48x128xf32>
    %46 = arith.truncf %45 : vector<48x128xf32> to vector<48x128xbf16>
    %cst_56 = arith.constant dense<0.000000e+00> : vector<48x32xf32>
    %47 = tpu.matmul %46, %39, %cst_56 {dimension_numbers = #tpu.dot_dimension_numbers<[1], [0], [0], [1], [0, 0, 1, 1], [], []>} : vector<48x128xbf16>, vector<128x32xbf16>, vector<48x32xf32> -> vector<48x32xf32>
    %48 = vector.broadcast %40 : vector<1x32xf32> to vector<48x32xf32>
    %49 = arith.addf %47, %48 : vector<48x32xf32>
    %cst_57 = arith.constant 0.000000e+00 : f32
    %50 = vector.broadcast %cst_57 : f32 to vector<8x32xf32>
    %51 = vector.extract_strided_slice %49 {offsets = [0, 0], sizes = [16, 32], strides = [1, 1]} : vector<48x32xf32> to vector<16x32xf32>
    %c8_58 = arith.constant 8 : index
    %c0_59 = arith.constant 0 : index
    %52 = vector.load %arg59[%c8_58, %c0_59] : memref<112x32xf32, #tpu.memory_space<vmem>>, vector<16x32xf32>
    tpu.vector_store %arg59[%c8_58, %c0_59], %51 {strides = array<i32>} : memref<112x32xf32, #tpu.memory_space<vmem>>, vector<16x32xf32>,
    %c24 = arith.constant 24 : index
    %c0_60 = arith.constant 0 : index
    %53 = vector.load %arg59[%c24, %c0_60] : memref<112x32xf32, #tpu.memory_space<vmem>>, vector<8x32xf32>
    tpu.vector_store %arg59[%c24, %c0_60], %50 {strides = array<i32>} : memref<112x32xf32, #tpu.memory_space<vmem>>, vector<8x32xf32>,
    %54 = vector.extract_strided_slice %49 {offsets = [24, 0], sizes = [16, 32], strides = [1, 1]} : vector<48x32xf32> to vector<16x32xf32>
    %c56_61 = arith.constant 56 : index
    %c0_62 = arith.constant 0 : index
    %55 = vector.load %arg59[%c56_61, %c0_62] : memref<112x32xf32, #tpu.memory_space<vmem>>, vector<16x32xf32>
    tpu.vector_store %arg59[%c56_61, %c0_62], %54 {strides = array<i32>} : memref<112x32xf32, #tpu.memory_space<vmem>>, vector<16x32xf32>,
    %c72 = arith.constant 72 : index
    %c0_63 = arith.constant 0 : index
    %56 = vector.load %arg59[%c72, %c0_63] : memref<112x32xf32, #tpu.memory_space<vmem>>, vector<8x32xf32>
    tpu.vector_store %arg59[%c72, %c0_63], %50 {strides = array<i32>} : memref<112x32xf32, #tpu.memory_space<vmem>>, vector<8x32xf32>,
    %c0_64 = arith.constant 0 : index
    %c0_65 = arith.constant 0 : index
    %57 = vector.load %arg5[%c0_64, %c0_65] : memref<96x32xbf16, #tpu.memory_space<vmem>>, vector<96x32xbf16>
    %c0_66 = arith.constant 0 : index
    %c0_67 = arith.constant 0 : index
    %58 = vector.load %arg6[%c0_66, %c0_67] : memref<1x32xf32, #tpu.memory_space<vmem>>, vector<1x32xf32>
    %c5 = arith.constant 5 : index
    %c0_68 = arith.constant 0 : index
    %59 = vector.load %arg59[%c5, %c0_68] : memref<112x32xf32, #tpu.memory_space<vmem>>, vector<96x32xf32>
    %c8_69 = arith.constant 8 : index
    %c0_70 = arith.constant 0 : index
    %60 = vector.load %arg59[%c8_69, %c0_70] : memref<112x32xf32, #tpu.memory_space<vmem>>, vector<96x32xf32>
    %c11 = arith.constant 11 : index
    %c0_71 = arith.constant 0 : index
    %61 = vector.load %arg59[%c11, %c0_71] : memref<112x32xf32, #tpu.memory_space<vmem>>, vector<96x32xf32>
    %62 = tpu.concatenate %59, %60, %61 in 1 : vector<96x32xf32>, vector<96x32xf32>, vector<96x32xf32> -> vector<96x96xf32>
    %cst_72 = arith.constant 0.000000e+00 : f32
    %63 = vector.broadcast %cst_72 : f32 to vector<96x96xf32>
    %64 = arith.maximumf %62, %63 : vector<96x96xf32>
    %65 = arith.truncf %64 : vector<96x96xf32> to vector<96x96xbf16>
    %cst_73 = arith.constant dense<0.000000e+00> : vector<96x32xf32>
    %66 = tpu.matmul %65, %57, %cst_73 {dimension_numbers = #tpu.dot_dimension_numbers<[1], [0], [0], [1], [0, 0, 1, 1], [], []>} : vector<96x96xbf16>, vector<96x32xbf16>, vector<96x32xf32> -> vector<96x32xf32>
    %67 = vector.broadcast %58 : vector<1x32xf32> to vector<96x32xf32>
    %68 = arith.addf %66, %67 : vector<96x32xf32>
    %cst_74 = arith.constant 0.000000e+00 : f32
    %69 = vector.broadcast %cst_74 : f32 to vector<96x32xf32>
    %70 = arith.maximumf %68, %69 : vector<96x32xf32>
    %cst_75 = arith.constant 0.000000e+00 : f32
    %71 = vector.broadcast %cst_75 : f32 to vector<8x32xf32>
    %72 = vector.extract_strided_slice %70 {offsets = [0, 0], sizes = [16, 32], strides = [1, 1]} : vector<96x32xf32> to vector<16x32xf32>
    %c8_76 = arith.constant 8 : index
    %c0_77 = arith.constant 0 : index
    %73 = vector.load %arg57[%c8_76, %c0_77] : memref<112x32xf32, #tpu.memory_space<vmem>>, vector<16x32xf32>
    tpu.vector_store %arg57[%c8_76, %c0_77], %72 {strides = array<i32>} : memref<112x32xf32, #tpu.memory_space<vmem>>, vector<16x32xf32>,
    %c24_78 = arith.constant 24 : index
    %c0_79 = arith.constant 0 : index
    %74 = vector.load %arg57[%c24_78, %c0_79] : memref<112x32xf32, #tpu.memory_space<vmem>>, vector<8x32xf32>
    tpu.vector_store %arg57[%c24_78, %c0_79], %71 {strides = array<i32>} : memref<112x32xf32, #tpu.memory_space<vmem>>, vector<8x32xf32>,
    %75 = vector.extract_strided_slice %70 {offsets = [48, 0], sizes = [16, 32], strides = [1, 1]} : vector<96x32xf32> to vector<16x32xf32>
    %c56_80 = arith.constant 56 : index
    %c0_81 = arith.constant 0 : index
    %76 = vector.load %arg57[%c56_80, %c0_81] : memref<112x32xf32, #tpu.memory_space<vmem>>, vector<16x32xf32>
    tpu.vector_store %arg57[%c56_80, %c0_81], %75 {strides = array<i32>} : memref<112x32xf32, #tpu.memory_space<vmem>>, vector<16x32xf32>,
    %c72_82 = arith.constant 72 : index
    %c0_83 = arith.constant 0 : index
    %77 = vector.load %arg57[%c72_82, %c0_83] : memref<112x32xf32, #tpu.memory_space<vmem>>, vector<8x32xf32>
    tpu.vector_store %arg57[%c72_82, %c0_83], %71 {strides = array<i32>} : memref<112x32xf32, #tpu.memory_space<vmem>>, vector<8x32xf32>,
    %c0_84 = arith.constant 0 : index
    %c0_85 = arith.constant 0 : index
    %78 = vector.load %arg7[%c0_84, %c0_85] : memref<32x32xbf16, #tpu.memory_space<vmem>>, vector<32x32xbf16>
    %c0_86 = arith.constant 0 : index
    %c0_87 = arith.constant 0 : index
    %79 = vector.load %arg8[%c0_86, %c0_87] : memref<1x32xf32, #tpu.memory_space<vmem>>, vector<1x32xf32>
    %c8_88 = arith.constant 8 : index
    %c0_89 = arith.constant 0 : index
    %80 = vector.load %arg57[%c8_88, %c0_89] : memref<112x32xf32, #tpu.memory_space<vmem>>, vector<96x32xf32>
    %81 = arith.truncf %80 : vector<96x32xf32> to vector<96x32xbf16>
    %cst_90 = arith.constant dense<0.000000e+00> : vector<96x32xf32>
    %82 = tpu.matmul %81, %78, %cst_90 {dimension_numbers = #tpu.dot_dimension_numbers<[1], [0], [0], [1], [0, 0, 1, 1], [], []>} : vector<96x32xbf16>, vector<32x32xbf16>, vector<96x32xf32> -> vector<96x32xf32>
    %83 = vector.broadcast %79 : vector<1x32xf32> to vector<96x32xf32>
    %84 = arith.addf %82, %83 : vector<96x32xf32>
    %c8_91 = arith.constant 8 : index
    %c0_92 = arith.constant 0 : index
    %85 = vector.load %arg59[%c8_91, %c0_92] : memref<112x32xf32, #tpu.memory_space<vmem>>, vector<96x32xf32>
    %86 = arith.addf %84, %85 : vector<96x32xf32>
    %cst_93 = arith.constant 0.000000e+00 : f32
    %87 = vector.broadcast %cst_93 : f32 to vector<8x32xf32>
    %88 = vector.extract_strided_slice %86 {offsets = [0, 0], sizes = [16, 32], strides = [1, 1]} : vector<96x32xf32> to vector<16x32xf32>
    %c8_94 = arith.constant 8 : index
    %c0_95 = arith.constant 0 : index
    %89 = vector.load %arg58[%c8_94, %c0_95] : memref<112x32xf32, #tpu.memory_space<vmem>>, vector<16x32xf32>
    tpu.vector_store %arg58[%c8_94, %c0_95], %88 {strides = array<i32>} : memref<112x32xf32, #tpu.memory_space<vmem>>, vector<16x32xf32>,
    %c24_96 = arith.constant 24 : index
    %c0_97 = arith.constant 0 : index
    %90 = vector.load %arg58[%c24_96, %c0_97] : memref<112x32xf32, #tpu.memory_space<vmem>>, vector<8x32xf32>
    tpu.vector_store %arg58[%c24_96, %c0_97], %87 {strides = array<i32>} : memref<112x32xf32, #tpu.memory_space<vmem>>, vector<8x32xf32>,
    %91 = vector.extract_strided_slice %86 {offsets = [48, 0], sizes = [16, 32], strides = [1, 1]} : vector<96x32xf32> to vector<16x32xf32>
    %c56_98 = arith.constant 56 : index
    %c0_99 = arith.constant 0 : index
    %92 = vector.load %arg58[%c56_98, %c0_99] : memref<112x32xf32, #tpu.memory_space<vmem>>, vector<16x32xf32>
    tpu.vector_store %arg58[%c56_98, %c0_99], %91 {strides = array<i32>} : memref<112x32xf32, #tpu.memory_space<vmem>>, vector<16x32xf32>,
    %c72_100 = arith.constant 72 : index
    %c0_101 = arith.constant 0 : index
    %93 = vector.load %arg58[%c72_100, %c0_101] : memref<112x32xf32, #tpu.memory_space<vmem>>, vector<8x32xf32>
    tpu.vector_store %arg58[%c72_100, %c0_101], %87 {strides = array<i32>} : memref<112x32xf32, #tpu.memory_space<vmem>>, vector<8x32xf32>,
    %c0_102 = arith.constant 0 : index
    %c0_103 = arith.constant 0 : index
    %94 = vector.load %arg9[%c0_102, %c0_103] : memref<96x32xbf16, #tpu.memory_space<vmem>>, vector<96x32xbf16>
    %c0_104 = arith.constant 0 : index
    %c0_105 = arith.constant 0 : index
    %95 = vector.load %arg10[%c0_104, %c0_105] : memref<1x32xf32, #tpu.memory_space<vmem>>, vector<1x32xf32>
    %c7_106 = arith.constant 7 : index
    %c0_107 = arith.constant 0 : index
    %96 = vector.load %arg58[%c7_106, %c0_107] : memref<112x32xf32, #tpu.memory_space<vmem>>, vector<96x32xf32>
    %c8_108 = arith.constant 8 : index
    %c0_109 = arith.constant 0 : index
    %97 = vector.load %arg58[%c8_108, %c0_109] : memref<112x32xf32, #tpu.memory_space<vmem>>, vector<96x32xf32>
    %c9_110 = arith.constant 9 : index
    %c0_111 = arith.constant 0 : index
    %98 = vector.load %arg58[%c9_110, %c0_111] : memref<112x32xf32, #tpu.memory_space<vmem>>, vector<96x32xf32>
    %99 = tpu.concatenate %96, %97, %98 in 1 : vector<96x32xf32>, vector<96x32xf32>, vector<96x32xf32> -> vector<96x96xf32>
    %cst_112 = arith.constant 0.000000e+00 : f32
    %100 = vector.broadcast %cst_112 : f32 to vector<96x96xf32>
    %101 = arith.maximumf %99, %100 : vector<96x96xf32>
    %102 = arith.truncf %101 : vector<96x96xf32> to vector<96x96xbf16>
    %cst_113 = arith.constant dense<0.000000e+00> : vector<96x32xf32>
    %103 = tpu.matmul %102, %94, %cst_113 {dimension_numbers = #tpu.dot_dimension_numbers<[1], [0], [0], [1], [0, 0, 1, 1], [], []>} : vector<96x96xbf16>, vector<96x32xbf16>, vector<96x32xf32> -> vector<96x32xf32>
    %104 = vector.broadcast %95 : vector<1x32xf32> to vector<96x32xf32>
    %105 = arith.addf %103, %104 : vector<96x32xf32>
    %cst_114 = arith.constant 0.000000e+00 : f32
    %106 = vector.broadcast %cst_114 : f32 to vector<96x32xf32>
    %107 = arith.maximumf %105, %106 : vector<96x32xf32>
    %cst_115 = arith.constant 0.000000e+00 : f32
    %108 = vector.broadcast %cst_115 : f32 to vector<8x32xf32>
    %109 = vector.extract_strided_slice %107 {offsets = [0, 0], sizes = [16, 32], strides = [1, 1]} : vector<96x32xf32> to vector<16x32xf32>
    %c8_116 = arith.constant 8 : index
    %c0_117 = arith.constant 0 : index
    %110 = vector.load %arg59[%c8_116, %c0_117] : memref<112x32xf32, #tpu.memory_space<vmem>>, vector<16x32xf32>
    tpu.vector_store %arg59[%c8_116, %c0_117], %109 {strides = array<i32>} : memref<112x32xf32, #tpu.memory_space<vmem>>, vector<16x32xf32>,
    %c24_118 = arith.constant 24 : index
    %c0_119 = arith.constant 0 : index
    %111 = vector.load %arg59[%c24_118, %c0_119] : memref<112x32xf32, #tpu.memory_space<vmem>>, vector<8x32xf32>
    tpu.vector_store %arg59[%c24_118, %c0_119], %108 {strides = array<i32>} : memref<112x32xf32, #tpu.memory_space<vmem>>, vector<8x32xf32>,
    %112 = vector.extract_strided_slice %107 {offsets = [48, 0], sizes = [16, 32], strides = [1, 1]} : vector<96x32xf32> to vector<16x32xf32>
    %c56_120 = arith.constant 56 : index
    %c0_121 = arith.constant 0 : index
    %113 = vector.load %arg59[%c56_120, %c0_121] : memref<112x32xf32, #tpu.memory_space<vmem>>, vector<16x32xf32>
    tpu.vector_store %arg59[%c56_120, %c0_121], %112 {strides = array<i32>} : memref<112x32xf32, #tpu.memory_space<vmem>>, vector<16x32xf32>,
    %c72_122 = arith.constant 72 : index
    %c0_123 = arith.constant 0 : index
    %114 = vector.load %arg59[%c72_122, %c0_123] : memref<112x32xf32, #tpu.memory_space<vmem>>, vector<8x32xf32>
    tpu.vector_store %arg59[%c72_122, %c0_123], %108 {strides = array<i32>} : memref<112x32xf32, #tpu.memory_space<vmem>>, vector<8x32xf32>,
    %c0_124 = arith.constant 0 : index
    %c0_125 = arith.constant 0 : index
    %115 = vector.load %arg11[%c0_124, %c0_125] : memref<32x32xbf16, #tpu.memory_space<vmem>>, vector<32x32xbf16>
    %c0_126 = arith.constant 0 : index
    %c0_127 = arith.constant 0 : index
    %116 = vector.load %arg12[%c0_126, %c0_127] : memref<1x32xf32, #tpu.memory_space<vmem>>, vector<1x32xf32>
    %c8_128 = arith.constant 8 : index
    %c0_129 = arith.constant 0 : index
    %117 = vector.load %arg59[%c8_128, %c0_129] : memref<112x32xf32, #tpu.memory_space<vmem>>, vector<96x32xf32>
    %118 = arith.truncf %117 : vector<96x32xf32> to vector<96x32xbf16>
    %cst_130 = arith.constant dense<0.000000e+00> : vector<96x32xf32>
    %119 = tpu.matmul %118, %115, %cst_130 {dimension_numbers = #tpu.dot_dimension_numbers<[1], [0], [0], [1], [0, 0, 1, 1], [], []>} : vector<96x32xbf16>, vector<32x32xbf16>, vector<96x32xf32> -> vector<96x32xf32>
    %120 = vector.broadcast %116 : vector<1x32xf32> to vector<96x32xf32>
    %121 = arith.addf %119, %120 : vector<96x32xf32>
    %c8_131 = arith.constant 8 : index
    %c0_132 = arith.constant 0 : index
    %122 = vector.load %arg58[%c8_131, %c0_132] : memref<112x32xf32, #tpu.memory_space<vmem>>, vector<96x32xf32>
    %123 = arith.addf %121, %122 : vector<96x32xf32>
    %cst_133 = arith.constant 0.000000e+00 : f32
    %124 = vector.broadcast %cst_133 : f32 to vector<8x32xf32>
    %125 = vector.extract_strided_slice %123 {offsets = [0, 0], sizes = [16, 32], strides = [1, 1]} : vector<96x32xf32> to vector<16x32xf32>
    %c8_134 = arith.constant 8 : index
    %c0_135 = arith.constant 0 : index
    %126 = vector.load %arg57[%c8_134, %c0_135] : memref<112x32xf32, #tpu.memory_space<vmem>>, vector<16x32xf32>
    tpu.vector_store %arg57[%c8_134, %c0_135], %125 {strides = array<i32>} : memref<112x32xf32, #tpu.memory_space<vmem>>, vector<16x32xf32>,
    %c24_136 = arith.constant 24 : index
    %c0_137 = arith.constant 0 : index
    %127 = vector.load %arg57[%c24_136, %c0_137] : memref<112x32xf32, #tpu.memory_space<vmem>>, vector<8x32xf32>
    tpu.vector_store %arg57[%c24_136, %c0_137], %124 {strides = array<i32>} : memref<112x32xf32, #tpu.memory_space<vmem>>, vector<8x32xf32>,
    %128 = vector.extract_strided_slice %123 {offsets = [48, 0], sizes = [16, 32], strides = [1, 1]} : vector<96x32xf32> to vector<16x32xf32>
    %c56_138 = arith.constant 56 : index
    %c0_139 = arith.constant 0 : index
    %129 = vector.load %arg57[%c56_138, %c0_139] : memref<112x32xf32, #tpu.memory_space<vmem>>, vector<16x32xf32>
    tpu.vector_store %arg57[%c56_138, %c0_139], %128 {strides = array<i32>} : memref<112x32xf32, #tpu.memory_space<vmem>>, vector<16x32xf32>,
    %c72_140 = arith.constant 72 : index
    %c0_141 = arith.constant 0 : index
    %130 = vector.load %arg57[%c72_140, %c0_141] : memref<112x32xf32, #tpu.memory_space<vmem>>, vector<8x32xf32>
    tpu.vector_store %arg57[%c72_140, %c0_141], %124 {strides = array<i32>} : memref<112x32xf32, #tpu.memory_space<vmem>>, vector<8x32xf32>,
    %c0_142 = arith.constant 0 : index
    %c0_143 = arith.constant 0 : index
    %131 = vector.load %arg13[%c0_142, %c0_143] : memref<128x32xbf16, #tpu.memory_space<vmem>>, vector<128x32xbf16>
    %c0_144 = arith.constant 0 : index
    %c0_145 = arith.constant 0 : index
    %132 = vector.load %arg14[%c0_144, %c0_145] : memref<1x32xf32, #tpu.memory_space<vmem>>, vector<1x32xf32>
    %c7_146 = arith.constant 7 : index
    %c0_147 = arith.constant 0 : index
    %133 = tpu.strided_load %arg57[%c7_146, %c0_147] {strides = array<i32: 2, 1>} : memref<112x32xf32, #tpu.memory_space<vmem>>, vector<48x32xf32>
    %c8_148 = arith.constant 8 : index
    %c0_149 = arith.constant 0 : index
    %134 = tpu.strided_load %arg57[%c8_148, %c0_149] {strides = array<i32: 2, 1>} : memref<112x32xf32, #tpu.memory_space<vmem>>, vector<48x32xf32>
    %c9_150 = arith.constant 9 : index
    %c0_151 = arith.constant 0 : index
    %135 = tpu.strided_load %arg57[%c9_150, %c0_151] {strides = array<i32: 2, 1>} : memref<112x32xf32, #tpu.memory_space<vmem>>, vector<48x32xf32>
    %c10_152 = arith.constant 10 : index
    %c0_153 = arith.constant 0 : index
    %136 = tpu.strided_load %arg57[%c10_152, %c0_153] {strides = array<i32: 2, 1>} : memref<112x32xf32, #tpu.memory_space<vmem>>, vector<48x32xf32>
    %137 = tpu.concatenate %133, %134, %135, %136 in 1 : vector<48x32xf32>, vector<48x32xf32>, vector<48x32xf32>, vector<48x32xf32> -> vector<48x128xf32>
    %138 = arith.truncf %137 : vector<48x128xf32> to vector<48x128xbf16>
    %cst_154 = arith.constant dense<0.000000e+00> : vector<48x32xf32>
    %139 = tpu.matmul %138, %131, %cst_154 {dimension_numbers = #tpu.dot_dimension_numbers<[1], [0], [0], [1], [0, 0, 1, 1], [], []>} : vector<48x128xbf16>, vector<128x32xbf16>, vector<48x32xf32> -> vector<48x32xf32>
    %140 = vector.broadcast %132 : vector<1x32xf32> to vector<48x32xf32>
    %141 = arith.addf %139, %140 : vector<48x32xf32>
    %cst_155 = arith.constant 0.000000e+00 : f32
    %142 = vector.broadcast %cst_155 : f32 to vector<8x32xf32>
    %143 = vector.extract_strided_slice %141 {offsets = [0, 0], sizes = [8, 32], strides = [1, 1]} : vector<48x32xf32> to vector<8x32xf32>
    %c8_156 = arith.constant 8 : index
    %c0_157 = arith.constant 0 : index
    %144 = vector.load %arg58[%c8_156, %c0_157] : memref<112x32xf32, #tpu.memory_space<vmem>>, vector<8x32xf32>
    tpu.vector_store %arg58[%c8_156, %c0_157], %143 {strides = array<i32>} : memref<112x32xf32, #tpu.memory_space<vmem>>, vector<8x32xf32>,
    %c16 = arith.constant 16 : index
    %c0_158 = arith.constant 0 : index
    %145 = vector.load %arg58[%c16, %c0_158] : memref<112x32xf32, #tpu.memory_space<vmem>>, vector<8x32xf32>
    tpu.vector_store %arg58[%c16, %c0_158], %142 {strides = array<i32>} : memref<112x32xf32, #tpu.memory_space<vmem>>, vector<8x32xf32>,
    %146 = vector.extract_strided_slice %141 {offsets = [24, 0], sizes = [8, 32], strides = [1, 1]} : vector<48x32xf32> to vector<8x32xf32>
    %c56_159 = arith.constant 56 : index
    %c0_160 = arith.constant 0 : index
    %147 = vector.load %arg58[%c56_159, %c0_160] : memref<112x32xf32, #tpu.memory_space<vmem>>, vector<8x32xf32>
    tpu.vector_store %arg58[%c56_159, %c0_160], %146 {strides = array<i32>} : memref<112x32xf32, #tpu.memory_space<vmem>>, vector<8x32xf32>,
    %c64 = arith.constant 64 : index
    %c0_161 = arith.constant 0 : index
    %148 = vector.load %arg58[%c64, %c0_161] : memref<112x32xf32, #tpu.memory_space<vmem>>, vector<8x32xf32>
    tpu.vector_store %arg58[%c64, %c0_161], %142 {strides = array<i32>} : memref<112x32xf32, #tpu.memory_space<vmem>>, vector<8x32xf32>,
    %c0_162 = arith.constant 0 : index
    %c0_163 = arith.constant 0 : index
    %149 = vector.load %arg15[%c0_162, %c0_163] : memref<96x32xbf16, #tpu.memory_space<vmem>>, vector<96x32xbf16>
    %c0_164 = arith.constant 0 : index
    %c0_165 = arith.constant 0 : index
    %150 = vector.load %arg16[%c0_164, %c0_165] : memref<1x32xf32, #tpu.memory_space<vmem>>, vector<1x32xf32>
    %c5_166 = arith.constant 5 : index
    %c0_167 = arith.constant 0 : index
    %151 = vector.load %arg58[%c5_166, %c0_167] : memref<112x32xf32, #tpu.memory_space<vmem>>, vector<96x32xf32>
    %c8_168 = arith.constant 8 : index
    %c0_169 = arith.constant 0 : index
    %152 = vector.load %arg58[%c8_168, %c0_169] : memref<112x32xf32, #tpu.memory_space<vmem>>, vector<96x32xf32>
    %c11_170 = arith.constant 11 : index
    %c0_171 = arith.constant 0 : index
    %153 = vector.load %arg58[%c11_170, %c0_171] : memref<112x32xf32, #tpu.memory_space<vmem>>, vector<96x32xf32>
    %154 = tpu.concatenate %151, %152, %153 in 1 : vector<96x32xf32>, vector<96x32xf32>, vector<96x32xf32> -> vector<96x96xf32>
    %cst_172 = arith.constant 0.000000e+00 : f32
    %155 = vector.broadcast %cst_172 : f32 to vector<96x96xf32>
    %156 = arith.maximumf %154, %155 : vector<96x96xf32>
    %157 = arith.truncf %156 : vector<96x96xf32> to vector<96x96xbf16>
    %cst_173 = arith.constant dense<0.000000e+00> : vector<96x32xf32>
    %158 = tpu.matmul %157, %149, %cst_173 {dimension_numbers = #tpu.dot_dimension_numbers<[1], [0], [0], [1], [0, 0, 1, 1], [], []>} : vector<96x96xbf16>, vector<96x32xbf16>, vector<96x32xf32> -> vector<96x32xf32>
    %159 = vector.broadcast %150 : vector<1x32xf32> to vector<96x32xf32>
    %160 = arith.addf %158, %159 : vector<96x32xf32>
    %cst_174 = arith.constant 0.000000e+00 : f32
    %161 = vector.broadcast %cst_174 : f32 to vector<96x32xf32>
    %162 = arith.maximumf %160, %161 : vector<96x32xf32>
    %cst_175 = arith.constant 0.000000e+00 : f32
    %163 = vector.broadcast %cst_175 : f32 to vector<8x32xf32>
    %164 = vector.extract_strided_slice %162 {offsets = [0, 0], sizes = [8, 32], strides = [1, 1]} : vector<96x32xf32> to vector<8x32xf32>
    %c8_176 = arith.constant 8 : index
    %c0_177 = arith.constant 0 : index
    %165 = vector.load %arg59[%c8_176, %c0_177] : memref<112x32xf32, #tpu.memory_space<vmem>>, vector<8x32xf32>
    tpu.vector_store %arg59[%c8_176, %c0_177], %164 {strides = array<i32>} : memref<112x32xf32, #tpu.memory_space<vmem>>, vector<8x32xf32>,
    %c16_178 = arith.constant 16 : index
    %c0_179 = arith.constant 0 : index
    %166 = vector.load %arg59[%c16_178, %c0_179] : memref<112x32xf32, #tpu.memory_space<vmem>>, vector<8x32xf32>
    tpu.vector_store %arg59[%c16_178, %c0_179], %163 {strides = array<i32>} : memref<112x32xf32, #tpu.memory_space<vmem>>, vector<8x32xf32>,
    %167 = vector.extract_strided_slice %162 {offsets = [48, 0], sizes = [8, 32], strides = [1, 1]} : vector<96x32xf32> to vector<8x32xf32>
    %c56_180 = arith.constant 56 : index
    %c0_181 = arith.constant 0 : index
    %168 = vector.load %arg59[%c56_180, %c0_181] : memref<112x32xf32, #tpu.memory_space<vmem>>, vector<8x32xf32>
    tpu.vector_store %arg59[%c56_180, %c0_181], %167 {strides = array<i32>} : memref<112x32xf32, #tpu.memory_space<vmem>>, vector<8x32xf32>,
    %c64_182 = arith.constant 64 : index
    %c0_183 = arith.constant 0 : index
    %169 = vector.load %arg59[%c64_182, %c0_183] : memref<112x32xf32, #tpu.memory_space<vmem>>, vector<8x32xf32>
    tpu.vector_store %arg59[%c64_182, %c0_183], %163 {strides = array<i32>} : memref<112x32xf32, #tpu.memory_space<vmem>>, vector<8x32xf32>,
    %c0_184 = arith.constant 0 : index
    %c0_185 = arith.constant 0 : index
    %170 = vector.load %arg17[%c0_184, %c0_185] : memref<32x32xbf16, #tpu.memory_space<vmem>>, vector<32x32xbf16>
    %c0_186 = arith.constant 0 : index
    %c0_187 = arith.constant 0 : index
    %171 = vector.load %arg18[%c0_186, %c0_187] : memref<1x32xf32, #tpu.memory_space<vmem>>, vector<1x32xf32>
    %c8_188 = arith.constant 8 : index
    %c0_189 = arith.constant 0 : index
    %172 = vector.load %arg59[%c8_188, %c0_189] : memref<112x32xf32, #tpu.memory_space<vmem>>, vector<96x32xf32>
    %173 = arith.truncf %172 : vector<96x32xf32> to vector<96x32xbf16>
    %cst_190 = arith.constant dense<0.000000e+00> : vector<96x32xf32>
    %174 = tpu.matmul %173, %170, %cst_190 {dimension_numbers = #tpu.dot_dimension_numbers<[1], [0], [0], [1], [0, 0, 1, 1], [], []>} : vector<96x32xbf16>, vector<32x32xbf16>, vector<96x32xf32> -> vector<96x32xf32>
    %175 = vector.broadcast %171 : vector<1x32xf32> to vector<96x32xf32>
    %176 = arith.addf %174, %175 : vector<96x32xf32>
    %c8_191 = arith.constant 8 : index
    %c0_192 = arith.constant 0 : index
    %177 = vector.load %arg58[%c8_191, %c0_192] : memref<112x32xf32, #tpu.memory_space<vmem>>, vector<96x32xf32>
    %178 = arith.addf %176, %177 : vector<96x32xf32>
    %cst_193 = arith.constant 0.000000e+00 : f32
    %179 = vector.broadcast %cst_193 : f32 to vector<8x32xf32>
    %180 = vector.extract_strided_slice %178 {offsets = [0, 0], sizes = [8, 32], strides = [1, 1]} : vector<96x32xf32> to vector<8x32xf32>
    %c8_194 = arith.constant 8 : index
    %c0_195 = arith.constant 0 : index
    %181 = vector.load %arg57[%c8_194, %c0_195] : memref<112x32xf32, #tpu.memory_space<vmem>>, vector<8x32xf32>
    tpu.vector_store %arg57[%c8_194, %c0_195], %180 {strides = array<i32>} : memref<112x32xf32, #tpu.memory_space<vmem>>, vector<8x32xf32>,
    %c16_196 = arith.constant 16 : index
    %c0_197 = arith.constant 0 : index
    %182 = vector.load %arg57[%c16_196, %c0_197] : memref<112x32xf32, #tpu.memory_space<vmem>>, vector<8x32xf32>
    tpu.vector_store %arg57[%c16_196, %c0_197], %179 {strides = array<i32>} : memref<112x32xf32, #tpu.memory_space<vmem>>, vector<8x32xf32>,
    %183 = vector.extract_strided_slice %178 {offsets = [48, 0], sizes = [8, 32], strides = [1, 1]} : vector<96x32xf32> to vector<8x32xf32>
    %c56_198 = arith.constant 56 : index
    %c0_199 = arith.constant 0 : index
    %184 = vector.load %arg57[%c56_198, %c0_199] : memref<112x32xf32, #tpu.memory_space<vmem>>, vector<8x32xf32>
    tpu.vector_store %arg57[%c56_198, %c0_199], %183 {strides = array<i32>} : memref<112x32xf32, #tpu.memory_space<vmem>>, vector<8x32xf32>,
    %c64_200 = arith.constant 64 : index
    %c0_201 = arith.constant 0 : index
    %185 = vector.load %arg57[%c64_200, %c0_201] : memref<112x32xf32, #tpu.memory_space<vmem>>, vector<8x32xf32>
    tpu.vector_store %arg57[%c64_200, %c0_201], %179 {strides = array<i32>} : memref<112x32xf32, #tpu.memory_space<vmem>>, vector<8x32xf32>,
    %c0_202 = arith.constant 0 : index
    %c0_203 = arith.constant 0 : index
    %186 = vector.load %arg19[%c0_202, %c0_203] : memref<96x32xbf16, #tpu.memory_space<vmem>>, vector<96x32xbf16>
    %c0_204 = arith.constant 0 : index
    %c0_205 = arith.constant 0 : index
    %187 = vector.load %arg20[%c0_204, %c0_205] : memref<1x32xf32, #tpu.memory_space<vmem>>, vector<1x32xf32>
    %c7_206 = arith.constant 7 : index
    %c0_207 = arith.constant 0 : index
    %188 = vector.load %arg57[%c7_206, %c0_207] : memref<112x32xf32, #tpu.memory_space<vmem>>, vector<96x32xf32>
    %c8_208 = arith.constant 8 : index
    %c0_209 = arith.constant 0 : index
    %189 = vector.load %arg57[%c8_208, %c0_209] : memref<112x32xf32, #tpu.memory_space<vmem>>, vector<96x32xf32>
    %c9_210 = arith.constant 9 : index
    %c0_211 = arith.constant 0 : index
    %190 = vector.load %arg57[%c9_210, %c0_211] : memref<112x32xf32, #tpu.memory_space<vmem>>, vector<96x32xf32>
    %191 = tpu.concatenate %188, %189, %190 in 1 : vector<96x32xf32>, vector<96x32xf32>, vector<96x32xf32> -> vector<96x96xf32>
    %cst_212 = arith.constant 0.000000e+00 : f32
    %192 = vector.broadcast %cst_212 : f32 to vector<96x96xf32>
    %193 = arith.maximumf %191, %192 : vector<96x96xf32>
    %194 = arith.truncf %193 : vector<96x96xf32> to vector<96x96xbf16>
    %cst_213 = arith.constant dense<0.000000e+00> : vector<96x32xf32>
    %195 = tpu.matmul %194, %186, %cst_213 {dimension_numbers = #tpu.dot_dimension_numbers<[1], [0], [0], [1], [0, 0, 1, 1], [], []>} : vector<96x96xbf16>, vector<96x32xbf16>, vector<96x32xf32> -> vector<96x32xf32>
    %196 = vector.broadcast %187 : vector<1x32xf32> to vector<96x32xf32>
    %197 = arith.addf %195, %196 : vector<96x32xf32>
    %cst_214 = arith.constant 0.000000e+00 : f32
    %198 = vector.broadcast %cst_214 : f32 to vector<96x32xf32>
    %199 = arith.maximumf %197, %198 : vector<96x32xf32>
    %cst_215 = arith.constant 0.000000e+00 : f32
    %200 = vector.broadcast %cst_215 : f32 to vector<8x32xf32>
    %201 = vector.extract_strided_slice %199 {offsets = [0, 0], sizes = [8, 32], strides = [1, 1]} : vector<96x32xf32> to vector<8x32xf32>
    %c8_216 = arith.constant 8 : index
    %c0_217 = arith.constant 0 : index
    %202 = vector.load %arg58[%c8_216, %c0_217] : memref<112x32xf32, #tpu.memory_space<vmem>>, vector<8x32xf32>
    tpu.vector_store %arg58[%c8_216, %c0_217], %201 {strides = array<i32>} : memref<112x32xf32, #tpu.memory_space<vmem>>, vector<8x32xf32>,
    %c16_218 = arith.constant 16 : index
    %c0_219 = arith.constant 0 : index
    %203 = vector.load %arg58[%c16_218, %c0_219] : memref<112x32xf32, #tpu.memory_space<vmem>>, vector<8x32xf32>
    tpu.vector_store %arg58[%c16_218, %c0_219], %200 {strides = array<i32>} : memref<112x32xf32, #tpu.memory_space<vmem>>, vector<8x32xf32>,
    %204 = vector.extract_strided_slice %199 {offsets = [48, 0], sizes = [8, 32], strides = [1, 1]} : vector<96x32xf32> to vector<8x32xf32>
    %c56_220 = arith.constant 56 : index
    %c0_221 = arith.constant 0 : index
    %205 = vector.load %arg58[%c56_220, %c0_221] : memref<112x32xf32, #tpu.memory_space<vmem>>, vector<8x32xf32>
    tpu.vector_store %arg58[%c56_220, %c0_221], %204 {strides = array<i32>} : memref<112x32xf32, #tpu.memory_space<vmem>>, vector<8x32xf32>,
    %c64_222 = arith.constant 64 : index
    %c0_223 = arith.constant 0 : index
    %206 = vector.load %arg58[%c64_222, %c0_223] : memref<112x32xf32, #tpu.memory_space<vmem>>, vector<8x32xf32>
    tpu.vector_store %arg58[%c64_222, %c0_223], %200 {strides = array<i32>} : memref<112x32xf32, #tpu.memory_space<vmem>>, vector<8x32xf32>,
    %c0_224 = arith.constant 0 : index
    %c0_225 = arith.constant 0 : index
    %207 = vector.load %arg21[%c0_224, %c0_225] : memref<32x32xbf16, #tpu.memory_space<vmem>>, vector<32x32xbf16>
    %c0_226 = arith.constant 0 : index
    %c0_227 = arith.constant 0 : index
    %208 = vector.load %arg22[%c0_226, %c0_227] : memref<1x32xf32, #tpu.memory_space<vmem>>, vector<1x32xf32>
    %c8_228 = arith.constant 8 : index
    %c0_229 = arith.constant 0 : index
    %209 = vector.load %arg58[%c8_228, %c0_229] : memref<112x32xf32, #tpu.memory_space<vmem>>, vector<96x32xf32>
    %210 = arith.truncf %209 : vector<96x32xf32> to vector<96x32xbf16>
    %cst_230 = arith.constant dense<0.000000e+00> : vector<96x32xf32>
    %211 = tpu.matmul %210, %207, %cst_230 {dimension_numbers = #tpu.dot_dimension_numbers<[1], [0], [0], [1], [0, 0, 1, 1], [], []>} : vector<96x32xbf16>, vector<32x32xbf16>, vector<96x32xf32> -> vector<96x32xf32>
    %212 = vector.broadcast %208 : vector<1x32xf32> to vector<96x32xf32>
    %213 = arith.addf %211, %212 : vector<96x32xf32>
    %c8_231 = arith.constant 8 : index
    %c0_232 = arith.constant 0 : index
    %214 = vector.load %arg57[%c8_231, %c0_232] : memref<112x32xf32, #tpu.memory_space<vmem>>, vector<96x32xf32>
    %215 = arith.addf %213, %214 : vector<96x32xf32>
    %cst_233 = arith.constant 0.000000e+00 : f32
    %216 = vector.broadcast %cst_233 : f32 to vector<8x32xf32>
    %217 = vector.extract_strided_slice %215 {offsets = [0, 0], sizes = [8, 32], strides = [1, 1]} : vector<96x32xf32> to vector<8x32xf32>
    %c8_234 = arith.constant 8 : index
    %c0_235 = arith.constant 0 : index
    %218 = vector.load %arg59[%c8_234, %c0_235] : memref<112x32xf32, #tpu.memory_space<vmem>>, vector<8x32xf32>
    tpu.vector_store %arg59[%c8_234, %c0_235], %217 {strides = array<i32>} : memref<112x32xf32, #tpu.memory_space<vmem>>, vector<8x32xf32>,
    %c16_236 = arith.constant 16 : index
    %c0_237 = arith.constant 0 : index
    %219 = vector.load %arg59[%c16_236, %c0_237] : memref<112x32xf32, #tpu.memory_space<vmem>>, vector<8x32xf32>
    tpu.vector_store %arg59[%c16_236, %c0_237], %216 {strides = array<i32>} : memref<112x32xf32, #tpu.memory_space<vmem>>, vector<8x32xf32>,
    %220 = vector.extract_strided_slice %215 {offsets = [48, 0], sizes = [8, 32], strides = [1, 1]} : vector<96x32xf32> to vector<8x32xf32>
    %c56_238 = arith.constant 56 : index
    %c0_239 = arith.constant 0 : index
    %221 = vector.load %arg59[%c56_238, %c0_239] : memref<112x32xf32, #tpu.memory_space<vmem>>, vector<8x32xf32>
    tpu.vector_store %arg59[%c56_238, %c0_239], %220 {strides = array<i32>} : memref<112x32xf32, #tpu.memory_space<vmem>>, vector<8x32xf32>,
    %c64_240 = arith.constant 64 : index
    %c0_241 = arith.constant 0 : index
    %222 = vector.load %arg59[%c64_240, %c0_241] : memref<112x32xf32, #tpu.memory_space<vmem>>, vector<8x32xf32>
    tpu.vector_store %arg59[%c64_240, %c0_241], %216 {strides = array<i32>} : memref<112x32xf32, #tpu.memory_space<vmem>>, vector<8x32xf32>,
    %c0_242 = arith.constant 0 : index
    %c0_243 = arith.constant 0 : index
    %223 = vector.load %arg23[%c0_242, %c0_243] : memref<96x32xbf16, #tpu.memory_space<vmem>>, vector<96x32xbf16>
    %c0_244 = arith.constant 0 : index
    %c0_245 = arith.constant 0 : index
    %224 = vector.load %arg24[%c0_244, %c0_245] : memref<1x32xf32, #tpu.memory_space<vmem>>, vector<1x32xf32>
    %c7_246 = arith.constant 7 : index
    %c0_247 = arith.constant 0 : index
    %225 = vector.load %arg59[%c7_246, %c0_247] : memref<112x32xf32, #tpu.memory_space<vmem>>, vector<96x32xf32>
    %c8_248 = arith.constant 8 : index
    %c0_249 = arith.constant 0 : index
    %226 = vector.load %arg59[%c8_248, %c0_249] : memref<112x32xf32, #tpu.memory_space<vmem>>, vector<96x32xf32>
    %c9_250 = arith.constant 9 : index
    %c0_251 = arith.constant 0 : index
    %227 = vector.load %arg59[%c9_250, %c0_251] : memref<112x32xf32, #tpu.memory_space<vmem>>, vector<96x32xf32>
    %228 = tpu.concatenate %225, %226, %227 in 1 : vector<96x32xf32>, vector<96x32xf32>, vector<96x32xf32> -> vector<96x96xf32>
    %229 = arith.truncf %228 : vector<96x96xf32> to vector<96x96xbf16>
    %cst_252 = arith.constant dense<0.000000e+00> : vector<96x32xf32>
    %230 = tpu.matmul %229, %223, %cst_252 {dimension_numbers = #tpu.dot_dimension_numbers<[1], [0], [0], [1], [0, 0, 1, 1], [], []>} : vector<96x96xbf16>, vector<96x32xbf16>, vector<96x32xf32> -> vector<96x32xf32>
    %231 = vector.broadcast %224 : vector<1x32xf32> to vector<96x32xf32>
    %232 = arith.addf %230, %231 : vector<96x32xf32>
    %cst_253 = arith.constant 0.000000e+00 : f32
    %233 = vector.broadcast %cst_253 : f32 to vector<8x32xf32>
    %234 = vector.extract_strided_slice %232 {offsets = [0, 0], sizes = [8, 32], strides = [1, 1]} : vector<96x32xf32> to vector<8x32xf32>
    %c8_254 = arith.constant 8 : index
    %c0_255 = arith.constant 0 : index
    %235 = vector.load %arg57[%c8_254, %c0_255] : memref<112x32xf32, #tpu.memory_space<vmem>>, vector<8x32xf32>
    tpu.vector_store %arg57[%c8_254, %c0_255], %234 {strides = array<i32>} : memref<112x32xf32, #tpu.memory_space<vmem>>, vector<8x32xf32>,
    %c16_256 = arith.constant 16 : index
    %c0_257 = arith.constant 0 : index
    %236 = vector.load %arg57[%c16_256, %c0_257] : memref<112x32xf32, #tpu.memory_space<vmem>>, vector<8x32xf32>
    tpu.vector_store %arg57[%c16_256, %c0_257], %233 {strides = array<i32>} : memref<112x32xf32, #tpu.memory_space<vmem>>, vector<8x32xf32>,
    %237 = vector.extract_strided_slice %232 {offsets = [48, 0], sizes = [8, 32], strides = [1, 1]} : vector<96x32xf32> to vector<8x32xf32>
    %c56_258 = arith.constant 56 : index
    %c0_259 = arith.constant 0 : index
    %238 = vector.load %arg57[%c56_258, %c0_259] : memref<112x32xf32, #tpu.memory_space<vmem>>, vector<8x32xf32>
    tpu.vector_store %arg57[%c56_258, %c0_259], %237 {strides = array<i32>} : memref<112x32xf32, #tpu.memory_space<vmem>>, vector<8x32xf32>,
    %c64_260 = arith.constant 64 : index
    %c0_261 = arith.constant 0 : index
    %239 = vector.load %arg57[%c64_260, %c0_261] : memref<112x32xf32, #tpu.memory_space<vmem>>, vector<8x32xf32>
    tpu.vector_store %arg57[%c64_260, %c0_261], %233 {strides = array<i32>} : memref<112x32xf32, #tpu.memory_space<vmem>>, vector<8x32xf32>,
    %c0_262 = arith.constant 0 : index
    %c0_263 = arith.constant 0 : index
    %240 = vector.load %arg51[%c0_262, %c0_263] : memref<64x32xf32, #tpu.memory_space<vmem>>, vector<64x32xf32>
    %c8_264 = arith.constant 8 : index
    %c0_265 = arith.constant 0 : index
    %241 = vector.load %arg57[%c8_264, %c0_265] : memref<112x32xf32, #tpu.memory_space<vmem>>, vector<8x32xf32>
    %c56_266 = arith.constant 56 : index
    %c0_267 = arith.constant 0 : index
    %242 = vector.load %arg57[%c56_266, %c0_267] : memref<112x32xf32, #tpu.memory_space<vmem>>, vector<8x32xf32>
    %243 = tpu.concatenate %241, %242 in 0 : vector<8x32xf32>, vector<8x32xf32> -> vector<16x32xf32>
    %244 = arith.mulf %243, %243 : vector<16x32xf32>
    %cst_268 = arith.constant dense<0.000000e+00> : vector<16xf32>
    %245 = vector.multi_reduction <add>, %244, %cst_268 [1] : vector<16x32xf32> to vector<16xf32>
    %246 = vector.shape_cast %245 : vector<16xf32> to vector<16x1xf32>
    %247 = arith.mulf %240, %240 : vector<64x32xf32>
    %cst_269 = arith.constant dense<0.000000e+00> : vector<64xf32>
    %248 = vector.multi_reduction <add>, %247, %cst_269 [1] : vector<64x32xf32> to vector<64xf32>
    %249 = vector.shape_cast %248 : vector<64xf32> to vector<1x64xf32>
    %cst_270 = arith.constant dense<0.000000e+00> : vector<16x64xf32>
    %250 = tpu.matmul %243, %240, %cst_270 {dimension_numbers = #tpu.dot_dimension_numbers<[1], [1], [0], [0], [0, 0, 1, 0], [], []>} : vector<16x32xf32>, vector<64x32xf32>, vector<16x64xf32> -> vector<16x64xf32>
    %cst_271 = arith.constant 2.000000e+00 : f32
    %251 = vector.broadcast %cst_271 : f32 to vector<16x64xf32>
    %252 = arith.mulf %251, %250 : vector<16x64xf32>
    %253 = vector.broadcast %246 : vector<16x1xf32> to vector<16x64xf32>
    %254 = arith.subf %253, %252 : vector<16x64xf32>
    %255 = vector.broadcast %249 : vector<1x64xf32> to vector<16x64xf32>
    %256 = arith.addf %254, %255 : vector<16x64xf32>
    %cst_272 = arith.constant dense<0x7F800000> : vector<16xf32>
    %257 = vector.multi_reduction <minimumf>, %256, %cst_272 [1] : vector<16x64xf32> to vector<16xf32>
    %258 = vector.shape_cast %257 : vector<16xf32> to vector<16x1xf32>
    %259 = tpu.iota {dimensions = array<i32: 1>} : vector<16x64xi32>
    %260 = vector.broadcast %258 : vector<16x1xf32> to vector<16x64xf32>
    %261 = arith.cmpf ole, %256, %260 : vector<16x64xf32>
    %c1073741824_i32 = arith.constant 1073741824 : i32
    %262 = vector.broadcast %c1073741824_i32 : i32 to vector<16x64xi32>
    %263 = arith.select %261, %259, %262 : vector<16x64xi1>, vector<16x64xi32>
    %cst_273 = arith.constant dense<2147483647> : vector<16xi32>
    %264 = vector.multi_reduction <minsi>, %263, %cst_273 [1] : vector<16x64xi32> to vector<16xi32>
    %265 = vector.shape_cast %264 : vector<16xi32> to vector<16x1xi32>
    %266 = vector.broadcast %265 : vector<16x1xi32> to vector<16x64xi32>
    %267 = arith.cmpi eq, %259, %266 : vector<16x64xi32>
    %268 = arith.extui %267 : vector<16x64xi1> to vector<16x64xi32>
    %269 = arith.sitofp %268 : vector<16x64xi32> to vector<16x64xf32>
    %cst_274 = arith.constant dense<0.000000e+00> : vector<16x32xf32>
    %270 = tpu.matmul %269, %240, %cst_274 {dimension_numbers = #tpu.dot_dimension_numbers<[1], [0], [0], [1], [0, 0, 1, 1], [], []>} : vector<16x64xf32>, vector<64x32xf32>, vector<16x32xf32> -> vector<16x32xf32>
    %c0_275 = arith.constant 0 : index
    %c0_276 = arith.constant 0 : index
    %271 = vector.load %arg53[%c0_275, %c0_276] : memref<16x1xi32, #tpu.memory_space<vmem>>, vector<16x1xi32>
    tpu.vector_store %arg53[%c0_275, %c0_276], %265 {strides = array<i32>} : memref<16x1xi32, #tpu.memory_space<vmem>>, vector<16x1xi32>,
    %272 = arith.subf %270, %243 : vector<16x32xf32>
    %273 = arith.mulf %272, %272 : vector<16x32xf32>
    %274 = vector.shape_cast %273 : vector<16x32xf32> to vector<1x16x32xf32>
    %cst_277 = arith.constant dense<0.000000e+00> : vector<1xf32>
    %275 = vector.multi_reduction <add>, %274, %cst_277 [1, 2] : vector<1x16x32xf32> to vector<1xf32>
    %276 = vector.shape_cast %275 : vector<1xf32> to vector<1x1x1xf32>
    %277 = vector.extract %276[0, 0, 0] : f32 from vector<1x1x1xf32>
    %278 = vector.broadcast %277 : f32 to vector<1x1xf32>
    %cst_278 = arith.constant 5.120000e+02 : f32
    %279 = vector.broadcast %cst_278 : f32 to vector<1x1xf32>
    %280 = arith.divf %278, %279 : vector<1x1xf32>
    %c0_279 = arith.constant 0 : index
    %c0_280 = arith.constant 0 : index
    %281 = vector.load %arg54[%c0_279, %c0_280] : memref<1x1xf32, #tpu.memory_space<vmem>>, vector<1x1xf32>
    tpu.vector_store %arg54[%c0_279, %c0_280], %280 {strides = array<i32>} : memref<1x1xf32, #tpu.memory_space<vmem>>, vector<1x1xf32>,
    %cst_281 = arith.constant 1.000000e+00 : f32
    %282 = vector.broadcast %cst_281 : f32 to vector<1x16xf32>
    %cst_282 = arith.constant dense<0.000000e+00> : vector<1x64xf32>
    %283 = tpu.matmul %282, %269, %cst_282 {dimension_numbers = #tpu.dot_dimension_numbers<[1], [0], [0], [1], [0, 0, 1, 1], [], []>} : vector<1x16xf32>, vector<16x64xf32>, vector<1x64xf32> -> vector<1x64xf32>
    %cst_283 = arith.constant 1.600000e+01 : f32
    %284 = vector.broadcast %cst_283 : f32 to vector<1x64xf32>
    %285 = arith.divf %283, %284 : vector<1x64xf32>
    %cst_284 = arith.constant 1.000000e-07 : f32
    %286 = vector.broadcast %cst_284 : f32 to vector<1x64xf32>
    %287 = arith.addf %285, %286 : vector<1x64xf32>
    %288 = math.log %287 : vector<1x64xf32>
    %289 = arith.mulf %285, %288 : vector<1x64xf32>
    %cst_285 = arith.constant dense<0.000000e+00> : vector<1xf32>
    %290 = vector.multi_reduction <add>, %289, %cst_285 [1] : vector<1x64xf32> to vector<1xf32>
    %291 = vector.shape_cast %290 : vector<1xf32> to vector<1x1xf32>
    %cst_286 = arith.constant 0.000000e+00 : f32
    %292 = vector.broadcast %cst_286 : f32 to vector<1x1xf32>
    %293 = arith.subf %292, %291 : vector<1x1xf32>
    %294 = math.exp %293 : vector<1x1xf32>
    %c0_287 = arith.constant 0 : index
    %c0_288 = arith.constant 0 : index
    %295 = vector.load %arg55[%c0_287, %c0_288] : memref<1x1xf32, #tpu.memory_space<vmem>>, vector<1x1xf32>
    tpu.vector_store %arg55[%c0_287, %c0_288], %294 {strides = array<i32>} : memref<1x1xf32, #tpu.memory_space<vmem>>, vector<1x1xf32>,
    %cst_289 = arith.constant 0.000000e+00 : f32
    %296 = vector.broadcast %cst_289 : f32 to vector<8x32xf32>
    %297 = vector.extract_strided_slice %270 {offsets = [0, 0], sizes = [8, 32], strides = [1, 1]} : vector<16x32xf32> to vector<8x32xf32>
    %c0_290 = arith.constant 0 : index
    %c0_291 = arith.constant 0 : index
    %c0_292 = arith.constant 0 : index
    %298 = vector.load %arg56[%c0_290, %c0_291, %c0_292] : memref<2x8x32xf32, #tpu.memory_space<vmem>>, vector<1x8x32xf32>
    %299 = vector.shape_cast %298 : vector<1x8x32xf32> to vector<8x32xf32>
    %300 = vector.shape_cast %297 : vector<8x32xf32> to vector<1x8x32xf32>
    tpu.vector_store %arg56[%c0_290, %c0_291, %c0_292], %300 {strides = array<i32>} : memref<2x8x32xf32, #tpu.memory_space<vmem>>, vector<1x8x32xf32>,
    %c8_293 = arith.constant 8 : index
    %c0_294 = arith.constant 0 : index
    %301 = vector.load %arg58[%c8_293, %c0_294] : memref<112x32xf32, #tpu.memory_space<vmem>>, vector<8x32xf32>
    tpu.vector_store %arg58[%c8_293, %c0_294], %297 {strides = array<i32>} : memref<112x32xf32, #tpu.memory_space<vmem>>, vector<8x32xf32>,
    %c16_295 = arith.constant 16 : index
    %c0_296 = arith.constant 0 : index
    %302 = vector.load %arg58[%c16_295, %c0_296] : memref<112x32xf32, #tpu.memory_space<vmem>>, vector<8x32xf32>
    tpu.vector_store %arg58[%c16_295, %c0_296], %296 {strides = array<i32>} : memref<112x32xf32, #tpu.memory_space<vmem>>, vector<8x32xf32>,
    %303 = vector.extract_strided_slice %270 {offsets = [8, 0], sizes = [8, 32], strides = [1, 1]} : vector<16x32xf32> to vector<8x32xf32>
    %c1_297 = arith.constant 1 : index
    %c0_298 = arith.constant 0 : index
    %c0_299 = arith.constant 0 : index
    %304 = vector.load %arg56[%c1_297, %c0_298, %c0_299] : memref<2x8x32xf32, #tpu.memory_space<vmem>>, vector<1x8x32xf32>
    %305 = vector.shape_cast %304 : vector<1x8x32xf32> to vector<8x32xf32>
    %306 = vector.shape_cast %303 : vector<8x32xf32> to vector<1x8x32xf32>
    tpu.vector_store %arg56[%c1_297, %c0_298, %c0_299], %306 {strides = array<i32>} : memref<2x8x32xf32, #tpu.memory_space<vmem>>, vector<1x8x32xf32>,
    %c56_300 = arith.constant 56 : index
    %c0_301 = arith.constant 0 : index
    %307 = vector.load %arg58[%c56_300, %c0_301] : memref<112x32xf32, #tpu.memory_space<vmem>>, vector<8x32xf32>
    tpu.vector_store %arg58[%c56_300, %c0_301], %303 {strides = array<i32>} : memref<112x32xf32, #tpu.memory_space<vmem>>, vector<8x32xf32>,
    %c64_302 = arith.constant 64 : index
    %c0_303 = arith.constant 0 : index
    %308 = vector.load %arg58[%c64_302, %c0_303] : memref<112x32xf32, #tpu.memory_space<vmem>>, vector<8x32xf32>
    tpu.vector_store %arg58[%c64_302, %c0_303], %296 {strides = array<i32>} : memref<112x32xf32, #tpu.memory_space<vmem>>, vector<8x32xf32>,
    %c0_304 = arith.constant 0 : index
    %c0_305 = arith.constant 0 : index
    %309 = vector.load %arg25[%c0_304, %c0_305] : memref<96x32xbf16, #tpu.memory_space<vmem>>, vector<96x32xbf16>
    %c0_306 = arith.constant 0 : index
    %c0_307 = arith.constant 0 : index
    %310 = vector.load %arg26[%c0_306, %c0_307] : memref<1x32xf32, #tpu.memory_space<vmem>>, vector<1x32xf32>
    %c7_308 = arith.constant 7 : index
    %c0_309 = arith.constant 0 : index
    %311 = vector.load %arg58[%c7_308, %c0_309] : memref<112x32xf32, #tpu.memory_space<vmem>>, vector<96x32xf32>
    %c8_310 = arith.constant 8 : index
    %c0_311 = arith.constant 0 : index
    %312 = vector.load %arg58[%c8_310, %c0_311] : memref<112x32xf32, #tpu.memory_space<vmem>>, vector<96x32xf32>
    %c9_312 = arith.constant 9 : index
    %c0_313 = arith.constant 0 : index
    %313 = vector.load %arg58[%c9_312, %c0_313] : memref<112x32xf32, #tpu.memory_space<vmem>>, vector<96x32xf32>
    %314 = tpu.concatenate %311, %312, %313 in 1 : vector<96x32xf32>, vector<96x32xf32>, vector<96x32xf32> -> vector<96x96xf32>
    %315 = arith.truncf %314 : vector<96x96xf32> to vector<96x96xbf16>
    %cst_314 = arith.constant dense<0.000000e+00> : vector<96x32xf32>
    %316 = tpu.matmul %315, %309, %cst_314 {dimension_numbers = #tpu.dot_dimension_numbers<[1], [0], [0], [1], [0, 0, 1, 1], [], []>} : vector<96x96xbf16>, vector<96x32xbf16>, vector<96x32xf32> -> vector<96x32xf32>
    %317 = vector.broadcast %310 : vector<1x32xf32> to vector<96x32xf32>
    %318 = arith.addf %316, %317 : vector<96x32xf32>
    %cst_315 = arith.constant 0.000000e+00 : f32
    %319 = vector.broadcast %cst_315 : f32 to vector<96x32xf32>
    %320 = arith.maximumf %318, %319 : vector<96x32xf32>
    %cst_316 = arith.constant 0.000000e+00 : f32
    %321 = vector.broadcast %cst_316 : f32 to vector<8x32xf32>
    %322 = vector.extract_strided_slice %320 {offsets = [0, 0], sizes = [8, 32], strides = [1, 1]} : vector<96x32xf32> to vector<8x32xf32>
    %c8_317 = arith.constant 8 : index
    %c0_318 = arith.constant 0 : index
    %323 = vector.load %arg59[%c8_317, %c0_318] : memref<112x32xf32, #tpu.memory_space<vmem>>, vector<8x32xf32>
    tpu.vector_store %arg59[%c8_317, %c0_318], %322 {strides = array<i32>} : memref<112x32xf32, #tpu.memory_space<vmem>>, vector<8x32xf32>,
    %c16_319 = arith.constant 16 : index
    %c0_320 = arith.constant 0 : index
    %324 = vector.load %arg59[%c16_319, %c0_320] : memref<112x32xf32, #tpu.memory_space<vmem>>, vector<8x32xf32>
    tpu.vector_store %arg59[%c16_319, %c0_320], %321 {strides = array<i32>} : memref<112x32xf32, #tpu.memory_space<vmem>>, vector<8x32xf32>,
    %325 = vector.extract_strided_slice %320 {offsets = [48, 0], sizes = [8, 32], strides = [1, 1]} : vector<96x32xf32> to vector<8x32xf32>
    %c56_321 = arith.constant 56 : index
    %c0_322 = arith.constant 0 : index
    %326 = vector.load %arg59[%c56_321, %c0_322] : memref<112x32xf32, #tpu.memory_space<vmem>>, vector<8x32xf32>
    tpu.vector_store %arg59[%c56_321, %c0_322], %325 {strides = array<i32>} : memref<112x32xf32, #tpu.memory_space<vmem>>, vector<8x32xf32>,
    %c64_323 = arith.constant 64 : index
    %c0_324 = arith.constant 0 : index
    %327 = vector.load %arg59[%c64_323, %c0_324] : memref<112x32xf32, #tpu.memory_space<vmem>>, vector<8x32xf32>
    tpu.vector_store %arg59[%c64_323, %c0_324], %321 {strides = array<i32>} : memref<112x32xf32, #tpu.memory_space<vmem>>, vector<8x32xf32>,
    %c0_325 = arith.constant 0 : index
    %c0_326 = arith.constant 0 : index
    %328 = vector.load %arg27[%c0_325, %c0_326] : memref<96x32xbf16, #tpu.memory_space<vmem>>, vector<96x32xbf16>
    %c0_327 = arith.constant 0 : index
    %c0_328 = arith.constant 0 : index
    %329 = vector.load %arg28[%c0_327, %c0_328] : memref<1x32xf32, #tpu.memory_space<vmem>>, vector<1x32xf32>
    %c5_329 = arith.constant 5 : index
    %c0_330 = arith.constant 0 : index
    %330 = vector.load %arg59[%c5_329, %c0_330] : memref<112x32xf32, #tpu.memory_space<vmem>>, vector<96x32xf32>
    %c8_331 = arith.constant 8 : index
    %c0_332 = arith.constant 0 : index
    %331 = vector.load %arg59[%c8_331, %c0_332] : memref<112x32xf32, #tpu.memory_space<vmem>>, vector<96x32xf32>
    %c11_333 = arith.constant 11 : index
    %c0_334 = arith.constant 0 : index
    %332 = vector.load %arg59[%c11_333, %c0_334] : memref<112x32xf32, #tpu.memory_space<vmem>>, vector<96x32xf32>
    %333 = tpu.concatenate %330, %331, %332 in 1 : vector<96x32xf32>, vector<96x32xf32>, vector<96x32xf32> -> vector<96x96xf32>
    %cst_335 = arith.constant 0.000000e+00 : f32
    %334 = vector.broadcast %cst_335 : f32 to vector<96x96xf32>
    %335 = arith.maximumf %333, %334 : vector<96x96xf32>
    %336 = arith.truncf %335 : vector<96x96xf32> to vector<96x96xbf16>
    %cst_336 = arith.constant dense<0.000000e+00> : vector<96x32xf32>
    %337 = tpu.matmul %336, %328, %cst_336 {dimension_numbers = #tpu.dot_dimension_numbers<[1], [0], [0], [1], [0, 0, 1, 1], [], []>} : vector<96x96xbf16>, vector<96x32xbf16>, vector<96x32xf32> -> vector<96x32xf32>
    %338 = vector.broadcast %329 : vector<1x32xf32> to vector<96x32xf32>
    %339 = arith.addf %337, %338 : vector<96x32xf32>
    %cst_337 = arith.constant 0.000000e+00 : f32
    %340 = vector.broadcast %cst_337 : f32 to vector<96x32xf32>
    %341 = arith.maximumf %339, %340 : vector<96x32xf32>
    %cst_338 = arith.constant 0.000000e+00 : f32
    %342 = vector.broadcast %cst_338 : f32 to vector<8x32xf32>
    %343 = vector.extract_strided_slice %341 {offsets = [0, 0], sizes = [8, 32], strides = [1, 1]} : vector<96x32xf32> to vector<8x32xf32>
    %c8_339 = arith.constant 8 : index
    %c0_340 = arith.constant 0 : index
    %344 = vector.load %arg57[%c8_339, %c0_340] : memref<112x32xf32, #tpu.memory_space<vmem>>, vector<8x32xf32>
    tpu.vector_store %arg57[%c8_339, %c0_340], %343 {strides = array<i32>} : memref<112x32xf32, #tpu.memory_space<vmem>>, vector<8x32xf32>,
    %c16_341 = arith.constant 16 : index
    %c0_342 = arith.constant 0 : index
    %345 = vector.load %arg57[%c16_341, %c0_342] : memref<112x32xf32, #tpu.memory_space<vmem>>, vector<8x32xf32>
    tpu.vector_store %arg57[%c16_341, %c0_342], %342 {strides = array<i32>} : memref<112x32xf32, #tpu.memory_space<vmem>>, vector<8x32xf32>,
    %346 = vector.extract_strided_slice %341 {offsets = [48, 0], sizes = [8, 32], strides = [1, 1]} : vector<96x32xf32> to vector<8x32xf32>
    %c56_343 = arith.constant 56 : index
    %c0_344 = arith.constant 0 : index
    %347 = vector.load %arg57[%c56_343, %c0_344] : memref<112x32xf32, #tpu.memory_space<vmem>>, vector<8x32xf32>
    tpu.vector_store %arg57[%c56_343, %c0_344], %346 {strides = array<i32>} : memref<112x32xf32, #tpu.memory_space<vmem>>, vector<8x32xf32>,
    %c64_345 = arith.constant 64 : index
    %c0_346 = arith.constant 0 : index
    %348 = vector.load %arg57[%c64_345, %c0_346] : memref<112x32xf32, #tpu.memory_space<vmem>>, vector<8x32xf32>
    tpu.vector_store %arg57[%c64_345, %c0_346], %342 {strides = array<i32>} : memref<112x32xf32, #tpu.memory_space<vmem>>, vector<8x32xf32>,
    %c0_347 = arith.constant 0 : index
    %c0_348 = arith.constant 0 : index
    %349 = vector.load %arg29[%c0_347, %c0_348] : memref<32x32xbf16, #tpu.memory_space<vmem>>, vector<32x32xbf16>
    %c0_349 = arith.constant 0 : index
    %c0_350 = arith.constant 0 : index
    %350 = vector.load %arg30[%c0_349, %c0_350] : memref<1x32xf32, #tpu.memory_space<vmem>>, vector<1x32xf32>
    %c8_351 = arith.constant 8 : index
    %c0_352 = arith.constant 0 : index
    %351 = vector.load %arg57[%c8_351, %c0_352] : memref<112x32xf32, #tpu.memory_space<vmem>>, vector<96x32xf32>
    %352 = arith.truncf %351 : vector<96x32xf32> to vector<96x32xbf16>
    %cst_353 = arith.constant dense<0.000000e+00> : vector<96x32xf32>
    %353 = tpu.matmul %352, %349, %cst_353 {dimension_numbers = #tpu.dot_dimension_numbers<[1], [0], [0], [1], [0, 0, 1, 1], [], []>} : vector<96x32xbf16>, vector<32x32xbf16>, vector<96x32xf32> -> vector<96x32xf32>
    %354 = vector.broadcast %350 : vector<1x32xf32> to vector<96x32xf32>
    %355 = arith.addf %353, %354 : vector<96x32xf32>
    %c8_354 = arith.constant 8 : index
    %c0_355 = arith.constant 0 : index
    %356 = vector.load %arg59[%c8_354, %c0_355] : memref<112x32xf32, #tpu.memory_space<vmem>>, vector<96x32xf32>
    %357 = arith.addf %355, %356 : vector<96x32xf32>
    %cst_356 = arith.constant 0.000000e+00 : f32
    %358 = vector.broadcast %cst_356 : f32 to vector<8x32xf32>
    %359 = vector.extract_strided_slice %357 {offsets = [0, 0], sizes = [8, 32], strides = [1, 1]} : vector<96x32xf32> to vector<8x32xf32>
    %c8_357 = arith.constant 8 : index
    %c0_358 = arith.constant 0 : index
    %360 = vector.load %arg58[%c8_357, %c0_358] : memref<112x32xf32, #tpu.memory_space<vmem>>, vector<8x32xf32>
    tpu.vector_store %arg58[%c8_357, %c0_358], %359 {strides = array<i32>} : memref<112x32xf32, #tpu.memory_space<vmem>>, vector<8x32xf32>,
    %c16_359 = arith.constant 16 : index
    %c0_360 = arith.constant 0 : index
    %361 = vector.load %arg58[%c16_359, %c0_360] : memref<112x32xf32, #tpu.memory_space<vmem>>, vector<8x32xf32>
    tpu.vector_store %arg58[%c16_359, %c0_360], %358 {strides = array<i32>} : memref<112x32xf32, #tpu.memory_space<vmem>>, vector<8x32xf32>,
    %362 = vector.extract_strided_slice %357 {offsets = [48, 0], sizes = [8, 32], strides = [1, 1]} : vector<96x32xf32> to vector<8x32xf32>
    %c56_361 = arith.constant 56 : index
    %c0_362 = arith.constant 0 : index
    %363 = vector.load %arg58[%c56_361, %c0_362] : memref<112x32xf32, #tpu.memory_space<vmem>>, vector<8x32xf32>
    tpu.vector_store %arg58[%c56_361, %c0_362], %362 {strides = array<i32>} : memref<112x32xf32, #tpu.memory_space<vmem>>, vector<8x32xf32>,
    %c64_363 = arith.constant 64 : index
    %c0_364 = arith.constant 0 : index
    %364 = vector.load %arg58[%c64_363, %c0_364] : memref<112x32xf32, #tpu.memory_space<vmem>>, vector<8x32xf32>
    tpu.vector_store %arg58[%c64_363, %c0_364], %358 {strides = array<i32>} : memref<112x32xf32, #tpu.memory_space<vmem>>, vector<8x32xf32>,
    %c0_365 = arith.constant 0 : index
    %c0_366 = arith.constant 0 : index
    %365 = vector.load %arg31[%c0_365, %c0_366] : memref<96x32xbf16, #tpu.memory_space<vmem>>, vector<96x32xbf16>
    %c0_367 = arith.constant 0 : index
    %c0_368 = arith.constant 0 : index
    %366 = vector.load %arg32[%c0_367, %c0_368] : memref<1x32xf32, #tpu.memory_space<vmem>>, vector<1x32xf32>
    %c7_369 = arith.constant 7 : index
    %c0_370 = arith.constant 0 : index
    %367 = vector.load %arg58[%c7_369, %c0_370] : memref<112x32xf32, #tpu.memory_space<vmem>>, vector<96x32xf32>
    %c8_371 = arith.constant 8 : index
    %c0_372 = arith.constant 0 : index
    %368 = vector.load %arg58[%c8_371, %c0_372] : memref<112x32xf32, #tpu.memory_space<vmem>>, vector<96x32xf32>
    %c9_373 = arith.constant 9 : index
    %c0_374 = arith.constant 0 : index
    %369 = vector.load %arg58[%c9_373, %c0_374] : memref<112x32xf32, #tpu.memory_space<vmem>>, vector<96x32xf32>
    %370 = tpu.concatenate %367, %368, %369 in 1 : vector<96x32xf32>, vector<96x32xf32>, vector<96x32xf32> -> vector<96x96xf32>
    %cst_375 = arith.constant 0.000000e+00 : f32
    %371 = vector.broadcast %cst_375 : f32 to vector<96x96xf32>
    %372 = arith.maximumf %370, %371 : vector<96x96xf32>
    %373 = arith.truncf %372 : vector<96x96xf32> to vector<96x96xbf16>
    %cst_376 = arith.constant dense<0.000000e+00> : vector<96x32xf32>
    %374 = tpu.matmul %373, %365, %cst_376 {dimension_numbers = #tpu.dot_dimension_numbers<[1], [0], [0], [1], [0, 0, 1, 1], [], []>} : vector<96x96xbf16>, vector<96x32xbf16>, vector<96x32xf32> -> vector<96x32xf32>
    %375 = vector.broadcast %366 : vector<1x32xf32> to vector<96x32xf32>
    %376 = arith.addf %374, %375 : vector<96x32xf32>
    %cst_377 = arith.constant 0.000000e+00 : f32
    %377 = vector.broadcast %cst_377 : f32 to vector<96x32xf32>
    %378 = arith.maximumf %376, %377 : vector<96x32xf32>
    %cst_378 = arith.constant 0.000000e+00 : f32
    %379 = vector.broadcast %cst_378 : f32 to vector<8x32xf32>
    %380 = vector.extract_strided_slice %378 {offsets = [0, 0], sizes = [8, 32], strides = [1, 1]} : vector<96x32xf32> to vector<8x32xf32>
    %c8_379 = arith.constant 8 : index
    %c0_380 = arith.constant 0 : index
    %381 = vector.load %arg59[%c8_379, %c0_380] : memref<112x32xf32, #tpu.memory_space<vmem>>, vector<8x32xf32>
    tpu.vector_store %arg59[%c8_379, %c0_380], %380 {strides = array<i32>} : memref<112x32xf32, #tpu.memory_space<vmem>>, vector<8x32xf32>,
    %c16_381 = arith.constant 16 : index
    %c0_382 = arith.constant 0 : index
    %382 = vector.load %arg59[%c16_381, %c0_382] : memref<112x32xf32, #tpu.memory_space<vmem>>, vector<8x32xf32>
    tpu.vector_store %arg59[%c16_381, %c0_382], %379 {strides = array<i32>} : memref<112x32xf32, #tpu.memory_space<vmem>>, vector<8x32xf32>,
    %383 = vector.extract_strided_slice %378 {offsets = [48, 0], sizes = [8, 32], strides = [1, 1]} : vector<96x32xf32> to vector<8x32xf32>
    %c56_383 = arith.constant 56 : index
    %c0_384 = arith.constant 0 : index
    %384 = vector.load %arg59[%c56_383, %c0_384] : memref<112x32xf32, #tpu.memory_space<vmem>>, vector<8x32xf32>
    tpu.vector_store %arg59[%c56_383, %c0_384], %383 {strides = array<i32>} : memref<112x32xf32, #tpu.memory_space<vmem>>, vector<8x32xf32>,
    %c64_385 = arith.constant 64 : index
    %c0_386 = arith.constant 0 : index
    %385 = vector.load %arg59[%c64_385, %c0_386] : memref<112x32xf32, #tpu.memory_space<vmem>>, vector<8x32xf32>
    tpu.vector_store %arg59[%c64_385, %c0_386], %379 {strides = array<i32>} : memref<112x32xf32, #tpu.memory_space<vmem>>, vector<8x32xf32>,
    %c0_387 = arith.constant 0 : index
    %c0_388 = arith.constant 0 : index
    %386 = vector.load %arg33[%c0_387, %c0_388] : memref<32x32xbf16, #tpu.memory_space<vmem>>, vector<32x32xbf16>
    %c0_389 = arith.constant 0 : index
    %c0_390 = arith.constant 0 : index
    %387 = vector.load %arg34[%c0_389, %c0_390] : memref<1x32xf32, #tpu.memory_space<vmem>>, vector<1x32xf32>
    %c8_391 = arith.constant 8 : index
    %c0_392 = arith.constant 0 : index
    %388 = vector.load %arg59[%c8_391, %c0_392] : memref<112x32xf32, #tpu.memory_space<vmem>>, vector<96x32xf32>
    %389 = arith.truncf %388 : vector<96x32xf32> to vector<96x32xbf16>
    %cst_393 = arith.constant dense<0.000000e+00> : vector<96x32xf32>
    %390 = tpu.matmul %389, %386, %cst_393 {dimension_numbers = #tpu.dot_dimension_numbers<[1], [0], [0], [1], [0, 0, 1, 1], [], []>} : vector<96x32xbf16>, vector<32x32xbf16>, vector<96x32xf32> -> vector<96x32xf32>
    %391 = vector.broadcast %387 : vector<1x32xf32> to vector<96x32xf32>
    %392 = arith.addf %390, %391 : vector<96x32xf32>
    %c8_394 = arith.constant 8 : index
    %c0_395 = arith.constant 0 : index
    %393 = vector.load %arg58[%c8_394, %c0_395] : memref<112x32xf32, #tpu.memory_space<vmem>>, vector<96x32xf32>
    %394 = arith.addf %392, %393 : vector<96x32xf32>
    %cst_396 = arith.constant 0.000000e+00 : f32
    %395 = vector.broadcast %cst_396 : f32 to vector<8x32xf32>
    %396 = vector.extract_strided_slice %394 {offsets = [0, 0], sizes = [8, 32], strides = [1, 1]} : vector<96x32xf32> to vector<8x32xf32>
    %c8_397 = arith.constant 8 : index
    %c0_398 = arith.constant 0 : index
    %397 = vector.load %arg57[%c8_397, %c0_398] : memref<112x32xf32, #tpu.memory_space<vmem>>, vector<8x32xf32>
    tpu.vector_store %arg57[%c8_397, %c0_398], %396 {strides = array<i32>} : memref<112x32xf32, #tpu.memory_space<vmem>>, vector<8x32xf32>,
    %c16_399 = arith.constant 16 : index
    %c0_400 = arith.constant 0 : index
    %398 = vector.load %arg57[%c16_399, %c0_400] : memref<112x32xf32, #tpu.memory_space<vmem>>, vector<8x32xf32>
    tpu.vector_store %arg57[%c16_399, %c0_400], %395 {strides = array<i32>} : memref<112x32xf32, #tpu.memory_space<vmem>>, vector<8x32xf32>,
    %399 = vector.extract_strided_slice %394 {offsets = [48, 0], sizes = [8, 32], strides = [1, 1]} : vector<96x32xf32> to vector<8x32xf32>
    %c56_401 = arith.constant 56 : index
    %c0_402 = arith.constant 0 : index
    %400 = vector.load %arg57[%c56_401, %c0_402] : memref<112x32xf32, #tpu.memory_space<vmem>>, vector<8x32xf32>
    tpu.vector_store %arg57[%c56_401, %c0_402], %399 {strides = array<i32>} : memref<112x32xf32, #tpu.memory_space<vmem>>, vector<8x32xf32>,
    %c64_403 = arith.constant 64 : index
    %c0_404 = arith.constant 0 : index
    %401 = vector.load %arg57[%c64_403, %c0_404] : memref<112x32xf32, #tpu.memory_space<vmem>>, vector<8x32xf32>
    tpu.vector_store %arg57[%c64_403, %c0_404], %395 {strides = array<i32>} : memref<112x32xf32, #tpu.memory_space<vmem>>, vector<8x32xf32>,
    %402 = tpu.iota {dimensions = array<i32: 0>} : vector<16x8xi32>
    %403 = tpu.iota {dimensions = array<i32: 1>} : vector<16x8xi32>
    %c2_i32 = arith.constant 2 : i32
    %404 = vector.broadcast %c2_i32 : i32 to vector<16x8xi32>
    %405 = arith.muli %404, %403 : vector<16x8xi32>
    %406 = arith.cmpi sge, %402, %405 : vector<16x8xi32>
    %c1_i32 = arith.constant 1 : i32
    %407 = vector.broadcast %c1_i32 : i32 to vector<16x8xi32>
    %408 = arith.addi %403, %407 : vector<16x8xi32>
    %c2_i32_405 = arith.constant 2 : i32
    %409 = vector.broadcast %c2_i32_405 : i32 to vector<16x8xi32>
    %410 = arith.muli %409, %408 : vector<16x8xi32>
    %411 = arith.cmpi slt, %402, %410 : vector<16x8xi32>
    %412 = arith.andi %406, %411 : vector<16x8xi1>
    %413 = arith.extui %412 : vector<16x8xi1> to vector<16x8xi32>
    %414 = arith.sitofp %413 : vector<16x8xi32> to vector<16x8xf32>
    %cst_406 = arith.constant 0.000000e+00 : f32
    %415 = vector.broadcast %cst_406 : f32 to vector<8x32xf32>
    %c8_407 = arith.constant 8 : index
    %c0_408 = arith.constant 0 : index
    %416 = vector.load %arg57[%c8_407, %c0_408] : memref<112x32xf32, #tpu.memory_space<vmem>>, vector<8x32xf32>
    %cst_409 = arith.constant dense<0.000000e+00> : vector<16x32xf32>
    %417 = tpu.matmul %414, %416, %cst_409 {dimension_numbers = #tpu.dot_dimension_numbers<[1], [0], [0], [1], [0, 0, 1, 1], [], []>} : vector<16x8xf32>, vector<8x32xf32>, vector<16x32xf32> -> vector<16x32xf32>
    %c8_410 = arith.constant 8 : index
    %c0_411 = arith.constant 0 : index
    %418 = vector.load %arg58[%c8_410, %c0_411] : memref<112x32xf32, #tpu.memory_space<vmem>>, vector<16x32xf32>
    tpu.vector_store %arg58[%c8_410, %c0_411], %417 {strides = array<i32>} : memref<112x32xf32, #tpu.memory_space<vmem>>, vector<16x32xf32>,
    %c24_412 = arith.constant 24 : index
    %c0_413 = arith.constant 0 : index
    %419 = vector.load %arg58[%c24_412, %c0_413] : memref<112x32xf32, #tpu.memory_space<vmem>>, vector<8x32xf32>
    tpu.vector_store %arg58[%c24_412, %c0_413], %415 {strides = array<i32>} : memref<112x32xf32, #tpu.memory_space<vmem>>, vector<8x32xf32>,
    %c56_414 = arith.constant 56 : index
    %c0_415 = arith.constant 0 : index
    %420 = vector.load %arg57[%c56_414, %c0_415] : memref<112x32xf32, #tpu.memory_space<vmem>>, vector<8x32xf32>
    %cst_416 = arith.constant dense<0.000000e+00> : vector<16x32xf32>
    %421 = tpu.matmul %414, %420, %cst_416 {dimension_numbers = #tpu.dot_dimension_numbers<[1], [0], [0], [1], [0, 0, 1, 1], [], []>} : vector<16x8xf32>, vector<8x32xf32>, vector<16x32xf32> -> vector<16x32xf32>
    %c56_417 = arith.constant 56 : index
    %c0_418 = arith.constant 0 : index
    %422 = vector.load %arg58[%c56_417, %c0_418] : memref<112x32xf32, #tpu.memory_space<vmem>>, vector<16x32xf32>
    tpu.vector_store %arg58[%c56_417, %c0_418], %421 {strides = array<i32>} : memref<112x32xf32, #tpu.memory_space<vmem>>, vector<16x32xf32>,
    %c72_419 = arith.constant 72 : index
    %c0_420 = arith.constant 0 : index
    %423 = vector.load %arg58[%c72_419, %c0_420] : memref<112x32xf32, #tpu.memory_space<vmem>>, vector<8x32xf32>
    tpu.vector_store %arg58[%c72_419, %c0_420], %415 {strides = array<i32>} : memref<112x32xf32, #tpu.memory_space<vmem>>, vector<8x32xf32>,
    %c0_421 = arith.constant 0 : index
    %c0_422 = arith.constant 0 : index
    %424 = vector.load %arg35[%c0_421, %c0_422] : memref<96x32xbf16, #tpu.memory_space<vmem>>, vector<96x32xbf16>
    %c0_423 = arith.constant 0 : index
    %c0_424 = arith.constant 0 : index
    %425 = vector.load %arg36[%c0_423, %c0_424] : memref<1x32xf32, #tpu.memory_space<vmem>>, vector<1x32xf32>
    %c7_425 = arith.constant 7 : index
    %c0_426 = arith.constant 0 : index
    %426 = vector.load %arg58[%c7_425, %c0_426] : memref<112x32xf32, #tpu.memory_space<vmem>>, vector<96x32xf32>
    %c8_427 = arith.constant 8 : index
    %c0_428 = arith.constant 0 : index
    %427 = vector.load %arg58[%c8_427, %c0_428] : memref<112x32xf32, #tpu.memory_space<vmem>>, vector<96x32xf32>
    %c9_429 = arith.constant 9 : index
    %c0_430 = arith.constant 0 : index
    %428 = vector.load %arg58[%c9_429, %c0_430] : memref<112x32xf32, #tpu.memory_space<vmem>>, vector<96x32xf32>
    %429 = tpu.concatenate %426, %427, %428 in 1 : vector<96x32xf32>, vector<96x32xf32>, vector<96x32xf32> -> vector<96x96xf32>
    %430 = arith.truncf %429 : vector<96x96xf32> to vector<96x96xbf16>
    %cst_431 = arith.constant dense<0.000000e+00> : vector<96x32xf32>
    %431 = tpu.matmul %430, %424, %cst_431 {dimension_numbers = #tpu.dot_dimension_numbers<[1], [0], [0], [1], [0, 0, 1, 1], [], []>} : vector<96x96xbf16>, vector<96x32xbf16>, vector<96x32xf32> -> vector<96x32xf32>
    %432 = vector.broadcast %425 : vector<1x32xf32> to vector<96x32xf32>
    %433 = arith.addf %431, %432 : vector<96x32xf32>
    %cst_432 = arith.constant 0.000000e+00 : f32
    %434 = vector.broadcast %cst_432 : f32 to vector<8x32xf32>
    %435 = vector.extract_strided_slice %433 {offsets = [0, 0], sizes = [16, 32], strides = [1, 1]} : vector<96x32xf32> to vector<16x32xf32>
    %c8_433 = arith.constant 8 : index
    %c0_434 = arith.constant 0 : index
    %436 = vector.load %arg59[%c8_433, %c0_434] : memref<112x32xf32, #tpu.memory_space<vmem>>, vector<16x32xf32>
    tpu.vector_store %arg59[%c8_433, %c0_434], %435 {strides = array<i32>} : memref<112x32xf32, #tpu.memory_space<vmem>>, vector<16x32xf32>,
    %c24_435 = arith.constant 24 : index
    %c0_436 = arith.constant 0 : index
    %437 = vector.load %arg59[%c24_435, %c0_436] : memref<112x32xf32, #tpu.memory_space<vmem>>, vector<8x32xf32>
    tpu.vector_store %arg59[%c24_435, %c0_436], %434 {strides = array<i32>} : memref<112x32xf32, #tpu.memory_space<vmem>>, vector<8x32xf32>,
    %438 = vector.extract_strided_slice %433 {offsets = [48, 0], sizes = [16, 32], strides = [1, 1]} : vector<96x32xf32> to vector<16x32xf32>
    %c56_437 = arith.constant 56 : index
    %c0_438 = arith.constant 0 : index
    %439 = vector.load %arg59[%c56_437, %c0_438] : memref<112x32xf32, #tpu.memory_space<vmem>>, vector<16x32xf32>
    tpu.vector_store %arg59[%c56_437, %c0_438], %438 {strides = array<i32>} : memref<112x32xf32, #tpu.memory_space<vmem>>, vector<16x32xf32>,
    %c72_439 = arith.constant 72 : index
    %c0_440 = arith.constant 0 : index
    %440 = vector.load %arg59[%c72_439, %c0_440] : memref<112x32xf32, #tpu.memory_space<vmem>>, vector<8x32xf32>
    tpu.vector_store %arg59[%c72_439, %c0_440], %434 {strides = array<i32>} : memref<112x32xf32, #tpu.memory_space<vmem>>, vector<8x32xf32>,
    %c0_441 = arith.constant 0 : index
    %c0_442 = arith.constant 0 : index
    %441 = vector.load %arg37[%c0_441, %c0_442] : memref<96x32xbf16, #tpu.memory_space<vmem>>, vector<96x32xbf16>
    %c0_443 = arith.constant 0 : index
    %c0_444 = arith.constant 0 : index
    %442 = vector.load %arg38[%c0_443, %c0_444] : memref<1x32xf32, #tpu.memory_space<vmem>>, vector<1x32xf32>
    %c5_445 = arith.constant 5 : index
    %c0_446 = arith.constant 0 : index
    %443 = vector.load %arg59[%c5_445, %c0_446] : memref<112x32xf32, #tpu.memory_space<vmem>>, vector<96x32xf32>
    %c8_447 = arith.constant 8 : index
    %c0_448 = arith.constant 0 : index
    %444 = vector.load %arg59[%c8_447, %c0_448] : memref<112x32xf32, #tpu.memory_space<vmem>>, vector<96x32xf32>
    %c11_449 = arith.constant 11 : index
    %c0_450 = arith.constant 0 : index
    %445 = vector.load %arg59[%c11_449, %c0_450] : memref<112x32xf32, #tpu.memory_space<vmem>>, vector<96x32xf32>
    %446 = tpu.concatenate %443, %444, %445 in 1 : vector<96x32xf32>, vector<96x32xf32>, vector<96x32xf32> -> vector<96x96xf32>
    %cst_451 = arith.constant 0.000000e+00 : f32
    %447 = vector.broadcast %cst_451 : f32 to vector<96x96xf32>
    %448 = arith.maximumf %446, %447 : vector<96x96xf32>
    %449 = arith.truncf %448 : vector<96x96xf32> to vector<96x96xbf16>
    %cst_452 = arith.constant dense<0.000000e+00> : vector<96x32xf32>
    %450 = tpu.matmul %449, %441, %cst_452 {dimension_numbers = #tpu.dot_dimension_numbers<[1], [0], [0], [1], [0, 0, 1, 1], [], []>} : vector<96x96xbf16>, vector<96x32xbf16>, vector<96x32xf32> -> vector<96x32xf32>
    %451 = vector.broadcast %442 : vector<1x32xf32> to vector<96x32xf32>
    %452 = arith.addf %450, %451 : vector<96x32xf32>
    %cst_453 = arith.constant 0.000000e+00 : f32
    %453 = vector.broadcast %cst_453 : f32 to vector<96x32xf32>
    %454 = arith.maximumf %452, %453 : vector<96x32xf32>
    %cst_454 = arith.constant 0.000000e+00 : f32
    %455 = vector.broadcast %cst_454 : f32 to vector<8x32xf32>
    %456 = vector.extract_strided_slice %454 {offsets = [0, 0], sizes = [16, 32], strides = [1, 1]} : vector<96x32xf32> to vector<16x32xf32>
    %c8_455 = arith.constant 8 : index
    %c0_456 = arith.constant 0 : index
    %457 = vector.load %arg57[%c8_455, %c0_456] : memref<112x32xf32, #tpu.memory_space<vmem>>, vector<16x32xf32>
    tpu.vector_store %arg57[%c8_455, %c0_456], %456 {strides = array<i32>} : memref<112x32xf32, #tpu.memory_space<vmem>>, vector<16x32xf32>,
    %c24_457 = arith.constant 24 : index
    %c0_458 = arith.constant 0 : index
    %458 = vector.load %arg57[%c24_457, %c0_458] : memref<112x32xf32, #tpu.memory_space<vmem>>, vector<8x32xf32>
    tpu.vector_store %arg57[%c24_457, %c0_458], %455 {strides = array<i32>} : memref<112x32xf32, #tpu.memory_space<vmem>>, vector<8x32xf32>,
    %459 = vector.extract_strided_slice %454 {offsets = [48, 0], sizes = [16, 32], strides = [1, 1]} : vector<96x32xf32> to vector<16x32xf32>
    %c56_459 = arith.constant 56 : index
    %c0_460 = arith.constant 0 : index
    %460 = vector.load %arg57[%c56_459, %c0_460] : memref<112x32xf32, #tpu.memory_space<vmem>>, vector<16x32xf32>
    tpu.vector_store %arg57[%c56_459, %c0_460], %459 {strides = array<i32>} : memref<112x32xf32, #tpu.memory_space<vmem>>, vector<16x32xf32>,
    %c72_461 = arith.constant 72 : index
    %c0_462 = arith.constant 0 : index
    %461 = vector.load %arg57[%c72_461, %c0_462] : memref<112x32xf32, #tpu.memory_space<vmem>>, vector<8x32xf32>
    tpu.vector_store %arg57[%c72_461, %c0_462], %455 {strides = array<i32>} : memref<112x32xf32, #tpu.memory_space<vmem>>, vector<8x32xf32>,
    %c0_463 = arith.constant 0 : index
    %c0_464 = arith.constant 0 : index
    %462 = vector.load %arg39[%c0_463, %c0_464] : memref<32x32xbf16, #tpu.memory_space<vmem>>, vector<32x32xbf16>
    %c0_465 = arith.constant 0 : index
    %c0_466 = arith.constant 0 : index
    %463 = vector.load %arg40[%c0_465, %c0_466] : memref<1x32xf32, #tpu.memory_space<vmem>>, vector<1x32xf32>
    %c8_467 = arith.constant 8 : index
    %c0_468 = arith.constant 0 : index
    %464 = vector.load %arg57[%c8_467, %c0_468] : memref<112x32xf32, #tpu.memory_space<vmem>>, vector<96x32xf32>
    %465 = arith.truncf %464 : vector<96x32xf32> to vector<96x32xbf16>
    %cst_469 = arith.constant dense<0.000000e+00> : vector<96x32xf32>
    %466 = tpu.matmul %465, %462, %cst_469 {dimension_numbers = #tpu.dot_dimension_numbers<[1], [0], [0], [1], [0, 0, 1, 1], [], []>} : vector<96x32xbf16>, vector<32x32xbf16>, vector<96x32xf32> -> vector<96x32xf32>
    %467 = vector.broadcast %463 : vector<1x32xf32> to vector<96x32xf32>
    %468 = arith.addf %466, %467 : vector<96x32xf32>
    %c8_470 = arith.constant 8 : index
    %c0_471 = arith.constant 0 : index
    %469 = vector.load %arg59[%c8_470, %c0_471] : memref<112x32xf32, #tpu.memory_space<vmem>>, vector<96x32xf32>
    %470 = arith.addf %468, %469 : vector<96x32xf32>
    %cst_472 = arith.constant 0.000000e+00 : f32
    %471 = vector.broadcast %cst_472 : f32 to vector<8x32xf32>
    %472 = vector.extract_strided_slice %470 {offsets = [0, 0], sizes = [16, 32], strides = [1, 1]} : vector<96x32xf32> to vector<16x32xf32>
    %c8_473 = arith.constant 8 : index
    %c0_474 = arith.constant 0 : index
    %473 = vector.load %arg58[%c8_473, %c0_474] : memref<112x32xf32, #tpu.memory_space<vmem>>, vector<16x32xf32>
    tpu.vector_store %arg58[%c8_473, %c0_474], %472 {strides = array<i32>} : memref<112x32xf32, #tpu.memory_space<vmem>>, vector<16x32xf32>,
    %c24_475 = arith.constant 24 : index
    %c0_476 = arith.constant 0 : index
    %474 = vector.load %arg58[%c24_475, %c0_476] : memref<112x32xf32, #tpu.memory_space<vmem>>, vector<8x32xf32>
    tpu.vector_store %arg58[%c24_475, %c0_476], %471 {strides = array<i32>} : memref<112x32xf32, #tpu.memory_space<vmem>>, vector<8x32xf32>,
    %475 = vector.extract_strided_slice %470 {offsets = [48, 0], sizes = [16, 32], strides = [1, 1]} : vector<96x32xf32> to vector<16x32xf32>
    %c56_477 = arith.constant 56 : index
    %c0_478 = arith.constant 0 : index
    %476 = vector.load %arg58[%c56_477, %c0_478] : memref<112x32xf32, #tpu.memory_space<vmem>>, vector<16x32xf32>
    tpu.vector_store %arg58[%c56_477, %c0_478], %475 {strides = array<i32>} : memref<112x32xf32, #tpu.memory_space<vmem>>, vector<16x32xf32>,
    %c72_479 = arith.constant 72 : index
    %c0_480 = arith.constant 0 : index
    %477 = vector.load %arg58[%c72_479, %c0_480] : memref<112x32xf32, #tpu.memory_space<vmem>>, vector<8x32xf32>
    tpu.vector_store %arg58[%c72_479, %c0_480], %471 {strides = array<i32>} : memref<112x32xf32, #tpu.memory_space<vmem>>, vector<8x32xf32>,
    %c0_481 = arith.constant 0 : index
    %c0_482 = arith.constant 0 : index
    %478 = vector.load %arg41[%c0_481, %c0_482] : memref<96x32xbf16, #tpu.memory_space<vmem>>, vector<96x32xbf16>
    %c0_483 = arith.constant 0 : index
    %c0_484 = arith.constant 0 : index
    %479 = vector.load %arg42[%c0_483, %c0_484] : memref<1x32xf32, #tpu.memory_space<vmem>>, vector<1x32xf32>
    %c7_485 = arith.constant 7 : index
    %c0_486 = arith.constant 0 : index
    %480 = vector.load %arg58[%c7_485, %c0_486] : memref<112x32xf32, #tpu.memory_space<vmem>>, vector<96x32xf32>
    %c8_487 = arith.constant 8 : index
    %c0_488 = arith.constant 0 : index
    %481 = vector.load %arg58[%c8_487, %c0_488] : memref<112x32xf32, #tpu.memory_space<vmem>>, vector<96x32xf32>
    %c9_489 = arith.constant 9 : index
    %c0_490 = arith.constant 0 : index
    %482 = vector.load %arg58[%c9_489, %c0_490] : memref<112x32xf32, #tpu.memory_space<vmem>>, vector<96x32xf32>
    %483 = tpu.concatenate %480, %481, %482 in 1 : vector<96x32xf32>, vector<96x32xf32>, vector<96x32xf32> -> vector<96x96xf32>
    %cst_491 = arith.constant 0.000000e+00 : f32
    %484 = vector.broadcast %cst_491 : f32 to vector<96x96xf32>
    %485 = arith.maximumf %483, %484 : vector<96x96xf32>
    %486 = arith.truncf %485 : vector<96x96xf32> to vector<96x96xbf16>
    %cst_492 = arith.constant dense<0.000000e+00> : vector<96x32xf32>
    %487 = tpu.matmul %486, %478, %cst_492 {dimension_numbers = #tpu.dot_dimension_numbers<[1], [0], [0], [1], [0, 0, 1, 1], [], []>} : vector<96x96xbf16>, vector<96x32xbf16>, vector<96x32xf32> -> vector<96x32xf32>
    %488 = vector.broadcast %479 : vector<1x32xf32> to vector<96x32xf32>
    %489 = arith.addf %487, %488 : vector<96x32xf32>
    %cst_493 = arith.constant 0.000000e+00 : f32
    %490 = vector.broadcast %cst_493 : f32 to vector<96x32xf32>
    %491 = arith.maximumf %489, %490 : vector<96x32xf32>
    %cst_494 = arith.constant 0.000000e+00 : f32
    %492 = vector.broadcast %cst_494 : f32 to vector<8x32xf32>
    %493 = vector.extract_strided_slice %491 {offsets = [0, 0], sizes = [16, 32], strides = [1, 1]} : vector<96x32xf32> to vector<16x32xf32>
    %c8_495 = arith.constant 8 : index
    %c0_496 = arith.constant 0 : index
    %494 = vector.load %arg59[%c8_495, %c0_496] : memref<112x32xf32, #tpu.memory_space<vmem>>, vector<16x32xf32>
    tpu.vector_store %arg59[%c8_495, %c0_496], %493 {strides = array<i32>} : memref<112x32xf32, #tpu.memory_space<vmem>>, vector<16x32xf32>,
    %c24_497 = arith.constant 24 : index
    %c0_498 = arith.constant 0 : index
    %495 = vector.load %arg59[%c24_497, %c0_498] : memref<112x32xf32, #tpu.memory_space<vmem>>, vector<8x32xf32>
    tpu.vector_store %arg59[%c24_497, %c0_498], %492 {strides = array<i32>} : memref<112x32xf32, #tpu.memory_space<vmem>>, vector<8x32xf32>,
    %496 = vector.extract_strided_slice %491 {offsets = [48, 0], sizes = [16, 32], strides = [1, 1]} : vector<96x32xf32> to vector<16x32xf32>
    %c56_499 = arith.constant 56 : index
    %c0_500 = arith.constant 0 : index
    %497 = vector.load %arg59[%c56_499, %c0_500] : memref<112x32xf32, #tpu.memory_space<vmem>>, vector<16x32xf32>
    tpu.vector_store %arg59[%c56_499, %c0_500], %496 {strides = array<i32>} : memref<112x32xf32, #tpu.memory_space<vmem>>, vector<16x32xf32>,
    %c72_501 = arith.constant 72 : index
    %c0_502 = arith.constant 0 : index
    %498 = vector.load %arg59[%c72_501, %c0_502] : memref<112x32xf32, #tpu.memory_space<vmem>>, vector<8x32xf32>
    tpu.vector_store %arg59[%c72_501, %c0_502], %492 {strides = array<i32>} : memref<112x32xf32, #tpu.memory_space<vmem>>, vector<8x32xf32>,
    %c0_503 = arith.constant 0 : index
    %c0_504 = arith.constant 0 : index
    %499 = vector.load %arg43[%c0_503, %c0_504] : memref<32x32xbf16, #tpu.memory_space<vmem>>, vector<32x32xbf16>
    %c0_505 = arith.constant 0 : index
    %c0_506 = arith.constant 0 : index
    %500 = vector.load %arg44[%c0_505, %c0_506] : memref<1x32xf32, #tpu.memory_space<vmem>>, vector<1x32xf32>
    %c8_507 = arith.constant 8 : index
    %c0_508 = arith.constant 0 : index
    %501 = vector.load %arg59[%c8_507, %c0_508] : memref<112x32xf32, #tpu.memory_space<vmem>>, vector<96x32xf32>
    %502 = arith.truncf %501 : vector<96x32xf32> to vector<96x32xbf16>
    %cst_509 = arith.constant dense<0.000000e+00> : vector<96x32xf32>
    %503 = tpu.matmul %502, %499, %cst_509 {dimension_numbers = #tpu.dot_dimension_numbers<[1], [0], [0], [1], [0, 0, 1, 1], [], []>} : vector<96x32xbf16>, vector<32x32xbf16>, vector<96x32xf32> -> vector<96x32xf32>
    %504 = vector.broadcast %500 : vector<1x32xf32> to vector<96x32xf32>
    %505 = arith.addf %503, %504 : vector<96x32xf32>
    %c8_510 = arith.constant 8 : index
    %c0_511 = arith.constant 0 : index
    %506 = vector.load %arg58[%c8_510, %c0_511] : memref<112x32xf32, #tpu.memory_space<vmem>>, vector<96x32xf32>
    %507 = arith.addf %505, %506 : vector<96x32xf32>
    %cst_512 = arith.constant 0.000000e+00 : f32
    %508 = vector.broadcast %cst_512 : f32 to vector<8x32xf32>
    %509 = vector.extract_strided_slice %507 {offsets = [0, 0], sizes = [16, 32], strides = [1, 1]} : vector<96x32xf32> to vector<16x32xf32>
    %c8_513 = arith.constant 8 : index
    %c0_514 = arith.constant 0 : index
    %510 = vector.load %arg57[%c8_513, %c0_514] : memref<112x32xf32, #tpu.memory_space<vmem>>, vector<16x32xf32>
    tpu.vector_store %arg57[%c8_513, %c0_514], %509 {strides = array<i32>} : memref<112x32xf32, #tpu.memory_space<vmem>>, vector<16x32xf32>,
    %c24_515 = arith.constant 24 : index
    %c0_516 = arith.constant 0 : index
    %511 = vector.load %arg57[%c24_515, %c0_516] : memref<112x32xf32, #tpu.memory_space<vmem>>, vector<8x32xf32>
    tpu.vector_store %arg57[%c24_515, %c0_516], %508 {strides = array<i32>} : memref<112x32xf32, #tpu.memory_space<vmem>>, vector<8x32xf32>,
    %512 = vector.extract_strided_slice %507 {offsets = [48, 0], sizes = [16, 32], strides = [1, 1]} : vector<96x32xf32> to vector<16x32xf32>
    %c56_517 = arith.constant 56 : index
    %c0_518 = arith.constant 0 : index
    %513 = vector.load %arg57[%c56_517, %c0_518] : memref<112x32xf32, #tpu.memory_space<vmem>>, vector<16x32xf32>
    tpu.vector_store %arg57[%c56_517, %c0_518], %512 {strides = array<i32>} : memref<112x32xf32, #tpu.memory_space<vmem>>, vector<16x32xf32>,
    %c72_519 = arith.constant 72 : index
    %c0_520 = arith.constant 0 : index
    %514 = vector.load %arg57[%c72_519, %c0_520] : memref<112x32xf32, #tpu.memory_space<vmem>>, vector<8x32xf32>
    tpu.vector_store %arg57[%c72_519, %c0_520], %508 {strides = array<i32>} : memref<112x32xf32, #tpu.memory_space<vmem>>, vector<8x32xf32>,
    %515 = tpu.iota {dimensions = array<i32: 0>} : vector<32x16xi32>
    %516 = tpu.iota {dimensions = array<i32: 1>} : vector<32x16xi32>
    %c2_i32_521 = arith.constant 2 : i32
    %517 = vector.broadcast %c2_i32_521 : i32 to vector<32x16xi32>
    %518 = arith.muli %517, %516 : vector<32x16xi32>
    %519 = arith.cmpi sge, %515, %518 : vector<32x16xi32>
    %c1_i32_522 = arith.constant 1 : i32
    %520 = vector.broadcast %c1_i32_522 : i32 to vector<32x16xi32>
    %521 = arith.addi %516, %520 : vector<32x16xi32>
    %c2_i32_523 = arith.constant 2 : i32
    %522 = vector.broadcast %c2_i32_523 : i32 to vector<32x16xi32>
    %523 = arith.muli %522, %521 : vector<32x16xi32>
    %524 = arith.cmpi slt, %515, %523 : vector<32x16xi32>
    %525 = arith.andi %519, %524 : vector<32x16xi1>
    %526 = arith.extui %525 : vector<32x16xi1> to vector<32x16xi32>
    %527 = arith.sitofp %526 : vector<32x16xi32> to vector<32x16xf32>
    %cst_524 = arith.constant 0.000000e+00 : f32
    %528 = vector.broadcast %cst_524 : f32 to vector<8x32xf32>
    %c8_525 = arith.constant 8 : index
    %c0_526 = arith.constant 0 : index
    %529 = vector.load %arg57[%c8_525, %c0_526] : memref<112x32xf32, #tpu.memory_space<vmem>>, vector<16x32xf32>
    %cst_527 = arith.constant dense<0.000000e+00> : vector<32x32xf32>
    %530 = tpu.matmul %527, %529, %cst_527 {dimension_numbers = #tpu.dot_dimension_numbers<[1], [0], [0], [1], [0, 0, 1, 1], [], []>} : vector<32x16xf32>, vector<16x32xf32>, vector<32x32xf32> -> vector<32x32xf32>
    %c8_528 = arith.constant 8 : index
    %c0_529 = arith.constant 0 : index
    %531 = vector.load %arg58[%c8_528, %c0_529] : memref<112x32xf32, #tpu.memory_space<vmem>>, vector<32x32xf32>
    tpu.vector_store %arg58[%c8_528, %c0_529], %530 {strides = array<i32>} : memref<112x32xf32, #tpu.memory_space<vmem>>, vector<32x32xf32>,
    %c40_530 = arith.constant 40 : index
    %c0_531 = arith.constant 0 : index
    %532 = vector.load %arg58[%c40_530, %c0_531] : memref<112x32xf32, #tpu.memory_space<vmem>>, vector<8x32xf32>
    tpu.vector_store %arg58[%c40_530, %c0_531], %528 {strides = array<i32>} : memref<112x32xf32, #tpu.memory_space<vmem>>, vector<8x32xf32>,
    %c56_532 = arith.constant 56 : index
    %c0_533 = arith.constant 0 : index
    %533 = vector.load %arg57[%c56_532, %c0_533] : memref<112x32xf32, #tpu.memory_space<vmem>>, vector<16x32xf32>
    %cst_534 = arith.constant dense<0.000000e+00> : vector<32x32xf32>
    %534 = tpu.matmul %527, %533, %cst_534 {dimension_numbers = #tpu.dot_dimension_numbers<[1], [0], [0], [1], [0, 0, 1, 1], [], []>} : vector<32x16xf32>, vector<16x32xf32>, vector<32x32xf32> -> vector<32x32xf32>
    %c56_535 = arith.constant 56 : index
    %c0_536 = arith.constant 0 : index
    %535 = vector.load %arg58[%c56_535, %c0_536] : memref<112x32xf32, #tpu.memory_space<vmem>>, vector<32x32xf32>
    tpu.vector_store %arg58[%c56_535, %c0_536], %534 {strides = array<i32>} : memref<112x32xf32, #tpu.memory_space<vmem>>, vector<32x32xf32>,
    %c88_537 = arith.constant 88 : index
    %c0_538 = arith.constant 0 : index
    %536 = vector.load %arg58[%c88_537, %c0_538] : memref<112x32xf32, #tpu.memory_space<vmem>>, vector<8x32xf32>
    tpu.vector_store %arg58[%c88_537, %c0_538], %528 {strides = array<i32>} : memref<112x32xf32, #tpu.memory_space<vmem>>, vector<8x32xf32>,
    %c0_539 = arith.constant 0 : index
    %c0_540 = arith.constant 0 : index
    %537 = vector.load %arg45[%c0_539, %c0_540] : memref<96x32xbf16, #tpu.memory_space<vmem>>, vector<96x32xbf16>
    %c0_541 = arith.constant 0 : index
    %c0_542 = arith.constant 0 : index
    %538 = vector.load %arg46[%c0_541, %c0_542] : memref<1x32xf32, #tpu.memory_space<vmem>>, vector<1x32xf32>
    %c7_543 = arith.constant 7 : index
    %c0_544 = arith.constant 0 : index
    %539 = vector.load %arg58[%c7_543, %c0_544] : memref<112x32xf32, #tpu.memory_space<vmem>>, vector<96x32xf32>
    %c8_545 = arith.constant 8 : index
    %c0_546 = arith.constant 0 : index
    %540 = vector.load %arg58[%c8_545, %c0_546] : memref<112x32xf32, #tpu.memory_space<vmem>>, vector<96x32xf32>
    %c9_547 = arith.constant 9 : index
    %c0_548 = arith.constant 0 : index
    %541 = vector.load %arg58[%c9_547, %c0_548] : memref<112x32xf32, #tpu.memory_space<vmem>>, vector<96x32xf32>
    %542 = tpu.concatenate %539, %540, %541 in 1 : vector<96x32xf32>, vector<96x32xf32>, vector<96x32xf32> -> vector<96x96xf32>
    %543 = arith.truncf %542 : vector<96x96xf32> to vector<96x96xbf16>
    %cst_549 = arith.constant dense<0.000000e+00> : vector<96x32xf32>
    %544 = tpu.matmul %543, %537, %cst_549 {dimension_numbers = #tpu.dot_dimension_numbers<[1], [0], [0], [1], [0, 0, 1, 1], [], []>} : vector<96x96xbf16>, vector<96x32xbf16>, vector<96x32xf32> -> vector<96x32xf32>
    %545 = vector.broadcast %538 : vector<1x32xf32> to vector<96x32xf32>
    %546 = arith.addf %544, %545 : vector<96x32xf32>
    %cst_550 = arith.constant 0.000000e+00 : f32
    %547 = vector.broadcast %cst_550 : f32 to vector<8x32xf32>
    %548 = vector.extract_strided_slice %546 {offsets = [0, 0], sizes = [32, 32], strides = [1, 1]} : vector<96x32xf32> to vector<32x32xf32>
    %c8_551 = arith.constant 8 : index
    %c0_552 = arith.constant 0 : index
    %549 = vector.load %arg59[%c8_551, %c0_552] : memref<112x32xf32, #tpu.memory_space<vmem>>, vector<32x32xf32>
    tpu.vector_store %arg59[%c8_551, %c0_552], %548 {strides = array<i32>} : memref<112x32xf32, #tpu.memory_space<vmem>>, vector<32x32xf32>,
    %c40_553 = arith.constant 40 : index
    %c0_554 = arith.constant 0 : index
    %550 = vector.load %arg59[%c40_553, %c0_554] : memref<112x32xf32, #tpu.memory_space<vmem>>, vector<8x32xf32>
    tpu.vector_store %arg59[%c40_553, %c0_554], %547 {strides = array<i32>} : memref<112x32xf32, #tpu.memory_space<vmem>>, vector<8x32xf32>,
    %551 = vector.extract_strided_slice %546 {offsets = [48, 0], sizes = [32, 32], strides = [1, 1]} : vector<96x32xf32> to vector<32x32xf32>
    %c56_555 = arith.constant 56 : index
    %c0_556 = arith.constant 0 : index
    %552 = vector.load %arg59[%c56_555, %c0_556] : memref<112x32xf32, #tpu.memory_space<vmem>>, vector<32x32xf32>
    tpu.vector_store %arg59[%c56_555, %c0_556], %551 {strides = array<i32>} : memref<112x32xf32, #tpu.memory_space<vmem>>, vector<32x32xf32>,
    %c88_557 = arith.constant 88 : index
    %c0_558 = arith.constant 0 : index
    %553 = vector.load %arg59[%c88_557, %c0_558] : memref<112x32xf32, #tpu.memory_space<vmem>>, vector<8x32xf32>
    tpu.vector_store %arg59[%c88_557, %c0_558], %547 {strides = array<i32>} : memref<112x32xf32, #tpu.memory_space<vmem>>, vector<8x32xf32>,
    %c0_559 = arith.constant 0 : index
    %c0_560 = arith.constant 0 : index
    %554 = vector.load %arg47[%c0_559, %c0_560] : memref<96x32xbf16, #tpu.memory_space<vmem>>, vector<96x32xbf16>
    %c0_561 = arith.constant 0 : index
    %c0_562 = arith.constant 0 : index
    %555 = vector.load %arg48[%c0_561, %c0_562] : memref<1x32xf32, #tpu.memory_space<vmem>>, vector<1x32xf32>
    %c7_563 = arith.constant 7 : index
    %c0_564 = arith.constant 0 : index
    %556 = vector.load %arg59[%c7_563, %c0_564] : memref<112x32xf32, #tpu.memory_space<vmem>>, vector<96x32xf32>
    %c8_565 = arith.constant 8 : index
    %c0_566 = arith.constant 0 : index
    %557 = vector.load %arg59[%c8_565, %c0_566] : memref<112x32xf32, #tpu.memory_space<vmem>>, vector<96x32xf32>
    %c9_567 = arith.constant 9 : index
    %c0_568 = arith.constant 0 : index
    %558 = vector.load %arg59[%c9_567, %c0_568] : memref<112x32xf32, #tpu.memory_space<vmem>>, vector<96x32xf32>
    %559 = tpu.concatenate %556, %557, %558 in 1 : vector<96x32xf32>, vector<96x32xf32>, vector<96x32xf32> -> vector<96x96xf32>
    %560 = arith.truncf %559 : vector<96x96xf32> to vector<96x96xbf16>
    %cst_569 = arith.constant dense<0.000000e+00> : vector<96x32xf32>
    %561 = tpu.matmul %560, %554, %cst_569 {dimension_numbers = #tpu.dot_dimension_numbers<[1], [0], [0], [1], [0, 0, 1, 1], [], []>} : vector<96x96xbf16>, vector<96x32xbf16>, vector<96x32xf32> -> vector<96x32xf32>
    %562 = vector.broadcast %555 : vector<1x32xf32> to vector<96x32xf32>
    %563 = arith.addf %561, %562 : vector<96x32xf32>
    %cst_570 = arith.constant 0.000000e+00 : f32
    %564 = vector.broadcast %cst_570 : f32 to vector<96x32xf32>
    %565 = arith.maximumf %563, %564 : vector<96x32xf32>
    %cst_571 = arith.constant 0.000000e+00 : f32
    %566 = vector.broadcast %cst_571 : f32 to vector<8x32xf32>
    %567 = vector.extract_strided_slice %565 {offsets = [0, 0], sizes = [32, 32], strides = [1, 1]} : vector<96x32xf32> to vector<32x32xf32>
    %c8_572 = arith.constant 8 : index
    %c0_573 = arith.constant 0 : index
    %568 = vector.load %arg57[%c8_572, %c0_573] : memref<112x32xf32, #tpu.memory_space<vmem>>, vector<32x32xf32>
    tpu.vector_store %arg57[%c8_572, %c0_573], %567 {strides = array<i32>} : memref<112x32xf32, #tpu.memory_space<vmem>>, vector<32x32xf32>,
    %c40_574 = arith.constant 40 : index
    %c0_575 = arith.constant 0 : index
    %569 = vector.load %arg57[%c40_574, %c0_575] : memref<112x32xf32, #tpu.memory_space<vmem>>, vector<8x32xf32>
    tpu.vector_store %arg57[%c40_574, %c0_575], %566 {strides = array<i32>} : memref<112x32xf32, #tpu.memory_space<vmem>>, vector<8x32xf32>,
    %570 = vector.extract_strided_slice %565 {offsets = [48, 0], sizes = [32, 32], strides = [1, 1]} : vector<96x32xf32> to vector<32x32xf32>
    %c56_576 = arith.constant 56 : index
    %c0_577 = arith.constant 0 : index
    %571 = vector.load %arg57[%c56_576, %c0_577] : memref<112x32xf32, #tpu.memory_space<vmem>>, vector<32x32xf32>
    tpu.vector_store %arg57[%c56_576, %c0_577], %570 {strides = array<i32>} : memref<112x32xf32, #tpu.memory_space<vmem>>, vector<32x32xf32>,
    %c88_578 = arith.constant 88 : index
    %c0_579 = arith.constant 0 : index
    %572 = vector.load %arg57[%c88_578, %c0_579] : memref<112x32xf32, #tpu.memory_space<vmem>>, vector<8x32xf32>
    tpu.vector_store %arg57[%c88_578, %c0_579], %566 {strides = array<i32>} : memref<112x32xf32, #tpu.memory_space<vmem>>, vector<8x32xf32>,
    %c0_580 = arith.constant 0 : index
    %c0_581 = arith.constant 0 : index
    %573 = vector.load %arg49[%c0_580, %c0_581] : memref<96x16xbf16, #tpu.memory_space<vmem>>, vector<96x16xbf16>
    %c0_582 = arith.constant 0 : index
    %c0_583 = arith.constant 0 : index
    %574 = vector.load %arg50[%c0_582, %c0_583] : memref<1x16xf32, #tpu.memory_space<vmem>>, vector<1x16xf32>
    %c7_584 = arith.constant 7 : index
    %c0_585 = arith.constant 0 : index
    %575 = vector.load %arg57[%c7_584, %c0_585] : memref<112x32xf32, #tpu.memory_space<vmem>>, vector<96x32xf32>
    %c8_586 = arith.constant 8 : index
    %c0_587 = arith.constant 0 : index
    %576 = vector.load %arg57[%c8_586, %c0_587] : memref<112x32xf32, #tpu.memory_space<vmem>>, vector<96x32xf32>
    %c9_588 = arith.constant 9 : index
    %c0_589 = arith.constant 0 : index
    %577 = vector.load %arg57[%c9_588, %c0_589] : memref<112x32xf32, #tpu.memory_space<vmem>>, vector<96x32xf32>
    %578 = tpu.concatenate %575, %576, %577 in 1 : vector<96x32xf32>, vector<96x32xf32>, vector<96x32xf32> -> vector<96x96xf32>
    %579 = arith.truncf %578 : vector<96x96xf32> to vector<96x96xbf16>
    %cst_590 = arith.constant dense<0.000000e+00> : vector<96x16xf32>
    %580 = tpu.matmul %579, %573, %cst_590 {dimension_numbers = #tpu.dot_dimension_numbers<[1], [0], [0], [1], [0, 0, 1, 1], [], []>} : vector<96x96xbf16>, vector<96x16xbf16>, vector<96x16xf32> -> vector<96x16xf32>
    %581 = vector.broadcast %574 : vector<1x16xf32> to vector<96x16xf32>
    %582 = arith.addf %580, %581 : vector<96x16xf32>
    %583 = vector.extract_strided_slice %582 {offsets = [0, 0], sizes = [32, 16], strides = [1, 1]} : vector<96x16xf32> to vector<32x16xf32>
    %c0_591 = arith.constant 0 : index
    %c0_592 = arith.constant 0 : index
    %c0_593 = arith.constant 0 : index
    %584 = vector.load %arg52[%c0_591, %c0_592, %c0_593] : memref<2x32x16xf32, #tpu.memory_space<vmem>>, vector<1x32x16xf32>
    %585 = vector.shape_cast %584 : vector<1x32x16xf32> to vector<32x16xf32>
    %586 = vector.shape_cast %583 : vector<32x16xf32> to vector<1x32x16xf32>
    tpu.vector_store %arg52[%c0_591, %c0_592, %c0_593], %586 {strides = array<i32>} : memref<2x32x16xf32, #tpu.memory_space<vmem>>, vector<1x32x16xf32>,
    %587 = vector.extract_strided_slice %582 {offsets = [48, 0], sizes = [32, 16], strides = [1, 1]} : vector<96x16xf32> to vector<32x16xf32>
    %c1_594 = arith.constant 1 : index
    %c0_595 = arith.constant 0 : index
    %c0_596 = arith.constant 0 : index
    %588 = vector.load %arg52[%c1_594, %c0_595, %c0_596] : memref<2x32x16xf32, #tpu.memory_space<vmem>>, vector<1x32x16xf32>
    %589 = vector.shape_cast %588 : vector<1x32x16xf32> to vector<32x16xf32>
    %590 = vector.shape_cast %587 : vector<32x16xf32> to vector<1x32x16xf32>
    tpu.vector_store %arg52[%c1_594, %c0_595, %c0_596], %590 {strides = array<i32>} : memref<2x32x16xf32, #tpu.memory_space<vmem>>, vector<1x32x16xf32>,
    return
  }
}

</mosaic_0001>

<llo_original>
// kernel: vqvae_forward.1
$region0: #{vqvae_forward.1}
  #allocation0 [shape = 'u32[]', space=smem, size = 0x4, offset = 0x4, fixed_abs, tag = 'smem constant byte address 0x4 - core index']
  #allocation1 [shape = 'u32[144,128]{1,0:T(1,128)}', space=vmem, size = 0x12000, scoped, tag = 'internal scratch']
  #allocation2 [shape = 'f32[112,32]{1,0:T(8,128)}', space=vmem, size = 0xe000, scoped, tag = 'scratch operand']
  #allocation3 [shape = 'f32[112,32]{1,0:T(8,128)}', space=vmem, size = 0xe000, scoped, tag = 'scratch operand']
  #allocation4 [shape = 'f32[112,32]{1,0:T(8,128)}', space=vmem, size = 0xe000, scoped, tag = 'scratch operand']
  %s0 = inlined_call_operand.smem [shape: u32[57], index: -1, kind: input, shape index: {}]
  %s1 = sld [smem:[%s0]]
  %s2 = scalar_lea.smem %s0, 1
  %s3 = sld [smem:[%s2]]
  %s4 = scalar_lea.smem %s0, 2
  %s5 = sld [smem:[%s4]]
  %s6 = scalar_lea.smem %s0, 3
  %s7 = sld [smem:[%s6]]
  %s8 = scalar_lea.smem %s0, 4
  %s9 = sld [smem:[%s8]]
  %s10 = scalar_lea.smem %s0, 5
  %s11 = sld [smem:[%s10]]
  %s12 = scalar_lea.smem %s0, 6
  %s13 = sld [smem:[%s12]]
  %s14 = scalar_lea.smem %s0, 7
  %s15 = sld [smem:[%s14]]
  %s16 = scalar_lea.smem %s0, 8
  %s17 = sld [smem:[%s16]]
  %s18 = scalar_lea.smem %s0, 9
  %s19 = sld [smem:[%s18]]
  %s20 = scalar_lea.smem %s0, 10
  %s21 = sld [smem:[%s20]]
  %s22 = scalar_lea.smem %s0, 11
  %s23 = sld [smem:[%s22]]
  %s24 = scalar_lea.smem %s0, 12
  %s25 = sld [smem:[%s24]]
  %s26 = scalar_lea.smem %s0, 13
  %s27 = sld [smem:[%s26]]
  %s28 = scalar_lea.smem %s0, 14
  %s29 = sld [smem:[%s28]]
  %s30 = scalar_lea.smem %s0, 15
  %s31 = sld [smem:[%s30]]
  %s32 = scalar_lea.smem %s0, 16
  %s33 = sld [smem:[%s32]]
  %s34 = scalar_lea.smem %s0, 17
  %s35 = sld [smem:[%s34]]
  %s36 = scalar_lea.smem %s0, 18
  %s37 = sld [smem:[%s36]]
  %s38 = scalar_lea.smem %s0, 19
  %s39 = sld [smem:[%s38]]
  %s40 = scalar_lea.smem %s0, 20
  %s41 = sld [smem:[%s40]]
  %s42 = scalar_lea.smem %s0, 21
  %s43 = sld [smem:[%s42]]
  %s44 = scalar_lea.smem %s0, 22
  %s45 = sld [smem:[%s44]]
  %s46 = scalar_lea.smem %s0, 23
  %s47 = sld [smem:[%s46]]
  %s48 = scalar_lea.smem %s0, 24
  %s49 = sld [smem:[%s48]]
  %s50 = scalar_lea.smem %s0, 25
  %s51 = sld [smem:[%s50]]
  %s52 = scalar_lea.smem %s0, 26
  %s53 = sld [smem:[%s52]]
  %s54 = scalar_lea.smem %s0, 27
  %s55 = sld [smem:[%s54]]
  %s56 = scalar_lea.smem %s0, 28
  %s57 = sld [smem:[%s56]]
  %s58 = scalar_lea.smem %s0, 29
  %s59 = sld [smem:[%s58]]
  %s60 = scalar_lea.smem %s0, 30
  %s61 = sld [smem:[%s60]]
  %s62 = scalar_lea.smem %s0, 31
  %s63 = sld [smem:[%s62]]
  %s64 = scalar_lea.smem %s0, 32
  %s65 = sld [smem:[%s64]]
  %s66 = scalar_lea.smem %s0, 33
  %s67 = sld [smem:[%s66]]
  %s68 = scalar_lea.smem %s0, 34
  %s69 = sld [smem:[%s68]]
  %s70 = scalar_lea.smem %s0, 35
  %s71 = sld [smem:[%s70]]
  %s72 = scalar_lea.smem %s0, 36
  %s73 = sld [smem:[%s72]]
  %s74 = scalar_lea.smem %s0, 37
  %s75 = sld [smem:[%s74]]
  %s76 = scalar_lea.smem %s0, 38
  %s77 = sld [smem:[%s76]]
  %s78 = scalar_lea.smem %s0, 39
  %s79 = sld [smem:[%s78]]
  %s80 = scalar_lea.smem %s0, 40
  %s81 = sld [smem:[%s80]]
  %s82 = scalar_lea.smem %s0, 41
  %s83 = sld [smem:[%s82]]
  %s84 = scalar_lea.smem %s0, 42
  %s85 = sld [smem:[%s84]]
  %s86 = scalar_lea.smem %s0, 43
  %s87 = sld [smem:[%s86]]
  %s88 = scalar_lea.smem %s0, 44
  %s89 = sld [smem:[%s88]]
  %s90 = scalar_lea.smem %s0, 45
  %s91 = sld [smem:[%s90]]
  %s92 = scalar_lea.smem %s0, 46
  %s93 = sld [smem:[%s92]]
  %s94 = scalar_lea.smem %s0, 47
  %s95 = sld [smem:[%s94]]
  %s96 = scalar_lea.smem %s0, 48
  %s97 = sld [smem:[%s96]]
  %s98 = scalar_lea.smem %s0, 49
  %s99 = sld [smem:[%s98]]
  %s100 = scalar_lea.smem %s0, 50
  %s101 = sld [smem:[%s100]]
  %s102 = scalar_lea.smem %s0, 51
  %s103 = sld [smem:[%s102]]
  %s104 = scalar_lea.smem %s0, 52
  %s105 = sld [smem:[%s104]]
  %s106 = scalar_lea.smem %s0, 53
  %s107 = sld [smem:[%s106]]
  %s108 = scalar_lea.smem %s0, 54
  %s109 = sld [smem:[%s108]]
  %s110 = scalar_lea.smem %s0, 55
  %s111 = sld [smem:[%s110]]
  %s112 = scalar_lea.smem %s0, 56
  %s113 = sld [smem:[%s112]]
  %114 = xla_tuple %s105, %s107, %s109, %s111, %s113
  %s115 = sld [smem:[#allocation0]]
  $region250: #{vqvae_forward.1} parent=0
    _
  %s117 = ssub.s32 1, %s115
  %s118 = scalar_select 0, %s117, %s115
  $region1: #{vqvae_forward.1} parent=0
    #allocation5 [shape = 'u8[512]{0}', space=vmem, size = 0x400, scoped, tag = 'output window, operand 2, single buffered']
    #allocation6 [shape = 's32[1]{0}', space=sflag, size = 0x4, scoped, tag = 'scoped memory for vqvae_forward.1']
    #allocation7 [shape = 'u8[512]{0}', space=vmem, size = 0x400, scoped, tag = 'output window, operand 3, single buffered']
    #allocation8 [shape = 's32[1]{0}', space=sflag, size = 0x4, scoped, tag = 'scoped memory for vqvae_forward.1']
    #allocation9 [shape = 'u8[8192]{0}', space=vmem, size = 0x2000, scoped, tag = 'output window, operand 4, single buffered']
    %119 = vsyncpa [#allocation6], 0
    %120 = vsyncpa [#allocation8], 0
    // Predicated region
    $region2: #{vqvae_forward.1} parent=1 // pred_check
      _
    $region3: #{vqvae_forward.1} parent=1 // pred_check_branch
      %122 = sbr.rel (0) target = $region5
    $region4: #{vqvae_forward.1} parent=1 // pred_region
      _
    $region5: #{vqvae_forward.1} parent=1 // pred_fallthru
      _
    // Predicated region
    $region6: #{vqvae_forward.1} parent=1 // pred_check
      _
    $region7: #{vqvae_forward.1} parent=1 // pred_check_branch
      %124 = sbr.rel (0) target = $region9
    $region8: #{vqvae_forward.1} parent=1 // pred_region
      _
    $region9: #{vqvae_forward.1} parent=1 // pred_fallthru
      _
    // Predicated region
    $region10: #{vqvae_forward.1} parent=1 // pred_check
      _
    $region11: #{vqvae_forward.1} parent=1 // pred_check_branch
      %126 = sbr.rel (0) target = $region13
    $region12: #{vqvae_forward.1} parent=1 // pred_region
      _
    $region13: #{vqvae_forward.1} parent=1 // pred_fallthru
      _
    // Predicated region
    $region14: #{vqvae_forward.1} parent=1 // pred_check
      _
    $region15: #{vqvae_forward.1} parent=1 // pred_check_branch
      %128 = sbr.rel (0) target = $region17
    $region16: #{vqvae_forward.1} parent=1 // pred_region
      _
    $region17: #{vqvae_forward.1} parent=1 // pred_fallthru
      _
    // Predicated region
    $region18: #{vqvae_forward.1} parent=1 // pred_check
      _
    $region19: #{vqvae_forward.1} parent=1 // pred_check_branch
      %130 = sbr.rel (0) target = $region21
    $region20: #{vqvae_forward.1} parent=1 // pred_region
      _
    $region21: #{vqvae_forward.1} parent=1 // pred_fallthru
      _
    // Predicated region
    $region22: #{vqvae_forward.1} parent=1 // pred_check
      _
    $region23: #{vqvae_forward.1} parent=1 // pred_check_branch
      %132 = sbr.rel (0) target = $region25
    $region24: #{vqvae_forward.1} parent=1 // pred_region
      _
    $region25: #{vqvae_forward.1} parent=1 // pred_fallthru
      _
    // Predicated region
    $region26: #{vqvae_forward.1} parent=1 // pred_check
      _
    $region27: #{vqvae_forward.1} parent=1 // pred_check_branch
      %134 = sbr.rel (0) target = $region29
    $region28: #{vqvae_forward.1} parent=1 // pred_region
      _
    $region29: #{vqvae_forward.1} parent=1 // pred_fallthru
      _
    // Predicated region
    $region30: #{vqvae_forward.1} parent=1 // pred_check
      _
    $region31: #{vqvae_forward.1} parent=1 // pred_check_branch
      %136 = sbr.rel (0) target = $region33
    $region32: #{vqvae_forward.1} parent=1 // pred_region
      _
    $region33: #{vqvae_forward.1} parent=1 // pred_fallthru
      _
    // Predicated region
    $region34: #{vqvae_forward.1} parent=1 // pred_check
      _
    $region35: #{vqvae_forward.1} parent=1 // pred_check_branch
      %138 = sbr.rel (0) target = $region37
    $region36: #{vqvae_forward.1} parent=1 // pred_region
      _
    $region37: #{vqvae_forward.1} parent=1 // pred_fallthru
      _
    // Predicated region
    $region38: #{vqvae_forward.1} parent=1 // pred_check
      _
    $region39: #{vqvae_forward.1} parent=1 // pred_check_branch
      %140 = sbr.rel (0) target = $region41
    $region40: #{vqvae_forward.1} parent=1 // pred_region
      _
    $region41: #{vqvae_forward.1} parent=1 // pred_fallthru
      _
    // Predicated region
    $region42: #{vqvae_forward.1} parent=1 // pred_check
      _
    $region43: #{vqvae_forward.1} parent=1 // pred_check_branch
      %142 = sbr.rel (0) target = $region45
    $region44: #{vqvae_forward.1} parent=1 // pred_region
      _
    $region45: #{vqvae_forward.1} parent=1 // pred_fallthru
      _
    // Predicated region
    $region46: #{vqvae_forward.1} parent=1 // pred_check
      _
    $region47: #{vqvae_forward.1} parent=1 // pred_check_branch
      %144 = sbr.rel (0) target = $region49
    $region48: #{vqvae_forward.1} parent=1 // pred_region
      _
    $region49: #{vqvae_forward.1} parent=1 // pred_fallthru
      _
    // Predicated region
    $region50: #{vqvae_forward.1} parent=1 // pred_check
      _
    $region51: #{vqvae_forward.1} parent=1 // pred_check_branch
      %146 = sbr.rel (0) target = $region53
    $region52: #{vqvae_forward.1} parent=1 // pred_region
      _
    $region53: #{vqvae_forward.1} parent=1 // pred_fallthru
      _
    // Predicated region
    $region54: #{vqvae_forward.1} parent=1 // pred_check
      _
    $region55: #{vqvae_forward.1} parent=1 // pred_check_branch
      %148 = sbr.rel (0) target = $region57
    $region56: #{vqvae_forward.1} parent=1 // pred_region
      _
    $region57: #{vqvae_forward.1} parent=1 // pred_fallthru
      _
    // Predicated region
    $region58: #{vqvae_forward.1} parent=1 // pred_check
      _
    $region59: #{vqvae_forward.1} parent=1 // pred_check_branch
      %150 = sbr.rel (0) target = $region61
    $region60: #{vqvae_forward.1} parent=1 // pred_region
      _
    $region61: #{vqvae_forward.1} parent=1 // pred_fallthru
      _
    // Predicated region
    $region62: #{vqvae_forward.1} parent=1 // pred_check
      _
    $region63: #{vqvae_forward.1} parent=1 // pred_check_branch
      %152 = sbr.rel (0) target = $region65
    $region64: #{vqvae_forward.1} parent=1 // pred_region
      _
    $region65: #{vqvae_forward.1} parent=1 // pred_fallthru
      _
    // Predicated region
    $region66: #{vqvae_forward.1} parent=1 // pred_check
      _
    $region67: #{vqvae_forward.1} parent=1 // pred_check_branch
      %154 = sbr.rel (0) target = $region69
    $region68: #{vqvae_forward.1} parent=1 // pred_region
      _
    $region69: #{vqvae_forward.1} parent=1 // pred_fallthru
      _
    // Predicated region
    $region70: #{vqvae_forward.1} parent=1 // pred_check
      _
    $region71: #{vqvae_forward.1} parent=1 // pred_check_branch
      %156 = sbr.rel (0) target = $region73
    $region72: #{vqvae_forward.1} parent=1 // pred_region
      _
    $region73: #{vqvae_forward.1} parent=1 // pred_fallthru
      _
    // Predicated region
    $region74: #{vqvae_forward.1} parent=1 // pred_check
      _
    $region75: #{vqvae_forward.1} parent=1 // pred_check_branch
      %158 = sbr.rel (0) target = $region77
    $region76: #{vqvae_forward.1} parent=1 // pred_region
      _
    $region77: #{vqvae_forward.1} parent=1 // pred_fallthru
      _
    // Predicated region
    $region78: #{vqvae_forward.1} parent=1 // pred_check
      _
    $region79: #{vqvae_forward.1} parent=1 // pred_check_branch
      %160 = sbr.rel (0) target = $region81
    $region80: #{vqvae_forward.1} parent=1 // pred_region
      _
    $region81: #{vqvae_forward.1} parent=1 // pred_fallthru
      _
    // Predicated region
    $region82: #{vqvae_forward.1} parent=1 // pred_check
      _
    $region83: #{vqvae_forward.1} parent=1 // pred_check_branch
      %162 = sbr.rel (0) target = $region85
    $region84: #{vqvae_forward.1} parent=1 // pred_region
      _
    $region85: #{vqvae_forward.1} parent=1 // pred_fallthru
      _
    // Predicated region
    $region86: #{vqvae_forward.1} parent=1 // pred_check
      _
    $region87: #{vqvae_forward.1} parent=1 // pred_check_branch
      %164 = sbr.rel (0) target = $region89
    $region88: #{vqvae_forward.1} parent=1 // pred_region
      _
    $region89: #{vqvae_forward.1} parent=1 // pred_fallthru
      _
    // Predicated region
    $region90: #{vqvae_forward.1} parent=1 // pred_check
      _
    $region91: #{vqvae_forward.1} parent=1 // pred_check_branch
      %166 = sbr.rel (0) target = $region93
    $region92: #{vqvae_forward.1} parent=1 // pred_region
      _
    $region93: #{vqvae_forward.1} parent=1 // pred_fallthru
      _
    // Predicated region
    $region94: #{vqvae_forward.1} parent=1 // pred_check
      _
    $region95: #{vqvae_forward.1} parent=1 // pred_check_branch
      %168 = sbr.rel (0) target = $region97
    $region96: #{vqvae_forward.1} parent=1 // pred_region
      _
    $region97: #{vqvae_forward.1} parent=1 // pred_fallthru
      _
    // Predicated region
    $region98: #{vqvae_forward.1} parent=1 // pred_check
      _
    $region99: #{vqvae_forward.1} parent=1 // pred_check_branch
      %170 = sbr.rel (0) target = $region101
    $region100: #{vqvae_forward.1} parent=1 // pred_region
      _
    $region101: #{vqvae_forward.1} parent=1 // pred_fallthru
      _
    // Predicated region
    $region102: #{vqvae_forward.1} parent=1 // pred_check
      _
    $region103: #{vqvae_forward.1} parent=1 // pred_check_branch
      %172 = sbr.rel (0) target = $region105
    $region104: #{vqvae_forward.1} parent=1 // pred_region
      _
    $region105: #{vqvae_forward.1} parent=1 // pred_fallthru
      _
    // Predicated region
    $region106: #{vqvae_forward.1} parent=1 // pred_check
      _
    $region107: #{vqvae_forward.1} parent=1 // pred_check_branch
      %174 = sbr.rel (0) target = $region109
    $region108: #{vqvae_forward.1} parent=1 // pred_region
      _
    $region109: #{vqvae_forward.1} parent=1 // pred_fallthru
      _
    // Predicated region
    $region110: #{vqvae_forward.1} parent=1 // pred_check
      _
    $region111: #{vqvae_forward.1} parent=1 // pred_check_branch
      %176 = sbr.rel (0) target = $region113
    $region112: #{vqvae_forward.1} parent=1 // pred_region
      _
    $region113: #{vqvae_forward.1} parent=1 // pred_fallthru
      _
    // Predicated region
    $region114: #{vqvae_forward.1} parent=1 // pred_check
      _
    $region115: #{vqvae_forward.1} parent=1 // pred_check_branch
      %178 = sbr.rel (0) target = $region117
    $region116: #{vqvae_forward.1} parent=1 // pred_region
      _
    $region117: #{vqvae_forward.1} parent=1 // pred_fallthru
      _
    // Predicated region
    $region118: #{vqvae_forward.1} parent=1 // pred_check
      _
    $region119: #{vqvae_forward.1} parent=1 // pred_check_branch
      %180 = sbr.rel (0) target = $region121
    $region120: #{vqvae_forward.1} parent=1 // pred_region
      _
    $region121: #{vqvae_forward.1} parent=1 // pred_fallthru
      _
    // Predicated region
    $region122: #{vqvae_forward.1} parent=1 // pred_check
      _
    $region123: #{vqvae_forward.1} parent=1 // pred_check_branch
      %182 = sbr.rel (0) target = $region125
    $region124: #{vqvae_forward.1} parent=1 // pred_region
      _
    $region125: #{vqvae_forward.1} parent=1 // pred_fallthru
      _
    // Predicated region
    $region126: #{vqvae_forward.1} parent=1 // pred_check
      _
    $region127: #{vqvae_forward.1} parent=1 // pred_check_branch
      %184 = sbr.rel (0) target = $region129
    $region128: #{vqvae_forward.1} parent=1 // pred_region
      _
    $region129: #{vqvae_forward.1} parent=1 // pred_fallthru
      _
    // Predicated region
    $region130: #{vqvae_forward.1} parent=1 // pred_check
      _
    $region131: #{vqvae_forward.1} parent=1 // pred_check_branch
      %186 = sbr.rel (0) target = $region133
    $region132: #{vqvae_forward.1} parent=1 // pred_region
      _
    $region133: #{vqvae_forward.1} parent=1 // pred_fallthru
      _
    // Predicated region
    $region134: #{vqvae_forward.1} parent=1 // pred_check
      _
    $region135: #{vqvae_forward.1} parent=1 // pred_check_branch
      %188 = sbr.rel (0) target = $region137
    $region136: #{vqvae_forward.1} parent=1 // pred_region
      _
    $region137: #{vqvae_forward.1} parent=1 // pred_fallthru
      _
    // Predicated region
    $region138: #{vqvae_forward.1} parent=1 // pred_check
      _
    $region139: #{vqvae_forward.1} parent=1 // pred_check_branch
      %190 = sbr.rel (0) target = $region141
    $region140: #{vqvae_forward.1} parent=1 // pred_region
      _
    $region141: #{vqvae_forward.1} parent=1 // pred_fallthru
      _
    // Predicated region
    $region142: #{vqvae_forward.1} parent=1 // pred_check
      _
    $region143: #{vqvae_forward.1} parent=1 // pred_check_branch
      %192 = sbr.rel (0) target = $region145
    $region144: #{vqvae_forward.1} parent=1 // pred_region
      _
    $region145: #{vqvae_forward.1} parent=1 // pred_fallthru
      _
    // Predicated region
    $region146: #{vqvae_forward.1} parent=1 // pred_check
      _
    $region147: #{vqvae_forward.1} parent=1 // pred_check_branch
      %194 = sbr.rel (0) target = $region149
    $region148: #{vqvae_forward.1} parent=1 // pred_region
      _
    $region149: #{vqvae_forward.1} parent=1 // pred_fallthru
      _
    // Predicated region
    $region150: #{vqvae_forward.1} parent=1 // pred_check
      _
    $region151: #{vqvae_forward.1} parent=1 // pred_check_branch
      %196 = sbr.rel (0) target = $region153
    $region152: #{vqvae_forward.1} parent=1 // pred_region
      _
    $region153: #{vqvae_forward.1} parent=1 // pred_fallthru
      _
    // Predicated region
    $region154: #{vqvae_forward.1} parent=1 // pred_check
      _
    $region155: #{vqvae_forward.1} parent=1 // pred_check_branch
      %198 = sbr.rel (0) target = $region157
    $region156: #{vqvae_forward.1} parent=1 // pred_region
      _
    $region157: #{vqvae_forward.1} parent=1 // pred_fallthru
      _
    // Predicated region
    $region158: #{vqvae_forward.1} parent=1 // pred_check
      _
    $region159: #{vqvae_forward.1} parent=1 // pred_check_branch
      %200 = sbr.rel (0) target = $region161
    $region160: #{vqvae_forward.1} parent=1 // pred_region
      _
    $region161: #{vqvae_forward.1} parent=1 // pred_fallthru
      _
    // Predicated region
    $region162: #{vqvae_forward.1} parent=1 // pred_check
      _
    $region163: #{vqvae_forward.1} parent=1 // pred_check_branch
      %202 = sbr.rel (0) target = $region165
    $region164: #{vqvae_forward.1} parent=1 // pred_region
      _
    $region165: #{vqvae_forward.1} parent=1 // pred_fallthru
      _
    // Predicated region
    $region166: #{vqvae_forward.1} parent=1 // pred_check
      _
    $region167: #{vqvae_forward.1} parent=1 // pred_check_branch
      %204 = sbr.rel (0) target = $region169
    $region168: #{vqvae_forward.1} parent=1 // pred_region
      _
    $region169: #{vqvae_forward.1} parent=1 // pred_fallthru
      _
    // Predicated region
    $region170: #{vqvae_forward.1} parent=1 // pred_check
      _
    $region171: #{vqvae_forward.1} parent=1 // pred_check_branch
      %206 = sbr.rel (0) target = $region173
    $region172: #{vqvae_forward.1} parent=1 // pred_region
      _
    $region173: #{vqvae_forward.1} parent=1 // pred_fallthru
      _
    // Predicated region
    $region174: #{vqvae_forward.1} parent=1 // pred_check
      _
    $region175: #{vqvae_forward.1} parent=1 // pred_check_branch
      %208 = sbr.rel (0) target = $region177
    $region176: #{vqvae_forward.1} parent=1 // pred_region
      _
    $region177: #{vqvae_forward.1} parent=1 // pred_fallthru
      _
    // Predicated region
    $region178: #{vqvae_forward.1} parent=1 // pred_check
      _
    $region179: #{vqvae_forward.1} parent=1 // pred_check_branch
      %210 = sbr.rel (0) target = $region181
    $region180: #{vqvae_forward.1} parent=1 // pred_region
      _
    $region181: #{vqvae_forward.1} parent=1 // pred_fallthru
      _
    // Predicated region
    $region182: #{vqvae_forward.1} parent=1 // pred_check
      _
    $region183: #{vqvae_forward.1} parent=1 // pred_check_branch
      %212 = sbr.rel (0) target = $region185
    $region184: #{vqvae_forward.1} parent=1 // pred_region
      _
    $region185: #{vqvae_forward.1} parent=1 // pred_fallthru
      _
    // Predicated region
    $region186: #{vqvae_forward.1} parent=1 // pred_check
      _
    $region187: #{vqvae_forward.1} parent=1 // pred_check_branch
      %214 = sbr.rel (0) target = $region189
    $region188: #{vqvae_forward.1} parent=1 // pred_region
      _
    $region189: #{vqvae_forward.1} parent=1 // pred_fallthru
      _
    // Predicated region
    $region190: #{vqvae_forward.1} parent=1 // pred_check
      _
    $region191: #{vqvae_forward.1} parent=1 // pred_check_branch
      %216 = sbr.rel (0) target = $region193
    $region192: #{vqvae_forward.1} parent=1 // pred_region
      _
    $region193: #{vqvae_forward.1} parent=1 // pred_fallthru
      _
    // Predicated region
    $region194: #{vqvae_forward.1} parent=1 // pred_check
      _
    $region195: #{vqvae_forward.1} parent=1 // pred_check_branch
      %218 = sbr.rel (0) target = $region197
    $region196: #{vqvae_forward.1} parent=1 // pred_region
      _
    $region197: #{vqvae_forward.1} parent=1 // pred_fallthru
      _
    // Predicated region
    $region198: #{vqvae_forward.1} parent=1 // pred_check
      _
    $region199: #{vqvae_forward.1} parent=1 // pred_check_branch
      %220 = sbr.rel (0) target = $region201
    $region200: #{vqvae_forward.1} parent=1 // pred_region
      _
    $region201: #{vqvae_forward.1} parent=1 // pred_fallthru
      _
    // Predicated region
    $region202: #{vqvae_forward.1} parent=1 // pred_check
      _
    $region203: #{vqvae_forward.1} parent=1 // pred_check_branch
      %222 = sbr.rel (0) target = $region205
    $region204: #{vqvae_forward.1} parent=1 // pred_region
      _
    $region205: #{vqvae_forward.1} parent=1 // pred_fallthru
      _
    // Predicated region
    $region206: #{vqvae_forward.1} parent=1 // pred_check
      _
    $region207: #{vqvae_forward.1} parent=1 // pred_check_branch
      %224 = sbr.rel (0) target = $region209
    $region208: #{vqvae_forward.1} parent=1 // pred_region
      _
    $region209: #{vqvae_forward.1} parent=1 // pred_fallthru
      _
    %vm226 = vcmask 261120
    %227 = vst.msk [vmem:[#allocation2] sm:$0xff] %vm226, 0.0
    %228 = vst.msk [vmem:[#allocation2 + $0x30] sm:$0xff] %vm226, 0.0
    %229 = vst.msk [vmem:[#allocation2 + $0x60] sm:$0xff] %vm226, 0.0
    %230 = vst.msk [vmem:[#allocation2 + $0x68] sm:$0xff] %vm226, 0.0
    %231 = vst.msk [vmem:[#allocation3] sm:$0xff] %vm226, 0.0
    %232 = vst.msk [vmem:[#allocation3 + $0x30] sm:$0xff] %vm226, 0.0
    %233 = vst.msk [vmem:[#allocation3 + $0x60] sm:$0xff] %vm226, 0.0
    %234 = vst.msk [vmem:[#allocation3 + $0x68] sm:$0xff] %vm226, 0.0
    %235 = vst.msk [vmem:[#allocation4] sm:$0xff] %vm226, 0.0
    %236 = vst.msk [vmem:[#allocation4 + $0x30] sm:$0xff] %vm226, 0.0
    %237 = vst.msk [vmem:[#allocation4 + $0x60] sm:$0xff] %vm226, 0.0
    %238 = vst.msk [vmem:[#allocation4 + $0x68] sm:$0xff] %vm226, 0.0
    %v239 = vld [vmem:[%s1] sm:$0xff]
    %v240 = vld [vmem:[%s1 + $0x8] sm:$0xff]
    %v241 = vld [vmem:[%s1 + $0x10] sm:$0xff]
    %v242 = vld [vmem:[%s1 + $0x18] sm:$0xff]
    %vm243 = vcmask 130048
    %244 = vst.msk [vmem:[#allocation2 + $0x8] sm:$0xff] %vm243, %v239
    %245 = vst.msk [vmem:[#allocation2 + $0x10] sm:$0xff] %vm243, %v240
    %246 = vst.msk [vmem:[#allocation2 + $0x18] sm:$0xff] %vm243, %v241
    %247 = vst.msk [vmem:[#allocation2 + $0x20] sm:$0xff] %vm243, %v242
    %248 = vst.msk [vmem:[#allocation2 + $0x28] sm:$0xff] %vm243, 0.0
    %s249 = scalar_lea.vmem %s1, 32
    %v250 = vld [vmem:[%s249] sm:$0xff]
    %v251 = vld [vmem:[%s249 + $0x8] sm:$0xff]
    %v252 = vld [vmem:[%s249 + $0x10] sm:$0xff]
    %v253 = vld [vmem:[%s249 + $0x18] sm:$0xff]
    %254 = vst.msk [vmem:[#allocation2 + $0x38] sm:$0xff] %vm243, %v250
    %255 = vst.msk [vmem:[#allocation2 + $0x40] sm:$0xff] %vm243, %v251
    %256 = vst.msk [vmem:[#allocation2 + $0x48] sm:$0xff] %vm243, %v252
    %257 = vst.msk [vmem:[#allocation2 + $0x50] sm:$0xff] %vm243, %v253
    %258 = vst.msk [vmem:[#allocation2 + $0x58] sm:$0xff] %vm243, 0.0
    %v259 = vld [vmem:[%s3] sm:$0xf]
    %v260 = vld [vmem:[%s3 + $0x4] sm:$0xf]
    %v261 = vld [vmem:[%s3 + $0x8] sm:$0xf]
    %v262 = vld [vmem:[%s3 + $0xc] sm:$0xf]
    %v263 = vld [vmem:[%s3 + $0x10] sm:$0xf]
    %v264 = vld [vmem:[%s3 + $0x14] sm:$0xf]
    %v265 = vld [vmem:[%s5] sm:$0x1]
    %v266 = vld [vmem:[#allocation2 + $0x7] sm:$0xff]
    %v267 = vld [vmem:[#allocation2 + $0xf] sm:$0xff]
    %v268 = vld [vmem:[#allocation2 + $0x17] sm:$0xff]
    %v269 = vld [vmem:[#allocation2 + $0x1f] sm:$0xff]
    %v270 = vld [vmem:[#allocation2 + $0x27] sm:$0xff]
    %v271 = vld [vmem:[#allocation2 + $0x2f] sm:$0xff]
    %v272 = vld [vmem:[#allocation2 + $0x37] sm:$0xff]
    %v273 = vld [vmem:[#allocation2 + $0x3f] sm:$0xff]
    %v274 = vld [vmem:[#allocation2 + $0x47] sm:$0xff]
    %v275 = vld [vmem:[#allocation2 + $0x4f] sm:$0xff]
    %v276 = vld [vmem:[#allocation2 + $0x57] sm:$0xff]
    %v277 = vld [vmem:[#allocation2 + $0x5f] sm:$0xff]
    %v278 = vld [vmem:[#allocation2 + $0x8] sm:$0xff]
    %v279 = vld [vmem:[#allocation2 + $0x10] sm:$0xff]
    %v280 = vld [vmem:[#allocation2 + $0x18] sm:$0xff]
    %v281 = vld [vmem:[#allocation2 + $0x20] sm:$0xff]
    %v282 = vld [vmem:[#allocation2 + $0x28] sm:$0xff]
    %v283 = vld [vmem:[#allocation2 + $0x30] sm:$0xff]
    %v284 = vld [vmem:[#allocation2 + $0x38] sm:$0xff]
    %v285 = vld [vmem:[#allocation2 + $0x40] sm:$0xff]
    %v286 = vld [vmem:[#allocation2 + $0x48] sm:$0xff]
    %v287 = vld [vmem:[#allocation2 + $0x50] sm:$0xff]
    %v288 = vld [vmem:[#allocation2 + $0x58] sm:$0xff]
    %v289 = vld [vmem:[#allocation2 + $0x60] sm:$0xff]
    %v290 = vld [vmem:[#allocation2 + $0x9] sm:$0xff]
    %v291 = vld [vmem:[#allocation2 + $0x11] sm:$0xff]
    %v292 = vld [vmem:[#allocation2 + $0x19] sm:$0xff]
    %v293 = vld [vmem:[#allocation2 + $0x21] sm:$0xff]
    %v294 = vld [vmem:[#allocation2 + $0x29] sm:$0xff]
    %v295 = vld [vmem:[#allocation2 + $0x31] sm:$0xff]
    %v296 = vld [vmem:[#allocation2 + $0x39] sm:$0xff]
    %v297 = vld [vmem:[#allocation2 + $0x41] sm:$0xff]
    %v298 = vld [vmem:[#allocation2 + $0x49] sm:$0xff]
    %v299 = vld [vmem:[#allocation2 + $0x51] sm:$0xff]
    %v300 = vld [vmem:[#allocation2 + $0x59] sm:$0xff]
    %v301 = vld [vmem:[#allocation2 + $0x61] sm:$0xff]
    %314 = vrot.lane.b32.xlu0 %v278, 16
    %v315 = vpop.permute.xlu0 %314
    %316 = vrot.lane.b32.xlu0 %v279, 16
    %v317 = vpop.permute.xlu0 %316
    %318 = vrot.lane.b32.xlu0 %v280, 16
    %v319 = vpop.permute.xlu0 %318
    %320 = vrot.lane.b32.xlu0 %v281, 16
    %v321 = vpop.permute.xlu0 %320
    %322 = vrot.lane.b32.xlu0 %v282, 16
    %v323 = vpop.permute.xlu0 %322
    %324 = vrot.lane.b32.xlu0 %v283, 16
    %v325 = vpop.permute.xlu0 %324
    %326 = vrot.lane.b32.xlu0 %v284, 16
    %v327 = vpop.permute.xlu0 %326
    %328 = vrot.lane.b32.xlu0 %v285, 16
    %v329 = vpop.permute.xlu0 %328
    %330 = vrot.lane.b32.xlu0 %v286, 16
    %v331 = vpop.permute.xlu0 %330
    %332 = vrot.lane.b32.xlu0 %v287, 16
    %v333 = vpop.permute.xlu0 %332
    %334 = vrot.lane.b32.xlu0 %v288, 16
    %v335 = vpop.permute.xlu0 %334
    %336 = vrot.lane.b32.xlu0 %v289, 16
    %v337 = vpop.permute.xlu0 %336
    %362 = vrot.lane.b32.xlu0 %v290, 32
    %v363 = vpop.permute.xlu0 %362
    %364 = vrot.lane.b32.xlu0 %v291, 32
    %v365 = vpop.permute.xlu0 %364
    %366 = vrot.lane.b32.xlu0 %v292, 32
    %v367 = vpop.permute.xlu0 %366
    %368 = vrot.lane.b32.xlu0 %v293, 32
    %v369 = vpop.permute.xlu0 %368
    %370 = vrot.lane.b32.xlu0 %v294, 32
    %v371 = vpop.permute.xlu0 %370
    %372 = vrot.lane.b32.xlu0 %v295, 32
    %v373 = vpop.permute.xlu0 %372
    %374 = vrot.lane.b32.xlu0 %v296, 32
    %v375 = vpop.permute.xlu0 %374
    %376 = vrot.lane.b32.xlu0 %v297, 32
    %v377 = vpop.permute.xlu0 %376
    %378 = vrot.lane.b32.xlu0 %v298, 32
    %v379 = vpop.permute.xlu0 %378
    %380 = vrot.lane.b32.xlu0 %v299, 32
    %v381 = vpop.permute.xlu0 %380
    %382 = vrot.lane.b32.xlu0 %v300, 32
    %v383 = vpop.permute.xlu0 %382
    %384 = vrot.lane.b32.xlu0 %v301, 32
    %v385 = vpop.permute.xlu0 %384
    %v398 = vsel %vm243, %v266, %v315
    %v399 = vsel %vm243, %v267, %v317
    %v400 = vsel %vm243, %v268, %v319
    %v401 = vsel %vm243, %v269, %v321
    %v402 = vsel %vm243, %v270, %v323
    %v403 = vsel %vm243, %v271, %v325
    %v404 = vsel %vm243, %v272, %v327
    %v405 = vsel %vm243, %v273, %v329
    %v406 = vsel %vm243, %v274, %v331
    %v407 = vsel %vm243, %v275, %v333
    %v408 = vsel %vm243, %v276, %v335
    %v409 = vsel %vm243, %v277, %v337
    %v410 = vsel %vm226, %v398, %v363
    %v411 = vsel %vm226, %v399, %v365
    %v412 = vsel %vm226, %v400, %v367
    %v413 = vsel %vm226, %v401, %v369
    %v414 = vsel %vm226, %v402, %v371
    %v415 = vsel %vm226, %v403, %v373
    %v416 = vsel %vm226, %v404, %v375
    %v417 = vsel %vm226, %v405, %v377
    %v418 = vsel %vm226, %v406, %v379
    %v419 = vsel %vm226, %v407, %v381
    %v420 = vsel %vm226, %v408, %v383
    %v421 = vsel %vm226, %v409, %v385
    %v422 = vpack.c.bf16 %v411, %v410
    %v423 = vpack.c.bf16 %v413, %v412
    %v424 = vpack.c.bf16 %v415, %v414
    %v425 = vpack.c.bf16 %v417, %v416
    %v426 = vpack.c.bf16 %v419, %v418
    %v427 = vpack.c.bf16 %v421, %v420
    %v429 = vlaneseq
    %v430 = vshrl.u32 %v429, 7
    %v431 = vsub.s32 0, %v430
    %v432 = vrot.slane %v265, %v431
    %v440 = vunpack.c.l.b16 %v259
    %v441 = vunpack.c.l.b16 %v260
    %v442 = vunpack.c.l.b16 %v261
    %v443 = vunpack.c.l.b16 %v262
    %v444 = vunpack.c.l.b16 %v263
    %v445 = vunpack.c.l.b16 %v264
    %v446 = vpack.c.b16 %v441, %v440
    %v447 = vpack.c.b16 %v443, %v442
    %v448 = vpack.c.b16 %v445, %v444
    %vm452 = vcmask 392192
    %v454 = vsel %vm452, %v422, 0
    %v457 = vsel %vm452, %v423, 0
    %v460 = vsel %vm452, %v424, 0
    %v463 = vsel %vm452, %v425, 0
    %v466 = vsel %vm452, %v426, 0
    %v469 = vsel %vm452, %v427, 0
    %471 = vmatprep.subr.bf16.mxu0 0
    %472 = vmatpush1.bf16.msra.mxu0 %v446
    %473 = vmatprep.subr.bf16.mxu0 0
    %474 = vmatpush1.bf16.msra.mxu0 %v447
    %475 = vmatprep.subr.bf16.mxu0 0
    %476 = vmatpush1.bf16.msra.mxu0 %v448
    %477 = vmatprep.subr.bf16.mxu0 0
    %478 = vmatpush1.bf16.msra.mxu0 0
    %479 = vmatprep.subr.bf16.mxu0 0
    %480 = vmatpush1.bf16.msra.mxu0 0
    %481 = vmatprep.subr.bf16.mxu0 0
    %482 = vmatpush1.bf16.msra.mxu0 0
    %483 = vmatprep.subr.bf16.mxu0 0
    %484 = vmatpush1.bf16.msra.mxu0 0
    %485 = vmatprep.subr.bf16.mxu0 0
    %486 = vmatpush1.bf16.msra.mxu0 0
    %487 = vmatprep.subr.bf16.mxu0 0
    %488 = vmatpush1.bf16.msra.mxu0 0
    %489 = vmatprep.subr.bf16.mxu0 0
    %490 = vmatpush1.bf16.msra.mxu0 0
    %491 = vmatprep.subr.bf16.mxu0 0
    %492 = vmatpush1.bf16.msra.mxu0 0
    %493 = vmatprep.subr.bf16.mxu0 0
    %494 = vmatpush1.bf16.msra.mxu0 0
    %495 = vmatprep.subr.bf16.mxu0 0
    %496 = vmatpush1.bf16.msra.mxu0 0
    %497 = vmatprep.subr.bf16.mxu0 0
    %498 = vmatpush1.bf16.msra.mxu0 0
    %499 = vmatprep.subr.bf16.mxu0 0
    %500 = vmatpush1.bf16.msra.mxu0 0
    %501 = vmatprep.subr.bf16.mxu0 0
    %502 = vmatpush1.bf16.msra.mxu0 0
    %503 = vmatprep.mubr.bf16.mxu0 0
    %504 = vmatmul.mubr.bf16.gmra.mrb[0].mxu0 %v454
    %v505 = vpop.f32.mrb[0].mxu0
    %v506 = vadd.f32 %v432, %v505
    %v507 = vpop.f32.mrb[0].mxu0
    %v508 = vpop.f32.mrb[0].mxu0
    %v509 = vadd.f32 %v432, %v508
    %v510 = vpop.f32.mrb[0].mxu0
    %511 = vmatprep.mubr.bf16.mxu0 0
    %512 = vmatmul.mubr.bf16.gmra.mrb[0].mxu0 %v457
    %v513 = vpop.f32.mrb[0].mxu0
    %v514 = vadd.f32 %v432, %v513
    %v515 = vpop.f32.mrb[0].mxu0
    %v516 = vpop.f32.mrb[0].mxu0
    %v517 = vadd.f32 %v432, %v516
    %v518 = vpop.f32.mrb[0].mxu0
    %519 = vmatprep.mubr.bf16.mxu0 0
    %520 = vmatmul.mubr.bf16.gmra.mrb[0].mxu0 %v460
    %v521 = vpop.f32.mrb[0].mxu0
    %v522 = vpop.f32.mrb[0].mxu0
    %v523 = vpop.f32.mrb[0].mxu0
    %v524 = vpop.f32.mrb[0].mxu0
    %525 = vmatprep.mubr.bf16.mxu0 0
    %526 = vmatmul.mubr.bf16.gmra.mrb[0].mxu0 %v463
    %v527 = vpop.f32.mrb[0].mxu0
    %v528 = vadd.f32 %v432, %v527
    %v529 = vpop.f32.mrb[0].mxu0
    %v530 = vpop.f32.mrb[0].mxu0
    %v531 = vadd.f32 %v432, %v530
    %v532 = vpop.f32.mrb[0].mxu0
    %533 = vmatprep.mubr.bf16.mxu0 0
    %534 = vmatmul.mubr.bf16.gmra.mrb[0].mxu0 %v466
    %v535 = vpop.f32.mrb[0].mxu0
    %v536 = vadd.f32 %v432, %v535
    %v537 = vpop.f32.mrb[0].mxu0
    %v538 = vpop.f32.mrb[0].mxu0
    %v539 = vadd.f32 %v432, %v538
    %v540 = vpop.f32.mrb[0].mxu0
    %541 = vmatprep.mubr.bf16.mxu0 0
    %542 = vmatmul.mubr.bf16.gmra.mrb[0].mxu0 %v469
    %v543 = vpop.f32.mrb[0].mxu0
    %v544 = vpop.f32.mrb[0].mxu0
    %v545 = vpop.f32.mrb[0].mxu0
    %v546 = vpop.f32.mrb[0].mxu0
    %547 = vdwg.mxu0
    %v548 = vmax.f32 %v506, 0.0
    %v549 = vmax.f32 %v509, 0.0
    %v550 = vmax.f32 %v514, 0.0
    %v551 = vmax.f32 %v517, 0.0
    %v552 = vmax.f32 %v528, 0.0
    %v553 = vmax.f32 %v531, 0.0
    %v554 = vmax.f32 %v536, 0.0
    %v555 = vmax.f32 %v539, 0.0
    %556 = vst.msk [vmem:[#allocation3 + $0x8] sm:$0xff] %vm226, %v548
    %557 = vst.msk [vmem:[#allocation3 + $0x10] sm:$0xff] %vm226, %v549
    %558 = vst.msk [vmem:[#allocation3 + $0x18] sm:$0xff] %vm226, %v550
    %559 = vst.msk [vmem:[#allocation3 + $0x20] sm:$0xff] %vm226, %v551
    %560 = vst.msk [vmem:[#allocation3 + $0x28] sm:$0xff] %vm226, 0.0
    %561 = vst.msk [vmem:[#allocation3 + $0x38] sm:$0xff] %vm226, %v552
    %562 = vst.msk [vmem:[#allocation3 + $0x40] sm:$0xff] %vm226, %v553
    %563 = vst.msk [vmem:[#allocation3 + $0x48] sm:$0xff] %vm226, %v554
    %564 = vst.msk [vmem:[#allocation3 + $0x50] sm:$0xff] %vm226, %v555
    %565 = vst.msk [vmem:[#allocation3 + $0x58] sm:$0xff] %vm226, 0.0
    %v566 = vld [vmem:[%s7] sm:$0xf]
    %v567 = vld [vmem:[%s7 + $0x4] sm:$0xf]
    %v568 = vld [vmem:[%s7 + $0x8] sm:$0xf]
    %v569 = vld [vmem:[%s7 + $0xc] sm:$0xf]
    %v570 = vld [vmem:[%s7 + $0x10] sm:$0xf]
    %v571 = vld [vmem:[%s7 + $0x14] sm:$0xf]
    %v572 = vld [vmem:[%s7 + $0x18] sm:$0xf]
    %v573 = vld [vmem:[%s7 + $0x1c] sm:$0xf]
    %v574 = vld [vmem:[%s7 + $0x20] sm:$0xf]
    %v575 = vld [vmem:[%s7 + $0x24] sm:$0xf]
    %v576 = vld [vmem:[%s7 + $0x28] sm:$0xf]
    %v577 = vld [vmem:[%s7 + $0x2c] sm:$0xf]
    %v578 = vld [vmem:[%s7 + $0x30] sm:$0xf]
    %v579 = vld [vmem:[%s7 + $0x34] sm:$0xf]
    %v580 = vld [vmem:[%s7 + $0x38] sm:$0xf]
    %v581 = vld [vmem:[%s7 + $0x3c] sm:$0xf]
    %v582 = vld [vmem:[%s9] sm:$0x1]
    %s583 = scalar_lea.vmem [#allocation3], 7
    %v584 = vld [vmem:[%s583] ss:$2 sm:$0xff]
    %s585 = scalar_lea.vmem [#allocation3], 23
    %v586 = vld [vmem:[%s585] ss:$2 sm:$0xff]
    %s587 = scalar_lea.vmem [#allocation3], 39
    %v588 = vld [vmem:[%s587] ss:$2 sm:$0xff]
    %s589 = scalar_lea.vmem [#allocation3], 55
    %v590 = vld [vmem:[%s589] ss:$2 sm:$0xff]
    %s591 = scalar_lea.vmem [#allocation3], 71
    %v592 = vld [vmem:[%s591] ss:$2 sm:$0xff]
    %s593 = scalar_lea.vmem [#allocation3], 87
    %v594 = vld [vmem:[%s593] ss:$2 sm:$0xff]
    %s595 = scalar_lea.vmem [#allocation3], 8
    %v596 = vld [vmem:[%s595] ss:$2 sm:$0xff]
    %s597 = scalar_lea.vmem [#allocation3], 24
    %v598 = vld [vmem:[%s597] ss:$2 sm:$0xff]
    %s599 = scalar_lea.vmem [#allocation3], 40
    %v600 = vld [vmem:[%s599] ss:$2 sm:$0xff]
    %s601 = scalar_lea.vmem [#allocation3], 56
    %v602 = vld [vmem:[%s601] ss:$2 sm:$0xff]
    %s603 = scalar_lea.vmem [#allocation3], 72
    %v604 = vld [vmem:[%s603] ss:$2 sm:$0xff]
    %s605 = scalar_lea.vmem [#allocation3], 88
    %v606 = vld [vmem:[%s605] ss:$2 sm:$0xff]
    %s607 = scalar_lea.vmem [#allocation3], 9
    %v608 = vld [vmem:[%s607] ss:$2 sm:$0xff]
    %s609 = scalar_lea.vmem [#allocation3], 25
    %v610 = vld [vmem:[%s609] ss:$2 sm:$0xff]
    %s611 = scalar_lea.vmem [#allocation3], 41
    %v612 = vld [vmem:[%s611] ss:$2 sm:$0xff]
    %s613 = scalar_lea.vmem [#allocation3], 57
    %v614 = vld [vmem:[%s613] ss:$2 sm:$0xff]
    %s615 = scalar_lea.vmem [#allocation3], 73
    %v616 = vld [vmem:[%s615] ss:$2 sm:$0xff]
    %s617 = scalar_lea.vmem [#allocation3], 89
    %v618 = vld [vmem:[%s617] ss:$2 sm:$0xff]
    %s619 = scalar_lea.vmem [#allocation3], 10
    %v620 = vld [vmem:[%s619] ss:$2 sm:$0xff]
    %s621 = scalar_lea.vmem [#allocation3], 26
    %v622 = vld [vmem:[%s621] ss:$2 sm:$0xff]
    %s623 = scalar_lea.vmem [#allocation3], 42
    %v624 = vld [vmem:[%s623] ss:$2 sm:$0xff]
    %s625 = scalar_lea.vmem [#allocation3], 58
    %v626 = vld [vmem:[%s625] ss:$2 sm:$0xff]
    %s627 = scalar_lea.vmem [#allocation3], 74
    %v628 = vld [vmem:[%s627] ss:$2 sm:$0xff]
    %s629 = scalar_lea.vmem [#allocation3], 90
    %v630 = vld [vmem:[%s629] ss:$2 sm:$0xff]
    %637 = vrot.lane.b32.xlu0 %v596, 32
    %v638 = vpop.permute.xlu0 %637
    %639 = vrot.lane.b32.xlu0 %v598, 32
    %v640 = vpop.permute.xlu0 %639
    %641 = vrot.lane.b32.xlu0 %v600, 32
    %v642 = vpop.permute.xlu0 %641
    %643 = vrot.lane.b32.xlu0 %v602, 32
    %v644 = vpop.permute.xlu0 %643
    %645 = vrot.lane.b32.xlu0 %v604, 32
    %v646 = vpop.permute.xlu0 %645
    %647 = vrot.lane.b32.xlu0 %v606, 32
    %v648 = vpop.permute.xlu0 %647
    %661 = vrot.lane.b32.xlu0 %v608, 64
    %v662 = vpop.permute.xlu0 %661
    %663 = vrot.lane.b32.xlu0 %v610, 64
    %v664 = vpop.permute.xlu0 %663
    %665 = vrot.lane.b32.xlu0 %v612, 64
    %v666 = vpop.permute.xlu0 %665
    %667 = vrot.lane.b32.xlu0 %v614, 64
    %v668 = vpop.permute.xlu0 %667
    %669 = vrot.lane.b32.xlu0 %v616, 64
    %v670 = vpop.permute.xlu0 %669
    %671 = vrot.lane.b32.xlu0 %v618, 64
    %v672 = vpop.permute.xlu0 %671
    %685 = vrot.lane.b32.xlu0 %v620, 96
    %v686 = vpop.permute.xlu0 %685
    %687 = vrot.lane.b32.xlu0 %v622, 96
    %v688 = vpop.permute.xlu0 %687
    %689 = vrot.lane.b32.xlu0 %v624, 96
    %v690 = vpop.permute.xlu0 %689
    %691 = vrot.lane.b32.xlu0 %v626, 96
    %v692 = vpop.permute.xlu0 %691
    %693 = vrot.lane.b32.xlu0 %v628, 96
    %v694 = vpop.permute.xlu0 %693
    %695 = vrot.lane.b32.xlu0 %v630, 96
    %v696 = vpop.permute.xlu0 %695
    %v703 = vsel %vm226, %v584, %v638
    %v704 = vsel %vm226, %v586, %v640
    %v705 = vsel %vm226, %v588, %v642
    %v706 = vsel %vm226, %v590, %v644
    %v707 = vsel %vm226, %v592, %v646
    %v708 = vsel %vm226, %v594, %v648
    %vm709 = vcmask 523264
    %v710 = vsel %vm709, %v703, %v662
    %v711 = vsel %vm709, %v704, %v664
    %v712 = vsel %vm709, %v705, %v666
    %v713 = vsel %vm709, %v706, %v668
    %v714 = vsel %vm709, %v707, %v670
    %v715 = vsel %vm709, %v708, %v672
    %vm716 = vcmask 785408
    %v717 = vsel %vm716, %v710, %v686
    %v718 = vsel %vm716, %v711, %v688
    %v719 = vsel %vm716, %v712, %v690
    %v720 = vsel %vm716, %v713, %v692
    %v721 = vsel %vm716, %v714, %v694
    %v722 = vsel %vm716, %v715, %v696
    %v723 = vpack.c.bf16 %v718, %v717
    %v724 = vpack.c.bf16 %v720, %v719
    %v725 = vpack.c.bf16 %v722, %v721
    %v727 = vlaneseq
    %v728 = vshrl.u32 %v727, 7
    %v729 = vsub.s32 0, %v728
    %v730 = vrot.slane %v582, %v729
    %v748 = vunpack.c.l.b16 %v566
    %v749 = vunpack.c.l.b16 %v567
    %v750 = vunpack.c.l.b16 %v568
    %v751 = vunpack.c.l.b16 %v569
    %v752 = vunpack.c.l.b16 %v570
    %v753 = vunpack.c.l.b16 %v571
    %v754 = vunpack.c.l.b16 %v572
    %v755 = vunpack.c.l.b16 %v573
    %v756 = vunpack.c.l.b16 %v574
    %v757 = vunpack.c.l.b16 %v575
    %v758 = vunpack.c.l.b16 %v576
    %v759 = vunpack.c.l.b16 %v577
    %v760 = vunpack.c.l.b16 %v578
    %v761 = vunpack.c.l.b16 %v579
    %v762 = vunpack.c.l.b16 %v580
    %v763 = vunpack.c.l.b16 %v581
    %v764 = vpack.c.b16 %v749, %v748
    %v765 = vpack.c.b16 %v751, %v750
    %v766 = vpack.c.b16 %v753, %v752
    %v767 = vpack.c.b16 %v755, %v754
    %v768 = vpack.c.b16 %v757, %v756
    %v769 = vpack.c.b16 %v759, %v758
    %v770 = vpack.c.b16 %v761, %v760
    %v771 = vpack.c.b16 %v763, %v762
    %780 = vmatprep.subr.bf16.mxu0 0
    %781 = vmatpush1.bf16.msra.mxu0 %v764
    %782 = vmatprep.subr.bf16.mxu0 0
    %783 = vmatpush1.bf16.msra.mxu0 %v765
    %784 = vmatprep.subr.bf16.mxu0 0
    %785 = vmatpush1.bf16.msra.mxu0 %v766
    %786 = vmatprep.subr.bf16.mxu0 0
    %787 = vmatpush1.bf16.msra.mxu0 %v767
    %788 = vmatprep.subr.bf16.mxu0 0
    %789 = vmatpush1.bf16.msra.mxu0 %v768
    %790 = vmatprep.subr.bf16.mxu0 0
    %791 = vmatpush1.bf16.msra.mxu0 %v769
    %792 = vmatprep.subr.bf16.mxu0 0
    %793 = vmatpush1.bf16.msra.mxu0 %v770
    %794 = vmatprep.subr.bf16.mxu0 0
    %795 = vmatpush1.bf16.msra.mxu0 %v771
    %796 = vmatprep.subr.bf16.mxu0 0
    %797 = vmatpush1.bf16.msra.mxu0 0
    %798 = vmatprep.subr.bf16.mxu0 0
    %799 = vmatpush1.bf16.msra.mxu0 0
    %800 = vmatprep.subr.bf16.mxu0 0
    %801 = vmatpush1.bf16.msra.mxu0 0
    %802 = vmatprep.subr.bf16.mxu0 0
    %803 = vmatpush1.bf16.msra.mxu0 0
    %804 = vmatprep.subr.bf16.mxu0 0
    %805 = vmatpush1.bf16.msra.mxu0 0
    %806 = vmatprep.subr.bf16.mxu0 0
    %807 = vmatpush1.bf16.msra.mxu0 0
    %808 = vmatprep.subr.bf16.mxu0 0
    %809 = vmatpush1.bf16.msra.mxu0 0
    %810 = vmatprep.subr.bf16.mxu0 0
    %811 = vmatpush1.bf16.msra.mxu0 0
    %812 = vmatprep.mubr.bf16.mxu0 0
    %813 = vmatmul.mubr.bf16.gmra.mrb[0].mxu0 %v723
    %v814 = vpop.f32.mrb[0].mxu0
    %v815 = vadd.f32 %v730, %v814
    %v816 = vpop.f32.mrb[0].mxu0
    %v817 = vpop.f32.mrb[0].mxu0
    %v818 = vadd.f32 %v730, %v817
    %v819 = vpop.f32.mrb[0].mxu0
    %820 = vmatprep.mubr.bf16.mxu0 0
    %821 = vmatmul.mubr.bf16.gmra.mrb[0].mxu0 %v724
    %v822 = vpop.f32.mrb[0].mxu0
    %v823 = vpop.f32.mrb[0].mxu0
    %v824 = vpop.f32.mrb[0].mxu0
    %v825 = vadd.f32 %v730, %v824
    %v826 = vpop.f32.mrb[0].mxu0
    %827 = vmatprep.mubr.bf16.mxu0 0
    %828 = vmatmul.mubr.bf16.gmra.mrb[0].mxu0 %v725
    %v829 = vpop.f32.mrb[0].mxu0
    %v830 = vadd.f32 %v730, %v829
    %v831 = vpop.f32.mrb[0].mxu0
    %v832 = vpop.f32.mrb[0].mxu0
    %v833 = vpop.f32.mrb[0].mxu0
    %834 = vdwg.mxu0
    %835 = vst.msk [vmem:[#allocation4 + $0x8] sm:$0xff] %vm226, %v815
    %836 = vst.msk [vmem:[#allocation4 + $0x10] sm:$0xff] %vm226, %v818
    %837 = vst.msk [vmem:[#allocation4 + $0x18] sm:$0xff] %vm226, 0.0
    %838 = vst.msk [vmem:[#allocation4 + $0x38] sm:$0xff] %vm226, %v825
    %839 = vst.msk [vmem:[#allocation4 + $0x40] sm:$0xff] %vm226, %v830
    %840 = vst.msk [vmem:[#allocation4 + $0x48] sm:$0xff] %vm226, 0.0
    %v841 = vld [vmem:[%s11] sm:$0xf]
    %v842 = vld [vmem:[%s11 + $0x4] sm:$0xf]
    %v843 = vld [vmem:[%s11 + $0x8] sm:$0xf]
    %v844 = vld [vmem:[%s11 + $0xc] sm:$0xf]
    %v845 = vld [vmem:[%s11 + $0x10] sm:$0xf]
    %v846 = vld [vmem:[%s11 + $0x14] sm:$0xf]
    %v847 = vld [vmem:[%s11 + $0x18] sm:$0xf]
    %v848 = vld [vmem:[%s11 + $0x1c] sm:$0xf]
    %v849 = vld [vmem:[%s11 + $0x20] sm:$0xf]
    %v850 = vld [vmem:[%s11 + $0x24] sm:$0xf]
    %v851 = vld [vmem:[%s11 + $0x28] sm:$0xf]
    %v852 = vld [vmem:[%s11 + $0x2c] sm:$0xf]
    %v853 = vld [vmem:[%s13] sm:$0x1]
    %v854 = vld [vmem:[#allocation4 + $0x5] sm:$0xff]
    %v855 = vld [vmem:[#allocation4 + $0xd] sm:$0xff]
    %v856 = vld [vmem:[#allocation4 + $0x15] sm:$0xff]
    %v857 = vld [vmem:[#allocation4 + $0x1d] sm:$0xff]
    %v858 = vld [vmem:[#allocation4 + $0x25] sm:$0xff]
    %v859 = vld [vmem:[#allocation4 + $0x2d] sm:$0xff]
    %v860 = vld [vmem:[#allocation4 + $0x35] sm:$0xff]
    %v861 = vld [vmem:[#allocation4 + $0x3d] sm:$0xff]
    %v862 = vld [vmem:[#allocation4 + $0x45] sm:$0xff]
    %v863 = vld [vmem:[#allocation4 + $0x4d] sm:$0xff]
    %v864 = vld [vmem:[#allocation4 + $0x55] sm:$0xff]
    %v865 = vld [vmem:[#allocation4 + $0x5d] sm:$0xff]
    %v866 = vld [vmem:[#allocation4 + $0x8] sm:$0xff]
    %v867 = vld [vmem:[#allocation4 + $0x10] sm:$0xff]
    %v868 = vld [vmem:[#allocation4 + $0x18] sm:$0xff]
    %v869 = vld [vmem:[#allocation4 + $0x20] sm:$0xff]
    %v870 = vld [vmem:[#allocation4 + $0x28] sm:$0xff]
    %v871 = vld [vmem:[#allocation4 + $0x30] sm:$0xff]
    %v872 = vld [vmem:[#allocation4 + $0x38] sm:$0xff]
    %v873 = vld [vmem:[#allocation4 + $0x40] sm:$0xff]
    %v874 = vld [vmem:[#allocation4 + $0x48] sm:$0xff]
    %v875 = vld [vmem:[#allocation4 + $0x50] sm:$0xff]
    %v876 = vld [vmem:[#allocation4 + $0x58] sm:$0xff]
    %v877 = vld [vmem:[#allocation4 + $0x60] sm:$0xff]
    %v878 = vld [vmem:[#allocation4 + $0xb] sm:$0xff]
    %v879 = vld [vmem:[#allocation4 + $0x13] sm:$0xff]
    %v880 = vld [vmem:[#allocation4 + $0x1b] sm:$0xff]
    %v881 = vld [vmem:[#allocation4 + $0x23] sm:$0xff]
    %v882 = vld [vmem:[#allocation4 + $0x2b] sm:$0xff]
    %v883 = vld [vmem:[#allocation4 + $0x33] sm:$0xff]
    %v884 = vld [vmem:[#allocation4 + $0x3b] sm:$0xff]
    %v885 = vld [vmem:[#allocation4 + $0x43] sm:$0xff]
    %v886 = vld [vmem:[#allocation4 + $0x4b] sm:$0xff]
    %v887 = vld [vmem:[#allocation4 + $0x53] sm:$0xff]
    %v888 = vld [vmem:[#allocation4 + $0x5b] sm:$0xff]
    %v889 = vld [vmem:[#allocation4 + $0x63] sm:$0xff]
    %902 = vrot.lane.b32.xlu0 %v866, 32
    %v903 = vpop.permute.xlu0 %902
    %904 = vrot.lane.b32.xlu0 %v867, 32
    %v905 = vpop.permute.xlu0 %904
    %906 = vrot.lane.b32.xlu0 %v868, 32
    %v907 = vpop.permute.xlu0 %906
    %908 = vrot.lane.b32.xlu0 %v869, 32
    %v909 = vpop.permute.xlu0 %908
    %910 = vrot.lane.b32.xlu0 %v870, 32
    %v911 = vpop.permute.xlu0 %910
    %912 = vrot.lane.b32.xlu0 %v871, 32
    %v913 = vpop.permute.xlu0 %912
    %914 = vrot.lane.b32.xlu0 %v872, 32
    %v915 = vpop.permute.xlu0 %914
    %916 = vrot.lane.b32.xlu0 %v873, 32
    %v917 = vpop.permute.xlu0 %916
    %918 = vrot.lane.b32.xlu0 %v874, 32
    %v919 = vpop.permute.xlu0 %918
    %920 = vrot.lane.b32.xlu0 %v875, 32
    %v921 = vpop.permute.xlu0 %920
    %922 = vrot.lane.b32.xlu0 %v876, 32
    %v923 = vpop.permute.xlu0 %922
    %924 = vrot.lane.b32.xlu0 %v877, 32
    %v925 = vpop.permute.xlu0 %924
    %950 = vrot.lane.b32.xlu0 %v878, 64
    %v951 = vpop.permute.xlu0 %950
    %952 = vrot.lane.b32.xlu0 %v879, 64
    %v953 = vpop.permute.xlu0 %952
    %954 = vrot.lane.b32.xlu0 %v880, 64
    %v955 = vpop.permute.xlu0 %954
    %956 = vrot.lane.b32.xlu0 %v881, 64
    %v957 = vpop.permute.xlu0 %956
    %958 = vrot.lane.b32.xlu0 %v882, 64
    %v959 = vpop.permute.xlu0 %958
    %960 = vrot.lane.b32.xlu0 %v883, 64
    %v961 = vpop.permute.xlu0 %960
    %962 = vrot.lane.b32.xlu0 %v884, 64
    %v963 = vpop.permute.xlu0 %962
    %964 = vrot.lane.b32.xlu0 %v885, 64
    %v965 = vpop.permute.xlu0 %964
    %966 = vrot.lane.b32.xlu0 %v886, 64
    %v967 = vpop.permute.xlu0 %966
    %968 = vrot.lane.b32.xlu0 %v887, 64
    %v969 = vpop.permute.xlu0 %968
    %970 = vrot.lane.b32.xlu0 %v888, 64
    %v971 = vpop.permute.xlu0 %970
    %972 = vrot.lane.b32.xlu0 %v889, 64
    %v973 = vpop.permute.xlu0 %972
    %v986 = vsel %vm226, %v854, %v903
    %v987 = vsel %vm226, %v855, %v905
    %v988 = vsel %vm226, %v856, %v907
    %v989 = vsel %vm226, %v857, %v909
    %v990 = vsel %vm226, %v858, %v911
    %v991 = vsel %vm226, %v859, %v913
    %v992 = vsel %vm226, %v860, %v915
    %v993 = vsel %vm226, %v861, %v917
    %v994 = vsel %vm226, %v862, %v919
    %v995 = vsel %vm226, %v863, %v921
    %v996 = vsel %vm226, %v864, %v923
    %v997 = vsel %vm226, %v865, %v925
    %v998 = vsel %vm709, %v986, %v951
    %v999 = vsel %vm709, %v987, %v953
    %v1000 = vsel %vm709, %v988, %v955
    %v1001 = vsel %vm709, %v989, %v957
    %v1002 = vsel %vm709, %v990, %v959
    %v1003 = vsel %vm709, %v991, %v961
    %v1004 = vsel %vm709, %v992, %v963
    %v1005 = vsel %vm709, %v993, %v965
    %v1006 = vsel %vm709, %v994, %v967
    %v1007 = vsel %vm709, %v995, %v969
    %v1008 = vsel %vm709, %v996, %v971
    %v1009 = vsel %vm709, %v997, %v973
    %v1010 = vmax.f32 %v998, 0.0
    %v1011 = vmax.f32 %v999, 0.0
    %v1012 = vmax.f32 %v1000, 0.0
    %v1013 = vmax.f32 %v1001, 0.0
    %v1014 = vmax.f32 %v1002, 0.0
    %v1015 = vmax.f32 %v1003, 0.0
    %v1016 = vmax.f32 %v1004, 0.0
    %v1017 = vmax.f32 %v1005, 0.0
    %v1018 = vmax.f32 %v1006, 0.0
    %v1019 = vmax.f32 %v1007, 0.0
    %v1020 = vmax.f32 %v1008, 0.0
    %v1021 = vmax.f32 %v1009, 0.0
    %v1022 = vpack.c.bf16 %v1011, %v1010
    %v1023 = vpack.c.bf16 %v1013, %v1012
    %v1024 = vpack.c.bf16 %v1015, %v1014
    %v1025 = vpack.c.bf16 %v1017, %v1016
    %v1026 = vpack.c.bf16 %v1019, %v1018
    %v1027 = vpack.c.bf16 %v1021, %v1020
    %v1029 = vlaneseq
    %v1030 = vshrl.u32 %v1029, 7
    %v1031 = vsub.s32 0, %v1030
    %v1032 = vrot.slane %v853, %v1031
    %v1046 = vunpack.c.l.b16 %v841
    %v1047 = vunpack.c.l.b16 %v842
    %v1048 = vunpack.c.l.b16 %v843
    %v1049 = vunpack.c.l.b16 %v844
    %v1050 = vunpack.c.l.b16 %v845
    %v1051 = vunpack.c.l.b16 %v846
    %v1052 = vunpack.c.l.b16 %v847
    %v1053 = vunpack.c.l.b16 %v848
    %v1054 = vunpack.c.l.b16 %v849
    %v1055 = vunpack.c.l.b16 %v850
    %v1056 = vunpack.c.l.b16 %v851
    %v1057 = vunpack.c.l.b16 %v852
    %v1058 = vpack.c.b16 %v1047, %v1046
    %v1059 = vpack.c.b16 %v1049, %v1048
    %v1060 = vpack.c.b16 %v1051, %v1050
    %v1061 = vpack.c.b16 %v1053, %v1052
    %v1062 = vpack.c.b16 %v1055, %v1054
    %v1063 = vpack.c.b16 %v1057, %v1056
    %v1071 = vsel %vm716, %v1022, 0
    %v1074 = vsel %vm716, %v1023, 0
    %v1077 = vsel %vm716, %v1024, 0
    %v1080 = vsel %vm716, %v1025, 0
    %v1083 = vsel %vm716, %v1026, 0
    %v1086 = vsel %vm716, %v1027, 0
    %1088 = vmatprep.subr.bf16.mxu0 0
    %1089 = vmatpush1.bf16.msra.mxu0 %v1058
    %1090 = vmatprep.subr.bf16.mxu0 0
    %1091 = vmatpush1.bf16.msra.mxu0 %v1059
    %1092 = vmatprep.subr.bf16.mxu0 0
    %1093 = vmatpush1.bf16.msra.mxu0 %v1060
    %1094 = vmatprep.subr.bf16.mxu0 0
    %1095 = vmatpush1.bf16.msra.mxu0 %v1061
    %1096 = vmatprep.subr.bf16.mxu0 0
    %1097 = vmatpush1.bf16.msra.mxu0 %v1062
    %1098 = vmatprep.subr.bf16.mxu0 0
    %1099 = vmatpush1.bf16.msra.mxu0 %v1063
    %1100 = vmatprep.subr.bf16.mxu0 0
    %1101 = vmatpush1.bf16.msra.mxu0 0
    %1102 = vmatprep.subr.bf16.mxu0 0
    %1103 = vmatpush1.bf16.msra.mxu0 0
    %1104 = vmatprep.subr.bf16.mxu0 0
    %1105 = vmatpush1.bf16.msra.mxu0 0
    %1106 = vmatprep.subr.bf16.mxu0 0
    %1107 = vmatpush1.bf16.msra.mxu0 0
    %1108 = vmatprep.subr.bf16.mxu0 0
    %1109 = vmatpush1.bf16.msra.mxu0 0
    %1110 = vmatprep.subr.bf16.mxu0 0
    %1111 = vmatpush1.bf16.msra.mxu0 0
    %1112 = vmatprep.subr.bf16.mxu0 0
    %1113 = vmatpush1.bf16.msra.mxu0 0
    %1114 = vmatprep.subr.bf16.mxu0 0
    %1115 = vmatpush1.bf16.msra.mxu0 0
    %1116 = vmatprep.subr.bf16.mxu0 0
    %1117 = vmatpush1.bf16.msra.mxu0 0
    %1118 = vmatprep.subr.bf16.mxu0 0
    %1119 = vmatpush1.bf16.msra.mxu0 0
    %1120 = vmatprep.mubr.bf16.mxu0 0
    %1121 = vmatmul.mubr.bf16.gmra.mrb[0].mxu0 %v1071
    %v1122 = vpop.f32.mrb[0].mxu0
    %v1123 = vadd.f32 %v1032, %v1122
    %v1124 = vpop.f32.mrb[0].mxu0
    %v1125 = vpop.f32.mrb[0].mxu0
    %v1126 = vadd.f32 %v1032, %v1125
    %v1127 = vpop.f32.mrb[0].mxu0
    %1128 = vmatprep.mubr.bf16.mxu0 0
    %1129 = vmatmul.mubr.bf16.gmra.mrb[0].mxu0 %v1074
    %v1130 = vpop.f32.mrb[0].mxu0
    %v1131 = vpop.f32.mrb[0].mxu0
    %v1132 = vpop.f32.mrb[0].mxu0
    %v1133 = vpop.f32.mrb[0].mxu0
    %1134 = vmatprep.mubr.bf16.mxu0 0
    %1135 = vmatmul.mubr.bf16.gmra.mrb[0].mxu0 %v1077
    %v1136 = vpop.f32.mrb[0].mxu0
    %v1137 = vpop.f32.mrb[0].mxu0
    %v1138 = vpop.f32.mrb[0].mxu0
    %v1139 = vpop.f32.mrb[0].mxu0
    %1140 = vmatprep.mubr.bf16.mxu0 0
    %1141 = vmatmul.mubr.bf16.gmra.mrb[0].mxu0 %v1080
    %v1142 = vpop.f32.mrb[0].mxu0
    %v1143 = vadd.f32 %v1032, %v1142
    %v1144 = vpop.f32.mrb[0].mxu0
    %v1145 = vpop.f32.mrb[0].mxu0
    %v1146 = vadd.f32 %v1032, %v1145
    %v1147 = vpop.f32.mrb[0].mxu0
    %1148 = vmatprep.mubr.bf16.mxu0 0
    %1149 = vmatmul.mubr.bf16.gmra.mrb[0].mxu0 %v1083
    %v1150 = vpop.f32.mrb[0].mxu0
    %v1151 = vpop.f32.mrb[0].mxu0
    %v1152 = vpop.f32.mrb[0].mxu0
    %v1153 = vpop.f32.mrb[0].mxu0
    %1154 = vmatprep.mubr.bf16.mxu0 0
    %1155 = vmatmul.mubr.bf16.gmra.mrb[0].mxu0 %v1086
    %v1156 = vpop.f32.mrb[0].mxu0
    %v1157 = vpop.f32.mrb[0].mxu0
    %v1158 = vpop.f32.mrb[0].mxu0
    %v1159 = vpop.f32.mrb[0].mxu0
    %1160 = vdwg.mxu0
    %v1161 = vmax.f32 %v1123, 0.0
    %v1162 = vmax.f32 %v1126, 0.0
    %v1163 = vmax.f32 %v1143, 0.0
    %v1164 = vmax.f32 %v1146, 0.0
    %1165 = vst.msk [vmem:[#allocation2 + $0x8] sm:$0xff] %vm226, %v1161
    %1166 = vst.msk [vmem:[#allocation2 + $0x10] sm:$0xff] %vm226, %v1162
    %1167 = vst.msk [vmem:[#allocation2 + $0x18] sm:$0xff] %vm226, 0.0
    %1168 = vst.msk [vmem:[#allocation2 + $0x38] sm:$0xff] %vm226, %v1163
    %1169 = vst.msk [vmem:[#allocation2 + $0x40] sm:$0xff] %vm226, %v1164
    %1170 = vst.msk [vmem:[#allocation2 + $0x48] sm:$0xff] %vm226, 0.0
    %v1171 = vld [vmem:[%s15] sm:$0xf]
    %v1172 = vld [vmem:[%s15 + $0x4] sm:$0xf]
    %v1173 = vld [vmem:[%s15 + $0x8] sm:$0xf]
    %v1174 = vld [vmem:[%s15 + $0xc] sm:$0xf]
    %v1175 = vld [vmem:[%s17] sm:$0x1]
    %v1176 = vld [vmem:[#allocation2 + $0x8] sm:$0xff]
    %v1177 = vld [vmem:[#allocation2 + $0x10] sm:$0xff]
    %v1178 = vld [vmem:[#allocation2 + $0x18] sm:$0xff]
    %v1179 = vld [vmem:[#allocation2 + $0x20] sm:$0xff]
    %v1180 = vld [vmem:[#allocation2 + $0x28] sm:$0xff]
    %v1181 = vld [vmem:[#allocation2 + $0x30] sm:$0xff]
    %v1182 = vld [vmem:[#allocation2 + $0x38] sm:$0xff]
    %v1183 = vld [vmem:[#allocation2 + $0x40] sm:$0xff]
    %v1184 = vld [vmem:[#allocation2 + $0x48] sm:$0xff]
    %v1185 = vld [vmem:[#allocation2 + $0x50] sm:$0xff]
    %v1186 = vld [vmem:[#allocation2 + $0x58] sm:$0xff]
    %v1187 = vld [vmem:[#allocation2 + $0x60] sm:$0xff]
    %v1188 = vpack.c.bf16 %v1177, %v1176
    %v1189 = vpack.c.bf16 %v1179, %v1178
    %v1190 = vpack.c.bf16 %v1181, %v1180
    %v1191 = vpack.c.bf16 %v1183, %v1182
    %v1192 = vpack.c.bf16 %v1185, %v1184
    %v1193 = vpack.c.bf16 %v1187, %v1186
    %v1195 = vlaneseq
    %v1196 = vshrl.u32 %v1195, 7
    %v1197 = vsub.s32 0, %v1196
    %v1198 = vrot.slane %v1175, %v1197
    %v1204 = vunpack.c.l.b16 %v1171
    %v1205 = vunpack.c.l.b16 %v1172
    %v1206 = vunpack.c.l.b16 %v1173
    %v1207 = vunpack.c.l.b16 %v1174
    %v1208 = vpack.c.b16 %v1205, %v1204
    %v1209 = vpack.c.b16 %v1207, %v1206
    %v1213 = vsel %vm226, %v1188, 0
    %v1216 = vsel %vm226, %v1189, 0
    %v1219 = vsel %vm226, %v1190, 0
    %v1222 = vsel %vm226, %v1191, 0
    %v1225 = vsel %vm226, %v1192, 0
    %v1228 = vsel %vm226, %v1193, 0
    %1230 = vmatprep.subr.bf16.mxu0 0
    %1231 = vmatpush1.bf16.msra.mxu0 %v1208
    %1232 = vmatprep.subr.bf16.mxu0 0
    %1233 = vmatpush1.bf16.msra.mxu0 %v1209
    %1234 = vmatprep.subr.bf16.mxu0 0
    %1235 = vmatpush1.bf16.msra.mxu0 0
    %1236 = vmatprep.subr.bf16.mxu0 0
    %1237 = vmatpush1.bf16.msra.mxu0 0
    %1238 = vmatprep.subr.bf16.mxu0 0
    %1239 = vmatpush1.bf16.msra.mxu0 0
    %1240 = vmatprep.subr.bf16.mxu0 0
    %1241 = vmatpush1.bf16.msra.mxu0 0
    %1242 = vmatprep.subr.bf16.mxu0 0
    %1243 = vmatpush1.bf16.msra.mxu0 0
    %1244 = vmatprep.subr.bf16.mxu0 0
    %1245 = vmatpush1.bf16.msra.mxu0 0
    %1246 = vmatprep.subr.bf16.mxu0 0
    %1247 = vmatpush1.bf16.msra.mxu0 0
    %1248 = vmatprep.subr.bf16.mxu0 0
    %1249 = vmatpush1.bf16.msra.mxu0 0
    %1250 = vmatprep.subr.bf16.mxu0 0
    %1251 = vmatpush1.bf16.msra.mxu0 0
    %1252 = vmatprep.subr.bf16.mxu0 0
    %1253 = vmatpush1.bf16.msra.mxu0 0
    %1254 = vmatprep.subr.bf16.mxu0 0
    %1255 = vmatpush1.bf16.msra.mxu0 0
    %1256 = vmatprep.subr.bf16.mxu0 0
    %1257 = vmatpush1.bf16.msra.mxu0 0
    %1258 = vmatprep.subr.bf16.mxu0 0
    %1259 = vmatpush1.bf16.msra.mxu0 0
    %1260 = vmatprep.subr.bf16.mxu0 0
    %1261 = vmatpush1.bf16.msra.mxu0 0
    %1262 = vmatprep.mubr.bf16.mxu0 0
    %1263 = vmatmul.mubr.bf16.gmra.mrb[0].mxu0 %v1213
    %v1264 = vpop.f32.mrb[0].mxu0
    %v1265 = vadd.f32 %v1198, %v1264
    %v1266 = vpop.f32.mrb[0].mxu0
    %v1267 = vpop.f32.mrb[0].mxu0
    %v1268 = vadd.f32 %v1198, %v1267
    %v1269 = vpop.f32.mrb[0].mxu0
    %1270 = vmatprep.mubr.bf16.mxu0 0
    %1271 = vmatmul.mubr.bf16.gmra.mrb[0].mxu0 %v1216
    %v1272 = vpop.f32.mrb[0].mxu0
    %v1273 = vpop.f32.mrb[0].mxu0
    %v1274 = vpop.f32.mrb[0].mxu0
    %v1275 = vpop.f32.mrb[0].mxu0
    %1276 = vmatprep.mubr.bf16.mxu0 0
    %1277 = vmatmul.mubr.bf16.gmra.mrb[0].mxu0 %v1219
    %v1278 = vpop.f32.mrb[0].mxu0
    %v1279 = vpop.f32.mrb[0].mxu0
    %v1280 = vpop.f32.mrb[0].mxu0
    %v1281 = vpop.f32.mrb[0].mxu0
    %1282 = vmatprep.mubr.bf16.mxu0 0
    %1283 = vmatmul.mubr.bf16.gmra.mrb[0].mxu0 %v1222
    %v1284 = vpop.f32.mrb[0].mxu0
    %v1285 = vadd.f32 %v1198, %v1284
    %v1286 = vpop.f32.mrb[0].mxu0
    %v1287 = vpop.f32.mrb[0].mxu0
    %v1288 = vadd.f32 %v1198, %v1287
    %v1289 = vpop.f32.mrb[0].mxu0
    %1290 = vmatprep.mubr.bf16.mxu0 0
    %1291 = vmatmul.mubr.bf16.gmra.mrb[0].mxu0 %v1225
    %v1292 = vpop.f32.mrb[0].mxu0
    %v1293 = vpop.f32.mrb[0].mxu0
    %v1294 = vpop.f32.mrb[0].mxu0
    %v1295 = vpop.f32.mrb[0].mxu0
    %1296 = vmatprep.mubr.bf16.mxu0 0
    %1297 = vmatmul.mubr.bf16.gmra.mrb[0].mxu0 %v1228
    %v1298 = vpop.f32.mrb[0].mxu0
    %v1299 = vpop.f32.mrb[0].mxu0
    %v1300 = vpop.f32.mrb[0].mxu0
    %v1301 = vpop.f32.mrb[0].mxu0
    %1302 = vdwg.mxu0
    %v1303 = vld [vmem:[#allocation4 + $0x8] sm:$0xff]
    %v1304 = vld [vmem:[#allocation4 + $0x10] sm:$0xff]
    %v1305 = vld [vmem:[#allocation4 + $0x38] sm:$0xff]
    %v1306 = vld [vmem:[#allocation4 + $0x40] sm:$0xff]
    %v1307 = vadd.f32 %v1265, %v1303
    %v1308 = vadd.f32 %v1268, %v1304
    %v1309 = vadd.f32 %v1285, %v1305
    %v1310 = vadd.f32 %v1288, %v1306
    %1311 = vst.msk [vmem:[#allocation3 + $0x8] sm:$0xff] %vm226, %v1307
    %1312 = vst.msk [vmem:[#allocation3 + $0x10] sm:$0xff] %vm226, %v1308
    %1313 = vst.msk [vmem:[#allocation3 + $0x18] sm:$0xff] %vm226, 0.0
    %1314 = vst.msk [vmem:[#allocation3 + $0x38] sm:$0xff] %vm226, %v1309
    %1315 = vst.msk [vmem:[#allocation3 + $0x40] sm:$0xff] %vm226, %v1310
    %1316 = vst.msk [vmem:[#allocation3 + $0x48] sm:$0xff] %vm226, 0.0
    %v1317 = vld [vmem:[%s19] sm:$0xf]
    %v1318 = vld [vmem:[%s19 + $0x4] sm:$0xf]
    %v1319 = vld [vmem:[%s19 + $0x8] sm:$0xf]
    %v1320 = vld [vmem:[%s19 + $0xc] sm:$0xf]
    %v1321 = vld [vmem:[%s19 + $0x10] sm:$0xf]
    %v1322 = vld [vmem:[%s19 + $0x14] sm:$0xf]
    %v1323 = vld [vmem:[%s19 + $0x18] sm:$0xf]
    %v1324 = vld [vmem:[%s19 + $0x1c] sm:$0xf]
    %v1325 = vld [vmem:[%s19 + $0x20] sm:$0xf]
    %v1326 = vld [vmem:[%s19 + $0x24] sm:$0xf]
    %v1327 = vld [vmem:[%s19 + $0x28] sm:$0xf]
    %v1328 = vld [vmem:[%s19 + $0x2c] sm:$0xf]
    %v1329 = vld [vmem:[%s21] sm:$0x1]
    %v1330 = vld [vmem:[#allocation3 + $0x7] sm:$0xff]
    %v1331 = vld [vmem:[#allocation3 + $0xf] sm:$0xff]
    %v1332 = vld [vmem:[#allocation3 + $0x17] sm:$0xff]
    %v1333 = vld [vmem:[#allocation3 + $0x1f] sm:$0xff]
    %v1334 = vld [vmem:[#allocation3 + $0x27] sm:$0xff]
    %v1335 = vld [vmem:[#allocation3 + $0x2f] sm:$0xff]
    %v1336 = vld [vmem:[#allocation3 + $0x37] sm:$0xff]
    %v1337 = vld [vmem:[#allocation3 + $0x3f] sm:$0xff]
    %v1338 = vld [vmem:[#allocation3 + $0x47] sm:$0xff]
    %v1339 = vld [vmem:[#allocation3 + $0x4f] sm:$0xff]
    %v1340 = vld [vmem:[#allocation3 + $0x57] sm:$0xff]
    %v1341 = vld [vmem:[#allocation3 + $0x5f] sm:$0xff]
    %v1342 = vld [vmem:[#allocation3 + $0x8] sm:$0xff]
    %v1343 = vld [vmem:[#allocation3 + $0x10] sm:$0xff]
    %v1344 = vld [vmem:[#allocation3 + $0x18] sm:$0xff]
    %v1345 = vld [vmem:[#allocation3 + $0x20] sm:$0xff]
    %v1346 = vld [vmem:[#allocation3 + $0x28] sm:$0xff]
    %v1347 = vld [vmem:[#allocation3 + $0x30] sm:$0xff]
    %v1348 = vld [vmem:[#allocation3 + $0x38] sm:$0xff]
    %v1349 = vld [vmem:[#allocation3 + $0x40] sm:$0xff]
    %v1350 = vld [vmem:[#allocation3 + $0x48] sm:$0xff]
    %v1351 = vld [vmem:[#allocation3 + $0x50] sm:$0xff]
    %v1352 = vld [vmem:[#allocation3 + $0x58] sm:$0xff]
    %v1353 = vld [vmem:[#allocation3 + $0x60] sm:$0xff]
    %v1354 = vld [vmem:[#allocation3 + $0x9] sm:$0xff]
    %v1355 = vld [vmem:[#allocation3 + $0x11] sm:$0xff]
    %v1356 = vld [vmem:[#allocation3 + $0x19] sm:$0xff]
    %v1357 = vld [vmem:[#allocation3 + $0x21] sm:$0xff]
    %v1358 = vld [vmem:[#allocation3 + $0x29] sm:$0xff]
    %v1359 = vld [vmem:[#allocation3 + $0x31] sm:$0xff]
    %v1360 = vld [vmem:[#allocation3 + $0x39] sm:$0xff]
    %v1361 = vld [vmem:[#allocation3 + $0x41] sm:$0xff]
    %v1362 = vld [vmem:[#allocation3 + $0x49] sm:$0xff]
    %v1363 = vld [vmem:[#allocation3 + $0x51] sm:$0xff]
    %v1364 = vld [vmem:[#allocation3 + $0x59] sm:$0xff]
    %v1365 = vld [vmem:[#allocation3 + $0x61] sm:$0xff]
    %1378 = vrot.lane.b32.xlu0 %v1342, 32
    %v1379 = vpop.permute.xlu0 %1378
    %1380 = vrot.lane.b32.xlu0 %v1343, 32
    %v1381 = vpop.permute.xlu0 %1380
    %1382 = vrot.lane.b32.xlu0 %v1344, 32
    %v1383 = vpop.permute.xlu0 %1382
    %1384 = vrot.lane.b32.xlu0 %v1345, 32
    %v1385 = vpop.permute.xlu0 %1384
    %1386 = vrot.lane.b32.xlu0 %v1346, 32
    %v1387 = vpop.permute.xlu0 %1386
    %1388 = vrot.lane.b32.xlu0 %v1347, 32
    %v1389 = vpop.permute.xlu0 %1388
    %1390 = vrot.lane.b32.xlu0 %v1348, 32
    %v1391 = vpop.permute.xlu0 %1390
    %1392 = vrot.lane.b32.xlu0 %v1349, 32
    %v1393 = vpop.permute.xlu0 %1392
    %1394 = vrot.lane.b32.xlu0 %v1350, 32
    %v1395 = vpop.permute.xlu0 %1394
    %1396 = vrot.lane.b32.xlu0 %v1351, 32
    %v1397 = vpop.permute.xlu0 %1396
    %1398 = vrot.lane.b32.xlu0 %v1352, 32
    %v1399 = vpop.permute.xlu0 %1398
    %1400 = vrot.lane.b32.xlu0 %v1353, 32
    %v1401 = vpop.permute.xlu0 %1400
    %1426 = vrot.lane.b32.xlu0 %v1354, 64
    %v1427 = vpop.permute.xlu0 %1426
    %1428 = vrot.lane.b32.xlu0 %v1355, 64
    %v1429 = vpop.permute.xlu0 %1428
    %1430 = vrot.lane.b32.xlu0 %v1356, 64
    %v1431 = vpop.permute.xlu0 %1430
    %1432 = vrot.lane.b32.xlu0 %v1357, 64
    %v1433 = vpop.permute.xlu0 %1432
    %1434 = vrot.lane.b32.xlu0 %v1358, 64
    %v1435 = vpop.permute.xlu0 %1434
    %1436 = vrot.lane.b32.xlu0 %v1359, 64
    %v1437 = vpop.permute.xlu0 %1436
    %1438 = vrot.lane.b32.xlu0 %v1360, 64
    %v1439 = vpop.permute.xlu0 %1438
    %1440 = vrot.lane.b32.xlu0 %v1361, 64
    %v1441 = vpop.permute.xlu0 %1440
    %1442 = vrot.lane.b32.xlu0 %v1362, 64
    %v1443 = vpop.permute.xlu0 %1442
    %1444 = vrot.lane.b32.xlu0 %v1363, 64
    %v1445 = vpop.permute.xlu0 %1444
    %1446 = vrot.lane.b32.xlu0 %v1364, 64
    %v1447 = vpop.permute.xlu0 %1446
    %1448 = vrot.lane.b32.xlu0 %v1365, 64
    %v1449 = vpop.permute.xlu0 %1448
    %v1462 = vsel %vm226, %v1330, %v1379
    %v1463 = vsel %vm226, %v1331, %v1381
    %v1464 = vsel %vm226, %v1332, %v1383
    %v1465 = vsel %vm226, %v1333, %v1385
    %v1466 = vsel %vm226, %v1334, %v1387
    %v1467 = vsel %vm226, %v1335, %v1389
    %v1468 = vsel %vm226, %v1336, %v1391
    %v1469 = vsel %vm226, %v1337, %v1393
    %v1470 = vsel %vm226, %v1338, %v1395
    %v1471 = vsel %vm226, %v1339, %v1397
    %v1472 = vsel %vm226, %v1340, %v1399
    %v1473 = vsel %vm226, %v1341, %v1401
    %v1474 = vsel %vm709, %v1462, %v1427
    %v1475 = vsel %vm709, %v1463, %v1429
    %v1476 = vsel %vm709, %v1464, %v1431
    %v1477 = vsel %vm709, %v1465, %v1433
    %v1478 = vsel %vm709, %v1466, %v1435
    %v1479 = vsel %vm709, %v1467, %v1437
    %v1480 = vsel %vm709, %v1468, %v1439
    %v1481 = vsel %vm709, %v1469, %v1441
    %v1482 = vsel %vm709, %v1470, %v1443
    %v1483 = vsel %vm709, %v1471, %v1445
    %v1484 = vsel %vm709, %v1472, %v1447
    %v1485 = vsel %vm709, %v1473, %v1449
    %v1486 = vmax.f32 %v1474, 0.0
    %v1487 = vmax.f32 %v1475, 0.0
    %v1488 = vmax.f32 %v1476, 0.0
    %v1489 = vmax.f32 %v1477, 0.0
    %v1490 = vmax.f32 %v1478, 0.0
    %v1491 = vmax.f32 %v1479, 0.0
    %v1492 = vmax.f32 %v1480, 0.0
    %v1493 = vmax.f32 %v1481, 0.0
    %v1494 = vmax.f32 %v1482, 0.0
    %v1495 = vmax.f32 %v1483, 0.0
    %v1496 = vmax.f32 %v1484, 0.0
    %v1497 = vmax.f32 %v1485, 0.0
    %v1498 = vpack.c.bf16 %v1487, %v1486
    %v1499 = vpack.c.bf16 %v1489, %v1488
    %v1500 = vpack.c.bf16 %v1491, %v1490
    %v1501 = vpack.c.bf16 %v1493, %v1492
    %v1502 = vpack.c.bf16 %v1495, %v1494
    %v1503 = vpack.c.bf16 %v1497, %v1496
    %v1505 = vlaneseq
    %v1506 = vshrl.u32 %v1505, 7
    %v1507 = vsub.s32 0, %v1506
    %v1508 = vrot.slane %v1329, %v1507
    %v1522 = vunpack.c.l.b16 %v1317
    %v1523 = vunpack.c.l.b16 %v1318
    %v1524 = vunpack.c.l.b16 %v1319
    %v1525 = vunpack.c.l.b16 %v1320
    %v1526 = vunpack.c.l.b16 %v1321
    %v1527 = vunpack.c.l.b16 %v1322
    %v1528 = vunpack.c.l.b16 %v1323
    %v1529 = vunpack.c.l.b16 %v1324
    %v1530 = vunpack.c.l.b16 %v1325
    %v1531 = vunpack.c.l.b16 %v1326
    %v1532 = vunpack.c.l.b16 %v1327
    %v1533 = vunpack.c.l.b16 %v1328
    %v1534 = vpack.c.b16 %v1523, %v1522
    %v1535 = vpack.c.b16 %v1525, %v1524
    %v1536 = vpack.c.b16 %v1527, %v1526
    %v1537 = vpack.c.b16 %v1529, %v1528
    %v1538 = vpack.c.b16 %v1531, %v1530
    %v1539 = vpack.c.b16 %v1533, %v1532
    %v1547 = vsel %vm716, %v1498, 0
    %v1550 = vsel %vm716, %v1499, 0
    %v1553 = vsel %vm716, %v1500, 0
    %v1556 = vsel %vm716, %v1501, 0
    %v1559 = vsel %vm716, %v1502, 0
    %v1562 = vsel %vm716, %v1503, 0
    %1564 = vmatprep.subr.bf16.mxu0 0
    %1565 = vmatpush1.bf16.msra.mxu0 %v1534
    %1566 = vmatprep.subr.bf16.mxu0 0
    %1567 = vmatpush1.bf16.msra.mxu0 %v1535
    %1568 = vmatprep.subr.bf16.mxu0 0
    %1569 = vmatpush1.bf16.msra.mxu0 %v1536
    %1570 = vmatprep.subr.bf16.mxu0 0
    %1571 = vmatpush1.bf16.msra.mxu0 %v1537
    %1572 = vmatprep.subr.bf16.mxu0 0
    %1573 = vmatpush1.bf16.msra.mxu0 %v1538
    %1574 = vmatprep.subr.bf16.mxu0 0
    %1575 = vmatpush1.bf16.msra.mxu0 %v1539
    %1576 = vmatprep.subr.bf16.mxu0 0
    %1577 = vmatpush1.bf16.msra.mxu0 0
    %1578 = vmatprep.subr.bf16.mxu0 0
    %1579 = vmatpush1.bf16.msra.mxu0 0
    %1580 = vmatprep.subr.bf16.mxu0 0
    %1581 = vmatpush1.bf16.msra.mxu0 0
    %1582 = vmatprep.subr.bf16.mxu0 0
    %1583 = vmatpush1.bf16.msra.mxu0 0
    %1584 = vmatprep.subr.bf16.mxu0 0
    %1585 = vmatpush1.bf16.msra.mxu0 0
    %1586 = vmatprep.subr.bf16.mxu0 0
    %1587 = vmatpush1.bf16.msra.mxu0 0
    %1588 = vmatprep.subr.bf16.mxu0 0
    %1589 = vmatpush1.bf16.msra.mxu0 0
    %1590 = vmatprep.subr.bf16.mxu0 0
    %1591 = vmatpush1.bf16.msra.mxu0 0
    %1592 = vmatprep.subr.bf16.mxu0 0
    %1593 = vmatpush1.bf16.msra.mxu0 0
    %1594 = vmatprep.subr.bf16.mxu0 0
    %1595 = vmatpush1.bf16.msra.mxu0 0
    %1596 = vmatprep.mubr.bf16.mxu0 0
    %1597 = vmatmul.mubr.bf16.gmra.mrb[0].mxu0 %v1547
    %v1598 = vpop.f32.mrb[0].mxu0
    %v1599 = vadd.f32 %v1508, %v1598
    %v1600 = vpop.f32.mrb[0].mxu0
    %v1601 = vpop.f32.mrb[0].mxu0
    %v1602 = vadd.f32 %v1508, %v1601
    %v1603 = vpop.f32.mrb[0].mxu0
    %1604 = vmatprep.mubr.bf16.mxu0 0
    %1605 = vmatmul.mubr.bf16.gmra.mrb[0].mxu0 %v1550
    %v1606 = vpop.f32.mrb[0].mxu0
    %v1607 = vpop.f32.mrb[0].mxu0
    %v1608 = vpop.f32.mrb[0].mxu0
    %v1609 = vpop.f32.mrb[0].mxu0
    %1610 = vmatprep.mubr.bf16.mxu0 0
    %1611 = vmatmul.mubr.bf16.gmra.mrb[0].mxu0 %v1553
    %v1612 = vpop.f32.mrb[0].mxu0
    %v1613 = vpop.f32.mrb[0].mxu0
    %v1614 = vpop.f32.mrb[0].mxu0
    %v1615 = vpop.f32.mrb[0].mxu0
    %1616 = vmatprep.mubr.bf16.mxu0 0
    %1617 = vmatmul.mubr.bf16.gmra.mrb[0].mxu0 %v1556
    %v1618 = vpop.f32.mrb[0].mxu0
    %v1619 = vadd.f32 %v1508, %v1618
    %v1620 = vpop.f32.mrb[0].mxu0
    %v1621 = vpop.f32.mrb[0].mxu0
    %v1622 = vadd.f32 %v1508, %v1621
    %v1623 = vpop.f32.mrb[0].mxu0
    %1624 = vmatprep.mubr.bf16.mxu0 0
    %1625 = vmatmul.mubr.bf16.gmra.mrb[0].mxu0 %v1559
    %v1626 = vpop.f32.mrb[0].mxu0
    %v1627 = vpop.f32.mrb[0].mxu0
    %v1628 = vpop.f32.mrb[0].mxu0
    %v1629 = vpop.f32.mrb[0].mxu0
    %1630 = vmatprep.mubr.bf16.mxu0 0
    %1631 = vmatmul.mubr.bf16.gmra.mrb[0].mxu0 %v1562
    %v1632 = vpop.f32.mrb[0].mxu0
    %v1633 = vpop.f32.mrb[0].mxu0
    %v1634 = vpop.f32.mrb[0].mxu0
    %v1635 = vpop.f32.mrb[0].mxu0
    %1636 = vdwg.mxu0
    %v1637 = vmax.f32 %v1599, 0.0
    %v1638 = vmax.f32 %v1602, 0.0
    %v1639 = vmax.f32 %v1619, 0.0
    %v1640 = vmax.f32 %v1622, 0.0
    %1641 = vst.msk [vmem:[#allocation4 + $0x8] sm:$0xff] %vm226, %v1637
    %1642 = vst.msk [vmem:[#allocation4 + $0x10] sm:$0xff] %vm226, %v1638
    %1643 = vst.msk [vmem:[#allocation4 + $0x18] sm:$0xff] %vm226, 0.0
    %1644 = vst.msk [vmem:[#allocation4 + $0x38] sm:$0xff] %vm226, %v1639
    %1645 = vst.msk [vmem:[#allocation4 + $0x40] sm:$0xff] %vm226, %v1640
    %1646 = vst.msk [vmem:[#allocation4 + $0x48] sm:$0xff] %vm226, 0.0
    %v1647 = vld [vmem:[%s23] sm:$0xf]
    %v1648 = vld [vmem:[%s23 + $0x4] sm:$0xf]
    %v1649 = vld [vmem:[%s23 + $0x8] sm:$0xf]
    %v1650 = vld [vmem:[%s23 + $0xc] sm:$0xf]
    %v1651 = vld [vmem:[%s25] sm:$0x1]
    %v1652 = vld [vmem:[#allocation4 + $0x8] sm:$0xff]
    %v1653 = vld [vmem:[#allocation4 + $0x10] sm:$0xff]
    %v1654 = vld [vmem:[#allocation4 + $0x18] sm:$0xff]
    %v1655 = vld [vmem:[#allocation4 + $0x20] sm:$0xff]
    %v1656 = vld [vmem:[#allocation4 + $0x28] sm:$0xff]
    %v1657 = vld [vmem:[#allocation4 + $0x30] sm:$0xff]
    %v1658 = vld [vmem:[#allocation4 + $0x38] sm:$0xff]
    %v1659 = vld [vmem:[#allocation4 + $0x40] sm:$0xff]
    %v1660 = vld [vmem:[#allocation4 + $0x48] sm:$0xff]
    %v1661 = vld [vmem:[#allocation4 + $0x50] sm:$0xff]
    %v1662 = vld [vmem:[#allocation4 + $0x58] sm:$0xff]
    %v1663 = vld [vmem:[#allocation4 + $0x60] sm:$0xff]
    %v1664 = vpack.c.bf16 %v1653, %v1652
    %v1665 = vpack.c.bf16 %v1655, %v1654
    %v1666 = vpack.c.bf16 %v1657, %v1656
    %v1667 = vpack.c.bf16 %v1659, %v1658
    %v1668 = vpack.c.bf16 %v1661, %v1660
    %v1669 = vpack.c.bf16 %v1663, %v1662
    %v1671 = vlaneseq
    %v1672 = vshrl.u32 %v1671, 7
    %v1673 = vsub.s32 0, %v1672
    %v1674 = vrot.slane %v1651, %v1673
    %v1680 = vunpack.c.l.b16 %v1647
    %v1681 = vunpack.c.l.b16 %v1648
    %v1682 = vunpack.c.l.b16 %v1649
    %v1683 = vunpack.c.l.b16 %v1650
    %v1684 = vpack.c.b16 %v1681, %v1680
    %v1685 = vpack.c.b16 %v1683, %v1682
    %v1689 = vsel %vm226, %v1664, 0
    %v1692 = vsel %vm226, %v1665, 0
    %v1695 = vsel %vm226, %v1666, 0
    %v1698 = vsel %vm226, %v1667, 0
    %v1701 = vsel %vm226, %v1668, 0
    %v1704 = vsel %vm226, %v1669, 0
    %1706 = vmatprep.subr.bf16.mxu0 0
    %1707 = vmatpush1.bf16.msra.mxu0 %v1684
    %1708 = vmatprep.subr.bf16.mxu0 0
    %1709 = vmatpush1.bf16.msra.mxu0 %v1685
    %1710 = vmatprep.subr.bf16.mxu0 0
    %1711 = vmatpush1.bf16.msra.mxu0 0
    %1712 = vmatprep.subr.bf16.mxu0 0
    %1713 = vmatpush1.bf16.msra.mxu0 0
    %1714 = vmatprep.subr.bf16.mxu0 0
    %1715 = vmatpush1.bf16.msra.mxu0 0
    %1716 = vmatprep.subr.bf16.mxu0 0
    %1717 = vmatpush1.bf16.msra.mxu0 0
    %1718 = vmatprep.subr.bf16.mxu0 0
    %1719 = vmatpush1.bf16.msra.mxu0 0
    %1720 = vmatprep.subr.bf16.mxu0 0
    %1721 = vmatpush1.bf16.msra.mxu0 0
    %1722 = vmatprep.subr.bf16.mxu0 0
    %1723 = vmatpush1.bf16.msra.mxu0 0
    %1724 = vmatprep.subr.bf16.mxu0 0
    %1725 = vmatpush1.bf16.msra.mxu0 0
    %1726 = vmatprep.subr.bf16.mxu0 0
    %1727 = vmatpush1.bf16.msra.mxu0 0
    %1728 = vmatprep.subr.bf16.mxu0 0
    %1729 = vmatpush1.bf16.msra.mxu0 0
    %1730 = vmatprep.subr.bf16.mxu0 0
    %1731 = vmatpush1.bf16.msra.mxu0 0
    %1732 = vmatprep.subr.bf16.mxu0 0
    %1733 = vmatpush1.bf16.msra.mxu0 0
    %1734 = vmatprep.subr.bf16.mxu0 0
    %1735 = vmatpush1.bf16.msra.mxu0 0
    %1736 = vmatprep.subr.bf16.mxu0 0
    %1737 = vmatpush1.bf16.msra.mxu0 0
    %1738 = vmatprep.mubr.bf16.mxu0 0
    %1739 = vmatmul.mubr.bf16.gmra.mrb[0].mxu0 %v1689
    %v1740 = vpop.f32.mrb[0].mxu0
    %v1741 = vadd.f32 %v1674, %v1740
    %v1742 = vpop.f32.mrb[0].mxu0
    %v1743 = vpop.f32.mrb[0].mxu0
    %v1744 = vadd.f32 %v1674, %v1743
    %v1745 = vpop.f32.mrb[0].mxu0
    %1746 = vmatprep.mubr.bf16.mxu0 0
    %1747 = vmatmul.mubr.bf16.gmra.mrb[0].mxu0 %v1692
    %v1748 = vpop.f32.mrb[0].mxu0
    %v1749 = vpop.f32.mrb[0].mxu0
    %v1750 = vpop.f32.mrb[0].mxu0
    %v1751 = vpop.f32.mrb[0].mxu0
    %1752 = vmatprep.mubr.bf16.mxu0 0
    %1753 = vmatmul.mubr.bf16.gmra.mrb[0].mxu0 %v1695
    %v1754 = vpop.f32.mrb[0].mxu0
    %v1755 = vpop.f32.mrb[0].mxu0
    %v1756 = vpop.f32.mrb[0].mxu0
    %v1757 = vpop.f32.mrb[0].mxu0
    %1758 = vmatprep.mubr.bf16.mxu0 0
    %1759 = vmatmul.mubr.bf16.gmra.mrb[0].mxu0 %v1698
    %v1760 = vpop.f32.mrb[0].mxu0
    %v1761 = vadd.f32 %v1674, %v1760
    %v1762 = vpop.f32.mrb[0].mxu0
    %v1763 = vpop.f32.mrb[0].mxu0
    %v1764 = vadd.f32 %v1674, %v1763
    %v1765 = vpop.f32.mrb[0].mxu0
    %1766 = vmatprep.mubr.bf16.mxu0 0
    %1767 = vmatmul.mubr.bf16.gmra.mrb[0].mxu0 %v1701
    %v1768 = vpop.f32.mrb[0].mxu0
    %v1769 = vpop.f32.mrb[0].mxu0
    %v1770 = vpop.f32.mrb[0].mxu0
    %v1771 = vpop.f32.mrb[0].mxu0
    %1772 = vmatprep.mubr.bf16.mxu0 0
    %1773 = vmatmul.mubr.bf16.gmra.mrb[0].mxu0 %v1704
    %v1774 = vpop.f32.mrb[0].mxu0
    %v1775 = vpop.f32.mrb[0].mxu0
    %v1776 = vpop.f32.mrb[0].mxu0
    %v1777 = vpop.f32.mrb[0].mxu0
    %1778 = vdwg.mxu0
    %v1779 = vld [vmem:[#allocation3 + $0x8] sm:$0xff]
    %v1780 = vld [vmem:[#allocation3 + $0x10] sm:$0xff]
    %v1781 = vld [vmem:[#allocation3 + $0x38] sm:$0xff]
    %v1782 = vld [vmem:[#allocation3 + $0x40] sm:$0xff]
    %v1783 = vadd.f32 %v1741, %v1779
    %v1784 = vadd.f32 %v1744, %v1780
    %v1785 = vadd.f32 %v1761, %v1781
    %v1786 = vadd.f32 %v1764, %v1782
    %1787 = vst.msk [vmem:[#allocation2 + $0x8] sm:$0xff] %vm226, %v1783
    %1788 = vst.msk [vmem:[#allocation2 + $0x10] sm:$0xff] %vm226, %v1784
    %1789 = vst.msk [vmem:[#allocation2 + $0x18] sm:$0xff] %vm226, 0.0
    %1790 = vst.msk [vmem:[#allocation2 + $0x38] sm:$0xff] %vm226, %v1785
    %1791 = vst.msk [vmem:[#allocation2 + $0x40] sm:$0xff] %vm226, %v1786
    %1792 = vst.msk [vmem:[#allocation2 + $0x48] sm:$0xff] %vm226, 0.0
    %v1793 = vld [vmem:[%s27] sm:$0xf]
    %v1794 = vld [vmem:[%s27 + $0x4] sm:$0xf]
    %v1795 = vld [vmem:[%s27 + $0x8] sm:$0xf]
    %v1796 = vld [vmem:[%s27 + $0xc] sm:$0xf]
    %v1797 = vld [vmem:[%s27 + $0x10] sm:$0xf]
    %v1798 = vld [vmem:[%s27 + $0x14] sm:$0xf]
    %v1799 = vld [vmem:[%s27 + $0x18] sm:$0xf]
    %v1800 = vld [vmem:[%s27 + $0x1c] sm:$0xf]
    %v1801 = vld [vmem:[%s27 + $0x20] sm:$0xf]
    %v1802 = vld [vmem:[%s27 + $0x24] sm:$0xf]
    %v1803 = vld [vmem:[%s27 + $0x28] sm:$0xf]
    %v1804 = vld [vmem:[%s27 + $0x2c] sm:$0xf]
    %v1805 = vld [vmem:[%s27 + $0x30] sm:$0xf]
    %v1806 = vld [vmem:[%s27 + $0x34] sm:$0xf]
    %v1807 = vld [vmem:[%s27 + $0x38] sm:$0xf]
    %v1808 = vld [vmem:[%s27 + $0x3c] sm:$0xf]
    %v1809 = vld [vmem:[%s29] sm:$0x1]
    %s1810 = scalar_lea.vmem [#allocation2], 7
    %v1811 = vld [vmem:[%s1810] ss:$2 sm:$0xff]
    %s1812 = scalar_lea.vmem [#allocation2], 23
    %v1813 = vld [vmem:[%s1812] ss:$2 sm:$0xff]
    %s1814 = scalar_lea.vmem [#allocation2], 39
    %v1815 = vld [vmem:[%s1814] ss:$2 sm:$0xff]
    %s1816 = scalar_lea.vmem [#allocation2], 55
    %v1817 = vld [vmem:[%s1816] ss:$2 sm:$0xff]
    %s1818 = scalar_lea.vmem [#allocation2], 71
    %v1819 = vld [vmem:[%s1818] ss:$2 sm:$0xff]
    %s1820 = scalar_lea.vmem [#allocation2], 87
    %v1821 = vld [vmem:[%s1820] ss:$2 sm:$0xff]
    %s1822 = scalar_lea.vmem [#allocation2], 8
    %v1823 = vld [vmem:[%s1822] ss:$2 sm:$0xff]
    %s1824 = scalar_lea.vmem [#allocation2], 24
    %v1825 = vld [vmem:[%s1824] ss:$2 sm:$0xff]
    %s1826 = scalar_lea.vmem [#allocation2], 40
    %v1827 = vld [vmem:[%s1826] ss:$2 sm:$0xff]
    %s1828 = scalar_lea.vmem [#allocation2], 56
    %v1829 = vld [vmem:[%s1828] ss:$2 sm:$0xff]
    %s1830 = scalar_lea.vmem [#allocation2], 72
    %v1831 = vld [vmem:[%s1830] ss:$2 sm:$0xff]
    %s1832 = scalar_lea.vmem [#allocation2], 88
    %v1833 = vld [vmem:[%s1832] ss:$2 sm:$0xff]
    %s1834 = scalar_lea.vmem [#allocation2], 9
    %v1835 = vld [vmem:[%s1834] ss:$2 sm:$0xff]
    %s1836 = scalar_lea.vmem [#allocation2], 25
    %v1837 = vld [vmem:[%s1836] ss:$2 sm:$0xff]
    %s1838 = scalar_lea.vmem [#allocation2], 41
    %v1839 = vld [vmem:[%s1838] ss:$2 sm:$0xff]
    %s1840 = scalar_lea.vmem [#allocation2], 57
    %v1841 = vld [vmem:[%s1840] ss:$2 sm:$0xff]
    %s1842 = scalar_lea.vmem [#allocation2], 73
    %v1843 = vld [vmem:[%s1842] ss:$2 sm:$0xff]
    %s1844 = scalar_lea.vmem [#allocation2], 89
    %v1845 = vld [vmem:[%s1844] ss:$2 sm:$0xff]
    %s1846 = scalar_lea.vmem [#allocation2], 10
    %v1847 = vld [vmem:[%s1846] ss:$2 sm:$0xff]
    %s1848 = scalar_lea.vmem [#allocation2], 26
    %v1849 = vld [vmem:[%s1848] ss:$2 sm:$0xff]
    %s1850 = scalar_lea.vmem [#allocation2], 42
    %v1851 = vld [vmem:[%s1850] ss:$2 sm:$0xff]
    %s1852 = scalar_lea.vmem [#allocation2], 58
    %v1853 = vld [vmem:[%s1852] ss:$2 sm:$0xff]
    %s1854 = scalar_lea.vmem [#allocation2], 74
    %v1855 = vld [vmem:[%s1854] ss:$2 sm:$0xff]
    %s1856 = scalar_lea.vmem [#allocation2], 90
    %v1857 = vld [vmem:[%s1856] ss:$2 sm:$0xff]
    %1864 = vrot.lane.b32.xlu0 %v1823, 32
    %v1865 = vpop.permute.xlu0 %1864
    %1866 = vrot.lane.b32.xlu0 %v1825, 32
    %v1867 = vpop.permute.xlu0 %1866
    %1868 = vrot.lane.b32.xlu0 %v1827, 32
    %v1869 = vpop.permute.xlu0 %1868
    %1870 = vrot.lane.b32.xlu0 %v1829, 32
    %v1871 = vpop.permute.xlu0 %1870
    %1872 = vrot.lane.b32.xlu0 %v1831, 32
    %v1873 = vpop.permute.xlu0 %1872
    %1874 = vrot.lane.b32.xlu0 %v1833, 32
    %v1875 = vpop.permute.xlu0 %1874
    %1888 = vrot.lane.b32.xlu0 %v1835, 64
    %v1889 = vpop.permute.xlu0 %1888
    %1890 = vrot.lane.b32.xlu0 %v1837, 64
    %v1891 = vpop.permute.xlu0 %1890
    %1892 = vrot.lane.b32.xlu0 %v1839, 64
    %v1893 = vpop.permute.xlu0 %1892
    %1894 = vrot.lane.b32.xlu0 %v1841, 64
    %v1895 = vpop.permute.xlu0 %1894
    %1896 = vrot.lane.b32.xlu0 %v1843, 64
    %v1897 = vpop.permute.xlu0 %1896
    %1898 = vrot.lane.b32.xlu0 %v1845, 64
    %v1899 = vpop.permute.xlu0 %1898
    %1912 = vrot.lane.b32.xlu0 %v1847, 96
    %v1913 = vpop.permute.xlu0 %1912
    %1914 = vrot.lane.b32.xlu0 %v1849, 96
    %v1915 = vpop.permute.xlu0 %1914
    %1916 = vrot.lane.b32.xlu0 %v1851, 96
    %v1917 = vpop.permute.xlu0 %1916
    %1918 = vrot.lane.b32.xlu0 %v1853, 96
    %v1919 = vpop.permute.xlu0 %1918
    %1920 = vrot.lane.b32.xlu0 %v1855, 96
    %v1921 = vpop.permute.xlu0 %1920
    %1922 = vrot.lane.b32.xlu0 %v1857, 96
    %v1923 = vpop.permute.xlu0 %1922
    %v1930 = vsel %vm226, %v1811, %v1865
    %v1931 = vsel %vm226, %v1813, %v1867
    %v1932 = vsel %vm226, %v1815, %v1869
    %v1933 = vsel %vm226, %v1817, %v1871
    %v1934 = vsel %vm226, %v1819, %v1873
    %v1935 = vsel %vm226, %v1821, %v1875
    %v1936 = vsel %vm709, %v1930, %v1889
    %v1937 = vsel %vm709, %v1931, %v1891
    %v1938 = vsel %vm709, %v1932, %v1893
    %v1939 = vsel %vm709, %v1933, %v1895
    %v1940 = vsel %vm709, %v1934, %v1897
    %v1941 = vsel %vm709, %v1935, %v1899
    %v1942 = vsel %vm716, %v1936, %v1913
    %v1943 = vsel %vm716, %v1937, %v1915
    %v1944 = vsel %vm716, %v1938, %v1917
    %v1945 = vsel %vm716, %v1939, %v1919
    %v1946 = vsel %vm716, %v1940, %v1921
    %v1947 = vsel %vm716, %v1941, %v1923
    %v1948 = vpack.c.bf16 %v1943, %v1942
    %v1949 = vpack.c.bf16 %v1945, %v1944
    %v1950 = vpack.c.bf16 %v1947, %v1946
    %v1952 = vlaneseq
    %v1953 = vshrl.u32 %v1952, 7
    %v1954 = vsub.s32 0, %v1953
    %v1955 = vrot.slane %v1809, %v1954
    %v1973 = vunpack.c.l.b16 %v1793
    %v1974 = vunpack.c.l.b16 %v1794
    %v1975 = vunpack.c.l.b16 %v1795
    %v1976 = vunpack.c.l.b16 %v1796
    %v1977 = vunpack.c.l.b16 %v1797
    %v1978 = vunpack.c.l.b16 %v1798
    %v1979 = vunpack.c.l.b16 %v1799
    %v1980 = vunpack.c.l.b16 %v1800
    %v1981 = vunpack.c.l.b16 %v1801
    %v1982 = vunpack.c.l.b16 %v1802
    %v1983 = vunpack.c.l.b16 %v1803
    %v1984 = vunpack.c.l.b16 %v1804
    %v1985 = vunpack.c.l.b16 %v1805
    %v1986 = vunpack.c.l.b16 %v1806
    %v1987 = vunpack.c.l.b16 %v1807
    %v1988 = vunpack.c.l.b16 %v1808
    %v1989 = vpack.c.b16 %v1974, %v1973
    %v1990 = vpack.c.b16 %v1976, %v1975
    %v1991 = vpack.c.b16 %v1978, %v1977
    %v1992 = vpack.c.b16 %v1980, %v1979
    %v1993 = vpack.c.b16 %v1982, %v1981
    %v1994 = vpack.c.b16 %v1984, %v1983
    %v1995 = vpack.c.b16 %v1986, %v1985
    %v1996 = vpack.c.b16 %v1988, %v1987
    %2005 = vmatprep.subr.bf16.mxu0 0
    %2006 = vmatpush1.bf16.msra.mxu0 %v1989
    %2007 = vmatprep.subr.bf16.mxu0 0
    %2008 = vmatpush1.bf16.msra.mxu0 %v1990
    %2009 = vmatprep.subr.bf16.mxu0 0
    %2010 = vmatpush1.bf16.msra.mxu0 %v1991
    %2011 = vmatprep.subr.bf16.mxu0 0
    %2012 = vmatpush1.bf16.msra.mxu0 %v1992
    %2013 = vmatprep.subr.bf16.mxu0 0
    %2014 = vmatpush1.bf16.msra.mxu0 %v1993
    %2015 = vmatprep.subr.bf16.mxu0 0
    %2016 = vmatpush1.bf16.msra.mxu0 %v1994
    %2017 = vmatprep.subr.bf16.mxu0 0
    %2018 = vmatpush1.bf16.msra.mxu0 %v1995
    %2019 = vmatprep.subr.bf16.mxu0 0
    %2020 = vmatpush1.bf16.msra.mxu0 %v1996
    %2021 = vmatprep.subr.bf16.mxu0 0
    %2022 = vmatpush1.bf16.msra.mxu0 0
    %2023 = vmatprep.subr.bf16.mxu0 0
    %2024 = vmatpush1.bf16.msra.mxu0 0
    %2025 = vmatprep.subr.bf16.mxu0 0
    %2026 = vmatpush1.bf16.msra.mxu0 0
    %2027 = vmatprep.subr.bf16.mxu0 0
    %2028 = vmatpush1.bf16.msra.mxu0 0
    %2029 = vmatprep.subr.bf16.mxu0 0
    %2030 = vmatpush1.bf16.msra.mxu0 0
    %2031 = vmatprep.subr.bf16.mxu0 0
    %2032 = vmatpush1.bf16.msra.mxu0 0
    %2033 = vmatprep.subr.bf16.mxu0 0
    %2034 = vmatpush1.bf16.msra.mxu0 0
    %2035 = vmatprep.subr.bf16.mxu0 0
    %2036 = vmatpush1.bf16.msra.mxu0 0
    %2037 = vmatprep.mubr.bf16.mxu0 0
    %2038 = vmatmul.mubr.bf16.gmra.mrb[0].mxu0 %v1948
    %v2039 = vpop.f32.mrb[0].mxu0
    %v2040 = vadd.f32 %v1955, %v2039
    %v2041 = vpop.f32.mrb[0].mxu0
    %v2042 = vpop.f32.mrb[0].mxu0
    %v2043 = vpop.f32.mrb[0].mxu0
    %2044 = vmatprep.mubr.bf16.mxu0 0
    %2045 = vmatmul.mubr.bf16.gmra.mrb[0].mxu0 %v1949
    %v2046 = vpop.f32.mrb[0].mxu0
    %v2047 = vpop.f32.mrb[0].mxu0
    %v2048 = vpop.f32.mrb[0].mxu0
    %v2049 = vadd.f32 %v1955, %v2048
    %v2050 = vpop.f32.mrb[0].mxu0
    %2051 = vmatprep.mubr.bf16.mxu0 0
    %2052 = vmatmul.mubr.bf16.gmra.mrb[0].mxu0 %v1950
    %v2053 = vpop.f32.mrb[0].mxu0
    %v2054 = vpop.f32.mrb[0].mxu0
    %v2055 = vpop.f32.mrb[0].mxu0
    %v2056 = vpop.f32.mrb[0].mxu0
    %2057 = vdwg.mxu0
    %2058 = vst.msk [vmem:[#allocation3 + $0x8] sm:$0xff] %vm226, %v2040
    %2059 = vst.msk [vmem:[#allocation3 + $0x10] sm:$0xff] %vm226, 0.0
    %2060 = vst.msk [vmem:[#allocation3 + $0x38] sm:$0xff] %vm226, %v2049
    %2061 = vst.msk [vmem:[#allocation3 + $0x40] sm:$0xff] %vm226, 0.0
    %v2062 = vld [vmem:[%s31] sm:$0xf]
    %v2063 = vld [vmem:[%s31 + $0x4] sm:$0xf]
    %v2064 = vld [vmem:[%s31 + $0x8] sm:$0xf]
    %v2065 = vld [vmem:[%s31 + $0xc] sm:$0xf]
    %v2066 = vld [vmem:[%s31 + $0x10] sm:$0xf]
    %v2067 = vld [vmem:[%s31 + $0x14] sm:$0xf]
    %v2068 = vld [vmem:[%s31 + $0x18] sm:$0xf]
    %v2069 = vld [vmem:[%s31 + $0x1c] sm:$0xf]
    %v2070 = vld [vmem:[%s31 + $0x20] sm:$0xf]
    %v2071 = vld [vmem:[%s31 + $0x24] sm:$0xf]
    %v2072 = vld [vmem:[%s31 + $0x28] sm:$0xf]
    %v2073 = vld [vmem:[%s31 + $0x2c] sm:$0xf]
    %v2074 = vld [vmem:[%s33] sm:$0x1]
    %v2075 = vld [vmem:[#allocation3 + $0x5] sm:$0xff]
    %v2076 = vld [vmem:[#allocation3 + $0xd] sm:$0xff]
    %v2077 = vld [vmem:[#allocation3 + $0x15] sm:$0xff]
    %v2078 = vld [vmem:[#allocation3 + $0x1d] sm:$0xff]
    %v2079 = vld [vmem:[#allocation3 + $0x25] sm:$0xff]
    %v2080 = vld [vmem:[#allocation3 + $0x2d] sm:$0xff]
    %v2081 = vld [vmem:[#allocation3 + $0x35] sm:$0xff]
    %v2082 = vld [vmem:[#allocation3 + $0x3d] sm:$0xff]
    %v2083 = vld [vmem:[#allocation3 + $0x45] sm:$0xff]
    %v2084 = vld [vmem:[#allocation3 + $0x4d] sm:$0xff]
    %v2085 = vld [vmem:[#allocation3 + $0x55] sm:$0xff]
    %v2086 = vld [vmem:[#allocation3 + $0x5d] sm:$0xff]
    %v2087 = vld [vmem:[#allocation3 + $0x8] sm:$0xff]
    %v2088 = vld [vmem:[#allocation3 + $0x10] sm:$0xff]
    %v2089 = vld [vmem:[#allocation3 + $0x18] sm:$0xff]
    %v2090 = vld [vmem:[#allocation3 + $0x20] sm:$0xff]
    %v2091 = vld [vmem:[#allocation3 + $0x28] sm:$0xff]
    %v2092 = vld [vmem:[#allocation3 + $0x30] sm:$0xff]
    %v2093 = vld [vmem:[#allocation3 + $0x38] sm:$0xff]
    %v2094 = vld [vmem:[#allocation3 + $0x40] sm:$0xff]
    %v2095 = vld [vmem:[#allocation3 + $0x48] sm:$0xff]
    %v2096 = vld [vmem:[#allocation3 + $0x50] sm:$0xff]
    %v2097 = vld [vmem:[#allocation3 + $0x58] sm:$0xff]
    %v2098 = vld [vmem:[#allocation3 + $0x60] sm:$0xff]
    %v2099 = vld [vmem:[#allocation3 + $0xb] sm:$0xff]
    %v2100 = vld [vmem:[#allocation3 + $0x13] sm:$0xff]
    %v2101 = vld [vmem:[#allocation3 + $0x1b] sm:$0xff]
    %v2102 = vld [vmem:[#allocation3 + $0x23] sm:$0xff]
    %v2103 = vld [vmem:[#allocation3 + $0x2b] sm:$0xff]
    %v2104 = vld [vmem:[#allocation3 + $0x33] sm:$0xff]
    %v2105 = vld [vmem:[#allocation3 + $0x3b] sm:$0xff]
    %v2106 = vld [vmem:[#allocation3 + $0x43] sm:$0xff]
    %v2107 = vld [vmem:[#allocation3 + $0x4b] sm:$0xff]
    %v2108 = vld [vmem:[#allocation3 + $0x53] sm:$0xff]
    %v2109 = vld [vmem:[#allocation3 + $0x5b] sm:$0xff]
    %v2110 = vld [vmem:[#allocation3 + $0x63] sm:$0xff]
    %2123 = vrot.lane.b32.xlu0 %v2087, 32
    %v2124 = vpop.permute.xlu0 %2123
    %2125 = vrot.lane.b32.xlu0 %v2088, 32
    %v2126 = vpop.permute.xlu0 %2125
    %2127 = vrot.lane.b32.xlu0 %v2089, 32
    %v2128 = vpop.permute.xlu0 %2127
    %2129 = vrot.lane.b32.xlu0 %v2090, 32
    %v2130 = vpop.permute.xlu0 %2129
    %2131 = vrot.lane.b32.xlu0 %v2091, 32
    %v2132 = vpop.permute.xlu0 %2131
    %2133 = vrot.lane.b32.xlu0 %v2092, 32
    %v2134 = vpop.permute.xlu0 %2133
    %2135 = vrot.lane.b32.xlu0 %v2093, 32
    %v2136 = vpop.permute.xlu0 %2135
    %2137 = vrot.lane.b32.xlu0 %v2094, 32
    %v2138 = vpop.permute.xlu0 %2137
    %2139 = vrot.lane.b32.xlu0 %v2095, 32
    %v2140 = vpop.permute.xlu0 %2139
    %2141 = vrot.lane.b32.xlu0 %v2096, 32
    %v2142 = vpop.permute.xlu0 %2141
    %2143 = vrot.lane.b32.xlu0 %v2097, 32
    %v2144 = vpop.permute.xlu0 %2143
    %2145 = vrot.lane.b32.xlu0 %v2098, 32
    %v2146 = vpop.permute.xlu0 %2145
    %2171 = vrot.lane.b32.xlu0 %v2099, 64
    %v2172 = vpop.permute.xlu0 %2171
    %2173 = vrot.lane.b32.xlu0 %v2100, 64
    %v2174 = vpop.permute.xlu0 %2173
    %2175 = vrot.lane.b32.xlu0 %v2101, 64
    %v2176 = vpop.permute.xlu0 %2175
    %2177 = vrot.lane.b32.xlu0 %v2102, 64
    %v2178 = vpop.permute.xlu0 %2177
    %2179 = vrot.lane.b32.xlu0 %v2103, 64
    %v2180 = vpop.permute.xlu0 %2179
    %2181 = vrot.lane.b32.xlu0 %v2104, 64
    %v2182 = vpop.permute.xlu0 %2181
    %2183 = vrot.lane.b32.xlu0 %v2105, 64
    %v2184 = vpop.permute.xlu0 %2183
    %2185 = vrot.lane.b32.xlu0 %v2106, 64
    %v2186 = vpop.permute.xlu0 %2185
    %2187 = vrot.lane.b32.xlu0 %v2107, 64
    %v2188 = vpop.permute.xlu0 %2187
    %2189 = vrot.lane.b32.xlu0 %v2108, 64
    %v2190 = vpop.permute.xlu0 %2189
    %2191 = vrot.lane.b32.xlu0 %v2109, 64
    %v2192 = vpop.permute.xlu0 %2191
    %2193 = vrot.lane.b32.xlu0 %v2110, 64
    %v2194 = vpop.permute.xlu0 %2193
    %v2207 = vsel %vm226, %v2075, %v2124
    %v2208 = vsel %vm226, %v2076, %v2126
    %v2209 = vsel %vm226, %v2077, %v2128
    %v2210 = vsel %vm226, %v2078, %v2130
    %v2211 = vsel %vm226, %v2079, %v2132
    %v2212 = vsel %vm226, %v2080, %v2134
    %v2213 = vsel %vm226, %v2081, %v2136
    %v2214 = vsel %vm226, %v2082, %v2138
    %v2215 = vsel %vm226, %v2083, %v2140
    %v2216 = vsel %vm226, %v2084, %v2142
    %v2217 = vsel %vm226, %v2085, %v2144
    %v2218 = vsel %vm226, %v2086, %v2146
    %v2219 = vsel %vm709, %v2207, %v2172
    %v2220 = vsel %vm709, %v2208, %v2174
    %v2221 = vsel %vm709, %v2209, %v2176
    %v2222 = vsel %vm709, %v2210, %v2178
    %v2223 = vsel %vm709, %v2211, %v2180
    %v2224 = vsel %vm709, %v2212, %v2182
    %v2225 = vsel %vm709, %v2213, %v2184
    %v2226 = vsel %vm709, %v2214, %v2186
    %v2227 = vsel %vm709, %v2215, %v2188
    %v2228 = vsel %vm709, %v2216, %v2190
    %v2229 = vsel %vm709, %v2217, %v2192
    %v2230 = vsel %vm709, %v2218, %v2194
    %v2231 = vmax.f32 %v2219, 0.0
    %v2232 = vmax.f32 %v2220, 0.0
    %v2233 = vmax.f32 %v2221, 0.0
    %v2234 = vmax.f32 %v2222, 0.0
    %v2235 = vmax.f32 %v2223, 0.0
    %v2236 = vmax.f32 %v2224, 0.0
    %v2237 = vmax.f32 %v2225, 0.0
    %v2238 = vmax.f32 %v2226, 0.0
    %v2239 = vmax.f32 %v2227, 0.0
    %v2240 = vmax.f32 %v2228, 0.0
    %v2241 = vmax.f32 %v2229, 0.0
    %v2242 = vmax.f32 %v2230, 0.0
    %v2243 = vpack.c.bf16 %v2232, %v2231
    %v2244 = vpack.c.bf16 %v2234, %v2233
    %v2245 = vpack.c.bf16 %v2236, %v2235
    %v2246 = vpack.c.bf16 %v2238, %v2237
    %v2247 = vpack.c.bf16 %v2240, %v2239
    %v2248 = vpack.c.bf16 %v2242, %v2241
    %v2250 = vlaneseq
    %v2251 = vshrl.u32 %v2250, 7
    %v2252 = vsub.s32 0, %v2251
    %v2253 = vrot.slane %v2074, %v2252
    %v2267 = vunpack.c.l.b16 %v2062
    %v2268 = vunpack.c.l.b16 %v2063
    %v2269 = vunpack.c.l.b16 %v2064
    %v2270 = vunpack.c.l.b16 %v2065
    %v2271 = vunpack.c.l.b16 %v2066
    %v2272 = vunpack.c.l.b16 %v2067
    %v2273 = vunpack.c.l.b16 %v2068
    %v2274 = vunpack.c.l.b16 %v2069
    %v2275 = vunpack.c.l.b16 %v2070
    %v2276 = vunpack.c.l.b16 %v2071
    %v2277 = vunpack.c.l.b16 %v2072
    %v2278 = vunpack.c.l.b16 %v2073
    %v2279 = vpack.c.b16 %v2268, %v2267
    %v2280 = vpack.c.b16 %v2270, %v2269
    %v2281 = vpack.c.b16 %v2272, %v2271
    %v2282 = vpack.c.b16 %v2274, %v2273
    %v2283 = vpack.c.b16 %v2276, %v2275
    %v2284 = vpack.c.b16 %v2278, %v2277
    %v2292 = vsel %vm716, %v2243, 0
    %v2295 = vsel %vm716, %v2244, 0
    %v2298 = vsel %vm716, %v2245, 0
    %v2301 = vsel %vm716, %v2246, 0
    %v2304 = vsel %vm716, %v2247, 0
    %v2307 = vsel %vm716, %v2248, 0
    %2309 = vmatprep.subr.bf16.mxu0 0
    %2310 = vmatpush1.bf16.msra.mxu0 %v2279
    %2311 = vmatprep.subr.bf16.mxu0 0
    %2312 = vmatpush1.bf16.msra.mxu0 %v2280
    %2313 = vmatprep.subr.bf16.mxu0 0
    %2314 = vmatpush1.bf16.msra.mxu0 %v2281
    %2315 = vmatprep.subr.bf16.mxu0 0
    %2316 = vmatpush1.bf16.msra.mxu0 %v2282
    %2317 = vmatprep.subr.bf16.mxu0 0
    %2318 = vmatpush1.bf16.msra.mxu0 %v2283
    %2319 = vmatprep.subr.bf16.mxu0 0
    %2320 = vmatpush1.bf16.msra.mxu0 %v2284
    %2321 = vmatprep.subr.bf16.mxu0 0
    %2322 = vmatpush1.bf16.msra.mxu0 0
    %2323 = vmatprep.subr.bf16.mxu0 0
    %2324 = vmatpush1.bf16.msra.mxu0 0
    %2325 = vmatprep.subr.bf16.mxu0 0
    %2326 = vmatpush1.bf16.msra.mxu0 0
    %2327 = vmatprep.subr.bf16.mxu0 0
    %2328 = vmatpush1.bf16.msra.mxu0 0
    %2329 = vmatprep.subr.bf16.mxu0 0
    %2330 = vmatpush1.bf16.msra.mxu0 0
    %2331 = vmatprep.subr.bf16.mxu0 0
    %2332 = vmatpush1.bf16.msra.mxu0 0
    %2333 = vmatprep.subr.bf16.mxu0 0
    %2334 = vmatpush1.bf16.msra.mxu0 0
    %2335 = vmatprep.subr.bf16.mxu0 0
    %2336 = vmatpush1.bf16.msra.mxu0 0
    %2337 = vmatprep.subr.bf16.mxu0 0
    %2338 = vmatpush1.bf16.msra.mxu0 0
    %2339 = vmatprep.subr.bf16.mxu0 0
    %2340 = vmatpush1.bf16.msra.mxu0 0
    %2341 = vmatprep.mubr.bf16.mxu0 0
    %2342 = vmatmul.mubr.bf16.gmra.mrb[0].mxu0 %v2292
    %v2343 = vpop.f32.mrb[0].mxu0
    %v2344 = vadd.f32 %v2253, %v2343
    %v2345 = vpop.f32.mrb[0].mxu0
    %v2346 = vpop.f32.mrb[0].mxu0
    %v2347 = vpop.f32.mrb[0].mxu0
    %2348 = vmatprep.mubr.bf16.mxu0 0
    %2349 = vmatmul.mubr.bf16.gmra.mrb[0].mxu0 %v2295
    %v2350 = vpop.f32.mrb[0].mxu0
    %v2351 = vpop.f32.mrb[0].mxu0
    %v2352 = vpop.f32.mrb[0].mxu0
    %v2353 = vpop.f32.mrb[0].mxu0
    %2354 = vmatprep.mubr.bf16.mxu0 0
    %2355 = vmatmul.mubr.bf16.gmra.mrb[0].mxu0 %v2298
    %v2356 = vpop.f32.mrb[0].mxu0
    %v2357 = vpop.f32.mrb[0].mxu0
    %v2358 = vpop.f32.mrb[0].mxu0
    %v2359 = vpop.f32.mrb[0].mxu0
    %2360 = vmatprep.mubr.bf16.mxu0 0
    %2361 = vmatmul.mubr.bf16.gmra.mrb[0].mxu0 %v2301
    %v2362 = vpop.f32.mrb[0].mxu0
    %v2363 = vadd.f32 %v2253, %v2362
    %v2364 = vpop.f32.mrb[0].mxu0
    %v2365 = vpop.f32.mrb[0].mxu0
    %v2366 = vpop.f32.mrb[0].mxu0
    %2367 = vmatprep.mubr.bf16.mxu0 0
    %2368 = vmatmul.mubr.bf16.gmra.mrb[0].mxu0 %v2304
    %v2369 = vpop.f32.mrb[0].mxu0
    %v2370 = vpop.f32.mrb[0].mxu0
    %v2371 = vpop.f32.mrb[0].mxu0
    %v2372 = vpop.f32.mrb[0].mxu0
    %2373 = vmatprep.mubr.bf16.mxu0 0
    %2374 = vmatmul.mubr.bf16.gmra.mrb[0].mxu0 %v2307
    %v2375 = vpop.f32.mrb[0].mxu0
    %v2376 = vpop.f32.mrb[0].mxu0
    %v2377 = vpop.f32.mrb[0].mxu0
    %v2378 = vpop.f32.mrb[0].mxu0
    %2379 = vdwg.mxu0
    %v2380 = vmax.f32 %v2344, 0.0
    %v2381 = vmax.f32 %v2363, 0.0
    %2382 = vst.msk [vmem:[#allocation4 + $0x8] sm:$0xff] %vm226, %v2380
    %2383 = vst.msk [vmem:[#allocation4 + $0x10] sm:$0xff] %vm226, 0.0
    %2384 = vst.msk [vmem:[#allocation4 + $0x38] sm:$0xff] %vm226, %v2381
    %2385 = vst.msk [vmem:[#allocation4 + $0x40] sm:$0xff] %vm226, 0.0
    %v2386 = vld [vmem:[%s35] sm:$0xf]
    %v2387 = vld [vmem:[%s35 + $0x4] sm:$0xf]
    %v2388 = vld [vmem:[%s35 + $0x8] sm:$0xf]
    %v2389 = vld [vmem:[%s35 + $0xc] sm:$0xf]
    %v2390 = vld [vmem:[%s37] sm:$0x1]
    %v2391 = vld [vmem:[#allocation4 + $0x8] sm:$0xff]
    %v2392 = vld [vmem:[#allocation4 + $0x10] sm:$0xff]
    %v2393 = vld [vmem:[#allocation4 + $0x18] sm:$0xff]
    %v2394 = vld [vmem:[#allocation4 + $0x20] sm:$0xff]
    %v2395 = vld [vmem:[#allocation4 + $0x28] sm:$0xff]
    %v2396 = vld [vmem:[#allocation4 + $0x30] sm:$0xff]
    %v2397 = vld [vmem:[#allocation4 + $0x38] sm:$0xff]
    %v2398 = vld [vmem:[#allocation4 + $0x40] sm:$0xff]
    %v2399 = vld [vmem:[#allocation4 + $0x48] sm:$0xff]
    %v2400 = vld [vmem:[#allocation4 + $0x50] sm:$0xff]
    %v2401 = vld [vmem:[#allocation4 + $0x58] sm:$0xff]
    %v2402 = vld [vmem:[#allocation4 + $0x60] sm:$0xff]
    %v2403 = vpack.c.bf16 %v2392, %v2391
    %v2404 = vpack.c.bf16 %v2394, %v2393
    %v2405 = vpack.c.bf16 %v2396, %v2395
    %v2406 = vpack.c.bf16 %v2398, %v2397
    %v2407 = vpack.c.bf16 %v2400, %v2399
    %v2408 = vpack.c.bf16 %v2402, %v2401
    %v2410 = vlaneseq
    %v2411 = vshrl.u32 %v2410, 7
    %v2412 = vsub.s32 0, %v2411
    %v2413 = vrot.slane %v2390, %v2412
    %v2419 = vunpack.c.l.b16 %v2386
    %v2420 = vunpack.c.l.b16 %v2387
    %v2421 = vunpack.c.l.b16 %v2388
    %v2422 = vunpack.c.l.b16 %v2389
    %v2423 = vpack.c.b16 %v2420, %v2419
    %v2424 = vpack.c.b16 %v2422, %v2421
    %v2428 = vsel %vm226, %v2403, 0
    %v2431 = vsel %vm226, %v2404, 0
    %v2434 = vsel %vm226, %v2405, 0
    %v2437 = vsel %vm226, %v2406, 0
    %v2440 = vsel %vm226, %v2407, 0
    %v2443 = vsel %vm226, %v2408, 0
    %2445 = vmatprep.subr.bf16.mxu0 0
    %2446 = vmatpush1.bf16.msra.mxu0 %v2423
    %2447 = vmatprep.subr.bf16.mxu0 0
    %2448 = vmatpush1.bf16.msra.mxu0 %v2424
    %2449 = vmatprep.subr.bf16.mxu0 0
    %2450 = vmatpush1.bf16.msra.mxu0 0
    %2451 = vmatprep.subr.bf16.mxu0 0
    %2452 = vmatpush1.bf16.msra.mxu0 0
    %2453 = vmatprep.subr.bf16.mxu0 0
    %2454 = vmatpush1.bf16.msra.mxu0 0
    %2455 = vmatprep.subr.bf16.mxu0 0
    %2456 = vmatpush1.bf16.msra.mxu0 0
    %2457 = vmatprep.subr.bf16.mxu0 0
    %2458 = vmatpush1.bf16.msra.mxu0 0
    %2459 = vmatprep.subr.bf16.mxu0 0
    %2460 = vmatpush1.bf16.msra.mxu0 0
    %2461 = vmatprep.subr.bf16.mxu0 0
    %2462 = vmatpush1.bf16.msra.mxu0 0
    %2463 = vmatprep.subr.bf16.mxu0 0
    %2464 = vmatpush1.bf16.msra.mxu0 0
    %2465 = vmatprep.subr.bf16.mxu0 0
    %2466 = vmatpush1.bf16.msra.mxu0 0
    %2467 = vmatprep.subr.bf16.mxu0 0
    %2468 = vmatpush1.bf16.msra.mxu0 0
    %2469 = vmatprep.subr.bf16.mxu0 0
    %2470 = vmatpush1.bf16.msra.mxu0 0
    %2471 = vmatprep.subr.bf16.mxu0 0
    %2472 = vmatpush1.bf16.msra.mxu0 0
    %2473 = vmatprep.subr.bf16.mxu0 0
    %2474 = vmatpush1.bf16.msra.mxu0 0
    %2475 = vmatprep.subr.bf16.mxu0 0
    %2476 = vmatpush1.bf16.msra.mxu0 0
    %2477 = vmatprep.mubr.bf16.mxu0 0
    %2478 = vmatmul.mubr.bf16.gmra.mrb[0].mxu0 %v2428
    %v2479 = vpop.f32.mrb[0].mxu0
    %v2480 = vadd.f32 %v2413, %v2479
    %v2481 = vpop.f32.mrb[0].mxu0
    %v2482 = vpop.f32.mrb[0].mxu0
    %v2483 = vpop.f32.mrb[0].mxu0
    %2484 = vmatprep.mubr.bf16.mxu0 0
    %2485 = vmatmul.mubr.bf16.gmra.mrb[0].mxu0 %v2431
    %v2486 = vpop.f32.mrb[0].mxu0
    %v2487 = vpop.f32.mrb[0].mxu0
    %v2488 = vpop.f32.mrb[0].mxu0
    %v2489 = vpop.f32.mrb[0].mxu0
    %2490 = vmatprep.mubr.bf16.mxu0 0
    %2491 = vmatmul.mubr.bf16.gmra.mrb[0].mxu0 %v2434
    %v2492 = vpop.f32.mrb[0].mxu0
    %v2493 = vpop.f32.mrb[0].mxu0
    %v2494 = vpop.f32.mrb[0].mxu0
    %v2495 = vpop.f32.mrb[0].mxu0
    %2496 = vmatprep.mubr.bf16.mxu0 0
    %2497 = vmatmul.mubr.bf16.gmra.mrb[0].mxu0 %v2437
    %v2498 = vpop.f32.mrb[0].mxu0
    %v2499 = vadd.f32 %v2413, %v2498
    %v2500 = vpop.f32.mrb[0].mxu0
    %v2501 = vpop.f32.mrb[0].mxu0
    %v2502 = vpop.f32.mrb[0].mxu0
    %2503 = vmatprep.mubr.bf16.mxu0 0
    %2504 = vmatmul.mubr.bf16.gmra.mrb[0].mxu0 %v2440
    %v2505 = vpop.f32.mrb[0].mxu0
    %v2506 = vpop.f32.mrb[0].mxu0
    %v2507 = vpop.f32.mrb[0].mxu0
    %v2508 = vpop.f32.mrb[0].mxu0
    %2509 = vmatprep.mubr.bf16.mxu0 0
    %2510 = vmatmul.mubr.bf16.gmra.mrb[0].mxu0 %v2443
    %v2511 = vpop.f32.mrb[0].mxu0
    %v2512 = vpop.f32.mrb[0].mxu0
    %v2513 = vpop.f32.mrb[0].mxu0
    %v2514 = vpop.f32.mrb[0].mxu0
    %2515 = vdwg.mxu0
    %v2516 = vld [vmem:[#allocation3 + $0x8] sm:$0xff]
    %v2517 = vld [vmem:[#allocation3 + $0x38] sm:$0xff]
    %v2518 = vadd.f32 %v2480, %v2516
    %v2519 = vadd.f32 %v2499, %v2517
    %2520 = vst.msk [vmem:[#allocation2 + $0x8] sm:$0xff] %vm226, %v2518
    %2521 = vst.msk [vmem:[#allocation2 + $0x10] sm:$0xff] %vm226, 0.0
    %2522 = vst.msk [vmem:[#allocation2 + $0x38] sm:$0xff] %vm226, %v2519
    %2523 = vst.msk [vmem:[#allocation2 + $0x40] sm:$0xff] %vm226, 0.0
    %v2524 = vld [vmem:[%s39] sm:$0xf]
    %v2525 = vld [vmem:[%s39 + $0x4] sm:$0xf]
    %v2526 = vld [vmem:[%s39 + $0x8] sm:$0xf]
    %v2527 = vld [vmem:[%s39 + $0xc] sm:$0xf]
    %v2528 = vld [vmem:[%s39 + $0x10] sm:$0xf]
    %v2529 = vld [vmem:[%s39 + $0x14] sm:$0xf]
    %v2530 = vld [vmem:[%s39 + $0x18] sm:$0xf]
    %v2531 = vld [vmem:[%s39 + $0x1c] sm:$0xf]
    %v2532 = vld [vmem:[%s39 + $0x20] sm:$0xf]
    %v2533 = vld [vmem:[%s39 + $0x24] sm:$0xf]
    %v2534 = vld [vmem:[%s39 + $0x28] sm:$0xf]
    %v2535 = vld [vmem:[%s39 + $0x2c] sm:$0xf]
    %v2536 = vld [vmem:[%s41] sm:$0x1]
    %v2537 = vld [vmem:[#allocation2 + $0x7] sm:$0xff]
    %v2538 = vld [vmem:[#allocation2 + $0xf] sm:$0xff]
    %v2539 = vld [vmem:[#allocation2 + $0x17] sm:$0xff]
    %v2540 = vld [vmem:[#allocation2 + $0x1f] sm:$0xff]
    %v2541 = vld [vmem:[#allocation2 + $0x27] sm:$0xff]
    %v2542 = vld [vmem:[#allocation2 + $0x2f] sm:$0xff]
    %v2543 = vld [vmem:[#allocation2 + $0x37] sm:$0xff]
    %v2544 = vld [vmem:[#allocation2 + $0x3f] sm:$0xff]
    %v2545 = vld [vmem:[#allocation2 + $0x47] sm:$0xff]
    %v2546 = vld [vmem:[#allocation2 + $0x4f] sm:$0xff]
    %v2547 = vld [vmem:[#allocation2 + $0x57] sm:$0xff]
    %v2548 = vld [vmem:[#allocation2 + $0x5f] sm:$0xff]
    %v2549 = vld [vmem:[#allocation2 + $0x8] sm:$0xff]
    %v2550 = vld [vmem:[#allocation2 + $0x10] sm:$0xff]
    %v2551 = vld [vmem:[#allocation2 + $0x18] sm:$0xff]
    %v2552 = vld [vmem:[#allocation2 + $0x20] sm:$0xff]
    %v2553 = vld [vmem:[#allocation2 + $0x28] sm:$0xff]
    %v2554 = vld [vmem:[#allocation2 + $0x30] sm:$0xff]
    %v2555 = vld [vmem:[#allocation2 + $0x38] sm:$0xff]
    %v2556 = vld [vmem:[#allocation2 + $0x40] sm:$0xff]
    %v2557 = vld [vmem:[#allocation2 + $0x48] sm:$0xff]
    %v2558 = vld [vmem:[#allocation2 + $0x50] sm:$0xff]
    %v2559 = vld [vmem:[#allocation2 + $0x58] sm:$0xff]
    %v2560 = vld [vmem:[#allocation2 + $0x60] sm:$0xff]
    %v2561 = vld [vmem:[#allocation2 + $0x9] sm:$0xff]
    %v2562 = vld [vmem:[#allocation2 + $0x11] sm:$0xff]
    %v2563 = vld [vmem:[#allocation2 + $0x19] sm:$0xff]
    %v2564 = vld [vmem:[#allocation2 + $0x21] sm:$0xff]
    %v2565 = vld [vmem:[#allocation2 + $0x29] sm:$0xff]
    %v2566 = vld [vmem:[#allocation2 + $0x31] sm:$0xff]
    %v2567 = vld [vmem:[#allocation2 + $0x39] sm:$0xff]
    %v2568 = vld [vmem:[#allocation2 + $0x41] sm:$0xff]
    %v2569 = vld [vmem:[#allocation2 + $0x49] sm:$0xff]
    %v2570 = vld [vmem:[#allocation2 + $0x51] sm:$0xff]
    %v2571 = vld [vmem:[#allocation2 + $0x59] sm:$0xff]
    %v2572 = vld [vmem:[#allocation2 + $0x61] sm:$0xff]
    %2585 = vrot.lane.b32.xlu0 %v2549, 32
    %v2586 = vpop.permute.xlu0 %2585
    %2587 = vrot.lane.b32.xlu0 %v2550, 32
    %v2588 = vpop.permute.xlu0 %2587
    %2589 = vrot.lane.b32.xlu0 %v2551, 32
    %v2590 = vpop.permute.xlu0 %2589
    %2591 = vrot.lane.b32.xlu0 %v2552, 32
    %v2592 = vpop.permute.xlu0 %2591
    %2593 = vrot.lane.b32.xlu0 %v2553, 32
    %v2594 = vpop.permute.xlu0 %2593
    %2595 = vrot.lane.b32.xlu0 %v2554, 32
    %v2596 = vpop.permute.xlu0 %2595
    %2597 = vrot.lane.b32.xlu0 %v2555, 32
    %v2598 = vpop.permute.xlu0 %2597
    %2599 = vrot.lane.b32.xlu0 %v2556, 32
    %v2600 = vpop.permute.xlu0 %2599
    %2601 = vrot.lane.b32.xlu0 %v2557, 32
    %v2602 = vpop.permute.xlu0 %2601
    %2603 = vrot.lane.b32.xlu0 %v2558, 32
    %v2604 = vpop.permute.xlu0 %2603
    %2605 = vrot.lane.b32.xlu0 %v2559, 32
    %v2606 = vpop.permute.xlu0 %2605
    %2607 = vrot.lane.b32.xlu0 %v2560, 32
    %v2608 = vpop.permute.xlu0 %2607
    %2633 = vrot.lane.b32.xlu0 %v2561, 64
    %v2634 = vpop.permute.xlu0 %2633
    %2635 = vrot.lane.b32.xlu0 %v2562, 64
    %v2636 = vpop.permute.xlu0 %2635
    %2637 = vrot.lane.b32.xlu0 %v2563, 64
    %v2638 = vpop.permute.xlu0 %2637
    %2639 = vrot.lane.b32.xlu0 %v2564, 64
    %v2640 = vpop.permute.xlu0 %2639
    %2641 = vrot.lane.b32.xlu0 %v2565, 64
    %v2642 = vpop.permute.xlu0 %2641
    %2643 = vrot.lane.b32.xlu0 %v2566, 64
    %v2644 = vpop.permute.xlu0 %2643
    %2645 = vrot.lane.b32.xlu0 %v2567, 64
    %v2646 = vpop.permute.xlu0 %2645
    %2647 = vrot.lane.b32.xlu0 %v2568, 64
    %v2648 = vpop.permute.xlu0 %2647
    %2649 = vrot.lane.b32.xlu0 %v2569, 64
    %v2650 = vpop.permute.xlu0 %2649
    %2651 = vrot.lane.b32.xlu0 %v2570, 64
    %v2652 = vpop.permute.xlu0 %2651
    %2653 = vrot.lane.b32.xlu0 %v2571, 64
    %v2654 = vpop.permute.xlu0 %2653
    %2655 = vrot.lane.b32.xlu0 %v2572, 64
    %v2656 = vpop.permute.xlu0 %2655
    %v2669 = vsel %vm226, %v2537, %v2586
    %v2670 = vsel %vm226, %v2538, %v2588
    %v2671 = vsel %vm226, %v2539, %v2590
    %v2672 = vsel %vm226, %v2540, %v2592
    %v2673 = vsel %vm226, %v2541, %v2594
    %v2674 = vsel %vm226, %v2542, %v2596
    %v2675 = vsel %vm226, %v2543, %v2598
    %v2676 = vsel %vm226, %v2544, %v2600
    %v2677 = vsel %vm226, %v2545, %v2602
    %v2678 = vsel %vm226, %v2546, %v2604
    %v2679 = vsel %vm226, %v2547, %v2606
    %v2680 = vsel %vm226, %v2548, %v2608
    %v2681 = vsel %vm709, %v2669, %v2634
    %v2682 = vsel %vm709, %v2670, %v2636
    %v2683 = vsel %vm709, %v2671, %v2638
    %v2684 = vsel %vm709, %v2672, %v2640
    %v2685 = vsel %vm709, %v2673, %v2642
    %v2686 = vsel %vm709, %v2674, %v2644
    %v2687 = vsel %vm709, %v2675, %v2646
    %v2688 = vsel %vm709, %v2676, %v2648
    %v2689 = vsel %vm709, %v2677, %v2650
    %v2690 = vsel %vm709, %v2678, %v2652
    %v2691 = vsel %vm709, %v2679, %v2654
    %v2692 = vsel %vm709, %v2680, %v2656
    %v2693 = vmax.f32 %v2681, 0.0
    %v2694 = vmax.f32 %v2682, 0.0
    %v2695 = vmax.f32 %v2683, 0.0
    %v2696 = vmax.f32 %v2684, 0.0
    %v2697 = vmax.f32 %v2685, 0.0
    %v2698 = vmax.f32 %v2686, 0.0
    %v2699 = vmax.f32 %v2687, 0.0
    %v2700 = vmax.f32 %v2688, 0.0
    %v2701 = vmax.f32 %v2689, 0.0
    %v2702 = vmax.f32 %v2690, 0.0
    %v2703 = vmax.f32 %v2691, 0.0
    %v2704 = vmax.f32 %v2692, 0.0
    %v2705 = vpack.c.bf16 %v2694, %v2693
    %v2706 = vpack.c.bf16 %v2696, %v2695
    %v2707 = vpack.c.bf16 %v2698, %v2697
    %v2708 = vpack.c.bf16 %v2700, %v2699
    %v2709 = vpack.c.bf16 %v2702, %v2701
    %v2710 = vpack.c.bf16 %v2704, %v2703
    %v2712 = vlaneseq
    %v2713 = vshrl.u32 %v2712, 7
    %v2714 = vsub.s32 0, %v2713
    %v2715 = vrot.slane %v2536, %v2714
    %v2729 = vunpack.c.l.b16 %v2524
    %v2730 = vunpack.c.l.b16 %v2525
    %v2731 = vunpack.c.l.b16 %v2526
    %v2732 = vunpack.c.l.b16 %v2527
    %v2733 = vunpack.c.l.b16 %v2528
    %v2734 = vunpack.c.l.b16 %v2529
    %v2735 = vunpack.c.l.b16 %v2530
    %v2736 = vunpack.c.l.b16 %v2531
    %v2737 = vunpack.c.l.b16 %v2532
    %v2738 = vunpack.c.l.b16 %v2533
    %v2739 = vunpack.c.l.b16 %v2534
    %v2740 = vunpack.c.l.b16 %v2535
    %v2741 = vpack.c.b16 %v2730, %v2729
    %v2742 = vpack.c.b16 %v2732, %v2731
    %v2743 = vpack.c.b16 %v2734, %v2733
    %v2744 = vpack.c.b16 %v2736, %v2735
    %v2745 = vpack.c.b16 %v2738, %v2737
    %v2746 = vpack.c.b16 %v2740, %v2739
    %v2754 = vsel %vm716, %v2705, 0
    %v2757 = vsel %vm716, %v2706, 0
    %v2760 = vsel %vm716, %v2707, 0
    %v2763 = vsel %vm716, %v2708, 0
    %v2766 = vsel %vm716, %v2709, 0
    %v2769 = vsel %vm716, %v2710, 0
    %2771 = vmatprep.subr.bf16.mxu0 0
    %2772 = vmatpush1.bf16.msra.mxu0 %v2741
    %2773 = vmatprep.subr.bf16.mxu0 0
    %2774 = vmatpush1.bf16.msra.mxu0 %v2742
    %2775 = vmatprep.subr.bf16.mxu0 0
    %2776 = vmatpush1.bf16.msra.mxu0 %v2743
    %2777 = vmatprep.subr.bf16.mxu0 0
    %2778 = vmatpush1.bf16.msra.mxu0 %v2744
    %2779 = vmatprep.subr.bf16.mxu0 0
    %2780 = vmatpush1.bf16.msra.mxu0 %v2745
    %2781 = vmatprep.subr.bf16.mxu0 0
    %2782 = vmatpush1.bf16.msra.mxu0 %v2746
    %2783 = vmatprep.subr.bf16.mxu0 0
    %2784 = vmatpush1.bf16.msra.mxu0 0
    %2785 = vmatprep.subr.bf16.mxu0 0
    %2786 = vmatpush1.bf16.msra.mxu0 0
    %2787 = vmatprep.subr.bf16.mxu0 0
    %2788 = vmatpush1.bf16.msra.mxu0 0
    %2789 = vmatprep.subr.bf16.mxu0 0
    %2790 = vmatpush1.bf16.msra.mxu0 0
    %2791 = vmatprep.subr.bf16.mxu0 0
    %2792 = vmatpush1.bf16.msra.mxu0 0
    %2793 = vmatprep.subr.bf16.mxu0 0
    %2794 = vmatpush1.bf16.msra.mxu0 0
    %2795 = vmatprep.subr.bf16.mxu0 0
    %2796 = vmatpush1.bf16.msra.mxu0 0
    %2797 = vmatprep.subr.bf16.mxu0 0
    %2798 = vmatpush1.bf16.msra.mxu0 0
    %2799 = vmatprep.subr.bf16.mxu0 0
    %2800 = vmatpush1.bf16.msra.mxu0 0
    %2801 = vmatprep.subr.bf16.mxu0 0
    %2802 = vmatpush1.bf16.msra.mxu0 0
    %2803 = vmatprep.mubr.bf16.mxu0 0
    %2804 = vmatmul.mubr.bf16.gmra.mrb[0].mxu0 %v2754
    %v2805 = vpop.f32.mrb[0].mxu0
    %v2806 = vadd.f32 %v2715, %v2805
    %v2807 = vpop.f32.mrb[0].mxu0
    %v2808 = vpop.f32.mrb[0].mxu0
    %v2809 = vpop.f32.mrb[0].mxu0
    %2810 = vmatprep.mubr.bf16.mxu0 0
    %2811 = vmatmul.mubr.bf16.gmra.mrb[0].mxu0 %v2757
    %v2812 = vpop.f32.mrb[0].mxu0
    %v2813 = vpop.f32.mrb[0].mxu0
    %v2814 = vpop.f32.mrb[0].mxu0
    %v2815 = vpop.f32.mrb[0].mxu0
    %2816 = vmatprep.mubr.bf16.mxu0 0
    %2817 = vmatmul.mubr.bf16.gmra.mrb[0].mxu0 %v2760
    %v2818 = vpop.f32.mrb[0].mxu0
    %v2819 = vpop.f32.mrb[0].mxu0
    %v2820 = vpop.f32.mrb[0].mxu0
    %v2821 = vpop.f32.mrb[0].mxu0
    %2822 = vmatprep.mubr.bf16.mxu0 0
    %2823 = vmatmul.mubr.bf16.gmra.mrb[0].mxu0 %v2763
    %v2824 = vpop.f32.mrb[0].mxu0
    %v2825 = vadd.f32 %v2715, %v2824
    %v2826 = vpop.f32.mrb[0].mxu0
    %v2827 = vpop.f32.mrb[0].mxu0
    %v2828 = vpop.f32.mrb[0].mxu0
    %2829 = vmatprep.mubr.bf16.mxu0 0
    %2830 = vmatmul.mubr.bf16.gmra.mrb[0].mxu0 %v2766
    %v2831 = vpop.f32.mrb[0].mxu0
    %v2832 = vpop.f32.mrb[0].mxu0
    %v2833 = vpop.f32.mrb[0].mxu0
    %v2834 = vpop.f32.mrb[0].mxu0
    %2835 = vmatprep.mubr.bf16.mxu0 0
    %2836 = vmatmul.mubr.bf16.gmra.mrb[0].mxu0 %v2769
    %v2837 = vpop.f32.mrb[0].mxu0
    %v2838 = vpop.f32.mrb[0].mxu0
    %v2839 = vpop.f32.mrb[0].mxu0
    %v2840 = vpop.f32.mrb[0].mxu0
    %2841 = vdwg.mxu0
    %v2842 = vmax.f32 %v2806, 0.0
    %v2843 = vmax.f32 %v2825, 0.0
    %2844 = vst.msk [vmem:[#allocation3 + $0x8] sm:$0xff] %vm226, %v2842
    %2845 = vst.msk [vmem:[#allocation3 + $0x10] sm:$0xff] %vm226, 0.0
    %2846 = vst.msk [vmem:[#allocation3 + $0x38] sm:$0xff] %vm226, %v2843
    %2847 = vst.msk [vmem:[#allocation3 + $0x40] sm:$0xff] %vm226, 0.0
    %v2848 = vld [vmem:[%s43] sm:$0xf]
    %v2849 = vld [vmem:[%s43 + $0x4] sm:$0xf]
    %v2850 = vld [vmem:[%s43 + $0x8] sm:$0xf]
    %v2851 = vld [vmem:[%s43 + $0xc] sm:$0xf]
    %v2852 = vld [vmem:[%s45] sm:$0x1]
    %v2853 = vld [vmem:[#allocation3 + $0x8] sm:$0xff]
    %v2854 = vld [vmem:[#allocation3 + $0x10] sm:$0xff]
    %v2855 = vld [vmem:[#allocation3 + $0x18] sm:$0xff]
    %v2856 = vld [vmem:[#allocation3 + $0x20] sm:$0xff]
    %v2857 = vld [vmem:[#allocation3 + $0x28] sm:$0xff]
    %v2858 = vld [vmem:[#allocation3 + $0x30] sm:$0xff]
    %v2859 = vld [vmem:[#allocation3 + $0x38] sm:$0xff]
    %v2860 = vld [vmem:[#allocation3 + $0x40] sm:$0xff]
    %v2861 = vld [vmem:[#allocation3 + $0x48] sm:$0xff]
    %v2862 = vld [vmem:[#allocation3 + $0x50] sm:$0xff]
    %v2863 = vld [vmem:[#allocation3 + $0x58] sm:$0xff]
    %v2864 = vld [vmem:[#allocation3 + $0x60] sm:$0xff]
    %v2865 = vpack.c.bf16 %v2854, %v2853
    %v2866 = vpack.c.bf16 %v2856, %v2855
    %v2867 = vpack.c.bf16 %v2858, %v2857
    %v2868 = vpack.c.bf16 %v2860, %v2859
    %v2869 = vpack.c.bf16 %v2862, %v2861
    %v2870 = vpack.c.bf16 %v2864, %v2863
    %v2872 = vlaneseq
    %v2873 = vshrl.u32 %v2872, 7
    %v2874 = vsub.s32 0, %v2873
    %v2875 = vrot.slane %v2852, %v2874
    %v2881 = vunpack.c.l.b16 %v2848
    %v2882 = vunpack.c.l.b16 %v2849
    %v2883 = vunpack.c.l.b16 %v2850
    %v2884 = vunpack.c.l.b16 %v2851
    %v2885 = vpack.c.b16 %v2882, %v2881
    %v2886 = vpack.c.b16 %v2884, %v2883
    %v2890 = vsel %vm226, %v2865, 0
    %v2893 = vsel %vm226, %v2866, 0
    %v2896 = vsel %vm226, %v2867, 0
    %v2899 = vsel %vm226, %v2868, 0
    %v2902 = vsel %vm226, %v2869, 0
    %v2905 = vsel %vm226, %v2870, 0
    %2907 = vmatprep.subr.bf16.mxu0 0
    %2908 = vmatpush1.bf16.msra.mxu0 %v2885
    %2909 = vmatprep.subr.bf16.mxu0 0
    %2910 = vmatpush1.bf16.msra.mxu0 %v2886
    %2911 = vmatprep.subr.bf16.mxu0 0
    %2912 = vmatpush1.bf16.msra.mxu0 0
    %2913 = vmatprep.subr.bf16.mxu0 0
    %2914 = vmatpush1.bf16.msra.mxu0 0
    %2915 = vmatprep.subr.bf16.mxu0 0
    %2916 = vmatpush1.bf16.msra.mxu0 0
    %2917 = vmatprep.subr.bf16.mxu0 0
    %2918 = vmatpush1.bf16.msra.mxu0 0
    %2919 = vmatprep.subr.bf16.mxu0 0
    %2920 = vmatpush1.bf16.msra.mxu0 0
    %2921 = vmatprep.subr.bf16.mxu0 0
    %2922 = vmatpush1.bf16.msra.mxu0 0
    %2923 = vmatprep.subr.bf16.mxu0 0
    %2924 = vmatpush1.bf16.msra.mxu0 0
    %2925 = vmatprep.subr.bf16.mxu0 0
    %2926 = vmatpush1.bf16.msra.mxu0 0
    %2927 = vmatprep.subr.bf16.mxu0 0
    %2928 = vmatpush1.bf16.msra.mxu0 0
    %2929 = vmatprep.subr.bf16.mxu0 0
    %2930 = vmatpush1.bf16.msra.mxu0 0
    %2931 = vmatprep.subr.bf16.mxu0 0
    %2932 = vmatpush1.bf16.msra.mxu0 0
    %2933 = vmatprep.subr.bf16.mxu0 0
    %2934 = vmatpush1.bf16.msra.mxu0 0
    %2935 = vmatprep.subr.bf16.mxu0 0
    %2936 = vmatpush1.bf16.msra.mxu0 0
    %2937 = vmatprep.subr.bf16.mxu0 0
    %2938 = vmatpush1.bf16.msra.mxu0 0
    %2939 = vmatprep.mubr.bf16.mxu0 0
    %2940 = vmatmul.mubr.bf16.gmra.mrb[0].mxu0 %v2890
    %v2941 = vpop.f32.mrb[0].mxu0
    %v2942 = vadd.f32 %v2875, %v2941
    %v2943 = vpop.f32.mrb[0].mxu0
    %v2944 = vpop.f32.mrb[0].mxu0
    %v2945 = vpop.f32.mrb[0].mxu0
    %2946 = vmatprep.mubr.bf16.mxu0 0
    %2947 = vmatmul.mubr.bf16.gmra.mrb[0].mxu0 %v2893
    %v2948 = vpop.f32.mrb[0].mxu0
    %v2949 = vpop.f32.mrb[0].mxu0
    %v2950 = vpop.f32.mrb[0].mxu0
    %v2951 = vpop.f32.mrb[0].mxu0
    %2952 = vmatprep.mubr.bf16.mxu0 0
    %2953 = vmatmul.mubr.bf16.gmra.mrb[0].mxu0 %v2896
    %v2954 = vpop.f32.mrb[0].mxu0
    %v2955 = vpop.f32.mrb[0].mxu0
    %v2956 = vpop.f32.mrb[0].mxu0
    %v2957 = vpop.f32.mrb[0].mxu0
    %2958 = vmatprep.mubr.bf16.mxu0 0
    %2959 = vmatmul.mubr.bf16.gmra.mrb[0].mxu0 %v2899
    %v2960 = vpop.f32.mrb[0].mxu0
    %v2961 = vadd.f32 %v2875, %v2960
    %v2962 = vpop.f32.mrb[0].mxu0
    %v2963 = vpop.f32.mrb[0].mxu0
    %v2964 = vpop.f32.mrb[0].mxu0
    %2965 = vmatprep.mubr.bf16.mxu0 0
    %2966 = vmatmul.mubr.bf16.gmra.mrb[0].mxu0 %v2902
    %v2967 = vpop.f32.mrb[0].mxu0
    %v2968 = vpop.f32.mrb[0].mxu0
    %v2969 = vpop.f32.mrb[0].mxu0
    %v2970 = vpop.f32.mrb[0].mxu0
    %2971 = vmatprep.mubr.bf16.mxu0 0
    %2972 = vmatmul.mubr.bf16.gmra.mrb[0].mxu0 %v2905
    %v2973 = vpop.f32.mrb[0].mxu0
    %v2974 = vpop.f32.mrb[0].mxu0
    %v2975 = vpop.f32.mrb[0].mxu0
    %v2976 = vpop.f32.mrb[0].mxu0
    %2977 = vdwg.mxu0
    %v2978 = vld [vmem:[#allocation2 + $0x8] sm:$0xff]
    %v2979 = vld [vmem:[#allocation2 + $0x38] sm:$0xff]
    %v2980 = vadd.f32 %v2942, %v2978
    %v2981 = vadd.f32 %v2961, %v2979
    %2982 = vst.msk [vmem:[#allocation4 + $0x8] sm:$0xff] %vm226, %v2980
    %2983 = vst.msk [vmem:[#allocation4 + $0x10] sm:$0xff] %vm226, 0.0
    %2984 = vst.msk [vmem:[#allocation4 + $0x38] sm:$0xff] %vm226, %v2981
    %2985 = vst.msk [vmem:[#allocation4 + $0x40] sm:$0xff] %vm226, 0.0
    %v2986 = vld [vmem:[%s47] sm:$0xf]
    %v2987 = vld [vmem:[%s47 + $0x4] sm:$0xf]
    %v2988 = vld [vmem:[%s47 + $0x8] sm:$0xf]
    %v2989 = vld [vmem:[%s47 + $0xc] sm:$0xf]
    %v2990 = vld [vmem:[%s47 + $0x10] sm:$0xf]
    %v2991 = vld [vmem:[%s47 + $0x14] sm:$0xf]
    %v2992 = vld [vmem:[%s47 + $0x18] sm:$0xf]
    %v2993 = vld [vmem:[%s47 + $0x1c] sm:$0xf]
    %v2994 = vld [vmem:[%s47 + $0x20] sm:$0xf]
    %v2995 = vld [vmem:[%s47 + $0x24] sm:$0xf]
    %v2996 = vld [vmem:[%s47 + $0x28] sm:$0xf]
    %v2997 = vld [vmem:[%s47 + $0x2c] sm:$0xf]
    %v2998 = vld [vmem:[%s49] sm:$0x1]
    %v2999 = vld [vmem:[#allocation4 + $0x7] sm:$0xff]
    %v3000 = vld [vmem:[#allocation4 + $0xf] sm:$0xff]
    %v3001 = vld [vmem:[#allocation4 + $0x17] sm:$0xff]
    %v3002 = vld [vmem:[#allocation4 + $0x1f] sm:$0xff]
    %v3003 = vld [vmem:[#allocation4 + $0x27] sm:$0xff]
    %v3004 = vld [vmem:[#allocation4 + $0x2f] sm:$0xff]
    %v3005 = vld [vmem:[#allocation4 + $0x37] sm:$0xff]
    %v3006 = vld [vmem:[#allocation4 + $0x3f] sm:$0xff]
    %v3007 = vld [vmem:[#allocation4 + $0x47] sm:$0xff]
    %v3008 = vld [vmem:[#allocation4 + $0x4f] sm:$0xff]
    %v3009 = vld [vmem:[#allocation4 + $0x57] sm:$0xff]
    %v3010 = vld [vmem:[#allocation4 + $0x5f] sm:$0xff]
    %v3011 = vld [vmem:[#allocation4 + $0x8] sm:$0xff]
    %v3012 = vld [vmem:[#allocation4 + $0x10] sm:$0xff]
    %v3013 = vld [vmem:[#allocation4 + $0x18] sm:$0xff]
    %v3014 = vld [vmem:[#allocation4 + $0x20] sm:$0xff]
    %v3015 = vld [vmem:[#allocation4 + $0x28] sm:$0xff]
    %v3016 = vld [vmem:[#allocation4 + $0x30] sm:$0xff]
    %v3017 = vld [vmem:[#allocation4 + $0x38] sm:$0xff]
    %v3018 = vld [vmem:[#allocation4 + $0x40] sm:$0xff]
    %v3019 = vld [vmem:[#allocation4 + $0x48] sm:$0xff]
    %v3020 = vld [vmem:[#allocation4 + $0x50] sm:$0xff]
    %v3021 = vld [vmem:[#allocation4 + $0x58] sm:$0xff]
    %v3022 = vld [vmem:[#allocation4 + $0x60] sm:$0xff]
    %v3023 = vld [vmem:[#allocation4 + $0x9] sm:$0xff]
    %v3024 = vld [vmem:[#allocation4 + $0x11] sm:$0xff]
    %v3025 = vld [vmem:[#allocation4 + $0x19] sm:$0xff]
    %v3026 = vld [vmem:[#allocation4 + $0x21] sm:$0xff]
    %v3027 = vld [vmem:[#allocation4 + $0x29] sm:$0xff]
    %v3028 = vld [vmem:[#allocation4 + $0x31] sm:$0xff]
    %v3029 = vld [vmem:[#allocation4 + $0x39] sm:$0xff]
    %v3030 = vld [vmem:[#allocation4 + $0x41] sm:$0xff]
    %v3031 = vld [vmem:[#allocation4 + $0x49] sm:$0xff]
    %v3032 = vld [vmem:[#allocation4 + $0x51] sm:$0xff]
    %v3033 = vld [vmem:[#allocation4 + $0x59] sm:$0xff]
    %v3034 = vld [vmem:[#allocation4 + $0x61] sm:$0xff]
    %3047 = vrot.lane.b32.xlu0 %v3011, 32
    %v3048 = vpop.permute.xlu0 %3047
    %3049 = vrot.lane.b32.xlu0 %v3012, 32
    %v3050 = vpop.permute.xlu0 %3049
    %3051 = vrot.lane.b32.xlu0 %v3013, 32
    %v3052 = vpop.permute.xlu0 %3051
    %3053 = vrot.lane.b32.xlu0 %v3014, 32
    %v3054 = vpop.permute.xlu0 %3053
    %3055 = vrot.lane.b32.xlu0 %v3015, 32
    %v3056 = vpop.permute.xlu0 %3055
    %3057 = vrot.lane.b32.xlu0 %v3016, 32
    %v3058 = vpop.permute.xlu0 %3057
    %3059 = vrot.lane.b32.xlu0 %v3017, 32
    %v3060 = vpop.permute.xlu0 %3059
    %3061 = vrot.lane.b32.xlu0 %v3018, 32
    %v3062 = vpop.permute.xlu0 %3061
    %3063 = vrot.lane.b32.xlu0 %v3019, 32
    %v3064 = vpop.permute.xlu0 %3063
    %3065 = vrot.lane.b32.xlu0 %v3020, 32
    %v3066 = vpop.permute.xlu0 %3065
    %3067 = vrot.lane.b32.xlu0 %v3021, 32
    %v3068 = vpop.permute.xlu0 %3067
    %3069 = vrot.lane.b32.xlu0 %v3022, 32
    %v3070 = vpop.permute.xlu0 %3069
    %3095 = vrot.lane.b32.xlu0 %v3023, 64
    %v3096 = vpop.permute.xlu0 %3095
    %3097 = vrot.lane.b32.xlu0 %v3024, 64
    %v3098 = vpop.permute.xlu0 %3097
    %3099 = vrot.lane.b32.xlu0 %v3025, 64
    %v3100 = vpop.permute.xlu0 %3099
    %3101 = vrot.lane.b32.xlu0 %v3026, 64
    %v3102 = vpop.permute.xlu0 %3101
    %3103 = vrot.lane.b32.xlu0 %v3027, 64
    %v3104 = vpop.permute.xlu0 %3103
    %3105 = vrot.lane.b32.xlu0 %v3028, 64
    %v3106 = vpop.permute.xlu0 %3105
    %3107 = vrot.lane.b32.xlu0 %v3029, 64
    %v3108 = vpop.permute.xlu0 %3107
    %3109 = vrot.lane.b32.xlu0 %v3030, 64
    %v3110 = vpop.permute.xlu0 %3109
    %3111 = vrot.lane.b32.xlu0 %v3031, 64
    %v3112 = vpop.permute.xlu0 %3111
    %3113 = vrot.lane.b32.xlu0 %v3032, 64
    %v3114 = vpop.permute.xlu0 %3113
    %3115 = vrot.lane.b32.xlu0 %v3033, 64
    %v3116 = vpop.permute.xlu0 %3115
    %3117 = vrot.lane.b32.xlu0 %v3034, 64
    %v3118 = vpop.permute.xlu0 %3117
    %v3131 = vsel %vm226, %v2999, %v3048
    %v3132 = vsel %vm226, %v3000, %v3050
    %v3133 = vsel %vm226, %v3001, %v3052
    %v3134 = vsel %vm226, %v3002, %v3054
    %v3135 = vsel %vm226, %v3003, %v3056
    %v3136 = vsel %vm226, %v3004, %v3058
    %v3137 = vsel %vm226, %v3005, %v3060
    %v3138 = vsel %vm226, %v3006, %v3062
    %v3139 = vsel %vm226, %v3007, %v3064
    %v3140 = vsel %vm226, %v3008, %v3066
    %v3141 = vsel %vm226, %v3009, %v3068
    %v3142 = vsel %vm226, %v3010, %v3070
    %v3143 = vsel %vm709, %v3131, %v3096
    %v3144 = vsel %vm709, %v3132, %v3098
    %v3145 = vsel %vm709, %v3133, %v3100
    %v3146 = vsel %vm709, %v3134, %v3102
    %v3147 = vsel %vm709, %v3135, %v3104
    %v3148 = vsel %vm709, %v3136, %v3106
    %v3149 = vsel %vm709, %v3137, %v3108
    %v3150 = vsel %vm709, %v3138, %v3110
    %v3151 = vsel %vm709, %v3139, %v3112
    %v3152 = vsel %vm709, %v3140, %v3114
    %v3153 = vsel %vm709, %v3141, %v3116
    %v3154 = vsel %vm709, %v3142, %v3118
    %v3155 = vpack.c.bf16 %v3144, %v3143
    %v3156 = vpack.c.bf16 %v3146, %v3145
    %v3157 = vpack.c.bf16 %v3148, %v3147
    %v3158 = vpack.c.bf16 %v3150, %v3149
    %v3159 = vpack.c.bf16 %v3152, %v3151
    %v3160 = vpack.c.bf16 %v3154, %v3153
    %v3162 = vlaneseq
    %v3163 = vshrl.u32 %v3162, 7
    %v3164 = vsub.s32 0, %v3163
    %v3165 = vrot.slane %v2998, %v3164
    %v3179 = vunpack.c.l.b16 %v2986
    %v3180 = vunpack.c.l.b16 %v2987
    %v3181 = vunpack.c.l.b16 %v2988
    %v3182 = vunpack.c.l.b16 %v2989
    %v3183 = vunpack.c.l.b16 %v2990
    %v3184 = vunpack.c.l.b16 %v2991
    %v3185 = vunpack.c.l.b16 %v2992
    %v3186 = vunpack.c.l.b16 %v2993
    %v3187 = vunpack.c.l.b16 %v2994
    %v3188 = vunpack.c.l.b16 %v2995
    %v3189 = vunpack.c.l.b16 %v2996
    %v3190 = vunpack.c.l.b16 %v2997
    %v3191 = vpack.c.b16 %v3180, %v3179
    %v3192 = vpack.c.b16 %v3182, %v3181
    %v3193 = vpack.c.b16 %v3184, %v3183
    %v3194 = vpack.c.b16 %v3186, %v3185
    %v3195 = vpack.c.b16 %v3188, %v3187
    %v3196 = vpack.c.b16 %v3190, %v3189
    %v3204 = vsel %vm716, %v3155, 0
    %v3207 = vsel %vm716, %v3156, 0
    %v3210 = vsel %vm716, %v3157, 0
    %v3213 = vsel %vm716, %v3158, 0
    %v3216 = vsel %vm716, %v3159, 0
    %v3219 = vsel %vm716, %v3160, 0
    %3221 = vmatprep.subr.bf16.mxu0 0
    %3222 = vmatpush1.bf16.msra.mxu0 %v3191
    %3223 = vmatprep.subr.bf16.mxu0 0
    %3224 = vmatpush1.bf16.msra.mxu0 %v3192
    %3225 = vmatprep.subr.bf16.mxu0 0
    %3226 = vmatpush1.bf16.msra.mxu0 %v3193
    %3227 = vmatprep.subr.bf16.mxu0 0
    %3228 = vmatpush1.bf16.msra.mxu0 %v3194
    %3229 = vmatprep.subr.bf16.mxu0 0
    %3230 = vmatpush1.bf16.msra.mxu0 %v3195
    %3231 = vmatprep.subr.bf16.mxu0 0
    %3232 = vmatpush1.bf16.msra.mxu0 %v3196
    %3233 = vmatprep.subr.bf16.mxu0 0
    %3234 = vmatpush1.bf16.msra.mxu0 0
    %3235 = vmatprep.subr.bf16.mxu0 0
    %3236 = vmatpush1.bf16.msra.mxu0 0
    %3237 = vmatprep.subr.bf16.mxu0 0
    %3238 = vmatpush1.bf16.msra.mxu0 0
    %3239 = vmatprep.subr.bf16.mxu0 0
    %3240 = vmatpush1.bf16.msra.mxu0 0
    %3241 = vmatprep.subr.bf16.mxu0 0
    %3242 = vmatpush1.bf16.msra.mxu0 0
    %3243 = vmatprep.subr.bf16.mxu0 0
    %3244 = vmatpush1.bf16.msra.mxu0 0
    %3245 = vmatprep.subr.bf16.mxu0 0
    %3246 = vmatpush1.bf16.msra.mxu0 0
    %3247 = vmatprep.subr.bf16.mxu0 0
    %3248 = vmatpush1.bf16.msra.mxu0 0
    %3249 = vmatprep.subr.bf16.mxu0 0
    %3250 = vmatpush1.bf16.msra.mxu0 0
    %3251 = vmatprep.subr.bf16.mxu0 0
    %3252 = vmatpush1.bf16.msra.mxu0 0
    %3253 = vmatprep.mubr.bf16.mxu0 0
    %3254 = vmatmul.mubr.bf16.gmra.mrb[0].mxu0 %v3204
    %v3255 = vpop.f32.mrb[0].mxu0
    %v3256 = vadd.f32 %v3165, %v3255
    %v3257 = vpop.f32.mrb[0].mxu0
    %v3258 = vpop.f32.mrb[0].mxu0
    %v3259 = vpop.f32.mrb[0].mxu0
    %3260 = vmatprep.mubr.bf16.mxu0 0
    %3261 = vmatmul.mubr.bf16.gmra.mrb[0].mxu0 %v3207
    %v3262 = vpop.f32.mrb[0].mxu0
    %v3263 = vpop.f32.mrb[0].mxu0
    %v3264 = vpop.f32.mrb[0].mxu0
    %v3265 = vpop.f32.mrb[0].mxu0
    %3266 = vmatprep.mubr.bf16.mxu0 0
    %3267 = vmatmul.mubr.bf16.gmra.mrb[0].mxu0 %v3210
    %v3268 = vpop.f32.mrb[0].mxu0
    %v3269 = vpop.f32.mrb[0].mxu0
    %v3270 = vpop.f32.mrb[0].mxu0
    %v3271 = vpop.f32.mrb[0].mxu0
    %3272 = vmatprep.mubr.bf16.mxu0 0
    %3273 = vmatmul.mubr.bf16.gmra.mrb[0].mxu0 %v3213
    %v3274 = vpop.f32.mrb[0].mxu0
    %v3275 = vadd.f32 %v3165, %v3274
    %v3276 = vpop.f32.mrb[0].mxu0
    %v3277 = vpop.f32.mrb[0].mxu0
    %v3278 = vpop.f32.mrb[0].mxu0
    %3279 = vmatprep.mubr.bf16.mxu0 0
    %3280 = vmatmul.mubr.bf16.gmra.mrb[0].mxu0 %v3216
    %v3281 = vpop.f32.mrb[0].mxu0
    %v3282 = vpop.f32.mrb[0].mxu0
    %v3283 = vpop.f32.mrb[0].mxu0
    %v3284 = vpop.f32.mrb[0].mxu0
    %3285 = vmatprep.mubr.bf16.mxu0 0
    %3286 = vmatmul.mubr.bf16.gmra.mrb[0].mxu0 %v3219
    %v3287 = vpop.f32.mrb[0].mxu0
    %v3288 = vpop.f32.mrb[0].mxu0
    %v3289 = vpop.f32.mrb[0].mxu0
    %v3290 = vpop.f32.mrb[0].mxu0
    %3291 = vdwg.mxu0
    %3292 = vst.msk [vmem:[#allocation2 + $0x8] sm:$0xff] %vm226, %v3256
    %3293 = vst.msk [vmem:[#allocation2 + $0x10] sm:$0xff] %vm226, 0.0
    %3294 = vst.msk [vmem:[#allocation2 + $0x38] sm:$0xff] %vm226, %v3275
    %3295 = vst.msk [vmem:[#allocation2 + $0x40] sm:$0xff] %vm226, 0.0
    %v3296 = vld [vmem:[%s103] sm:$0xff]
    %v3297 = vld [vmem:[%s103 + $0x8] sm:$0xff]
    %v3298 = vld [vmem:[%s103 + $0x10] sm:$0xff]
    %v3299 = vld [vmem:[%s103 + $0x18] sm:$0xff]
    %v3300 = vld [vmem:[%s103 + $0x20] sm:$0xff]
    %v3301 = vld [vmem:[%s103 + $0x28] sm:$0xff]
    %v3302 = vld [vmem:[%s103 + $0x30] sm:$0xff]
    %v3303 = vld [vmem:[%s103 + $0x38] sm:$0xff]
    %v3304 = vld [vmem:[#allocation2 + $0x8] sm:$0xff]
    %v3305 = vld [vmem:[#allocation2 + $0x38] sm:$0xff]
    %v3306 = vmul.f32 %v3304, %v3304
    %v3307 = vmul.f32 %v3305, %v3305
    %v3308 = vsel %vm226, %v3306, 0.0
    %3309 = vadd.xlane.f32.xlu0 %v3308
    %v3310 = vpop.xlane.xlu0 %3309
    %v3311 = vsel %vm226, %v3307, 0.0
    %3312 = vadd.xlane.f32.xlu0 %v3311
    %v3313 = vpop.xlane.xlu0 %3312
    %v3314 = vmul.f32 %v3296, %v3296
    %v3315 = vmul.f32 %v3297, %v3297
    %v3316 = vmul.f32 %v3298, %v3298
    %v3317 = vmul.f32 %v3299, %v3299
    %v3318 = vmul.f32 %v3300, %v3300
    %v3319 = vmul.f32 %v3301, %v3301
    %v3320 = vmul.f32 %v3302, %v3302
    %v3321 = vmul.f32 %v3303, %v3303
    %v3322 = vsel %vm226, %v3314, 0.0
    %3323 = vadd.xlane.f32.xlu0 %v3322
    %v3324 = vpop.xlane.xlu0 %3323
    %v3325 = vsel %vm226, %v3315, 0.0
    %3326 = vadd.xlane.f32.xlu0 %v3325
    %v3327 = vpop.xlane.xlu0 %3326
    %v3328 = vsel %vm226, %v3316, 0.0
    %3329 = vadd.xlane.f32.xlu0 %v3328
    %v3330 = vpop.xlane.xlu0 %3329
    %v3331 = vsel %vm226, %v3317, 0.0
    %3332 = vadd.xlane.f32.xlu0 %v3331
    %v3333 = vpop.xlane.xlu0 %3332
    %v3334 = vsel %vm226, %v3318, 0.0
    %3335 = vadd.xlane.f32.xlu0 %v3334
    %v3336 = vpop.xlane.xlu0 %3335
    %v3337 = vsel %vm226, %v3319, 0.0
    %3338 = vadd.xlane.f32.xlu0 %v3337
    %v3339 = vpop.xlane.xlu0 %3338
    %v3340 = vsel %vm226, %v3320, 0.0
    %3341 = vadd.xlane.f32.xlu0 %v3340
    %v3342 = vpop.xlane.xlu0 %3341
    %v3343 = vsel %vm226, %v3321, 0.0
    %3344 = vadd.xlane.f32.xlu0 %v3343
    %v3345 = vpop.xlane.xlu0 %3344
    %v3347 = vsel %vm226, %v3304, 0
    %v3350 = vsel %vm226, %v3305, 0
    %v3353 = vsel %vm226, %v3296, 0
    %v3356 = vsel %vm226, %v3297, 0
    %v3359 = vsel %vm226, %v3298, 0
    %v3362 = vsel %vm226, %v3299, 0
    %v3365 = vsel %vm226, %v3300, 0
    %v3368 = vsel %vm226, %v3301, 0
    %v3371 = vsel %vm226, %v3302, 0
    %v3374 = vsel %vm226, %v3303, 0
    %3376 = vmatprep.subr.mxu0 0.0
    %3377 = vmatpush1.xpose.msra.mxu0 %v3353
    %3378 = vmatprep.subr.mxu0 0.0
    %3379 = vmatpush1.xpose.msra.mxu0 %v3356
    %3380 = vmatprep.subr.mxu0 0.0
    %3381 = vmatpush1.xpose.msra.mxu0 %v3359
    %3382 = vmatprep.subr.mxu0 0.0
    %3383 = vmatpush1.xpose.msra.mxu0 %v3362
    %3384 = vmatprep.subr.mxu0 0.0
    %3385 = vmatpush1.xpose.msra.mxu0 %v3365
    %3386 = vmatprep.subr.mxu0 0.0
    %3387 = vmatpush1.xpose.msra.mxu0 %v3368
    %3388 = vmatprep.subr.mxu0 0.0
    %3389 = vmatpush1.xpose.msra.mxu0 %v3371
    %3390 = vmatprep.subr.mxu0 0.0
    %3391 = vmatpush1.xpose.msra.mxu0 %v3374
    %3392 = vmatprep.subr.mxu0 0.0
    %3393 = vmatpush1.xpose.msra.mxu0 0.0
    %3394 = vmatprep.subr.mxu0 0.0
    %3395 = vmatpush1.xpose.msra.mxu0 0.0
    %3396 = vmatprep.subr.mxu0 0.0
    %3397 = vmatpush1.xpose.msra.mxu0 0.0
    %3398 = vmatprep.subr.mxu0 0.0
    %3399 = vmatpush1.xpose.msra.mxu0 0.0
    %3400 = vmatprep.subr.mxu0 0.0
    %3401 = vmatpush1.xpose.msra.mxu0 0.0
    %3402 = vmatprep.subr.mxu0 0.0
    %3403 = vmatpush1.xpose.msra.mxu0 0.0
    %3404 = vmatprep.subr.mxu0 0.0
    %3405 = vmatpush1.xpose.msra.mxu0 0.0
    %3406 = vmatprep.subr.mxu0 0.0
    %3407 = vmatpush1.xpose.msra.mxu0 0.0
    %3408 = vmatprep.subr.mxu0 0.0
    %3409 = vmatpush1.xpose.msra.mxu0 0.0
    %3410 = vmatprep.subr.mxu0 0.0
    %3411 = vmatpush1.xpose.msra.mxu0 0.0
    %3412 = vmatprep.subr.mxu0 0.0
    %3413 = vmatpush1.xpose.msra.mxu0 0.0
    %3414 = vmatprep.subr.mxu0 0.0
    %3415 = vmatpush1.xpose.msra.mxu0 0.0
    %3416 = vmatprep.subr.mxu0 0.0
    %3417 = vmatpush1.xpose.msra.mxu0 0.0
    %3418 = vmatprep.subr.mxu0 0.0
    %3419 = vmatpush1.xpose.msra.mxu0 0.0
    %3420 = vmatprep.subr.mxu0 0.0
    %3421 = vmatpush1.xpose.msra.mxu0 0.0
    %3422 = vmatprep.subr.mxu0 0.0
    %3423 = vmatpush1.xpose.msra.mxu0 0.0
    %3424 = vmatprep.subr.mxu0 0.0
    %3425 = vmatpush1.xpose.msra.mxu0 0.0
    %3426 = vmatprep.subr.mxu0 0.0
    %3427 = vmatpush1.xpose.msra.mxu0 0.0
    %3428 = vmatprep.subr.mxu0 0.0
    %3429 = vmatpush1.xpose.msra.mxu0 0.0
    %3430 = vmatprep.subr.mxu0 0.0
    %3431 = vmatpush1.xpose.msra.mxu0 0.0
    %3432 = vmatprep.subr.mxu0 0.0
    %3433 = vmatpush1.xpose.msra.mxu0 0.0
    %3434 = vmatprep.subr.mxu0 0.0
    %3435 = vmatpush1.xpose.msra.mxu0 0.0
    %3436 = vmatprep.subr.mxu0 0.0
    %3437 = vmatpush1.xpose.msra.mxu0 0.0
    %3438 = vmatprep.subr.mxu0 0.0
    %3439 = vmatpush1.xpose.msra.mxu0 0.0
    %3440 = vmatprep.mubr.f32.mxu0 0.0
    %3441 = vmatmul.mubr.f32.gmra.mrb[0].mxu0 %v3347
    %v3442 = vpop.f32.mrb[0].mxu0
    %v3443 = vadd.f32 0.0, %v3442
    %v3444 = vpop.f32.mrb[0].mxu0
    %3445 = vmatprep.mubr.f32.mxu0 0.0
    %3446 = vmatmul.mubr.f32.gmra.mrb[0].mxu0 %v3350
    %v3447 = vpop.f32.mrb[0].mxu0
    %v3448 = vadd.f32 0.0, %v3447
    %v3449 = vpop.f32.mrb[0].mxu0
    %3450 = vdwg.mxu0
    %v3451 = vmul.f32 %v3443, 2.0
    %v3452 = vmul.f32 %v3448, 2.0
    %v3453 = vsub.f32 %v3310, %v3451
    %v3454 = vsub.f32 %v3313, %v3452
    %v3463 = vlaneseq
    %v3464 = vand.u32 %v3463, 127
    %v3465 = vlaneseq
    %v3466 = vshrl.u32 %v3465, 7
    %v3467 = vsub.s32 %v3464, %v3466
    %v3468 = vrot.slane %v3324, %v3467
    %v3469 = vadd.s32 %v3464, 4294967288
    %v3470 = vlaneseq
    %v3471 = vshrl.u32 %v3470, 7
    %v3472 = vsub.s32 %v3469, %v3471
    %v3473 = vrot.slane %v3327, %v3472
    %vm3474 = vcmask 130112
    %v3475 = vsel %vm3474, %v3473, %v3468
    %v3476 = vadd.s32 %v3464, 4294967280
    %v3477 = vlaneseq
    %v3478 = vshrl.u32 %v3477, 7
    %v3479 = vsub.s32 %v3476, %v3478
    %v3480 = vrot.slane %v3330, %v3479
    %vm3481 = vcmask 195712
    %v3482 = vsel %vm3481, %v3480, %v3475
    %v3483 = vadd.s32 %v3464, 4294967272
    %v3484 = vlaneseq
    %v3485 = vshrl.u32 %v3484, 7
    %v3486 = vsub.s32 %v3483, %v3485
    %v3487 = vrot.slane %v3333, %v3486
    %vm3488 = vcmask 261312
    %v3489 = vsel %vm3488, %v3487, %v3482
    %v3490 = vadd.s32 %v3464, 4294967264
    %v3491 = vlaneseq
    %v3492 = vshrl.u32 %v3491, 7
    %v3493 = vsub.s32 %v3490, %v3492
    %v3494 = vrot.slane %v3336, %v3493
    %vm3495 = vcmask 326912
    %v3496 = vsel %vm3495, %v3494, %v3489
    %v3497 = vadd.s32 %v3464, 4294967256
    %v3498 = vlaneseq
    %v3499 = vshrl.u32 %v3498, 7
    %v3500 = vsub.s32 %v3497, %v3499
    %v3501 = vrot.slane %v3339, %v3500
    %vm3502 = vcmask 392512
    %v3503 = vsel %vm3502, %v3501, %v3496
    %v3504 = vadd.s32 %v3464, 4294967248
    %v3505 = vlaneseq
    %v3506 = vshrl.u32 %v3505, 7
    %v3507 = vsub.s32 %v3504, %v3506
    %v3508 = vrot.slane %v3342, %v3507
    %vm3509 = vcmask 458112
    %v3510 = vsel %vm3509, %v3508, %v3503
    %v3511 = vadd.s32 %v3464, 4294967240
    %v3512 = vlaneseq
    %v3513 = vshrl.u32 %v3512, 7
    %v3514 = vsub.s32 %v3511, %v3513
    %v3515 = vrot.slane %v3345, %v3514
    %vm3516 = vcmask 523712
    %v3517 = vsel %vm3516, %v3515, %v3510
    %vm3518 = vcmask 1042434
    %v3519 = vsel %vm3518, %v3517, %v3517
    %vm3520 = vcmask 1043459
    %v3521 = vsel %vm3520, %v3517, %v3519
    %vm3522 = vcmask 1044484
    %v3523 = vsel %vm3522, %v3517, %v3521
    %vm3524 = vcmask 1045509
    %v3525 = vsel %vm3524, %v3517, %v3523
    %vm3526 = vcmask 1046534
    %v3527 = vsel %vm3526, %v3517, %v3525
    %vm3528 = vcmask 1047559
    %v3529 = vsel %vm3528, %v3517, %v3527
    %v3531 = vadd.f32 %v3453, %v3529
    %v3532 = vadd.f32 %v3454, %v3529
    %v3533 = vsel %vm709, %v3531, inf
    %3534 = vmin.xlane.f32.xlu0 %v3533
    %v3535 = vpop.xlane.xlu0 %3534
    %v3536 = vsel %vm709, %v3532, inf
    %3537 = vmin.xlane.f32.xlu0 %v3536
    %v3538 = vpop.xlane.xlu0 %3537
    %vm3539 = vcmp.le.f32.partialorder %v3531, %v3535
    %vm3540 = vcmp.le.f32.partialorder %v3532, %v3538
    %v3541 = vsel %vm3539, %v3464, 1073741824
    %v3542 = vsel %vm3540, %v3464, 1073741824
    %v3543 = vsel %vm709, %v3541, 2147483647
    %v3544 = vand.u32 %v3543, 65535
    %v3545 = vshra.s32 %v3543, 16
    %v3546 = vcvt.s32.f32 %v3544
    %v3547 = vcvt.s32.f32 %v3545
    %3548 = vmin.xlane.f32.xlu0 %v3547
    %v3549 = vpop.xlane.xlu0 %3548
    %vm3550 = vcmp.eq.f32.partialorder %v3547, %v3549
    %v3551 = vsel %vm3550, %v3546, inf
    %3552 = vmin.xlane.f32.xlu0 %v3551
    %v3553 = vpop.xlane.xlu0 %3552
    %v3554 = vcvt.f32.s32 %v3553
    %v3555 = vcvt.f32.s32 %v3549
    %v3556 = vshll.u32 %v3555, 16
    %v3557 = vadd.s32 %v3556, %v3554
    %v3558 = vsel %vm709, %v3542, 2147483647
    %v3559 = vand.u32 %v3558, 65535
    %v3560 = vshra.s32 %v3558, 16
    %v3561 = vcvt.s32.f32 %v3559
    %v3562 = vcvt.s32.f32 %v3560
    %3563 = vmin.xlane.f32.xlu0 %v3562
    %v3564 = vpop.xlane.xlu0 %3563
    %vm3565 = vcmp.eq.f32.partialorder %v3562, %v3564
    %v3566 = vsel %vm3565, %v3561, inf
    %3567 = vmin.xlane.f32.xlu0 %v3566
    %v3568 = vpop.xlane.xlu0 %3567
    %v3569 = vcvt.f32.s32 %v3568
    %v3570 = vcvt.f32.s32 %v3564
    %v3571 = vshll.u32 %v3570, 16
    %v3572 = vadd.s32 %v3571, %v3569
    %vm3573 = vcmp.eq.s32.totalorder %v3464, %v3557
    %vm3574 = vcmp.eq.s32.totalorder %v3464, %v3572
    %v3575 = vsel %vm3573, 1, 0
    %v3576 = vsel %vm3574, 1, 0
    %v3577 = vcvt.s32.f32 %v3575
    %v3578 = vcvt.s32.f32 %v3576
    %v3580 = vsel %vm709, %v3577, 0
    %v3583 = vsel %vm709, %v3578, 0
    %3585 = vmatprep.subr.mxu0 0.0
    %3586 = vmatpush1.msra.mxu0 %v3296
    %3587 = vmatprep.subr.mxu0 0.0
    %3588 = vmatpush1.msra.mxu0 %v3297
    %3589 = vmatprep.subr.mxu0 0.0
    %3590 = vmatpush1.msra.mxu0 %v3298
    %3591 = vmatprep.subr.mxu0 0.0
    %3592 = vmatpush1.msra.mxu0 %v3299
    %3593 = vmatprep.subr.mxu0 0.0
    %3594 = vmatpush1.msra.mxu0 %v3300
    %3595 = vmatprep.subr.mxu0 0.0
    %3596 = vmatpush1.msra.mxu0 %v3301
    %3597 = vmatprep.subr.mxu0 0.0
    %3598 = vmatpush1.msra.mxu0 %v3302
    %3599 = vmatprep.subr.mxu0 0.0
    %3600 = vmatpush1.msra.mxu0 %v3303
    %3601 = vmatprep.subr.mxu0 0.0
    %3602 = vmatpush1.msra.mxu0 0.0
    %3603 = vmatprep.subr.mxu0 0.0
    %3604 = vmatpush1.msra.mxu0 0.0
    %3605 = vmatprep.subr.mxu0 0.0
    %3606 = vmatpush1.msra.mxu0 0.0
    %3607 = vmatprep.subr.mxu0 0.0
    %3608 = vmatpush1.msra.mxu0 0.0
    %3609 = vmatprep.subr.mxu0 0.0
    %3610 = vmatpush1.msra.mxu0 0.0
    %3611 = vmatprep.subr.mxu0 0.0
    %3612 = vmatpush1.msra.mxu0 0.0
    %3613 = vmatprep.subr.mxu0 0.0
    %3614 = vmatpush1.msra.mxu0 0.0
    %3615 = vmatprep.subr.mxu0 0.0
    %3616 = vmatpush1.msra.mxu0 0.0
    %3617 = vmatprep.subr.mxu0 0.0
    %3618 = vmatpush1.msra.mxu0 0.0
    %3619 = vmatprep.subr.mxu0 0.0
    %3620 = vmatpush1.msra.mxu0 0.0
    %3621 = vmatprep.subr.mxu0 0.0
    %3622 = vmatpush1.msra.mxu0 0.0
    %3623 = vmatprep.subr.mxu0 0.0
    %3624 = vmatpush1.msra.mxu0 0.0
    %3625 = vmatprep.subr.mxu0 0.0
    %3626 = vmatpush1.msra.mxu0 0.0
    %3627 = vmatprep.subr.mxu0 0.0
    %3628 = vmatpush1.msra.mxu0 0.0
    %3629 = vmatprep.subr.mxu0 0.0
    %3630 = vmatpush1.msra.mxu0 0.0
    %3631 = vmatprep.subr.mxu0 0.0
    %3632 = vmatpush1.msra.mxu0 0.0
    %3633 = vmatprep.subr.mxu0 0.0
    %3634 = vmatpush1.msra.mxu0 0.0
    %3635 = vmatprep.subr.mxu0 0.0
    %3636 = vmatpush1.msra.mxu0 0.0
    %3637 = vmatprep.subr.mxu0 0.0
    %3638 = vmatpush1.msra.mxu0 0.0
    %3639 = vmatprep.subr.mxu0 0.0
    %3640 = vmatpush1.msra.mxu0 0.0
    %3641 = vmatprep.subr.mxu0 0.0
    %3642 = vmatpush1.msra.mxu0 0.0
    %3643 = vmatprep.subr.mxu0 0.0
    %3644 = vmatpush1.msra.mxu0 0.0
    %3645 = vmatprep.subr.mxu0 0.0
    %3646 = vmatpush1.msra.mxu0 0.0
    %3647 = vmatprep.subr.mxu0 0.0
    %3648 = vmatpush1.msra.mxu0 0.0
    %3649 = vmatprep.mubr.f32.mxu0 0.0
    %3650 = vmatmul.mubr.f32.gmra.mrb[0].mxu0 %v3580
    %v3651 = vpop.f32.mrb[0].mxu0
    %v3652 = vadd.f32 0.0, %v3651
    %v3653 = vpop.f32.mrb[0].mxu0
    %3654 = vmatprep.mubr.f32.mxu0 0.0
    %3655 = vmatmul.mubr.f32.gmra.mrb[0].mxu0 %v3583
    %v3656 = vpop.f32.mrb[0].mxu0
    %v3657 = vadd.f32 0.0, %v3656
    %v3658 = vpop.f32.mrb[0].mxu0
    %3659 = vdwg.mxu0
    %vm3660 = vcmask 7168
    %3661 = vst.msk [vmem:[%s107] sm:$0xff] %vm3660, %v3557
    %3662 = vst.msk [vmem:[%s107 + $0x8] sm:$0xff] %vm3660, %v3572
    %v3663 = vsub.f32 %v3652, %v3304
    %v3664 = vsub.f32 %v3657, %v3305
    %v3665 = vmul.f32 %v3663, %v3663
    %v3666 = vmul.f32 %v3664, %v3664
    %v3667 = vsel %vm226, %v3665, 0.0
    %v3668 = vsel %vm226, %v3666, 0.0
    %v3669 = vadd.f32 %v3667, %v3668
    %3670 = vadd.xlane.f32.xlu0 %v3669
    %v3671 = vpop.xlane.xlu0 %3670
    %v3672 = vrot.slane %v3671, 4
    %v3673 = vadd.f32 %v3671, %v3672
    %v3674 = vrot.slane %v3673, 2
    %v3675 = vadd.f32 %v3673, %v3674
    %v3676 = vrot.slane %v3675, 1
    %v3677 = vadd.f32 %v3675, %v3676
    %s3678 = vtos %v3677
    %v3679 = vstv %s3678
    %v3680 = vrcp.pop 512.0
    %v3681 = vmul.f32 %v3679, %v3680
    %vm3682 = vcmask 0
    %3683 = vst.msk [vmem:[#allocation5] sm:$0x1] %vm3682, %v3681
    %v3685 = vsel %vm243, 1.0, 0
    %3687 = vmatprep.subr.mxu0 0.0
    %3688 = vmatpush1.msra.mxu0 %v3577
    %3689 = vmatprep.subr.mxu0 0.0
    %3690 = vmatpush1.msra.mxu0 %v3578
    %3691 = vmatprep.subr.mxu0 0.0
    %3692 = vmatpush1.msra.mxu0 0.0
    %3693 = vmatprep.subr.mxu0 0.0
    %3694 = vmatpush1.msra.mxu0 0.0
    %3695 = vmatprep.subr.mxu0 0.0
    %3696 = vmatpush1.msra.mxu0 0.0
    %3697 = vmatprep.subr.mxu0 0.0
    %3698 = vmatpush1.msra.mxu0 0.0
    %3699 = vmatprep.subr.mxu0 0.0
    %3700 = vmatpush1.msra.mxu0 0.0
    %3701 = vmatprep.subr.mxu0 0.0
    %3702 = vmatpush1.msra.mxu0 0.0
    %3703 = vmatprep.subr.mxu0 0.0
    %3704 = vmatpush1.msra.mxu0 0.0
    %3705 = vmatprep.subr.mxu0 0.0
    %3706 = vmatpush1.msra.mxu0 0.0
    %3707 = vmatprep.subr.mxu0 0.0
    %3708 = vmatpush1.msra.mxu0 0.0
    %3709 = vmatprep.subr.mxu0 0.0
    %3710 = vmatpush1.msra.mxu0 0.0
    %3711 = vmatprep.subr.mxu0 0.0
    %3712 = vmatpush1.msra.mxu0 0.0
    %3713 = vmatprep.subr.mxu0 0.0
    %3714 = vmatpush1.msra.mxu0 0.0
    %3715 = vmatprep.subr.mxu0 0.0
    %3716 = vmatpush1.msra.mxu0 0.0
    %3717 = vmatprep.subr.mxu0 0.0
    %3718 = vmatpush1.msra.mxu0 0.0
    %3719 = vmatprep.subr.mxu0 0.0
    %3720 = vmatpush1.msra.mxu0 0.0
    %3721 = vmatprep.subr.mxu0 0.0
    %3722 = vmatpush1.msra.mxu0 0.0
    %3723 = vmatprep.subr.mxu0 0.0
    %3724 = vmatpush1.msra.mxu0 0.0
    %3725 = vmatprep.subr.mxu0 0.0
    %3726 = vmatpush1.msra.mxu0 0.0
    %3727 = vmatprep.subr.mxu0 0.0
    %3728 = vmatpush1.msra.mxu0 0.0
    %3729 = vmatprep.subr.mxu0 0.0
    %3730 = vmatpush1.msra.mxu0 0.0
    %3731 = vmatprep.subr.mxu0 0.0
    %3732 = vmatpush1.msra.mxu0 0.0
    %3733 = vmatprep.subr.mxu0 0.0
    %3734 = vmatpush1.msra.mxu0 0.0
    %3735 = vmatprep.subr.mxu0 0.0
    %3736 = vmatpush1.msra.mxu0 0.0
    %3737 = vmatprep.subr.mxu0 0.0
    %3738 = vmatpush1.msra.mxu0 0.0
    %3739 = vmatprep.subr.mxu0 0.0
    %3740 = vmatpush1.msra.mxu0 0.0
    %3741 = vmatprep.subr.mxu0 0.0
    %3742 = vmatpush1.msra.mxu0 0.0
    %3743 = vmatprep.subr.mxu0 0.0
    %3744 = vmatpush1.msra.mxu0 0.0
    %3745 = vmatprep.subr.mxu0 0.0
    %3746 = vmatpush1.msra.mxu0 0.0
    %3747 = vmatprep.subr.mxu0 0.0
    %3748 = vmatpush1.msra.mxu0 0.0
    %3749 = vmatprep.subr.mxu0 0.0
    %3750 = vmatpush1.msra.mxu0 0.0
    %3751 = vmatprep.mubr.f32.mxu0 0.0
    %3752 = vmatmul.mubr.f32.gmra.mrb[0].mxu0 %v3685
    %v3753 = vpop.f32.mrb[0].mxu0
    %v3754 = vadd.f32 0.0, %v3753
    %v3755 = vpop.f32.mrb[0].mxu0
    %3756 = vdwg.mxu0
    %v3757 = vrcp.pop 16.0
    %v3758 = vmul.f32 %v3754, %v3757
    %v3759 = vadd.f32 %v3758, 1e-07
    %v3760 = vlog2.pop %v3759
    %v3761 = vmul.f32 %v3760, 0.6931472
    %v3762 = vmul.f32 %v3758, %v3761
    %vm3763 = vcmask 516096
    %v3764 = vsel %vm3763, %v3762, 0.0
    %3765 = vadd.xlane.f32.xlu0 %v3764
    %v3766 = vpop.xlane.xlu0 %3765
    %v3767 = vsub.f32 0.0, %v3766
    %v3768 = vmul.f32 %v3767, 1.442695
    %v3769 = vpow.pop %v3768
    %3770 = vst.msk [vmem:[#allocation7] sm:$0x1] %vm3682, %v3769
    %3771 = vst.msk [vmem:[#allocation9] sm:$0xff] %vm226, %v3652
    %3772 = vst.msk [vmem:[#allocation3 + $0x8] sm:$0xff] %vm226, %v3652
    %3773 = vst.msk [vmem:[#allocation3 + $0x10] sm:$0xff] %vm226, 0.0
    %s3774 = scalar_lea.vmem [#allocation9], 8
    %3775 = vst.msk [vmem:[%s3774] sm:$0xff] %vm226, %v3657
    %3776 = vst.msk [vmem:[#allocation3 + $0x38] sm:$0xff] %vm226, %v3657
    %3777 = vst.msk [vmem:[#allocation3 + $0x40] sm:$0xff] %vm226, 0.0
    %v3778 = vld [vmem:[%s51] sm:$0xf]
    %v3779 = vld [vmem:[%s51 + $0x4] sm:$0xf]
    %v3780 = vld [vmem:[%s51 + $0x8] sm:$0xf]
    %v3781 = vld [vmem:[%s51 + $0xc] sm:$0xf]
    %v3782 = vld [vmem:[%s51 + $0x10] sm:$0xf]
    %v3783 = vld [vmem:[%s51 + $0x14] sm:$0xf]
    %v3784 = vld [vmem:[%s51 + $0x18] sm:$0xf]
    %v3785 = vld [vmem:[%s51 + $0x1c] sm:$0xf]
    %v3786 = vld [vmem:[%s51 + $0x20] sm:$0xf]
    %v3787 = vld [vmem:[%s51 + $0x24] sm:$0xf]
    %v3788 = vld [vmem:[%s51 + $0x28] sm:$0xf]
    %v3789 = vld [vmem:[%s51 + $0x2c] sm:$0xf]
    %v3790 = vld [vmem:[%s53] sm:$0x1]
    %v3791 = vld [vmem:[#allocation3 + $0x7] sm:$0xff]
    %v3792 = vld [vmem:[#allocation3 + $0xf] sm:$0xff]
    %v3793 = vld [vmem:[#allocation3 + $0x17] sm:$0xff]
    %v3794 = vld [vmem:[#allocation3 + $0x1f] sm:$0xff]
    %v3795 = vld [vmem:[#allocation3 + $0x27] sm:$0xff]
    %v3796 = vld [vmem:[#allocation3 + $0x2f] sm:$0xff]
    %v3797 = vld [vmem:[#allocation3 + $0x37] sm:$0xff]
    %v3798 = vld [vmem:[#allocation3 + $0x3f] sm:$0xff]
    %v3799 = vld [vmem:[#allocation3 + $0x47] sm:$0xff]
    %v3800 = vld [vmem:[#allocation3 + $0x4f] sm:$0xff]
    %v3801 = vld [vmem:[#allocation3 + $0x57] sm:$0xff]
    %v3802 = vld [vmem:[#allocation3 + $0x5f] sm:$0xff]
    %v3803 = vld [vmem:[#allocation3 + $0x8] sm:$0xff]
    %v3804 = vld [vmem:[#allocation3 + $0x10] sm:$0xff]
    %v3805 = vld [vmem:[#allocation3 + $0x18] sm:$0xff]
    %v3806 = vld [vmem:[#allocation3 + $0x20] sm:$0xff]
    %v3807 = vld [vmem:[#allocation3 + $0x28] sm:$0xff]
    %v3808 = vld [vmem:[#allocation3 + $0x30] sm:$0xff]
    %v3809 = vld [vmem:[#allocation3 + $0x38] sm:$0xff]
    %v3810 = vld [vmem:[#allocation3 + $0x40] sm:$0xff]
    %v3811 = vld [vmem:[#allocation3 + $0x48] sm:$0xff]
    %v3812 = vld [vmem:[#allocation3 + $0x50] sm:$0xff]
    %v3813 = vld [vmem:[#allocation3 + $0x58] sm:$0xff]
    %v3814 = vld [vmem:[#allocation3 + $0x60] sm:$0xff]
    %v3815 = vld [vmem:[#allocation3 + $0x9] sm:$0xff]
    %v3816 = vld [vmem:[#allocation3 + $0x11] sm:$0xff]
    %v3817 = vld [vmem:[#allocation3 + $0x19] sm:$0xff]
    %v3818 = vld [vmem:[#allocation3 + $0x21] sm:$0xff]
    %v3819 = vld [vmem:[#allocation3 + $0x29] sm:$0xff]
    %v3820 = vld [vmem:[#allocation3 + $0x31] sm:$0xff]
    %v3821 = vld [vmem:[#allocation3 + $0x39] sm:$0xff]
    %v3822 = vld [vmem:[#allocation3 + $0x41] sm:$0xff]
    %v3823 = vld [vmem:[#allocation3 + $0x49] sm:$0xff]
    %v3824 = vld [vmem:[#allocation3 + $0x51] sm:$0xff]
    %v3825 = vld [vmem:[#allocation3 + $0x59] sm:$0xff]
    %v3826 = vld [vmem:[#allocation3 + $0x61] sm:$0xff]
    %3839 = vrot.lane.b32.xlu0 %v3803, 32
    %v3840 = vpop.permute.xlu0 %3839
    %3841 = vrot.lane.b32.xlu0 %v3804, 32
    %v3842 = vpop.permute.xlu0 %3841
    %3843 = vrot.lane.b32.xlu0 %v3805, 32
    %v3844 = vpop.permute.xlu0 %3843
    %3845 = vrot.lane.b32.xlu0 %v3806, 32
    %v3846 = vpop.permute.xlu0 %3845
    %3847 = vrot.lane.b32.xlu0 %v3807, 32
    %v3848 = vpop.permute.xlu0 %3847
    %3849 = vrot.lane.b32.xlu0 %v3808, 32
    %v3850 = vpop.permute.xlu0 %3849
    %3851 = vrot.lane.b32.xlu0 %v3809, 32
    %v3852 = vpop.permute.xlu0 %3851
    %3853 = vrot.lane.b32.xlu0 %v3810, 32
    %v3854 = vpop.permute.xlu0 %3853
    %3855 = vrot.lane.b32.xlu0 %v3811, 32
    %v3856 = vpop.permute.xlu0 %3855
    %3857 = vrot.lane.b32.xlu0 %v3812, 32
    %v3858 = vpop.permute.xlu0 %3857
    %3859 = vrot.lane.b32.xlu0 %v3813, 32
    %v3860 = vpop.permute.xlu0 %3859
    %3861 = vrot.lane.b32.xlu0 %v3814, 32
    %v3862 = vpop.permute.xlu0 %3861
    %3887 = vrot.lane.b32.xlu0 %v3815, 64
    %v3888 = vpop.permute.xlu0 %3887
    %3889 = vrot.lane.b32.xlu0 %v3816, 64
    %v3890 = vpop.permute.xlu0 %3889
    %3891 = vrot.lane.b32.xlu0 %v3817, 64
    %v3892 = vpop.permute.xlu0 %3891
    %3893 = vrot.lane.b32.xlu0 %v3818, 64
    %v3894 = vpop.permute.xlu0 %3893
    %3895 = vrot.lane.b32.xlu0 %v3819, 64
    %v3896 = vpop.permute.xlu0 %3895
    %3897 = vrot.lane.b32.xlu0 %v3820, 64
    %v3898 = vpop.permute.xlu0 %3897
    %3899 = vrot.lane.b32.xlu0 %v3821, 64
    %v3900 = vpop.permute.xlu0 %3899
    %3901 = vrot.lane.b32.xlu0 %v3822, 64
    %v3902 = vpop.permute.xlu0 %3901
    %3903 = vrot.lane.b32.xlu0 %v3823, 64
    %v3904 = vpop.permute.xlu0 %3903
    %3905 = vrot.lane.b32.xlu0 %v3824, 64
    %v3906 = vpop.permute.xlu0 %3905
    %3907 = vrot.lane.b32.xlu0 %v3825, 64
    %v3908 = vpop.permute.xlu0 %3907
    %3909 = vrot.lane.b32.xlu0 %v3826, 64
    %v3910 = vpop.permute.xlu0 %3909
    %v3923 = vsel %vm226, %v3791, %v3840
    %v3924 = vsel %vm226, %v3792, %v3842
    %v3925 = vsel %vm226, %v3793, %v3844
    %v3926 = vsel %vm226, %v3794, %v3846
    %v3927 = vsel %vm226, %v3795, %v3848
    %v3928 = vsel %vm226, %v3796, %v3850
    %v3929 = vsel %vm226, %v3797, %v3852
    %v3930 = vsel %vm226, %v3798, %v3854
    %v3931 = vsel %vm226, %v3799, %v3856
    %v3932 = vsel %vm226, %v3800, %v3858
    %v3933 = vsel %vm226, %v3801, %v3860
    %v3934 = vsel %vm226, %v3802, %v3862
    %v3935 = vsel %vm709, %v3923, %v3888
    %v3936 = vsel %vm709, %v3924, %v3890
    %v3937 = vsel %vm709, %v3925, %v3892
    %v3938 = vsel %vm709, %v3926, %v3894
    %v3939 = vsel %vm709, %v3927, %v3896
    %v3940 = vsel %vm709, %v3928, %v3898
    %v3941 = vsel %vm709, %v3929, %v3900
    %v3942 = vsel %vm709, %v3930, %v3902
    %v3943 = vsel %vm709, %v3931, %v3904
    %v3944 = vsel %vm709, %v3932, %v3906
    %v3945 = vsel %vm709, %v3933, %v3908
    %v3946 = vsel %vm709, %v3934, %v3910
    %v3947 = vpack.c.bf16 %v3936, %v3935
    %v3948 = vpack.c.bf16 %v3938, %v3937
    %v3949 = vpack.c.bf16 %v3940, %v3939
    %v3950 = vpack.c.bf16 %v3942, %v3941
    %v3951 = vpack.c.bf16 %v3944, %v3943
    %v3952 = vpack.c.bf16 %v3946, %v3945
    %v3954 = vlaneseq
    %v3955 = vshrl.u32 %v3954, 7
    %v3956 = vsub.s32 0, %v3955
    %v3957 = vrot.slane %v3790, %v3956
    %v3971 = vunpack.c.l.b16 %v3778
    %v3972 = vunpack.c.l.b16 %v3779
    %v3973 = vunpack.c.l.b16 %v3780
    %v3974 = vunpack.c.l.b16 %v3781
    %v3975 = vunpack.c.l.b16 %v3782
    %v3976 = vunpack.c.l.b16 %v3783
    %v3977 = vunpack.c.l.b16 %v3784
    %v3978 = vunpack.c.l.b16 %v3785
    %v3979 = vunpack.c.l.b16 %v3786
    %v3980 = vunpack.c.l.b16 %v3787
    %v3981 = vunpack.c.l.b16 %v3788
    %v3982 = vunpack.c.l.b16 %v3789
    %v3983 = vpack.c.b16 %v3972, %v3971
    %v3984 = vpack.c.b16 %v3974, %v3973
    %v3985 = vpack.c.b16 %v3976, %v3975
    %v3986 = vpack.c.b16 %v3978, %v3977
    %v3987 = vpack.c.b16 %v3980, %v3979
    %v3988 = vpack.c.b16 %v3982, %v3981
    %v3996 = vsel %vm716, %v3947, 0
    %v3999 = vsel %vm716, %v3948, 0
    %v4002 = vsel %vm716, %v3949, 0
    %v4005 = vsel %vm716, %v3950, 0
    %v4008 = vsel %vm716, %v3951, 0
    %v4011 = vsel %vm716, %v3952, 0
    %4013 = vmatprep.subr.bf16.mxu0 0
    %4014 = vmatpush1.bf16.msra.mxu0 %v3983
    %4015 = vmatprep.subr.bf16.mxu0 0
    %4016 = vmatpush1.bf16.msra.mxu0 %v3984
    %4017 = vmatprep.subr.bf16.mxu0 0
    %4018 = vmatpush1.bf16.msra.mxu0 %v3985
    %4019 = vmatprep.subr.bf16.mxu0 0
    %4020 = vmatpush1.bf16.msra.mxu0 %v3986
    %4021 = vmatprep.subr.bf16.mxu0 0
    %4022 = vmatpush1.bf16.msra.mxu0 %v3987
    %4023 = vmatprep.subr.bf16.mxu0 0
    %4024 = vmatpush1.bf16.msra.mxu0 %v3988
    %4025 = vmatprep.subr.bf16.mxu0 0
    %4026 = vmatpush1.bf16.msra.mxu0 0
    %4027 = vmatprep.subr.bf16.mxu0 0
    %4028 = vmatpush1.bf16.msra.mxu0 0
    %4029 = vmatprep.subr.bf16.mxu0 0
    %4030 = vmatpush1.bf16.msra.mxu0 0
    %4031 = vmatprep.subr.bf16.mxu0 0
    %4032 = vmatpush1.bf16.msra.mxu0 0
    %4033 = vmatprep.subr.bf16.mxu0 0
    %4034 = vmatpush1.bf16.msra.mxu0 0
    %4035 = vmatprep.subr.bf16.mxu0 0
    %4036 = vmatpush1.bf16.msra.mxu0 0
    %4037 = vmatprep.subr.bf16.mxu0 0
    %4038 = vmatpush1.bf16.msra.mxu0 0
    %4039 = vmatprep.subr.bf16.mxu0 0
    %4040 = vmatpush1.bf16.msra.mxu0 0
    %4041 = vmatprep.subr.bf16.mxu0 0
    %4042 = vmatpush1.bf16.msra.mxu0 0
    %4043 = vmatprep.subr.bf16.mxu0 0
    %4044 = vmatpush1.bf16.msra.mxu0 0
    %4045 = vmatprep.mubr.bf16.mxu0 0
    %4046 = vmatmul.mubr.bf16.gmra.mrb[0].mxu0 %v3996
    %v4047 = vpop.f32.mrb[0].mxu0
    %v4048 = vadd.f32 %v3957, %v4047
    %v4049 = vpop.f32.mrb[0].mxu0
    %v4050 = vpop.f32.mrb[0].mxu0
    %v4051 = vpop.f32.mrb[0].mxu0
    %4052 = vmatprep.mubr.bf16.mxu0 0
    %4053 = vmatmul.mubr.bf16.gmra.mrb[0].mxu0 %v3999
    %v4054 = vpop.f32.mrb[0].mxu0
    %v4055 = vpop.f32.mrb[0].mxu0
    %v4056 = vpop.f32.mrb[0].mxu0
    %v4057 = vpop.f32.mrb[0].mxu0
    %4058 = vmatprep.mubr.bf16.mxu0 0
    %4059 = vmatmul.mubr.bf16.gmra.mrb[0].mxu0 %v4002
    %v4060 = vpop.f32.mrb[0].mxu0
    %v4061 = vpop.f32.mrb[0].mxu0
    %v4062 = vpop.f32.mrb[0].mxu0
    %v4063 = vpop.f32.mrb[0].mxu0
    %4064 = vmatprep.mubr.bf16.mxu0 0
    %4065 = vmatmul.mubr.bf16.gmra.mrb[0].mxu0 %v4005
    %v4066 = vpop.f32.mrb[0].mxu0
    %v4067 = vadd.f32 %v3957, %v4066
    %v4068 = vpop.f32.mrb[0].mxu0
    %v4069 = vpop.f32.mrb[0].mxu0
    %v4070 = vpop.f32.mrb[0].mxu0
    %4071 = vmatprep.mubr.bf16.mxu0 0
    %4072 = vmatmul.mubr.bf16.gmra.mrb[0].mxu0 %v4008
    %v4073 = vpop.f32.mrb[0].mxu0
    %v4074 = vpop.f32.mrb[0].mxu0
    %v4075 = vpop.f32.mrb[0].mxu0
    %v4076 = vpop.f32.mrb[0].mxu0
    %4077 = vmatprep.mubr.bf16.mxu0 0
    %4078 = vmatmul.mubr.bf16.gmra.mrb[0].mxu0 %v4011
    %v4079 = vpop.f32.mrb[0].mxu0
    %v4080 = vpop.f32.mrb[0].mxu0
    %v4081 = vpop.f32.mrb[0].mxu0
    %v4082 = vpop.f32.mrb[0].mxu0
    %4083 = vdwg.mxu0
    %v4084 = vmax.f32 %v4048, 0.0
    %v4085 = vmax.f32 %v4067, 0.0
    %4086 = vst.msk [vmem:[#allocation4 + $0x8] sm:$0xff] %vm226, %v4084
    %4087 = vst.msk [vmem:[#allocation4 + $0x10] sm:$0xff] %vm226, 0.0
    %4088 = vst.msk [vmem:[#allocation4 + $0x38] sm:$0xff] %vm226, %v4085
    %4089 = vst.msk [vmem:[#allocation4 + $0x40] sm:$0xff] %vm226, 0.0
    %v4090 = vld [vmem:[%s55] sm:$0xf]
    %v4091 = vld [vmem:[%s55 + $0x4] sm:$0xf]
    %v4092 = vld [vmem:[%s55 + $0x8] sm:$0xf]
    %v4093 = vld [vmem:[%s55 + $0xc] sm:$0xf]
    %v4094 = vld [vmem:[%s55 + $0x10] sm:$0xf]
    %v4095 = vld [vmem:[%s55 + $0x14] sm:$0xf]
    %v4096 = vld [vmem:[%s55 + $0x18] sm:$0xf]
    %v4097 = vld [vmem:[%s55 + $0x1c] sm:$0xf]
    %v4098 = vld [vmem:[%s55 + $0x20] sm:$0xf]
    %v4099 = vld [vmem:[%s55 + $0x24] sm:$0xf]
    %v4100 = vld [vmem:[%s55 + $0x28] sm:$0xf]
    %v4101 = vld [vmem:[%s55 + $0x2c] sm:$0xf]
    %v4102 = vld [vmem:[%s57] sm:$0x1]
    %v4103 = vld [vmem:[#allocation4 + $0x5] sm:$0xff]
    %v4104 = vld [vmem:[#allocation4 + $0xd] sm:$0xff]
    %v4105 = vld [vmem:[#allocation4 + $0x15] sm:$0xff]
    %v4106 = vld [vmem:[#allocation4 + $0x1d] sm:$0xff]
    %v4107 = vld [vmem:[#allocation4 + $0x25] sm:$0xff]
    %v4108 = vld [vmem:[#allocation4 + $0x2d] sm:$0xff]
    %v4109 = vld [vmem:[#allocation4 + $0x35] sm:$0xff]
    %v4110 = vld [vmem:[#allocation4 + $0x3d] sm:$0xff]
    %v4111 = vld [vmem:[#allocation4 + $0x45] sm:$0xff]
    %v4112 = vld [vmem:[#allocation4 + $0x4d] sm:$0xff]
    %v4113 = vld [vmem:[#allocation4 + $0x55] sm:$0xff]
    %v4114 = vld [vmem:[#allocation4 + $0x5d] sm:$0xff]
    %v4115 = vld [vmem:[#allocation4 + $0x8] sm:$0xff]
    %v4116 = vld [vmem:[#allocation4 + $0x10] sm:$0xff]
    %v4117 = vld [vmem:[#allocation4 + $0x18] sm:$0xff]
    %v4118 = vld [vmem:[#allocation4 + $0x20] sm:$0xff]
    %v4119 = vld [vmem:[#allocation4 + $0x28] sm:$0xff]
    %v4120 = vld [vmem:[#allocation4 + $0x30] sm:$0xff]
    %v4121 = vld [vmem:[#allocation4 + $0x38] sm:$0xff]
    %v4122 = vld [vmem:[#allocation4 + $0x40] sm:$0xff]
    %v4123 = vld [vmem:[#allocation4 + $0x48] sm:$0xff]
    %v4124 = vld [vmem:[#allocation4 + $0x50] sm:$0xff]
    %v4125 = vld [vmem:[#allocation4 + $0x58] sm:$0xff]
    %v4126 = vld [vmem:[#allocation4 + $0x60] sm:$0xff]
    %v4127 = vld [vmem:[#allocation4 + $0xb] sm:$0xff]
    %v4128 = vld [vmem:[#allocation4 + $0x13] sm:$0xff]
    %v4129 = vld [vmem:[#allocation4 + $0x1b] sm:$0xff]
    %v4130 = vld [vmem:[#allocation4 + $0x23] sm:$0xff]
    %v4131 = vld [vmem:[#allocation4 + $0x2b] sm:$0xff]
    %v4132 = vld [vmem:[#allocation4 + $0x33] sm:$0xff]
    %v4133 = vld [vmem:[#allocation4 + $0x3b] sm:$0xff]
    %v4134 = vld [vmem:[#allocation4 + $0x43] sm:$0xff]
    %v4135 = vld [vmem:[#allocation4 + $0x4b] sm:$0xff]
    %v4136 = vld [vmem:[#allocation4 + $0x53] sm:$0xff]
    %v4137 = vld [vmem:[#allocation4 + $0x5b] sm:$0xff]
    %v4138 = vld [vmem:[#allocation4 + $0x63] sm:$0xff]
    %4151 = vrot.lane.b32.xlu0 %v4115, 32
    %v4152 = vpop.permute.xlu0 %4151
    %4153 = vrot.lane.b32.xlu0 %v4116, 32
    %v4154 = vpop.permute.xlu0 %4153
    %4155 = vrot.lane.b32.xlu0 %v4117, 32
    %v4156 = vpop.permute.xlu0 %4155
    %4157 = vrot.lane.b32.xlu0 %v4118, 32
    %v4158 = vpop.permute.xlu0 %4157
    %4159 = vrot.lane.b32.xlu0 %v4119, 32
    %v4160 = vpop.permute.xlu0 %4159
    %4161 = vrot.lane.b32.xlu0 %v4120, 32
    %v4162 = vpop.permute.xlu0 %4161
    %4163 = vrot.lane.b32.xlu0 %v4121, 32
    %v4164 = vpop.permute.xlu0 %4163
    %4165 = vrot.lane.b32.xlu0 %v4122, 32
    %v4166 = vpop.permute.xlu0 %4165
    %4167 = vrot.lane.b32.xlu0 %v4123, 32
    %v4168 = vpop.permute.xlu0 %4167
    %4169 = vrot.lane.b32.xlu0 %v4124, 32
    %v4170 = vpop.permute.xlu0 %4169
    %4171 = vrot.lane.b32.xlu0 %v4125, 32
    %v4172 = vpop.permute.xlu0 %4171
    %4173 = vrot.lane.b32.xlu0 %v4126, 32
    %v4174 = vpop.permute.xlu0 %4173
    %4199 = vrot.lane.b32.xlu0 %v4127, 64
    %v4200 = vpop.permute.xlu0 %4199
    %4201 = vrot.lane.b32.xlu0 %v4128, 64
    %v4202 = vpop.permute.xlu0 %4201
    %4203 = vrot.lane.b32.xlu0 %v4129, 64
    %v4204 = vpop.permute.xlu0 %4203
    %4205 = vrot.lane.b32.xlu0 %v4130, 64
    %v4206 = vpop.permute.xlu0 %4205
    %4207 = vrot.lane.b32.xlu0 %v4131, 64
    %v4208 = vpop.permute.xlu0 %4207
    %4209 = vrot.lane.b32.xlu0 %v4132, 64
    %v4210 = vpop.permute.xlu0 %4209
    %4211 = vrot.lane.b32.xlu0 %v4133, 64
    %v4212 = vpop.permute.xlu0 %4211
    %4213 = vrot.lane.b32.xlu0 %v4134, 64
    %v4214 = vpop.permute.xlu0 %4213
    %4215 = vrot.lane.b32.xlu0 %v4135, 64
    %v4216 = vpop.permute.xlu0 %4215
    %4217 = vrot.lane.b32.xlu0 %v4136, 64
    %v4218 = vpop.permute.xlu0 %4217
    %4219 = vrot.lane.b32.xlu0 %v4137, 64
    %v4220 = vpop.permute.xlu0 %4219
    %4221 = vrot.lane.b32.xlu0 %v4138, 64
    %v4222 = vpop.permute.xlu0 %4221
    %v4235 = vsel %vm226, %v4103, %v4152
    %v4236 = vsel %vm226, %v4104, %v4154
    %v4237 = vsel %vm226, %v4105, %v4156
    %v4238 = vsel %vm226, %v4106, %v4158
    %v4239 = vsel %vm226, %v4107, %v4160
    %v4240 = vsel %vm226, %v4108, %v4162
    %v4241 = vsel %vm226, %v4109, %v4164
    %v4242 = vsel %vm226, %v4110, %v4166
    %v4243 = vsel %vm226, %v4111, %v4168
    %v4244 = vsel %vm226, %v4112, %v4170
    %v4245 = vsel %vm226, %v4113, %v4172
    %v4246 = vsel %vm226, %v4114, %v4174
    %v4247 = vsel %vm709, %v4235, %v4200
    %v4248 = vsel %vm709, %v4236, %v4202
    %v4249 = vsel %vm709, %v4237, %v4204
    %v4250 = vsel %vm709, %v4238, %v4206
    %v4251 = vsel %vm709, %v4239, %v4208
    %v4252 = vsel %vm709, %v4240, %v4210
    %v4253 = vsel %vm709, %v4241, %v4212
    %v4254 = vsel %vm709, %v4242, %v4214
    %v4255 = vsel %vm709, %v4243, %v4216
    %v4256 = vsel %vm709, %v4244, %v4218
    %v4257 = vsel %vm709, %v4245, %v4220
    %v4258 = vsel %vm709, %v4246, %v4222
    %v4259 = vmax.f32 %v4247, 0.0
    %v4260 = vmax.f32 %v4248, 0.0
    %v4261 = vmax.f32 %v4249, 0.0
    %v4262 = vmax.f32 %v4250, 0.0
    %v4263 = vmax.f32 %v4251, 0.0
    %v4264 = vmax.f32 %v4252, 0.0
    %v4265 = vmax.f32 %v4253, 0.0
    %v4266 = vmax.f32 %v4254, 0.0
    %v4267 = vmax.f32 %v4255, 0.0
    %v4268 = vmax.f32 %v4256, 0.0
    %v4269 = vmax.f32 %v4257, 0.0
    %v4270 = vmax.f32 %v4258, 0.0
    %v4271 = vpack.c.bf16 %v4260, %v4259
    %v4272 = vpack.c.bf16 %v4262, %v4261
    %v4273 = vpack.c.bf16 %v4264, %v4263
    %v4274 = vpack.c.bf16 %v4266, %v4265
    %v4275 = vpack.c.bf16 %v4268, %v4267
    %v4276 = vpack.c.bf16 %v4270, %v4269
    %v4278 = vlaneseq
    %v4279 = vshrl.u32 %v4278, 7
    %v4280 = vsub.s32 0, %v4279
    %v4281 = vrot.slane %v4102, %v4280
    %v4295 = vunpack.c.l.b16 %v4090
    %v4296 = vunpack.c.l.b16 %v4091
    %v4297 = vunpack.c.l.b16 %v4092
    %v4298 = vunpack.c.l.b16 %v4093
    %v4299 = vunpack.c.l.b16 %v4094
    %v4300 = vunpack.c.l.b16 %v4095
    %v4301 = vunpack.c.l.b16 %v4096
    %v4302 = vunpack.c.l.b16 %v4097
    %v4303 = vunpack.c.l.b16 %v4098
    %v4304 = vunpack.c.l.b16 %v4099
    %v4305 = vunpack.c.l.b16 %v4100
    %v4306 = vunpack.c.l.b16 %v4101
    %v4307 = vpack.c.b16 %v4296, %v4295
    %v4308 = vpack.c.b16 %v4298, %v4297
    %v4309 = vpack.c.b16 %v4300, %v4299
    %v4310 = vpack.c.b16 %v4302, %v4301
    %v4311 = vpack.c.b16 %v4304, %v4303
    %v4312 = vpack.c.b16 %v4306, %v4305
    %v4320 = vsel %vm716, %v4271, 0
    %v4323 = vsel %vm716, %v4272, 0
    %v4326 = vsel %vm716, %v4273, 0
    %v4329 = vsel %vm716, %v4274, 0
    %v4332 = vsel %vm716, %v4275, 0
    %v4335 = vsel %vm716, %v4276, 0
    %4337 = vmatprep.subr.bf16.mxu0 0
    %4338 = vmatpush1.bf16.msra.mxu0 %v4307
    %4339 = vmatprep.subr.bf16.mxu0 0
    %4340 = vmatpush1.bf16.msra.mxu0 %v4308
    %4341 = vmatprep.subr.bf16.mxu0 0
    %4342 = vmatpush1.bf16.msra.mxu0 %v4309
    %4343 = vmatprep.subr.bf16.mxu0 0
    %4344 = vmatpush1.bf16.msra.mxu0 %v4310
    %4345 = vmatprep.subr.bf16.mxu0 0
    %4346 = vmatpush1.bf16.msra.mxu0 %v4311
    %4347 = vmatprep.subr.bf16.mxu0 0
    %4348 = vmatpush1.bf16.msra.mxu0 %v4312
    %4349 = vmatprep.subr.bf16.mxu0 0
    %4350 = vmatpush1.bf16.msra.mxu0 0
    %4351 = vmatprep.subr.bf16.mxu0 0
    %4352 = vmatpush1.bf16.msra.mxu0 0
    %4353 = vmatprep.subr.bf16.mxu0 0
    %4354 = vmatpush1.bf16.msra.mxu0 0
    %4355 = vmatprep.subr.bf16.mxu0 0
    %4356 = vmatpush1.bf16.msra.mxu0 0
    %4357 = vmatprep.subr.bf16.mxu0 0
    %4358 = vmatpush1.bf16.msra.mxu0 0
    %4359 = vmatprep.subr.bf16.mxu0 0
    %4360 = vmatpush1.bf16.msra.mxu0 0
    %4361 = vmatprep.subr.bf16.mxu0 0
    %4362 = vmatpush1.bf16.msra.mxu0 0
    %4363 = vmatprep.subr.bf16.mxu0 0
    %4364 = vmatpush1.bf16.msra.mxu0 0
    %4365 = vmatprep.subr.bf16.mxu0 0
    %4366 = vmatpush1.bf16.msra.mxu0 0
    %4367 = vmatprep.subr.bf16.mxu0 0
    %4368 = vmatpush1.bf16.msra.mxu0 0
    %4369 = vmatprep.mubr.bf16.mxu0 0
    %4370 = vmatmul.mubr.bf16.gmra.mrb[0].mxu0 %v4320
    %v4371 = vpop.f32.mrb[0].mxu0
    %v4372 = vadd.f32 %v4281, %v4371
    %v4373 = vpop.f32.mrb[0].mxu0
    %v4374 = vpop.f32.mrb[0].mxu0
    %v4375 = vpop.f32.mrb[0].mxu0
    %4376 = vmatprep.mubr.bf16.mxu0 0
    %4377 = vmatmul.mubr.bf16.gmra.mrb[0].mxu0 %v4323
    %v4378 = vpop.f32.mrb[0].mxu0
    %v4379 = vpop.f32.mrb[0].mxu0
    %v4380 = vpop.f32.mrb[0].mxu0
    %v4381 = vpop.f32.mrb[0].mxu0
    %4382 = vmatprep.mubr.bf16.mxu0 0
    %4383 = vmatmul.mubr.bf16.gmra.mrb[0].mxu0 %v4326
    %v4384 = vpop.f32.mrb[0].mxu0
    %v4385 = vpop.f32.mrb[0].mxu0
    %v4386 = vpop.f32.mrb[0].mxu0
    %v4387 = vpop.f32.mrb[0].mxu0
    %4388 = vmatprep.mubr.bf16.mxu0 0
    %4389 = vmatmul.mubr.bf16.gmra.mrb[0].mxu0 %v4329
    %v4390 = vpop.f32.mrb[0].mxu0
    %v4391 = vadd.f32 %v4281, %v4390
    %v4392 = vpop.f32.mrb[0].mxu0
    %v4393 = vpop.f32.mrb[0].mxu0
    %v4394 = vpop.f32.mrb[0].mxu0
    %4395 = vmatprep.mubr.bf16.mxu0 0
    %4396 = vmatmul.mubr.bf16.gmra.mrb[0].mxu0 %v4332
    %v4397 = vpop.f32.mrb[0].mxu0
    %v4398 = vpop.f32.mrb[0].mxu0
    %v4399 = vpop.f32.mrb[0].mxu0
    %v4400 = vpop.f32.mrb[0].mxu0
    %4401 = vmatprep.mubr.bf16.mxu0 0
    %4402 = vmatmul.mubr.bf16.gmra.mrb[0].mxu0 %v4335
    %v4403 = vpop.f32.mrb[0].mxu0
    %v4404 = vpop.f32.mrb[0].mxu0
    %v4405 = vpop.f32.mrb[0].mxu0
    %v4406 = vpop.f32.mrb[0].mxu0
    %4407 = vdwg.mxu0
    %v4408 = vmax.f32 %v4372, 0.0
    %v4409 = vmax.f32 %v4391, 0.0
    %4410 = vst.msk [vmem:[#allocation2 + $0x8] sm:$0xff] %vm226, %v4408
    %4411 = vst.msk [vmem:[#allocation2 + $0x10] sm:$0xff] %vm226, 0.0
    %4412 = vst.msk [vmem:[#allocation2 + $0x38] sm:$0xff] %vm226, %v4409
    %4413 = vst.msk [vmem:[#allocation2 + $0x40] sm:$0xff] %vm226, 0.0
    %v4414 = vld [vmem:[%s59] sm:$0xf]
    %v4415 = vld [vmem:[%s59 + $0x4] sm:$0xf]
    %v4416 = vld [vmem:[%s59 + $0x8] sm:$0xf]
    %v4417 = vld [vmem:[%s59 + $0xc] sm:$0xf]
    %v4418 = vld [vmem:[%s61] sm:$0x1]
    %v4419 = vld [vmem:[#allocation2 + $0x8] sm:$0xff]
    %v4420 = vld [vmem:[#allocation2 + $0x10] sm:$0xff]
    %v4421 = vld [vmem:[#allocation2 + $0x18] sm:$0xff]
    %v4422 = vld [vmem:[#allocation2 + $0x20] sm:$0xff]
    %v4423 = vld [vmem:[#allocation2 + $0x28] sm:$0xff]
    %v4424 = vld [vmem:[#allocation2 + $0x30] sm:$0xff]
    %v4425 = vld [vmem:[#allocation2 + $0x38] sm:$0xff]
    %v4426 = vld [vmem:[#allocation2 + $0x40] sm:$0xff]
    %v4427 = vld [vmem:[#allocation2 + $0x48] sm:$0xff]
    %v4428 = vld [vmem:[#allocation2 + $0x50] sm:$0xff]
    %v4429 = vld [vmem:[#allocation2 + $0x58] sm:$0xff]
    %v4430 = vld [vmem:[#allocation2 + $0x60] sm:$0xff]
    %v4431 = vpack.c.bf16 %v4420, %v4419
    %v4432 = vpack.c.bf16 %v4422, %v4421
    %v4433 = vpack.c.bf16 %v4424, %v4423
    %v4434 = vpack.c.bf16 %v4426, %v4425
    %v4435 = vpack.c.bf16 %v4428, %v4427
    %v4436 = vpack.c.bf16 %v4430, %v4429
    %v4438 = vlaneseq
    %v4439 = vshrl.u32 %v4438, 7
    %v4440 = vsub.s32 0, %v4439
    %v4441 = vrot.slane %v4418, %v4440
    %v4447 = vunpack.c.l.b16 %v4414
    %v4448 = vunpack.c.l.b16 %v4415
    %v4449 = vunpack.c.l.b16 %v4416
    %v4450 = vunpack.c.l.b16 %v4417
    %v4451 = vpack.c.b16 %v4448, %v4447
    %v4452 = vpack.c.b16 %v4450, %v4449
    %v4456 = vsel %vm226, %v4431, 0
    %v4459 = vsel %vm226, %v4432, 0
    %v4462 = vsel %vm226, %v4433, 0
    %v4465 = vsel %vm226, %v4434, 0
    %v4468 = vsel %vm226, %v4435, 0
    %v4471 = vsel %vm226, %v4436, 0
    %4473 = vmatprep.subr.bf16.mxu0 0
    %4474 = vmatpush1.bf16.msra.mxu0 %v4451
    %4475 = vmatprep.subr.bf16.mxu0 0
    %4476 = vmatpush1.bf16.msra.mxu0 %v4452
    %4477 = vmatprep.subr.bf16.mxu0 0
    %4478 = vmatpush1.bf16.msra.mxu0 0
    %4479 = vmatprep.subr.bf16.mxu0 0
    %4480 = vmatpush1.bf16.msra.mxu0 0
    %4481 = vmatprep.subr.bf16.mxu0 0
    %4482 = vmatpush1.bf16.msra.mxu0 0
    %4483 = vmatprep.subr.bf16.mxu0 0
    %4484 = vmatpush1.bf16.msra.mxu0 0
    %4485 = vmatprep.subr.bf16.mxu0 0
    %4486 = vmatpush1.bf16.msra.mxu0 0
    %4487 = vmatprep.subr.bf16.mxu0 0
    %4488 = vmatpush1.bf16.msra.mxu0 0
    %4489 = vmatprep.subr.bf16.mxu0 0
    %4490 = vmatpush1.bf16.msra.mxu0 0
    %4491 = vmatprep.subr.bf16.mxu0 0
    %4492 = vmatpush1.bf16.msra.mxu0 0
    %4493 = vmatprep.subr.bf16.mxu0 0
    %4494 = vmatpush1.bf16.msra.mxu0 0
    %4495 = vmatprep.subr.bf16.mxu0 0
    %4496 = vmatpush1.bf16.msra.mxu0 0
    %4497 = vmatprep.subr.bf16.mxu0 0
    %4498 = vmatpush1.bf16.msra.mxu0 0
    %4499 = vmatprep.subr.bf16.mxu0 0
    %4500 = vmatpush1.bf16.msra.mxu0 0
    %4501 = vmatprep.subr.bf16.mxu0 0
    %4502 = vmatpush1.bf16.msra.mxu0 0
    %4503 = vmatprep.subr.bf16.mxu0 0
    %4504 = vmatpush1.bf16.msra.mxu0 0
    %4505 = vmatprep.mubr.bf16.mxu0 0
    %4506 = vmatmul.mubr.bf16.gmra.mrb[0].mxu0 %v4456
    %v4507 = vpop.f32.mrb[0].mxu0
    %v4508 = vadd.f32 %v4441, %v4507
    %v4509 = vpop.f32.mrb[0].mxu0
    %v4510 = vpop.f32.mrb[0].mxu0
    %v4511 = vpop.f32.mrb[0].mxu0
    %4512 = vmatprep.mubr.bf16.mxu0 0
    %4513 = vmatmul.mubr.bf16.gmra.mrb[0].mxu0 %v4459
    %v4514 = vpop.f32.mrb[0].mxu0
    %v4515 = vpop.f32.mrb[0].mxu0
    %v4516 = vpop.f32.mrb[0].mxu0
    %v4517 = vpop.f32.mrb[0].mxu0
    %4518 = vmatprep.mubr.bf16.mxu0 0
    %4519 = vmatmul.mubr.bf16.gmra.mrb[0].mxu0 %v4462
    %v4520 = vpop.f32.mrb[0].mxu0
    %v4521 = vpop.f32.mrb[0].mxu0
    %v4522 = vpop.f32.mrb[0].mxu0
    %v4523 = vpop.f32.mrb[0].mxu0
    %4524 = vmatprep.mubr.bf16.mxu0 0
    %4525 = vmatmul.mubr.bf16.gmra.mrb[0].mxu0 %v4465
    %v4526 = vpop.f32.mrb[0].mxu0
    %v4527 = vadd.f32 %v4441, %v4526
    %v4528 = vpop.f32.mrb[0].mxu0
    %v4529 = vpop.f32.mrb[0].mxu0
    %v4530 = vpop.f32.mrb[0].mxu0
    %4531 = vmatprep.mubr.bf16.mxu0 0
    %4532 = vmatmul.mubr.bf16.gmra.mrb[0].mxu0 %v4468
    %v4533 = vpop.f32.mrb[0].mxu0
    %v4534 = vpop.f32.mrb[0].mxu0
    %v4535 = vpop.f32.mrb[0].mxu0
    %v4536 = vpop.f32.mrb[0].mxu0
    %4537 = vmatprep.mubr.bf16.mxu0 0
    %4538 = vmatmul.mubr.bf16.gmra.mrb[0].mxu0 %v4471
    %v4539 = vpop.f32.mrb[0].mxu0
    %v4540 = vpop.f32.mrb[0].mxu0
    %v4541 = vpop.f32.mrb[0].mxu0
    %v4542 = vpop.f32.mrb[0].mxu0
    %4543 = vdwg.mxu0
    %v4544 = vld [vmem:[#allocation4 + $0x8] sm:$0xff]
    %v4545 = vld [vmem:[#allocation4 + $0x38] sm:$0xff]
    %v4546 = vadd.f32 %v4508, %v4544
    %v4547 = vadd.f32 %v4527, %v4545
    %4548 = vst.msk [vmem:[#allocation3 + $0x8] sm:$0xff] %vm226, %v4546
    %4549 = vst.msk [vmem:[#allocation3 + $0x10] sm:$0xff] %vm226, 0.0
    %4550 = vst.msk [vmem:[#allocation3 + $0x38] sm:$0xff] %vm226, %v4547
    %4551 = vst.msk [vmem:[#allocation3 + $0x40] sm:$0xff] %vm226, 0.0
    %v4552 = vld [vmem:[%s63] sm:$0xf]
    %v4553 = vld [vmem:[%s63 + $0x4] sm:$0xf]
    %v4554 = vld [vmem:[%s63 + $0x8] sm:$0xf]
    %v4555 = vld [vmem:[%s63 + $0xc] sm:$0xf]
    %v4556 = vld [vmem:[%s63 + $0x10] sm:$0xf]
    %v4557 = vld [vmem:[%s63 + $0x14] sm:$0xf]
    %v4558 = vld [vmem:[%s63 + $0x18] sm:$0xf]
    %v4559 = vld [vmem:[%s63 + $0x1c] sm:$0xf]
    %v4560 = vld [vmem:[%s63 + $0x20] sm:$0xf]
    %v4561 = vld [vmem:[%s63 + $0x24] sm:$0xf]
    %v4562 = vld [vmem:[%s63 + $0x28] sm:$0xf]
    %v4563 = vld [vmem:[%s63 + $0x2c] sm:$0xf]
    %v4564 = vld [vmem:[%s65] sm:$0x1]
    %v4565 = vld [vmem:[#allocation3 + $0x7] sm:$0xff]
    %v4566 = vld [vmem:[#allocation3 + $0xf] sm:$0xff]
    %v4567 = vld [vmem:[#allocation3 + $0x17] sm:$0xff]
    %v4568 = vld [vmem:[#allocation3 + $0x1f] sm:$0xff]
    %v4569 = vld [vmem:[#allocation3 + $0x27] sm:$0xff]
    %v4570 = vld [vmem:[#allocation3 + $0x2f] sm:$0xff]
    %v4571 = vld [vmem:[#allocation3 + $0x37] sm:$0xff]
    %v4572 = vld [vmem:[#allocation3 + $0x3f] sm:$0xff]
    %v4573 = vld [vmem:[#allocation3 + $0x47] sm:$0xff]
    %v4574 = vld [vmem:[#allocation3 + $0x4f] sm:$0xff]
    %v4575 = vld [vmem:[#allocation3 + $0x57] sm:$0xff]
    %v4576 = vld [vmem:[#allocation3 + $0x5f] sm:$0xff]
    %v4577 = vld [vmem:[#allocation3 + $0x8] sm:$0xff]
    %v4578 = vld [vmem:[#allocation3 + $0x10] sm:$0xff]
    %v4579 = vld [vmem:[#allocation3 + $0x18] sm:$0xff]
    %v4580 = vld [vmem:[#allocation3 + $0x20] sm:$0xff]
    %v4581 = vld [vmem:[#allocation3 + $0x28] sm:$0xff]
    %v4582 = vld [vmem:[#allocation3 + $0x30] sm:$0xff]
    %v4583 = vld [vmem:[#allocation3 + $0x38] sm:$0xff]
    %v4584 = vld [vmem:[#allocation3 + $0x40] sm:$0xff]
    %v4585 = vld [vmem:[#allocation3 + $0x48] sm:$0xff]
    %v4586 = vld [vmem:[#allocation3 + $0x50] sm:$0xff]
    %v4587 = vld [vmem:[#allocation3 + $0x58] sm:$0xff]
    %v4588 = vld [vmem:[#allocation3 + $0x60] sm:$0xff]
    %v4589 = vld [vmem:[#allocation3 + $0x9] sm:$0xff]
    %v4590 = vld [vmem:[#allocation3 + $0x11] sm:$0xff]
    %v4591 = vld [vmem:[#allocation3 + $0x19] sm:$0xff]
    %v4592 = vld [vmem:[#allocation3 + $0x21] sm:$0xff]
    %v4593 = vld [vmem:[#allocation3 + $0x29] sm:$0xff]
    %v4594 = vld [vmem:[#allocation3 + $0x31] sm:$0xff]
    %v4595 = vld [vmem:[#allocation3 + $0x39] sm:$0xff]
    %v4596 = vld [vmem:[#allocation3 + $0x41] sm:$0xff]
    %v4597 = vld [vmem:[#allocation3 + $0x49] sm:$0xff]
    %v4598 = vld [vmem:[#allocation3 + $0x51] sm:$0xff]
    %v4599 = vld [vmem:[#allocation3 + $0x59] sm:$0xff]
    %v4600 = vld [vmem:[#allocation3 + $0x61] sm:$0xff]
    %4613 = vrot.lane.b32.xlu0 %v4577, 32
    %v4614 = vpop.permute.xlu0 %4613
    %4615 = vrot.lane.b32.xlu0 %v4578, 32
    %v4616 = vpop.permute.xlu0 %4615
    %4617 = vrot.lane.b32.xlu0 %v4579, 32
    %v4618 = vpop.permute.xlu0 %4617
    %4619 = vrot.lane.b32.xlu0 %v4580, 32
    %v4620 = vpop.permute.xlu0 %4619
    %4621 = vrot.lane.b32.xlu0 %v4581, 32
    %v4622 = vpop.permute.xlu0 %4621
    %4623 = vrot.lane.b32.xlu0 %v4582, 32
    %v4624 = vpop.permute.xlu0 %4623
    %4625 = vrot.lane.b32.xlu0 %v4583, 32
    %v4626 = vpop.permute.xlu0 %4625
    %4627 = vrot.lane.b32.xlu0 %v4584, 32
    %v4628 = vpop.permute.xlu0 %4627
    %4629 = vrot.lane.b32.xlu0 %v4585, 32
    %v4630 = vpop.permute.xlu0 %4629
    %4631 = vrot.lane.b32.xlu0 %v4586, 32
    %v4632 = vpop.permute.xlu0 %4631
    %4633 = vrot.lane.b32.xlu0 %v4587, 32
    %v4634 = vpop.permute.xlu0 %4633
    %4635 = vrot.lane.b32.xlu0 %v4588, 32
    %v4636 = vpop.permute.xlu0 %4635
    %4661 = vrot.lane.b32.xlu0 %v4589, 64
    %v4662 = vpop.permute.xlu0 %4661
    %4663 = vrot.lane.b32.xlu0 %v4590, 64
    %v4664 = vpop.permute.xlu0 %4663
    %4665 = vrot.lane.b32.xlu0 %v4591, 64
    %v4666 = vpop.permute.xlu0 %4665
    %4667 = vrot.lane.b32.xlu0 %v4592, 64
    %v4668 = vpop.permute.xlu0 %4667
    %4669 = vrot.lane.b32.xlu0 %v4593, 64
    %v4670 = vpop.permute.xlu0 %4669
    %4671 = vrot.lane.b32.xlu0 %v4594, 64
    %v4672 = vpop.permute.xlu0 %4671
    %4673 = vrot.lane.b32.xlu0 %v4595, 64
    %v4674 = vpop.permute.xlu0 %4673
    %4675 = vrot.lane.b32.xlu0 %v4596, 64
    %v4676 = vpop.permute.xlu0 %4675
    %4677 = vrot.lane.b32.xlu0 %v4597, 64
    %v4678 = vpop.permute.xlu0 %4677
    %4679 = vrot.lane.b32.xlu0 %v4598, 64
    %v4680 = vpop.permute.xlu0 %4679
    %4681 = vrot.lane.b32.xlu0 %v4599, 64
    %v4682 = vpop.permute.xlu0 %4681
    %4683 = vrot.lane.b32.xlu0 %v4600, 64
    %v4684 = vpop.permute.xlu0 %4683
    %v4697 = vsel %vm226, %v4565, %v4614
    %v4698 = vsel %vm226, %v4566, %v4616
    %v4699 = vsel %vm226, %v4567, %v4618
    %v4700 = vsel %vm226, %v4568, %v4620
    %v4701 = vsel %vm226, %v4569, %v4622
    %v4702 = vsel %vm226, %v4570, %v4624
    %v4703 = vsel %vm226, %v4571, %v4626
    %v4704 = vsel %vm226, %v4572, %v4628
    %v4705 = vsel %vm226, %v4573, %v4630
    %v4706 = vsel %vm226, %v4574, %v4632
    %v4707 = vsel %vm226, %v4575, %v4634
    %v4708 = vsel %vm226, %v4576, %v4636
    %v4709 = vsel %vm709, %v4697, %v4662
    %v4710 = vsel %vm709, %v4698, %v4664
    %v4711 = vsel %vm709, %v4699, %v4666
    %v4712 = vsel %vm709, %v4700, %v4668
    %v4713 = vsel %vm709, %v4701, %v4670
    %v4714 = vsel %vm709, %v4702, %v4672
    %v4715 = vsel %vm709, %v4703, %v4674
    %v4716 = vsel %vm709, %v4704, %v4676
    %v4717 = vsel %vm709, %v4705, %v4678
    %v4718 = vsel %vm709, %v4706, %v4680
    %v4719 = vsel %vm709, %v4707, %v4682
    %v4720 = vsel %vm709, %v4708, %v4684
    %v4721 = vmax.f32 %v4709, 0.0
    %v4722 = vmax.f32 %v4710, 0.0
    %v4723 = vmax.f32 %v4711, 0.0
    %v4724 = vmax.f32 %v4712, 0.0
    %v4725 = vmax.f32 %v4713, 0.0
    %v4726 = vmax.f32 %v4714, 0.0
    %v4727 = vmax.f32 %v4715, 0.0
    %v4728 = vmax.f32 %v4716, 0.0
    %v4729 = vmax.f32 %v4717, 0.0
    %v4730 = vmax.f32 %v4718, 0.0
    %v4731 = vmax.f32 %v4719, 0.0
    %v4732 = vmax.f32 %v4720, 0.0
    %v4733 = vpack.c.bf16 %v4722, %v4721
    %v4734 = vpack.c.bf16 %v4724, %v4723
    %v4735 = vpack.c.bf16 %v4726, %v4725
    %v4736 = vpack.c.bf16 %v4728, %v4727
    %v4737 = vpack.c.bf16 %v4730, %v4729
    %v4738 = vpack.c.bf16 %v4732, %v4731
    %v4740 = vlaneseq
    %v4741 = vshrl.u32 %v4740, 7
    %v4742 = vsub.s32 0, %v4741
    %v4743 = vrot.slane %v4564, %v4742
    %v4757 = vunpack.c.l.b16 %v4552
    %v4758 = vunpack.c.l.b16 %v4553
    %v4759 = vunpack.c.l.b16 %v4554
    %v4760 = vunpack.c.l.b16 %v4555
    %v4761 = vunpack.c.l.b16 %v4556
    %v4762 = vunpack.c.l.b16 %v4557
    %v4763 = vunpack.c.l.b16 %v4558
    %v4764 = vunpack.c.l.b16 %v4559
    %v4765 = vunpack.c.l.b16 %v4560
    %v4766 = vunpack.c.l.b16 %v4561
    %v4767 = vunpack.c.l.b16 %v4562
    %v4768 = vunpack.c.l.b16 %v4563
    %v4769 = vpack.c.b16 %v4758, %v4757
    %v4770 = vpack.c.b16 %v4760, %v4759
    %v4771 = vpack.c.b16 %v4762, %v4761
    %v4772 = vpack.c.b16 %v4764, %v4763
    %v4773 = vpack.c.b16 %v4766, %v4765
    %v4774 = vpack.c.b16 %v4768, %v4767
    %v4782 = vsel %vm716, %v4733, 0
    %v4785 = vsel %vm716, %v4734, 0
    %v4788 = vsel %vm716, %v4735, 0
    %v4791 = vsel %vm716, %v4736, 0
    %v4794 = vsel %vm716, %v4737, 0
    %v4797 = vsel %vm716, %v4738, 0
    %4799 = vmatprep.subr.bf16.mxu0 0
    %4800 = vmatpush1.bf16.msra.mxu0 %v4769
    %4801 = vmatprep.subr.bf16.mxu0 0
    %4802 = vmatpush1.bf16.msra.mxu0 %v4770
    %4803 = vmatprep.subr.bf16.mxu0 0
    %4804 = vmatpush1.bf16.msra.mxu0 %v4771
    %4805 = vmatprep.subr.bf16.mxu0 0
    %4806 = vmatpush1.bf16.msra.mxu0 %v4772
    %4807 = vmatprep.subr.bf16.mxu0 0
    %4808 = vmatpush1.bf16.msra.mxu0 %v4773
    %4809 = vmatprep.subr.bf16.mxu0 0
    %4810 = vmatpush1.bf16.msra.mxu0 %v4774
    %4811 = vmatprep.subr.bf16.mxu0 0
    %4812 = vmatpush1.bf16.msra.mxu0 0
    %4813 = vmatprep.subr.bf16.mxu0 0
    %4814 = vmatpush1.bf16.msra.mxu0 0
    %4815 = vmatprep.subr.bf16.mxu0 0
    %4816 = vmatpush1.bf16.msra.mxu0 0
    %4817 = vmatprep.subr.bf16.mxu0 0
    %4818 = vmatpush1.bf16.msra.mxu0 0
    %4819 = vmatprep.subr.bf16.mxu0 0
    %4820 = vmatpush1.bf16.msra.mxu0 0
    %4821 = vmatprep.subr.bf16.mxu0 0
    %4822 = vmatpush1.bf16.msra.mxu0 0
    %4823 = vmatprep.subr.bf16.mxu0 0
    %4824 = vmatpush1.bf16.msra.mxu0 0
    %4825 = vmatprep.subr.bf16.mxu0 0
    %4826 = vmatpush1.bf16.msra.mxu0 0
    %4827 = vmatprep.subr.bf16.mxu0 0
    %4828 = vmatpush1.bf16.msra.mxu0 0
    %4829 = vmatprep.subr.bf16.mxu0 0
    %4830 = vmatpush1.bf16.msra.mxu0 0
    %4831 = vmatprep.mubr.bf16.mxu0 0
    %4832 = vmatmul.mubr.bf16.gmra.mrb[0].mxu0 %v4782
    %v4833 = vpop.f32.mrb[0].mxu0
    %v4834 = vadd.f32 %v4743, %v4833
    %v4835 = vpop.f32.mrb[0].mxu0
    %v4836 = vpop.f32.mrb[0].mxu0
    %v4837 = vpop.f32.mrb[0].mxu0
    %4838 = vmatprep.mubr.bf16.mxu0 0
    %4839 = vmatmul.mubr.bf16.gmra.mrb[0].mxu0 %v4785
    %v4840 = vpop.f32.mrb[0].mxu0
    %v4841 = vpop.f32.mrb[0].mxu0
    %v4842 = vpop.f32.mrb[0].mxu0
    %v4843 = vpop.f32.mrb[0].mxu0
    %4844 = vmatprep.mubr.bf16.mxu0 0
    %4845 = vmatmul.mubr.bf16.gmra.mrb[0].mxu0 %v4788
    %v4846 = vpop.f32.mrb[0].mxu0
    %v4847 = vpop.f32.mrb[0].mxu0
    %v4848 = vpop.f32.mrb[0].mxu0
    %v4849 = vpop.f32.mrb[0].mxu0
    %4850 = vmatprep.mubr.bf16.mxu0 0
    %4851 = vmatmul.mubr.bf16.gmra.mrb[0].mxu0 %v4791
    %v4852 = vpop.f32.mrb[0].mxu0
    %v4853 = vadd.f32 %v4743, %v4852
    %v4854 = vpop.f32.mrb[0].mxu0
    %v4855 = vpop.f32.mrb[0].mxu0
    %v4856 = vpop.f32.mrb[0].mxu0
    %4857 = vmatprep.mubr.bf16.mxu0 0
    %4858 = vmatmul.mubr.bf16.gmra.mrb[0].mxu0 %v4794
    %v4859 = vpop.f32.mrb[0].mxu0
    %v4860 = vpop.f32.mrb[0].mxu0
    %v4861 = vpop.f32.mrb[0].mxu0
    %v4862 = vpop.f32.mrb[0].mxu0
    %4863 = vmatprep.mubr.bf16.mxu0 0
    %4864 = vmatmul.mubr.bf16.gmra.mrb[0].mxu0 %v4797
    %v4865 = vpop.f32.mrb[0].mxu0
    %v4866 = vpop.f32.mrb[0].mxu0
    %v4867 = vpop.f32.mrb[0].mxu0
    %v4868 = vpop.f32.mrb[0].mxu0
    %4869 = vdwg.mxu0
    %v4870 = vmax.f32 %v4834, 0.0
    %v4871 = vmax.f32 %v4853, 0.0
    %4872 = vst.msk [vmem:[#allocation4 + $0x8] sm:$0xff] %vm226, %v4870
    %4873 = vst.msk [vmem:[#allocation4 + $0x10] sm:$0xff] %vm226, 0.0
    %4874 = vst.msk [vmem:[#allocation4 + $0x38] sm:$0xff] %vm226, %v4871
    %4875 = vst.msk [vmem:[#allocation4 + $0x40] sm:$0xff] %vm226, 0.0
    %v4876 = vld [vmem:[%s67] sm:$0xf]
    %v4877 = vld [vmem:[%s67 + $0x4] sm:$0xf]
    %v4878 = vld [vmem:[%s67 + $0x8] sm:$0xf]
    %v4879 = vld [vmem:[%s67 + $0xc] sm:$0xf]
    %v4880 = vld [vmem:[%s69] sm:$0x1]
    %v4881 = vld [vmem:[#allocation4 + $0x8] sm:$0xff]
    %v4882 = vld [vmem:[#allocation4 + $0x10] sm:$0xff]
    %v4883 = vld [vmem:[#allocation4 + $0x18] sm:$0xff]
    %v4884 = vld [vmem:[#allocation4 + $0x20] sm:$0xff]
    %v4885 = vld [vmem:[#allocation4 + $0x28] sm:$0xff]
    %v4886 = vld [vmem:[#allocation4 + $0x30] sm:$0xff]
    %v4887 = vld [vmem:[#allocation4 + $0x38] sm:$0xff]
    %v4888 = vld [vmem:[#allocation4 + $0x40] sm:$0xff]
    %v4889 = vld [vmem:[#allocation4 + $0x48] sm:$0xff]
    %v4890 = vld [vmem:[#allocation4 + $0x50] sm:$0xff]
    %v4891 = vld [vmem:[#allocation4 + $0x58] sm:$0xff]
    %v4892 = vld [vmem:[#allocation4 + $0x60] sm:$0xff]
    %v4893 = vpack.c.bf16 %v4882, %v4881
    %v4894 = vpack.c.bf16 %v4884, %v4883
    %v4895 = vpack.c.bf16 %v4886, %v4885
    %v4896 = vpack.c.bf16 %v4888, %v4887
    %v4897 = vpack.c.bf16 %v4890, %v4889
    %v4898 = vpack.c.bf16 %v4892, %v4891
    %v4900 = vlaneseq
    %v4901 = vshrl.u32 %v4900, 7
    %v4902 = vsub.s32 0, %v4901
    %v4903 = vrot.slane %v4880, %v4902
    %v4909 = vunpack.c.l.b16 %v4876
    %v4910 = vunpack.c.l.b16 %v4877
    %v4911 = vunpack.c.l.b16 %v4878
    %v4912 = vunpack.c.l.b16 %v4879
    %v4913 = vpack.c.b16 %v4910, %v4909
    %v4914 = vpack.c.b16 %v4912, %v4911
    %v4918 = vsel %vm226, %v4893, 0
    %v4921 = vsel %vm226, %v4894, 0
    %v4924 = vsel %vm226, %v4895, 0
    %v4927 = vsel %vm226, %v4896, 0
    %v4930 = vsel %vm226, %v4897, 0
    %v4933 = vsel %vm226, %v4898, 0
    %4935 = vmatprep.subr.bf16.mxu0 0
    %4936 = vmatpush1.bf16.msra.mxu0 %v4913
    %4937 = vmatprep.subr.bf16.mxu0 0
    %4938 = vmatpush1.bf16.msra.mxu0 %v4914
    %4939 = vmatprep.subr.bf16.mxu0 0
    %4940 = vmatpush1.bf16.msra.mxu0 0
    %4941 = vmatprep.subr.bf16.mxu0 0
    %4942 = vmatpush1.bf16.msra.mxu0 0
    %4943 = vmatprep.subr.bf16.mxu0 0
    %4944 = vmatpush1.bf16.msra.mxu0 0
    %4945 = vmatprep.subr.bf16.mxu0 0
    %4946 = vmatpush1.bf16.msra.mxu0 0
    %4947 = vmatprep.subr.bf16.mxu0 0
    %4948 = vmatpush1.bf16.msra.mxu0 0
    %4949 = vmatprep.subr.bf16.mxu0 0
    %4950 = vmatpush1.bf16.msra.mxu0 0
    %4951 = vmatprep.subr.bf16.mxu0 0
    %4952 = vmatpush1.bf16.msra.mxu0 0
    %4953 = vmatprep.subr.bf16.mxu0 0
    %4954 = vmatpush1.bf16.msra.mxu0 0
    %4955 = vmatprep.subr.bf16.mxu0 0
    %4956 = vmatpush1.bf16.msra.mxu0 0
    %4957 = vmatprep.subr.bf16.mxu0 0
    %4958 = vmatpush1.bf16.msra.mxu0 0
    %4959 = vmatprep.subr.bf16.mxu0 0
    %4960 = vmatpush1.bf16.msra.mxu0 0
    %4961 = vmatprep.subr.bf16.mxu0 0
    %4962 = vmatpush1.bf16.msra.mxu0 0
    %4963 = vmatprep.subr.bf16.mxu0 0
    %4964 = vmatpush1.bf16.msra.mxu0 0
    %4965 = vmatprep.subr.bf16.mxu0 0
    %4966 = vmatpush1.bf16.msra.mxu0 0
    %4967 = vmatprep.mubr.bf16.mxu0 0
    %4968 = vmatmul.mubr.bf16.gmra.mrb[0].mxu0 %v4918
    %v4969 = vpop.f32.mrb[0].mxu0
    %v4970 = vadd.f32 %v4903, %v4969
    %v4971 = vpop.f32.mrb[0].mxu0
    %v4972 = vpop.f32.mrb[0].mxu0
    %v4973 = vpop.f32.mrb[0].mxu0
    %4974 = vmatprep.mubr.bf16.mxu0 0
    %4975 = vmatmul.mubr.bf16.gmra.mrb[0].mxu0 %v4921
    %v4976 = vpop.f32.mrb[0].mxu0
    %v4977 = vpop.f32.mrb[0].mxu0
    %v4978 = vpop.f32.mrb[0].mxu0
    %v4979 = vpop.f32.mrb[0].mxu0
    %4980 = vmatprep.mubr.bf16.mxu0 0
    %4981 = vmatmul.mubr.bf16.gmra.mrb[0].mxu0 %v4924
    %v4982 = vpop.f32.mrb[0].mxu0
    %v4983 = vpop.f32.mrb[0].mxu0
    %v4984 = vpop.f32.mrb[0].mxu0
    %v4985 = vpop.f32.mrb[0].mxu0
    %4986 = vmatprep.mubr.bf16.mxu0 0
    %4987 = vmatmul.mubr.bf16.gmra.mrb[0].mxu0 %v4927
    %v4988 = vpop.f32.mrb[0].mxu0
    %v4989 = vadd.f32 %v4903, %v4988
    %v4990 = vpop.f32.mrb[0].mxu0
    %v4991 = vpop.f32.mrb[0].mxu0
    %v4992 = vpop.f32.mrb[0].mxu0
    %4993 = vmatprep.mubr.bf16.mxu0 0
    %4994 = vmatmul.mubr.bf16.gmra.mrb[0].mxu0 %v4930
    %v4995 = vpop.f32.mrb[0].mxu0
    %v4996 = vpop.f32.mrb[0].mxu0
    %v4997 = vpop.f32.mrb[0].mxu0
    %v4998 = vpop.f32.mrb[0].mxu0
    %4999 = vmatprep.mubr.bf16.mxu0 0
    %5000 = vmatmul.mubr.bf16.gmra.mrb[0].mxu0 %v4933
    %v5001 = vpop.f32.mrb[0].mxu0
    %v5002 = vpop.f32.mrb[0].mxu0
    %v5003 = vpop.f32.mrb[0].mxu0
    %v5004 = vpop.f32.mrb[0].mxu0
    %5005 = vdwg.mxu0
    %v5006 = vld [vmem:[#allocation3 + $0x8] sm:$0xff]
    %v5007 = vld [vmem:[#allocation3 + $0x38] sm:$0xff]
    %v5008 = vadd.f32 %v4970, %v5006
    %v5009 = vadd.f32 %v4989, %v5007
    %5010 = vst.msk [vmem:[#allocation2 + $0x8] sm:$0xff] %vm226, %v5008
    %5011 = vst.msk [vmem:[#allocation2 + $0x10] sm:$0xff] %vm226, 0.0
    %5012 = vst.msk [vmem:[#allocation2 + $0x38] sm:$0xff] %vm226, %v5009
    %5013 = vst.msk [vmem:[#allocation2 + $0x40] sm:$0xff] %vm226, 0.0
    %v5014 = vlaneseq
    %v5015 = vshrl.u32 %v5014, 7
    %v5016 = vadd.s32 %v5015, 8
    %v5017 = vmul.u32 %v3464, 2
    %vm5018 = vcmp.ge.s32.totalorder %v5015, %v5017
    %vm5019 = vcmp.ge.s32.totalorder %v5016, %v5017
    %v5020 = vadd.s32 %v3464, 1
    %v5021 = vmul.u32 %v5020, 2
    %vm5022 = vcmp.lt.s32.totalorder %v5015, %v5021
    %vm5023 = vcmp.lt.s32.totalorder %v5016, %v5021
    %vm5024 = vmand %vm5018, %vm5022
    %vm5025 = vmand %vm5019, %vm5023
    %v5026 = vsel %vm5024, 1, 0
    %v5027 = vsel %vm5025, 1, 0
    %v5028 = vcvt.s32.f32 %v5026
    %v5029 = vcvt.s32.f32 %v5027
    %v5030 = vld [vmem:[#allocation2 + $0x8] sm:$0xff]
    %vm5031 = vcmask 64512
    %v5033 = vsel %vm5031, %v5028, 0
    %v5036 = vsel %vm5031, %v5029, 0
    %5038 = vmatprep.subr.mxu0 0.0
    %5039 = vmatpush1.msra.mxu0 %v5030
    %5040 = vmatprep.subr.mxu0 0.0
    %5041 = vmatpush1.msra.mxu0 0.0
    %5042 = vmatprep.subr.mxu0 0.0
    %5043 = vmatpush1.msra.mxu0 0.0
    %5044 = vmatprep.subr.mxu0 0.0
    %5045 = vmatpush1.msra.mxu0 0.0
    %5046 = vmatprep.subr.mxu0 0.0
    %5047 = vmatpush1.msra.mxu0 0.0
    %5048 = vmatprep.subr.mxu0 0.0
    %5049 = vmatpush1.msra.mxu0 0.0
    %5050 = vmatprep.subr.mxu0 0.0
    %5051 = vmatpush1.msra.mxu0 0.0
    %5052 = vmatprep.subr.mxu0 0.0
    %5053 = vmatpush1.msra.mxu0 0.0
    %5054 = vmatprep.subr.mxu0 0.0
    %5055 = vmatpush1.msra.mxu0 0.0
    %5056 = vmatprep.subr.mxu0 0.0
    %5057 = vmatpush1.msra.mxu0 0.0
    %5058 = vmatprep.subr.mxu0 0.0
    %5059 = vmatpush1.msra.mxu0 0.0
    %5060 = vmatprep.subr.mxu0 0.0
    %5061 = vmatpush1.msra.mxu0 0.0
    %5062 = vmatprep.subr.mxu0 0.0
    %5063 = vmatpush1.msra.mxu0 0.0
    %5064 = vmatprep.subr.mxu0 0.0
    %5065 = vmatpush1.msra.mxu0 0.0
    %5066 = vmatprep.subr.mxu0 0.0
    %5067 = vmatpush1.msra.mxu0 0.0
    %5068 = vmatprep.subr.mxu0 0.0
    %5069 = vmatpush1.msra.mxu0 0.0
    %5070 = vmatprep.subr.mxu0 0.0
    %5071 = vmatpush1.msra.mxu0 0.0
    %5072 = vmatprep.subr.mxu0 0.0
    %5073 = vmatpush1.msra.mxu0 0.0
    %5074 = vmatprep.subr.mxu0 0.0
    %5075 = vmatpush1.msra.mxu0 0.0
    %5076 = vmatprep.subr.mxu0 0.0
    %5077 = vmatpush1.msra.mxu0 0.0
    %5078 = vmatprep.subr.mxu0 0.0
    %5079 = vmatpush1.msra.mxu0 0.0
    %5080 = vmatprep.subr.mxu0 0.0
    %5081 = vmatpush1.msra.mxu0 0.0
    %5082 = vmatprep.subr.mxu0 0.0
    %5083 = vmatpush1.msra.mxu0 0.0
    %5084 = vmatprep.subr.mxu0 0.0
    %5085 = vmatpush1.msra.mxu0 0.0
    %5086 = vmatprep.subr.mxu0 0.0
    %5087 = vmatpush1.msra.mxu0 0.0
    %5088 = vmatprep.subr.mxu0 0.0
    %5089 = vmatpush1.msra.mxu0 0.0
    %5090 = vmatprep.subr.mxu0 0.0
    %5091 = vmatpush1.msra.mxu0 0.0
    %5092 = vmatprep.subr.mxu0 0.0
    %5093 = vmatpush1.msra.mxu0 0.0
    %5094 = vmatprep.subr.mxu0 0.0
    %5095 = vmatpush1.msra.mxu0 0.0
    %5096 = vmatprep.subr.mxu0 0.0
    %5097 = vmatpush1.msra.mxu0 0.0
    %5098 = vmatprep.subr.mxu0 0.0
    %5099 = vmatpush1.msra.mxu0 0.0
    %5100 = vmatprep.subr.mxu0 0.0
    %5101 = vmatpush1.msra.mxu0 0.0
    %5102 = vmatprep.mubr.f32.mxu0 0.0
    %5103 = vmatmul.mubr.f32.gmra.mrb[0].mxu0 %v5033
    %v5104 = vpop.f32.mrb[0].mxu0
    %v5105 = vadd.f32 0.0, %v5104
    %v5106 = vpop.f32.mrb[0].mxu0
    %5107 = vmatprep.mubr.f32.mxu0 0.0
    %5108 = vmatmul.mubr.f32.gmra.mrb[0].mxu0 %v5036
    %v5109 = vpop.f32.mrb[0].mxu0
    %v5110 = vadd.f32 0.0, %v5109
    %v5111 = vpop.f32.mrb[0].mxu0
    %5112 = vdwg.mxu0
    %5113 = vst.msk [vmem:[#allocation3 + $0x8] sm:$0xff] %vm226, %v5105
    %5114 = vst.msk [vmem:[#allocation3 + $0x10] sm:$0xff] %vm226, %v5110
    %5115 = vst.msk [vmem:[#allocation3 + $0x18] sm:$0xff] %vm226, 0.0
    %v5116 = vld [vmem:[#allocation2 + $0x38] sm:$0xff]
    %5117 = vmatprep.subr.mxu0 0.0
    %5118 = vmatpush1.msra.mxu0 %v5116
    %5119 = vmatprep.subr.mxu0 0.0
    %5120 = vmatpush1.msra.mxu0 0.0
    %5121 = vmatprep.subr.mxu0 0.0
    %5122 = vmatpush1.msra.mxu0 0.0
    %5123 = vmatprep.subr.mxu0 0.0
    %5124 = vmatpush1.msra.mxu0 0.0
    %5125 = vmatprep.subr.mxu0 0.0
    %5126 = vmatpush1.msra.mxu0 0.0
    %5127 = vmatprep.subr.mxu0 0.0
    %5128 = vmatpush1.msra.mxu0 0.0
    %5129 = vmatprep.subr.mxu0 0.0
    %5130 = vmatpush1.msra.mxu0 0.0
    %5131 = vmatprep.subr.mxu0 0.0
    %5132 = vmatpush1.msra.mxu0 0.0
    %5133 = vmatprep.subr.mxu0 0.0
    %5134 = vmatpush1.msra.mxu0 0.0
    %5135 = vmatprep.subr.mxu0 0.0
    %5136 = vmatpush1.msra.mxu0 0.0
    %5137 = vmatprep.subr.mxu0 0.0
    %5138 = vmatpush1.msra.mxu0 0.0
    %5139 = vmatprep.subr.mxu0 0.0
    %5140 = vmatpush1.msra.mxu0 0.0
    %5141 = vmatprep.subr.mxu0 0.0
    %5142 = vmatpush1.msra.mxu0 0.0
    %5143 = vmatprep.subr.mxu0 0.0
    %5144 = vmatpush1.msra.mxu0 0.0
    %5145 = vmatprep.subr.mxu0 0.0
    %5146 = vmatpush1.msra.mxu0 0.0
    %5147 = vmatprep.subr.mxu0 0.0
    %5148 = vmatpush1.msra.mxu0 0.0
    %5149 = vmatprep.subr.mxu0 0.0
    %5150 = vmatpush1.msra.mxu0 0.0
    %5151 = vmatprep.subr.mxu0 0.0
    %5152 = vmatpush1.msra.mxu0 0.0
    %5153 = vmatprep.subr.mxu0 0.0
    %5154 = vmatpush1.msra.mxu0 0.0
    %5155 = vmatprep.subr.mxu0 0.0
    %5156 = vmatpush1.msra.mxu0 0.0
    %5157 = vmatprep.subr.mxu0 0.0
    %5158 = vmatpush1.msra.mxu0 0.0
    %5159 = vmatprep.subr.mxu0 0.0
    %5160 = vmatpush1.msra.mxu0 0.0
    %5161 = vmatprep.subr.mxu0 0.0
    %5162 = vmatpush1.msra.mxu0 0.0
    %5163 = vmatprep.subr.mxu0 0.0
    %5164 = vmatpush1.msra.mxu0 0.0
    %5165 = vmatprep.subr.mxu0 0.0
    %5166 = vmatpush1.msra.mxu0 0.0
    %5167 = vmatprep.subr.mxu0 0.0
    %5168 = vmatpush1.msra.mxu0 0.0
    %5169 = vmatprep.subr.mxu0 0.0
    %5170 = vmatpush1.msra.mxu0 0.0
    %5171 = vmatprep.subr.mxu0 0.0
    %5172 = vmatpush1.msra.mxu0 0.0
    %5173 = vmatprep.subr.mxu0 0.0
    %5174 = vmatpush1.msra.mxu0 0.0
    %5175 = vmatprep.subr.mxu0 0.0
    %5176 = vmatpush1.msra.mxu0 0.0
    %5177 = vmatprep.subr.mxu0 0.0
    %5178 = vmatpush1.msra.mxu0 0.0
    %5179 = vmatprep.subr.mxu0 0.0
    %5180 = vmatpush1.msra.mxu0 0.0
    %5181 = vmatprep.mubr.f32.mxu0 0.0
    %5182 = vmatmul.mubr.f32.gmra.mrb[0].mxu0 %v5033
    %v5183 = vpop.f32.mrb[0].mxu0
    %v5184 = vadd.f32 0.0, %v5183
    %v5185 = vpop.f32.mrb[0].mxu0
    %5186 = vmatprep.mubr.f32.mxu0 0.0
    %5187 = vmatmul.mubr.f32.gmra.mrb[0].mxu0 %v5036
    %v5188 = vpop.f32.mrb[0].mxu0
    %v5189 = vadd.f32 0.0, %v5188
    %v5190 = vpop.f32.mrb[0].mxu0
    %5191 = vdwg.mxu0
    %5192 = vst.msk [vmem:[#allocation3 + $0x38] sm:$0xff] %vm226, %v5184
    %5193 = vst.msk [vmem:[#allocation3 + $0x40] sm:$0xff] %vm226, %v5189
    %5194 = vst.msk [vmem:[#allocation3 + $0x48] sm:$0xff] %vm226, 0.0
    %v5195 = vld [vmem:[%s71] sm:$0xf]
    %v5196 = vld [vmem:[%s71 + $0x4] sm:$0xf]
    %v5197 = vld [vmem:[%s71 + $0x8] sm:$0xf]
    %v5198 = vld [vmem:[%s71 + $0xc] sm:$0xf]
    %v5199 = vld [vmem:[%s71 + $0x10] sm:$0xf]
    %v5200 = vld [vmem:[%s71 + $0x14] sm:$0xf]
    %v5201 = vld [vmem:[%s71 + $0x18] sm:$0xf]
    %v5202 = vld [vmem:[%s71 + $0x1c] sm:$0xf]
    %v5203 = vld [vmem:[%s71 + $0x20] sm:$0xf]
    %v5204 = vld [vmem:[%s71 + $0x24] sm:$0xf]
    %v5205 = vld [vmem:[%s71 + $0x28] sm:$0xf]
    %v5206 = vld [vmem:[%s71 + $0x2c] sm:$0xf]
    %v5207 = vld [vmem:[%s73] sm:$0x1]
    %v5208 = vld [vmem:[#allocation3 + $0x7] sm:$0xff]
    %v5209 = vld [vmem:[#allocation3 + $0xf] sm:$0xff]
    %v5210 = vld [vmem:[#allocation3 + $0x17] sm:$0xff]
    %v5211 = vld [vmem:[#allocation3 + $0x1f] sm:$0xff]
    %v5212 = vld [vmem:[#allocation3 + $0x27] sm:$0xff]
    %v5213 = vld [vmem:[#allocation3 + $0x2f] sm:$0xff]
    %v5214 = vld [vmem:[#allocation3 + $0x37] sm:$0xff]
    %v5215 = vld [vmem:[#allocation3 + $0x3f] sm:$0xff]
    %v5216 = vld [vmem:[#allocation3 + $0x47] sm:$0xff]
    %v5217 = vld [vmem:[#allocation3 + $0x4f] sm:$0xff]
    %v5218 = vld [vmem:[#allocation3 + $0x57] sm:$0xff]
    %v5219 = vld [vmem:[#allocation3 + $0x5f] sm:$0xff]
    %v5220 = vld [vmem:[#allocation3 + $0x8] sm:$0xff]
    %v5221 = vld [vmem:[#allocation3 + $0x10] sm:$0xff]
    %v5222 = vld [vmem:[#allocation3 + $0x18] sm:$0xff]
    %v5223 = vld [vmem:[#allocation3 + $0x20] sm:$0xff]
    %v5224 = vld [vmem:[#allocation3 + $0x28] sm:$0xff]
    %v5225 = vld [vmem:[#allocation3 + $0x30] sm:$0xff]
    %v5226 = vld [vmem:[#allocation3 + $0x38] sm:$0xff]
    %v5227 = vld [vmem:[#allocation3 + $0x40] sm:$0xff]
    %v5228 = vld [vmem:[#allocation3 + $0x48] sm:$0xff]
    %v5229 = vld [vmem:[#allocation3 + $0x50] sm:$0xff]
    %v5230 = vld [vmem:[#allocation3 + $0x58] sm:$0xff]
    %v5231 = vld [vmem:[#allocation3 + $0x60] sm:$0xff]
    %v5232 = vld [vmem:[#allocation3 + $0x9] sm:$0xff]
    %v5233 = vld [vmem:[#allocation3 + $0x11] sm:$0xff]
    %v5234 = vld [vmem:[#allocation3 + $0x19] sm:$0xff]
    %v5235 = vld [vmem:[#allocation3 + $0x21] sm:$0xff]
    %v5236 = vld [vmem:[#allocation3 + $0x29] sm:$0xff]
    %v5237 = vld [vmem:[#allocation3 + $0x31] sm:$0xff]
    %v5238 = vld [vmem:[#allocation3 + $0x39] sm:$0xff]
    %v5239 = vld [vmem:[#allocation3 + $0x41] sm:$0xff]
    %v5240 = vld [vmem:[#allocation3 + $0x49] sm:$0xff]
    %v5241 = vld [vmem:[#allocation3 + $0x51] sm:$0xff]
    %v5242 = vld [vmem:[#allocation3 + $0x59] sm:$0xff]
    %v5243 = vld [vmem:[#allocation3 + $0x61] sm:$0xff]
    %5256 = vrot.lane.b32.xlu0 %v5220, 32
    %v5257 = vpop.permute.xlu0 %5256
    %5258 = vrot.lane.b32.xlu0 %v5221, 32
    %v5259 = vpop.permute.xlu0 %5258
    %5260 = vrot.lane.b32.xlu0 %v5222, 32
    %v5261 = vpop.permute.xlu0 %5260
    %5262 = vrot.lane.b32.xlu0 %v5223, 32
    %v5263 = vpop.permute.xlu0 %5262
    %5264 = vrot.lane.b32.xlu0 %v5224, 32
    %v5265 = vpop.permute.xlu0 %5264
    %5266 = vrot.lane.b32.xlu0 %v5225, 32
    %v5267 = vpop.permute.xlu0 %5266
    %5268 = vrot.lane.b32.xlu0 %v5226, 32
    %v5269 = vpop.permute.xlu0 %5268
    %5270 = vrot.lane.b32.xlu0 %v5227, 32
    %v5271 = vpop.permute.xlu0 %5270
    %5272 = vrot.lane.b32.xlu0 %v5228, 32
    %v5273 = vpop.permute.xlu0 %5272
    %5274 = vrot.lane.b32.xlu0 %v5229, 32
    %v5275 = vpop.permute.xlu0 %5274
    %5276 = vrot.lane.b32.xlu0 %v5230, 32
    %v5277 = vpop.permute.xlu0 %5276
    %5278 = vrot.lane.b32.xlu0 %v5231, 32
    %v5279 = vpop.permute.xlu0 %5278
    %5304 = vrot.lane.b32.xlu0 %v5232, 64
    %v5305 = vpop.permute.xlu0 %5304
    %5306 = vrot.lane.b32.xlu0 %v5233, 64
    %v5307 = vpop.permute.xlu0 %5306
    %5308 = vrot.lane.b32.xlu0 %v5234, 64
    %v5309 = vpop.permute.xlu0 %5308
    %5310 = vrot.lane.b32.xlu0 %v5235, 64
    %v5311 = vpop.permute.xlu0 %5310
    %5312 = vrot.lane.b32.xlu0 %v5236, 64
    %v5313 = vpop.permute.xlu0 %5312
    %5314 = vrot.lane.b32.xlu0 %v5237, 64
    %v5315 = vpop.permute.xlu0 %5314
    %5316 = vrot.lane.b32.xlu0 %v5238, 64
    %v5317 = vpop.permute.xlu0 %5316
    %5318 = vrot.lane.b32.xlu0 %v5239, 64
    %v5319 = vpop.permute.xlu0 %5318
    %5320 = vrot.lane.b32.xlu0 %v5240, 64
    %v5321 = vpop.permute.xlu0 %5320
    %5322 = vrot.lane.b32.xlu0 %v5241, 64
    %v5323 = vpop.permute.xlu0 %5322
    %5324 = vrot.lane.b32.xlu0 %v5242, 64
    %v5325 = vpop.permute.xlu0 %5324
    %5326 = vrot.lane.b32.xlu0 %v5243, 64
    %v5327 = vpop.permute.xlu0 %5326
    %v5340 = vsel %vm226, %v5208, %v5257
    %v5341 = vsel %vm226, %v5209, %v5259
    %v5342 = vsel %vm226, %v5210, %v5261
    %v5343 = vsel %vm226, %v5211, %v5263
    %v5344 = vsel %vm226, %v5212, %v5265
    %v5345 = vsel %vm226, %v5213, %v5267
    %v5346 = vsel %vm226, %v5214, %v5269
    %v5347 = vsel %vm226, %v5215, %v5271
    %v5348 = vsel %vm226, %v5216, %v5273
    %v5349 = vsel %vm226, %v5217, %v5275
    %v5350 = vsel %vm226, %v5218, %v5277
    %v5351 = vsel %vm226, %v5219, %v5279
    %v5352 = vsel %vm709, %v5340, %v5305
    %v5353 = vsel %vm709, %v5341, %v5307
    %v5354 = vsel %vm709, %v5342, %v5309
    %v5355 = vsel %vm709, %v5343, %v5311
    %v5356 = vsel %vm709, %v5344, %v5313
    %v5357 = vsel %vm709, %v5345, %v5315
    %v5358 = vsel %vm709, %v5346, %v5317
    %v5359 = vsel %vm709, %v5347, %v5319
    %v5360 = vsel %vm709, %v5348, %v5321
    %v5361 = vsel %vm709, %v5349, %v5323
    %v5362 = vsel %vm709, %v5350, %v5325
    %v5363 = vsel %vm709, %v5351, %v5327
    %v5364 = vpack.c.bf16 %v5353, %v5352
    %v5365 = vpack.c.bf16 %v5355, %v5354
    %v5366 = vpack.c.bf16 %v5357, %v5356
    %v5367 = vpack.c.bf16 %v5359, %v5358
    %v5368 = vpack.c.bf16 %v5361, %v5360
    %v5369 = vpack.c.bf16 %v5363, %v5362
    %v5371 = vlaneseq
    %v5372 = vshrl.u32 %v5371, 7
    %v5373 = vsub.s32 0, %v5372
    %v5374 = vrot.slane %v5207, %v5373
    %v5388 = vunpack.c.l.b16 %v5195
    %v5389 = vunpack.c.l.b16 %v5196
    %v5390 = vunpack.c.l.b16 %v5197
    %v5391 = vunpack.c.l.b16 %v5198
    %v5392 = vunpack.c.l.b16 %v5199
    %v5393 = vunpack.c.l.b16 %v5200
    %v5394 = vunpack.c.l.b16 %v5201
    %v5395 = vunpack.c.l.b16 %v5202
    %v5396 = vunpack.c.l.b16 %v5203
    %v5397 = vunpack.c.l.b16 %v5204
    %v5398 = vunpack.c.l.b16 %v5205
    %v5399 = vunpack.c.l.b16 %v5206
    %v5400 = vpack.c.b16 %v5389, %v5388
    %v5401 = vpack.c.b16 %v5391, %v5390
    %v5402 = vpack.c.b16 %v5393, %v5392
    %v5403 = vpack.c.b16 %v5395, %v5394
    %v5404 = vpack.c.b16 %v5397, %v5396
    %v5405 = vpack.c.b16 %v5399, %v5398
    %v5413 = vsel %vm716, %v5364, 0
    %v5416 = vsel %vm716, %v5365, 0
    %v5419 = vsel %vm716, %v5366, 0
    %v5422 = vsel %vm716, %v5367, 0
    %v5425 = vsel %vm716, %v5368, 0
    %v5428 = vsel %vm716, %v5369, 0
    %5430 = vmatprep.subr.bf16.mxu0 0
    %5431 = vmatpush1.bf16.msra.mxu0 %v5400
    %5432 = vmatprep.subr.bf16.mxu0 0
    %5433 = vmatpush1.bf16.msra.mxu0 %v5401
    %5434 = vmatprep.subr.bf16.mxu0 0
    %5435 = vmatpush1.bf16.msra.mxu0 %v5402
    %5436 = vmatprep.subr.bf16.mxu0 0
    %5437 = vmatpush1.bf16.msra.mxu0 %v5403
    %5438 = vmatprep.subr.bf16.mxu0 0
    %5439 = vmatpush1.bf16.msra.mxu0 %v5404
    %5440 = vmatprep.subr.bf16.mxu0 0
    %5441 = vmatpush1.bf16.msra.mxu0 %v5405
    %5442 = vmatprep.subr.bf16.mxu0 0
    %5443 = vmatpush1.bf16.msra.mxu0 0
    %5444 = vmatprep.subr.bf16.mxu0 0
    %5445 = vmatpush1.bf16.msra.mxu0 0
    %5446 = vmatprep.subr.bf16.mxu0 0
    %5447 = vmatpush1.bf16.msra.mxu0 0
    %5448 = vmatprep.subr.bf16.mxu0 0
    %5449 = vmatpush1.bf16.msra.mxu0 0
    %5450 = vmatprep.subr.bf16.mxu0 0
    %5451 = vmatpush1.bf16.msra.mxu0 0
    %5452 = vmatprep.subr.bf16.mxu0 0
    %5453 = vmatpush1.bf16.msra.mxu0 0
    %5454 = vmatprep.subr.bf16.mxu0 0
    %5455 = vmatpush1.bf16.msra.mxu0 0
    %5456 = vmatprep.subr.bf16.mxu0 0
    %5457 = vmatpush1.bf16.msra.mxu0 0
    %5458 = vmatprep.subr.bf16.mxu0 0
    %5459 = vmatpush1.bf16.msra.mxu0 0
    %5460 = vmatprep.subr.bf16.mxu0 0
    %5461 = vmatpush1.bf16.msra.mxu0 0
    %5462 = vmatprep.mubr.bf16.mxu0 0
    %5463 = vmatmul.mubr.bf16.gmra.mrb[0].mxu0 %v5413
    %v5464 = vpop.f32.mrb[0].mxu0
    %v5465 = vadd.f32 %v5374, %v5464
    %v5466 = vpop.f32.mrb[0].mxu0
    %v5467 = vpop.f32.mrb[0].mxu0
    %v5468 = vadd.f32 %v5374, %v5467
    %v5469 = vpop.f32.mrb[0].mxu0
    %5470 = vmatprep.mubr.bf16.mxu0 0
    %5471 = vmatmul.mubr.bf16.gmra.mrb[0].mxu0 %v5416
    %v5472 = vpop.f32.mrb[0].mxu0
    %v5473 = vpop.f32.mrb[0].mxu0
    %v5474 = vpop.f32.mrb[0].mxu0
    %v5475 = vpop.f32.mrb[0].mxu0
    %5476 = vmatprep.mubr.bf16.mxu0 0
    %5477 = vmatmul.mubr.bf16.gmra.mrb[0].mxu0 %v5419
    %v5478 = vpop.f32.mrb[0].mxu0
    %v5479 = vpop.f32.mrb[0].mxu0
    %v5480 = vpop.f32.mrb[0].mxu0
    %v5481 = vpop.f32.mrb[0].mxu0
    %5482 = vmatprep.mubr.bf16.mxu0 0
    %5483 = vmatmul.mubr.bf16.gmra.mrb[0].mxu0 %v5422
    %v5484 = vpop.f32.mrb[0].mxu0
    %v5485 = vadd.f32 %v5374, %v5484
    %v5486 = vpop.f32.mrb[0].mxu0
    %v5487 = vpop.f32.mrb[0].mxu0
    %v5488 = vadd.f32 %v5374, %v5487
    %v5489 = vpop.f32.mrb[0].mxu0
    %5490 = vmatprep.mubr.bf16.mxu0 0
    %5491 = vmatmul.mubr.bf16.gmra.mrb[0].mxu0 %v5425
    %v5492 = vpop.f32.mrb[0].mxu0
    %v5493 = vpop.f32.mrb[0].mxu0
    %v5494 = vpop.f32.mrb[0].mxu0
    %v5495 = vpop.f32.mrb[0].mxu0
    %5496 = vmatprep.mubr.bf16.mxu0 0
    %5497 = vmatmul.mubr.bf16.gmra.mrb[0].mxu0 %v5428
    %v5498 = vpop.f32.mrb[0].mxu0
    %v5499 = vpop.f32.mrb[0].mxu0
    %v5500 = vpop.f32.mrb[0].mxu0
    %v5501 = vpop.f32.mrb[0].mxu0
    %5502 = vdwg.mxu0
    %5503 = vst.msk [vmem:[#allocation4 + $0x8] sm:$0xff] %vm226, %v5465
    %5504 = vst.msk [vmem:[#allocation4 + $0x10] sm:$0xff] %vm226, %v5468
    %5505 = vst.msk [vmem:[#allocation4 + $0x18] sm:$0xff] %vm226, 0.0
    %5506 = vst.msk [vmem:[#allocation4 + $0x38] sm:$0xff] %vm226, %v5485
    %5507 = vst.msk [vmem:[#allocation4 + $0x40] sm:$0xff] %vm226, %v5488
    %5508 = vst.msk [vmem:[#allocation4 + $0x48] sm:$0xff] %vm226, 0.0
    %v5509 = vld [vmem:[%s75] sm:$0xf]
    %v5510 = vld [vmem:[%s75 + $0x4] sm:$0xf]
    %v5511 = vld [vmem:[%s75 + $0x8] sm:$0xf]
    %v5512 = vld [vmem:[%s75 + $0xc] sm:$0xf]
    %v5513 = vld [vmem:[%s75 + $0x10] sm:$0xf]
    %v5514 = vld [vmem:[%s75 + $0x14] sm:$0xf]
    %v5515 = vld [vmem:[%s75 + $0x18] sm:$0xf]
    %v5516 = vld [vmem:[%s75 + $0x1c] sm:$0xf]
    %v5517 = vld [vmem:[%s75 + $0x20] sm:$0xf]
    %v5518 = vld [vmem:[%s75 + $0x24] sm:$0xf]
    %v5519 = vld [vmem:[%s75 + $0x28] sm:$0xf]
    %v5520 = vld [vmem:[%s75 + $0x2c] sm:$0xf]
    %v5521 = vld [vmem:[%s77] sm:$0x1]
    %v5522 = vld [vmem:[#allocation4 + $0x5] sm:$0xff]
    %v5523 = vld [vmem:[#allocation4 + $0xd] sm:$0xff]
    %v5524 = vld [vmem:[#allocation4 + $0x15] sm:$0xff]
    %v5525 = vld [vmem:[#allocation4 + $0x1d] sm:$0xff]
    %v5526 = vld [vmem:[#allocation4 + $0x25] sm:$0xff]
    %v5527 = vld [vmem:[#allocation4 + $0x2d] sm:$0xff]
    %v5528 = vld [vmem:[#allocation4 + $0x35] sm:$0xff]
    %v5529 = vld [vmem:[#allocation4 + $0x3d] sm:$0xff]
    %v5530 = vld [vmem:[#allocation4 + $0x45] sm:$0xff]
    %v5531 = vld [vmem:[#allocation4 + $0x4d] sm:$0xff]
    %v5532 = vld [vmem:[#allocation4 + $0x55] sm:$0xff]
    %v5533 = vld [vmem:[#allocation4 + $0x5d] sm:$0xff]
    %v5534 = vld [vmem:[#allocation4 + $0x8] sm:$0xff]
    %v5535 = vld [vmem:[#allocation4 + $0x10] sm:$0xff]
    %v5536 = vld [vmem:[#allocation4 + $0x18] sm:$0xff]
    %v5537 = vld [vmem:[#allocation4 + $0x20] sm:$0xff]
    %v5538 = vld [vmem:[#allocation4 + $0x28] sm:$0xff]
    %v5539 = vld [vmem:[#allocation4 + $0x30] sm:$0xff]
    %v5540 = vld [vmem:[#allocation4 + $0x38] sm:$0xff]
    %v5541 = vld [vmem:[#allocation4 + $0x40] sm:$0xff]
    %v5542 = vld [vmem:[#allocation4 + $0x48] sm:$0xff]
    %v5543 = vld [vmem:[#allocation4 + $0x50] sm:$0xff]
    %v5544 = vld [vmem:[#allocation4 + $0x58] sm:$0xff]
    %v5545 = vld [vmem:[#allocation4 + $0x60] sm:$0xff]
    %v5546 = vld [vmem:[#allocation4 + $0xb] sm:$0xff]
    %v5547 = vld [vmem:[#allocation4 + $0x13] sm:$0xff]
    %v5548 = vld [vmem:[#allocation4 + $0x1b] sm:$0xff]
    %v5549 = vld [vmem:[#allocation4 + $0x23] sm:$0xff]
    %v5550 = vld [vmem:[#allocation4 + $0x2b] sm:$0xff]
    %v5551 = vld [vmem:[#allocation4 + $0x33] sm:$0xff]
    %v5552 = vld [vmem:[#allocation4 + $0x3b] sm:$0xff]
    %v5553 = vld [vmem:[#allocation4 + $0x43] sm:$0xff]
    %v5554 = vld [vmem:[#allocation4 + $0x4b] sm:$0xff]
    %v5555 = vld [vmem:[#allocation4 + $0x53] sm:$0xff]
    %v5556 = vld [vmem:[#allocation4 + $0x5b] sm:$0xff]
    %v5557 = vld [vmem:[#allocation4 + $0x63] sm:$0xff]
    %5570 = vrot.lane.b32.xlu0 %v5534, 32
    %v5571 = vpop.permute.xlu0 %5570
    %5572 = vrot.lane.b32.xlu0 %v5535, 32
    %v5573 = vpop.permute.xlu0 %5572
    %5574 = vrot.lane.b32.xlu0 %v5536, 32
    %v5575 = vpop.permute.xlu0 %5574
    %5576 = vrot.lane.b32.xlu0 %v5537, 32
    %v5577 = vpop.permute.xlu0 %5576
    %5578 = vrot.lane.b32.xlu0 %v5538, 32
    %v5579 = vpop.permute.xlu0 %5578
    %5580 = vrot.lane.b32.xlu0 %v5539, 32
    %v5581 = vpop.permute.xlu0 %5580
    %5582 = vrot.lane.b32.xlu0 %v5540, 32
    %v5583 = vpop.permute.xlu0 %5582
    %5584 = vrot.lane.b32.xlu0 %v5541, 32
    %v5585 = vpop.permute.xlu0 %5584
    %5586 = vrot.lane.b32.xlu0 %v5542, 32
    %v5587 = vpop.permute.xlu0 %5586
    %5588 = vrot.lane.b32.xlu0 %v5543, 32
    %v5589 = vpop.permute.xlu0 %5588
    %5590 = vrot.lane.b32.xlu0 %v5544, 32
    %v5591 = vpop.permute.xlu0 %5590
    %5592 = vrot.lane.b32.xlu0 %v5545, 32
    %v5593 = vpop.permute.xlu0 %5592
    %5618 = vrot.lane.b32.xlu0 %v5546, 64
    %v5619 = vpop.permute.xlu0 %5618
    %5620 = vrot.lane.b32.xlu0 %v5547, 64
    %v5621 = vpop.permute.xlu0 %5620
    %5622 = vrot.lane.b32.xlu0 %v5548, 64
    %v5623 = vpop.permute.xlu0 %5622
    %5624 = vrot.lane.b32.xlu0 %v5549, 64
    %v5625 = vpop.permute.xlu0 %5624
    %5626 = vrot.lane.b32.xlu0 %v5550, 64
    %v5627 = vpop.permute.xlu0 %5626
    %5628 = vrot.lane.b32.xlu0 %v5551, 64
    %v5629 = vpop.permute.xlu0 %5628
    %5630 = vrot.lane.b32.xlu0 %v5552, 64
    %v5631 = vpop.permute.xlu0 %5630
    %5632 = vrot.lane.b32.xlu0 %v5553, 64
    %v5633 = vpop.permute.xlu0 %5632
    %5634 = vrot.lane.b32.xlu0 %v5554, 64
    %v5635 = vpop.permute.xlu0 %5634
    %5636 = vrot.lane.b32.xlu0 %v5555, 64
    %v5637 = vpop.permute.xlu0 %5636
    %5638 = vrot.lane.b32.xlu0 %v5556, 64
    %v5639 = vpop.permute.xlu0 %5638
    %5640 = vrot.lane.b32.xlu0 %v5557, 64
    %v5641 = vpop.permute.xlu0 %5640
    %v5654 = vsel %vm226, %v5522, %v5571
    %v5655 = vsel %vm226, %v5523, %v5573
    %v5656 = vsel %vm226, %v5524, %v5575
    %v5657 = vsel %vm226, %v5525, %v5577
    %v5658 = vsel %vm226, %v5526, %v5579
    %v5659 = vsel %vm226, %v5527, %v5581
    %v5660 = vsel %vm226, %v5528, %v5583
    %v5661 = vsel %vm226, %v5529, %v5585
    %v5662 = vsel %vm226, %v5530, %v5587
    %v5663 = vsel %vm226, %v5531, %v5589
    %v5664 = vsel %vm226, %v5532, %v5591
    %v5665 = vsel %vm226, %v5533, %v5593
    %v5666 = vsel %vm709, %v5654, %v5619
    %v5667 = vsel %vm709, %v5655, %v5621
    %v5668 = vsel %vm709, %v5656, %v5623
    %v5669 = vsel %vm709, %v5657, %v5625
    %v5670 = vsel %vm709, %v5658, %v5627
    %v5671 = vsel %vm709, %v5659, %v5629
    %v5672 = vsel %vm709, %v5660, %v5631
    %v5673 = vsel %vm709, %v5661, %v5633
    %v5674 = vsel %vm709, %v5662, %v5635
    %v5675 = vsel %vm709, %v5663, %v5637
    %v5676 = vsel %vm709, %v5664, %v5639
    %v5677 = vsel %vm709, %v5665, %v5641
    %v5678 = vmax.f32 %v5666, 0.0
    %v5679 = vmax.f32 %v5667, 0.0
    %v5680 = vmax.f32 %v5668, 0.0
    %v5681 = vmax.f32 %v5669, 0.0
    %v5682 = vmax.f32 %v5670, 0.0
    %v5683 = vmax.f32 %v5671, 0.0
    %v5684 = vmax.f32 %v5672, 0.0
    %v5685 = vmax.f32 %v5673, 0.0
    %v5686 = vmax.f32 %v5674, 0.0
    %v5687 = vmax.f32 %v5675, 0.0
    %v5688 = vmax.f32 %v5676, 0.0
    %v5689 = vmax.f32 %v5677, 0.0
    %v5690 = vpack.c.bf16 %v5679, %v5678
    %v5691 = vpack.c.bf16 %v5681, %v5680
    %v5692 = vpack.c.bf16 %v5683, %v5682
    %v5693 = vpack.c.bf16 %v5685, %v5684
    %v5694 = vpack.c.bf16 %v5687, %v5686
    %v5695 = vpack.c.bf16 %v5689, %v5688
    %v5697 = vlaneseq
    %v5698 = vshrl.u32 %v5697, 7
    %v5699 = vsub.s32 0, %v5698
    %v5700 = vrot.slane %v5521, %v5699
    %v5714 = vunpack.c.l.b16 %v5509
    %v5715 = vunpack.c.l.b16 %v5510
    %v5716 = vunpack.c.l.b16 %v5511
    %v5717 = vunpack.c.l.b16 %v5512
    %v5718 = vunpack.c.l.b16 %v5513
    %v5719 = vunpack.c.l.b16 %v5514
    %v5720 = vunpack.c.l.b16 %v5515
    %v5721 = vunpack.c.l.b16 %v5516
    %v5722 = vunpack.c.l.b16 %v5517
    %v5723 = vunpack.c.l.b16 %v5518
    %v5724 = vunpack.c.l.b16 %v5519
    %v5725 = vunpack.c.l.b16 %v5520
    %v5726 = vpack.c.b16 %v5715, %v5714
    %v5727 = vpack.c.b16 %v5717, %v5716
    %v5728 = vpack.c.b16 %v5719, %v5718
    %v5729 = vpack.c.b16 %v5721, %v5720
    %v5730 = vpack.c.b16 %v5723, %v5722
    %v5731 = vpack.c.b16 %v5725, %v5724
    %v5739 = vsel %vm716, %v5690, 0
    %v5742 = vsel %vm716, %v5691, 0
    %v5745 = vsel %vm716, %v5692, 0
    %v5748 = vsel %vm716, %v5693, 0
    %v5751 = vsel %vm716, %v5694, 0
    %v5754 = vsel %vm716, %v5695, 0
    %5756 = vmatprep.subr.bf16.mxu0 0
    %5757 = vmatpush1.bf16.msra.mxu0 %v5726
    %5758 = vmatprep.subr.bf16.mxu0 0
    %5759 = vmatpush1.bf16.msra.mxu0 %v5727
    %5760 = vmatprep.subr.bf16.mxu0 0
    %5761 = vmatpush1.bf16.msra.mxu0 %v5728
    %5762 = vmatprep.subr.bf16.mxu0 0
    %5763 = vmatpush1.bf16.msra.mxu0 %v5729
    %5764 = vmatprep.subr.bf16.mxu0 0
    %5765 = vmatpush1.bf16.msra.mxu0 %v5730
    %5766 = vmatprep.subr.bf16.mxu0 0
    %5767 = vmatpush1.bf16.msra.mxu0 %v5731
    %5768 = vmatprep.subr.bf16.mxu0 0
    %5769 = vmatpush1.bf16.msra.mxu0 0
    %5770 = vmatprep.subr.bf16.mxu0 0
    %5771 = vmatpush1.bf16.msra.mxu0 0
    %5772 = vmatprep.subr.bf16.mxu0 0
    %5773 = vmatpush1.bf16.msra.mxu0 0
    %5774 = vmatprep.subr.bf16.mxu0 0
    %5775 = vmatpush1.bf16.msra.mxu0 0
    %5776 = vmatprep.subr.bf16.mxu0 0
    %5777 = vmatpush1.bf16.msra.mxu0 0
    %5778 = vmatprep.subr.bf16.mxu0 0
    %5779 = vmatpush1.bf16.msra.mxu0 0
    %5780 = vmatprep.subr.bf16.mxu0 0
    %5781 = vmatpush1.bf16.msra.mxu0 0
    %5782 = vmatprep.subr.bf16.mxu0 0
    %5783 = vmatpush1.bf16.msra.mxu0 0
    %5784 = vmatprep.subr.bf16.mxu0 0
    %5785 = vmatpush1.bf16.msra.mxu0 0
    %5786 = vmatprep.subr.bf16.mxu0 0
    %5787 = vmatpush1.bf16.msra.mxu0 0
    %5788 = vmatprep.mubr.bf16.mxu0 0
    %5789 = vmatmul.mubr.bf16.gmra.mrb[0].mxu0 %v5739
    %v5790 = vpop.f32.mrb[0].mxu0
    %v5791 = vadd.f32 %v5700, %v5790
    %v5792 = vpop.f32.mrb[0].mxu0
    %v5793 = vpop.f32.mrb[0].mxu0
    %v5794 = vadd.f32 %v5700, %v5793
    %v5795 = vpop.f32.mrb[0].mxu0
    %5796 = vmatprep.mubr.bf16.mxu0 0
    %5797 = vmatmul.mubr.bf16.gmra.mrb[0].mxu0 %v5742
    %v5798 = vpop.f32.mrb[0].mxu0
    %v5799 = vpop.f32.mrb[0].mxu0
    %v5800 = vpop.f32.mrb[0].mxu0
    %v5801 = vpop.f32.mrb[0].mxu0
    %5802 = vmatprep.mubr.bf16.mxu0 0
    %5803 = vmatmul.mubr.bf16.gmra.mrb[0].mxu0 %v5745
    %v5804 = vpop.f32.mrb[0].mxu0
    %v5805 = vpop.f32.mrb[0].mxu0
    %v5806 = vpop.f32.mrb[0].mxu0
    %v5807 = vpop.f32.mrb[0].mxu0
    %5808 = vmatprep.mubr.bf16.mxu0 0
    %5809 = vmatmul.mubr.bf16.gmra.mrb[0].mxu0 %v5748
    %v5810 = vpop.f32.mrb[0].mxu0
    %v5811 = vadd.f32 %v5700, %v5810
    %v5812 = vpop.f32.mrb[0].mxu0
    %v5813 = vpop.f32.mrb[0].mxu0
    %v5814 = vadd.f32 %v5700, %v5813
    %v5815 = vpop.f32.mrb[0].mxu0
    %5816 = vmatprep.mubr.bf16.mxu0 0
    %5817 = vmatmul.mubr.bf16.gmra.mrb[0].mxu0 %v5751
    %v5818 = vpop.f32.mrb[0].mxu0
    %v5819 = vpop.f32.mrb[0].mxu0
    %v5820 = vpop.f32.mrb[0].mxu0
    %v5821 = vpop.f32.mrb[0].mxu0
    %5822 = vmatprep.mubr.bf16.mxu0 0
    %5823 = vmatmul.mubr.bf16.gmra.mrb[0].mxu0 %v5754
    %v5824 = vpop.f32.mrb[0].mxu0
    %v5825 = vpop.f32.mrb[0].mxu0
    %v5826 = vpop.f32.mrb[0].mxu0
    %v5827 = vpop.f32.mrb[0].mxu0
    %5828 = vdwg.mxu0
    %v5829 = vmax.f32 %v5791, 0.0
    %v5830 = vmax.f32 %v5794, 0.0
    %v5831 = vmax.f32 %v5811, 0.0
    %v5832 = vmax.f32 %v5814, 0.0
    %5833 = vst.msk [vmem:[#allocation2 + $0x8] sm:$0xff] %vm226, %v5829
    %5834 = vst.msk [vmem:[#allocation2 + $0x10] sm:$0xff] %vm226, %v5830
    %5835 = vst.msk [vmem:[#allocation2 + $0x18] sm:$0xff] %vm226, 0.0
    %5836 = vst.msk [vmem:[#allocation2 + $0x38] sm:$0xff] %vm226, %v5831
    %5837 = vst.msk [vmem:[#allocation2 + $0x40] sm:$0xff] %vm226, %v5832
    %5838 = vst.msk [vmem:[#allocation2 + $0x48] sm:$0xff] %vm226, 0.0
    %v5839 = vld [vmem:[%s79] sm:$0xf]
    %v5840 = vld [vmem:[%s79 + $0x4] sm:$0xf]
    %v5841 = vld [vmem:[%s79 + $0x8] sm:$0xf]
    %v5842 = vld [vmem:[%s79 + $0xc] sm:$0xf]
    %v5843 = vld [vmem:[%s81] sm:$0x1]
    %v5844 = vld [vmem:[#allocation2 + $0x8] sm:$0xff]
    %v5845 = vld [vmem:[#allocation2 + $0x10] sm:$0xff]
    %v5846 = vld [vmem:[#allocation2 + $0x18] sm:$0xff]
    %v5847 = vld [vmem:[#allocation2 + $0x20] sm:$0xff]
    %v5848 = vld [vmem:[#allocation2 + $0x28] sm:$0xff]
    %v5849 = vld [vmem:[#allocation2 + $0x30] sm:$0xff]
    %v5850 = vld [vmem:[#allocation2 + $0x38] sm:$0xff]
    %v5851 = vld [vmem:[#allocation2 + $0x40] sm:$0xff]
    %v5852 = vld [vmem:[#allocation2 + $0x48] sm:$0xff]
    %v5853 = vld [vmem:[#allocation2 + $0x50] sm:$0xff]
    %v5854 = vld [vmem:[#allocation2 + $0x58] sm:$0xff]
    %v5855 = vld [vmem:[#allocation2 + $0x60] sm:$0xff]
    %v5856 = vpack.c.bf16 %v5845, %v5844
    %v5857 = vpack.c.bf16 %v5847, %v5846
    %v5858 = vpack.c.bf16 %v5849, %v5848
    %v5859 = vpack.c.bf16 %v5851, %v5850
    %v5860 = vpack.c.bf16 %v5853, %v5852
    %v5861 = vpack.c.bf16 %v5855, %v5854
    %v5863 = vlaneseq
    %v5864 = vshrl.u32 %v5863, 7
    %v5865 = vsub.s32 0, %v5864
    %v5866 = vrot.slane %v5843, %v5865
    %v5872 = vunpack.c.l.b16 %v5839
    %v5873 = vunpack.c.l.b16 %v5840
    %v5874 = vunpack.c.l.b16 %v5841
    %v5875 = vunpack.c.l.b16 %v5842
    %v5876 = vpack.c.b16 %v5873, %v5872
    %v5877 = vpack.c.b16 %v5875, %v5874
    %v5881 = vsel %vm226, %v5856, 0
    %v5884 = vsel %vm226, %v5857, 0
    %v5887 = vsel %vm226, %v5858, 0
    %v5890 = vsel %vm226, %v5859, 0
    %v5893 = vsel %vm226, %v5860, 0
    %v5896 = vsel %vm226, %v5861, 0
    %5898 = vmatprep.subr.bf16.mxu0 0
    %5899 = vmatpush1.bf16.msra.mxu0 %v5876
    %5900 = vmatprep.subr.bf16.mxu0 0
    %5901 = vmatpush1.bf16.msra.mxu0 %v5877
    %5902 = vmatprep.subr.bf16.mxu0 0
    %5903 = vmatpush1.bf16.msra.mxu0 0
    %5904 = vmatprep.subr.bf16.mxu0 0
    %5905 = vmatpush1.bf16.msra.mxu0 0
    %5906 = vmatprep.subr.bf16.mxu0 0
    %5907 = vmatpush1.bf16.msra.mxu0 0
    %5908 = vmatprep.subr.bf16.mxu0 0
    %5909 = vmatpush1.bf16.msra.mxu0 0
    %5910 = vmatprep.subr.bf16.mxu0 0
    %5911 = vmatpush1.bf16.msra.mxu0 0
    %5912 = vmatprep.subr.bf16.mxu0 0
    %5913 = vmatpush1.bf16.msra.mxu0 0
    %5914 = vmatprep.subr.bf16.mxu0 0
    %5915 = vmatpush1.bf16.msra.mxu0 0
    %5916 = vmatprep.subr.bf16.mxu0 0
    %5917 = vmatpush1.bf16.msra.mxu0 0
    %5918 = vmatprep.subr.bf16.mxu0 0
    %5919 = vmatpush1.bf16.msra.mxu0 0
    %5920 = vmatprep.subr.bf16.mxu0 0
    %5921 = vmatpush1.bf16.msra.mxu0 0
    %5922 = vmatprep.subr.bf16.mxu0 0
    %5923 = vmatpush1.bf16.msra.mxu0 0
    %5924 = vmatprep.subr.bf16.mxu0 0
    %5925 = vmatpush1.bf16.msra.mxu0 0
    %5926 = vmatprep.subr.bf16.mxu0 0
    %5927 = vmatpush1.bf16.msra.mxu0 0
    %5928 = vmatprep.subr.bf16.mxu0 0
    %5929 = vmatpush1.bf16.msra.mxu0 0
    %5930 = vmatprep.mubr.bf16.mxu0 0
    %5931 = vmatmul.mubr.bf16.gmra.mrb[0].mxu0 %v5881
    %v5932 = vpop.f32.mrb[0].mxu0
    %v5933 = vadd.f32 %v5866, %v5932
    %v5934 = vpop.f32.mrb[0].mxu0
    %v5935 = vpop.f32.mrb[0].mxu0
    %v5936 = vadd.f32 %v5866, %v5935
    %v5937 = vpop.f32.mrb[0].mxu0
    %5938 = vmatprep.mubr.bf16.mxu0 0
    %5939 = vmatmul.mubr.bf16.gmra.mrb[0].mxu0 %v5884
    %v5940 = vpop.f32.mrb[0].mxu0
    %v5941 = vpop.f32.mrb[0].mxu0
    %v5942 = vpop.f32.mrb[0].mxu0
    %v5943 = vpop.f32.mrb[0].mxu0
    %5944 = vmatprep.mubr.bf16.mxu0 0
    %5945 = vmatmul.mubr.bf16.gmra.mrb[0].mxu0 %v5887
    %v5946 = vpop.f32.mrb[0].mxu0
    %v5947 = vpop.f32.mrb[0].mxu0
    %v5948 = vpop.f32.mrb[0].mxu0
    %v5949 = vpop.f32.mrb[0].mxu0
    %5950 = vmatprep.mubr.bf16.mxu0 0
    %5951 = vmatmul.mubr.bf16.gmra.mrb[0].mxu0 %v5890
    %v5952 = vpop.f32.mrb[0].mxu0
    %v5953 = vadd.f32 %v5866, %v5952
    %v5954 = vpop.f32.mrb[0].mxu0
    %v5955 = vpop.f32.mrb[0].mxu0
    %v5956 = vadd.f32 %v5866, %v5955
    %v5957 = vpop.f32.mrb[0].mxu0
    %5958 = vmatprep.mubr.bf16.mxu0 0
    %5959 = vmatmul.mubr.bf16.gmra.mrb[0].mxu0 %v5893
    %v5960 = vpop.f32.mrb[0].mxu0
    %v5961 = vpop.f32.mrb[0].mxu0
    %v5962 = vpop.f32.mrb[0].mxu0
    %v5963 = vpop.f32.mrb[0].mxu0
    %5964 = vmatprep.mubr.bf16.mxu0 0
    %5965 = vmatmul.mubr.bf16.gmra.mrb[0].mxu0 %v5896
    %v5966 = vpop.f32.mrb[0].mxu0
    %v5967 = vpop.f32.mrb[0].mxu0
    %v5968 = vpop.f32.mrb[0].mxu0
    %v5969 = vpop.f32.mrb[0].mxu0
    %5970 = vdwg.mxu0
    %v5971 = vld [vmem:[#allocation4 + $0x8] sm:$0xff]
    %v5972 = vld [vmem:[#allocation4 + $0x10] sm:$0xff]
    %v5973 = vld [vmem:[#allocation4 + $0x38] sm:$0xff]
    %v5974 = vld [vmem:[#allocation4 + $0x40] sm:$0xff]
    %v5975 = vadd.f32 %v5933, %v5971
    %v5976 = vadd.f32 %v5936, %v5972
    %v5977 = vadd.f32 %v5953, %v5973
    %v5978 = vadd.f32 %v5956, %v5974
    %5979 = vst.msk [vmem:[#allocation3 + $0x8] sm:$0xff] %vm226, %v5975
    %5980 = vst.msk [vmem:[#allocation3 + $0x10] sm:$0xff] %vm226, %v5976
    %5981 = vst.msk [vmem:[#allocation3 + $0x18] sm:$0xff] %vm226, 0.0
    %5982 = vst.msk [vmem:[#allocation3 + $0x38] sm:$0xff] %vm226, %v5977
    %5983 = vst.msk [vmem:[#allocation3 + $0x40] sm:$0xff] %vm226, %v5978
    %5984 = vst.msk [vmem:[#allocation3 + $0x48] sm:$0xff] %vm226, 0.0
    %v5985 = vld [vmem:[%s83] sm:$0xf]
    %v5986 = vld [vmem:[%s83 + $0x4] sm:$0xf]
    %v5987 = vld [vmem:[%s83 + $0x8] sm:$0xf]
    %v5988 = vld [vmem:[%s83 + $0xc] sm:$0xf]
    %v5989 = vld [vmem:[%s83 + $0x10] sm:$0xf]
    %v5990 = vld [vmem:[%s83 + $0x14] sm:$0xf]
    %v5991 = vld [vmem:[%s83 + $0x18] sm:$0xf]
    %v5992 = vld [vmem:[%s83 + $0x1c] sm:$0xf]
    %v5993 = vld [vmem:[%s83 + $0x20] sm:$0xf]
    %v5994 = vld [vmem:[%s83 + $0x24] sm:$0xf]
    %v5995 = vld [vmem:[%s83 + $0x28] sm:$0xf]
    %v5996 = vld [vmem:[%s83 + $0x2c] sm:$0xf]
    %v5997 = vld [vmem:[%s85] sm:$0x1]
    %v5998 = vld [vmem:[#allocation3 + $0x7] sm:$0xff]
    %v5999 = vld [vmem:[#allocation3 + $0xf] sm:$0xff]
    %v6000 = vld [vmem:[#allocation3 + $0x17] sm:$0xff]
    %v6001 = vld [vmem:[#allocation3 + $0x1f] sm:$0xff]
    %v6002 = vld [vmem:[#allocation3 + $0x27] sm:$0xff]
    %v6003 = vld [vmem:[#allocation3 + $0x2f] sm:$0xff]
    %v6004 = vld [vmem:[#allocation3 + $0x37] sm:$0xff]
    %v6005 = vld [vmem:[#allocation3 + $0x3f] sm:$0xff]
    %v6006 = vld [vmem:[#allocation3 + $0x47] sm:$0xff]
    %v6007 = vld [vmem:[#allocation3 + $0x4f] sm:$0xff]
    %v6008 = vld [vmem:[#allocation3 + $0x57] sm:$0xff]
    %v6009 = vld [vmem:[#allocation3 + $0x5f] sm:$0xff]
    %v6010 = vld [vmem:[#allocation3 + $0x8] sm:$0xff]
    %v6011 = vld [vmem:[#allocation3 + $0x10] sm:$0xff]
    %v6012 = vld [vmem:[#allocation3 + $0x18] sm:$0xff]
    %v6013 = vld [vmem:[#allocation3 + $0x20] sm:$0xff]
    %v6014 = vld [vmem:[#allocation3 + $0x28] sm:$0xff]
    %v6015 = vld [vmem:[#allocation3 + $0x30] sm:$0xff]
    %v6016 = vld [vmem:[#allocation3 + $0x38] sm:$0xff]
    %v6017 = vld [vmem:[#allocation3 + $0x40] sm:$0xff]
    %v6018 = vld [vmem:[#allocation3 + $0x48] sm:$0xff]
    %v6019 = vld [vmem:[#allocation3 + $0x50] sm:$0xff]
    %v6020 = vld [vmem:[#allocation3 + $0x58] sm:$0xff]
    %v6021 = vld [vmem:[#allocation3 + $0x60] sm:$0xff]
    %v6022 = vld [vmem:[#allocation3 + $0x9] sm:$0xff]
    %v6023 = vld [vmem:[#allocation3 + $0x11] sm:$0xff]
    %v6024 = vld [vmem:[#allocation3 + $0x19] sm:$0xff]
    %v6025 = vld [vmem:[#allocation3 + $0x21] sm:$0xff]
    %v6026 = vld [vmem:[#allocation3 + $0x29] sm:$0xff]
    %v6027 = vld [vmem:[#allocation3 + $0x31] sm:$0xff]
    %v6028 = vld [vmem:[#allocation3 + $0x39] sm:$0xff]
    %v6029 = vld [vmem:[#allocation3 + $0x41] sm:$0xff]
    %v6030 = vld [vmem:[#allocation3 + $0x49] sm:$0xff]
    %v6031 = vld [vmem:[#allocation3 + $0x51] sm:$0xff]
    %v6032 = vld [vmem:[#allocation3 + $0x59] sm:$0xff]
    %v6033 = vld [vmem:[#allocation3 + $0x61] sm:$0xff]
    %6046 = vrot.lane.b32.xlu0 %v6010, 32
    %v6047 = vpop.permute.xlu0 %6046
    %6048 = vrot.lane.b32.xlu0 %v6011, 32
    %v6049 = vpop.permute.xlu0 %6048
    %6050 = vrot.lane.b32.xlu0 %v6012, 32
    %v6051 = vpop.permute.xlu0 %6050
    %6052 = vrot.lane.b32.xlu0 %v6013, 32
    %v6053 = vpop.permute.xlu0 %6052
    %6054 = vrot.lane.b32.xlu0 %v6014, 32
    %v6055 = vpop.permute.xlu0 %6054
    %6056 = vrot.lane.b32.xlu0 %v6015, 32
    %v6057 = vpop.permute.xlu0 %6056
    %6058 = vrot.lane.b32.xlu0 %v6016, 32
    %v6059 = vpop.permute.xlu0 %6058
    %6060 = vrot.lane.b32.xlu0 %v6017, 32
    %v6061 = vpop.permute.xlu0 %6060
    %6062 = vrot.lane.b32.xlu0 %v6018, 32
    %v6063 = vpop.permute.xlu0 %6062
    %6064 = vrot.lane.b32.xlu0 %v6019, 32
    %v6065 = vpop.permute.xlu0 %6064
    %6066 = vrot.lane.b32.xlu0 %v6020, 32
    %v6067 = vpop.permute.xlu0 %6066
    %6068 = vrot.lane.b32.xlu0 %v6021, 32
    %v6069 = vpop.permute.xlu0 %6068
    %6094 = vrot.lane.b32.xlu0 %v6022, 64
    %v6095 = vpop.permute.xlu0 %6094
    %6096 = vrot.lane.b32.xlu0 %v6023, 64
    %v6097 = vpop.permute.xlu0 %6096
    %6098 = vrot.lane.b32.xlu0 %v6024, 64
    %v6099 = vpop.permute.xlu0 %6098
    %6100 = vrot.lane.b32.xlu0 %v6025, 64
    %v6101 = vpop.permute.xlu0 %6100
    %6102 = vrot.lane.b32.xlu0 %v6026, 64
    %v6103 = vpop.permute.xlu0 %6102
    %6104 = vrot.lane.b32.xlu0 %v6027, 64
    %v6105 = vpop.permute.xlu0 %6104
    %6106 = vrot.lane.b32.xlu0 %v6028, 64
    %v6107 = vpop.permute.xlu0 %6106
    %6108 = vrot.lane.b32.xlu0 %v6029, 64
    %v6109 = vpop.permute.xlu0 %6108
    %6110 = vrot.lane.b32.xlu0 %v6030, 64
    %v6111 = vpop.permute.xlu0 %6110
    %6112 = vrot.lane.b32.xlu0 %v6031, 64
    %v6113 = vpop.permute.xlu0 %6112
    %6114 = vrot.lane.b32.xlu0 %v6032, 64
    %v6115 = vpop.permute.xlu0 %6114
    %6116 = vrot.lane.b32.xlu0 %v6033, 64
    %v6117 = vpop.permute.xlu0 %6116
    %v6130 = vsel %vm226, %v5998, %v6047
    %v6131 = vsel %vm226, %v5999, %v6049
    %v6132 = vsel %vm226, %v6000, %v6051
    %v6133 = vsel %vm226, %v6001, %v6053
    %v6134 = vsel %vm226, %v6002, %v6055
    %v6135 = vsel %vm226, %v6003, %v6057
    %v6136 = vsel %vm226, %v6004, %v6059
    %v6137 = vsel %vm226, %v6005, %v6061
    %v6138 = vsel %vm226, %v6006, %v6063
    %v6139 = vsel %vm226, %v6007, %v6065
    %v6140 = vsel %vm226, %v6008, %v6067
    %v6141 = vsel %vm226, %v6009, %v6069
    %v6142 = vsel %vm709, %v6130, %v6095
    %v6143 = vsel %vm709, %v6131, %v6097
    %v6144 = vsel %vm709, %v6132, %v6099
    %v6145 = vsel %vm709, %v6133, %v6101
    %v6146 = vsel %vm709, %v6134, %v6103
    %v6147 = vsel %vm709, %v6135, %v6105
    %v6148 = vsel %vm709, %v6136, %v6107
    %v6149 = vsel %vm709, %v6137, %v6109
    %v6150 = vsel %vm709, %v6138, %v6111
    %v6151 = vsel %vm709, %v6139, %v6113
    %v6152 = vsel %vm709, %v6140, %v6115
    %v6153 = vsel %vm709, %v6141, %v6117
    %v6154 = vmax.f32 %v6142, 0.0
    %v6155 = vmax.f32 %v6143, 0.0
    %v6156 = vmax.f32 %v6144, 0.0
    %v6157 = vmax.f32 %v6145, 0.0
    %v6158 = vmax.f32 %v6146, 0.0
    %v6159 = vmax.f32 %v6147, 0.0
    %v6160 = vmax.f32 %v6148, 0.0
    %v6161 = vmax.f32 %v6149, 0.0
    %v6162 = vmax.f32 %v6150, 0.0
    %v6163 = vmax.f32 %v6151, 0.0
    %v6164 = vmax.f32 %v6152, 0.0
    %v6165 = vmax.f32 %v6153, 0.0
    %v6166 = vpack.c.bf16 %v6155, %v6154
    %v6167 = vpack.c.bf16 %v6157, %v6156
    %v6168 = vpack.c.bf16 %v6159, %v6158
    %v6169 = vpack.c.bf16 %v6161, %v6160
    %v6170 = vpack.c.bf16 %v6163, %v6162
    %v6171 = vpack.c.bf16 %v6165, %v6164
    %v6173 = vlaneseq
    %v6174 = vshrl.u32 %v6173, 7
    %v6175 = vsub.s32 0, %v6174
    %v6176 = vrot.slane %v5997, %v6175
    %v6190 = vunpack.c.l.b16 %v5985
    %v6191 = vunpack.c.l.b16 %v5986
    %v6192 = vunpack.c.l.b16 %v5987
    %v6193 = vunpack.c.l.b16 %v5988
    %v6194 = vunpack.c.l.b16 %v5989
    %v6195 = vunpack.c.l.b16 %v5990
    %v6196 = vunpack.c.l.b16 %v5991
    %v6197 = vunpack.c.l.b16 %v5992
    %v6198 = vunpack.c.l.b16 %v5993
    %v6199 = vunpack.c.l.b16 %v5994
    %v6200 = vunpack.c.l.b16 %v5995
    %v6201 = vunpack.c.l.b16 %v5996
    %v6202 = vpack.c.b16 %v6191, %v6190
    %v6203 = vpack.c.b16 %v6193, %v6192
    %v6204 = vpack.c.b16 %v6195, %v6194
    %v6205 = vpack.c.b16 %v6197, %v6196
    %v6206 = vpack.c.b16 %v6199, %v6198
    %v6207 = vpack.c.b16 %v6201, %v6200
    %v6215 = vsel %vm716, %v6166, 0
    %v6218 = vsel %vm716, %v6167, 0
    %v6221 = vsel %vm716, %v6168, 0
    %v6224 = vsel %vm716, %v6169, 0
    %v6227 = vsel %vm716, %v6170, 0
    %v6230 = vsel %vm716, %v6171, 0
    %6232 = vmatprep.subr.bf16.mxu0 0
    %6233 = vmatpush1.bf16.msra.mxu0 %v6202
    %6234 = vmatprep.subr.bf16.mxu0 0
    %6235 = vmatpush1.bf16.msra.mxu0 %v6203
    %6236 = vmatprep.subr.bf16.mxu0 0
    %6237 = vmatpush1.bf16.msra.mxu0 %v6204
    %6238 = vmatprep.subr.bf16.mxu0 0
    %6239 = vmatpush1.bf16.msra.mxu0 %v6205
    %6240 = vmatprep.subr.bf16.mxu0 0
    %6241 = vmatpush1.bf16.msra.mxu0 %v6206
    %6242 = vmatprep.subr.bf16.mxu0 0
    %6243 = vmatpush1.bf16.msra.mxu0 %v6207
    %6244 = vmatprep.subr.bf16.mxu0 0
    %6245 = vmatpush1.bf16.msra.mxu0 0
    %6246 = vmatprep.subr.bf16.mxu0 0
    %6247 = vmatpush1.bf16.msra.mxu0 0
    %6248 = vmatprep.subr.bf16.mxu0 0
    %6249 = vmatpush1.bf16.msra.mxu0 0
    %6250 = vmatprep.subr.bf16.mxu0 0
    %6251 = vmatpush1.bf16.msra.mxu0 0
    %6252 = vmatprep.subr.bf16.mxu0 0
    %6253 = vmatpush1.bf16.msra.mxu0 0
    %6254 = vmatprep.subr.bf16.mxu0 0
    %6255 = vmatpush1.bf16.msra.mxu0 0
    %6256 = vmatprep.subr.bf16.mxu0 0
    %6257 = vmatpush1.bf16.msra.mxu0 0
    %6258 = vmatprep.subr.bf16.mxu0 0
    %6259 = vmatpush1.bf16.msra.mxu0 0
    %6260 = vmatprep.subr.bf16.mxu0 0
    %6261 = vmatpush1.bf16.msra.mxu0 0
    %6262 = vmatprep.subr.bf16.mxu0 0
    %6263 = vmatpush1.bf16.msra.mxu0 0
    %6264 = vmatprep.mubr.bf16.mxu0 0
    %6265 = vmatmul.mubr.bf16.gmra.mrb[0].mxu0 %v6215
    %v6266 = vpop.f32.mrb[0].mxu0
    %v6267 = vadd.f32 %v6176, %v6266
    %v6268 = vpop.f32.mrb[0].mxu0
    %v6269 = vpop.f32.mrb[0].mxu0
    %v6270 = vadd.f32 %v6176, %v6269
    %v6271 = vpop.f32.mrb[0].mxu0
    %6272 = vmatprep.mubr.bf16.mxu0 0
    %6273 = vmatmul.mubr.bf16.gmra.mrb[0].mxu0 %v6218
    %v6274 = vpop.f32.mrb[0].mxu0
    %v6275 = vpop.f32.mrb[0].mxu0
    %v6276 = vpop.f32.mrb[0].mxu0
    %v6277 = vpop.f32.mrb[0].mxu0
    %6278 = vmatprep.mubr.bf16.mxu0 0
    %6279 = vmatmul.mubr.bf16.gmra.mrb[0].mxu0 %v6221
    %v6280 = vpop.f32.mrb[0].mxu0
    %v6281 = vpop.f32.mrb[0].mxu0
    %v6282 = vpop.f32.mrb[0].mxu0
    %v6283 = vpop.f32.mrb[0].mxu0
    %6284 = vmatprep.mubr.bf16.mxu0 0
    %6285 = vmatmul.mubr.bf16.gmra.mrb[0].mxu0 %v6224
    %v6286 = vpop.f32.mrb[0].mxu0
    %v6287 = vadd.f32 %v6176, %v6286
    %v6288 = vpop.f32.mrb[0].mxu0
    %v6289 = vpop.f32.mrb[0].mxu0
    %v6290 = vadd.f32 %v6176, %v6289
    %v6291 = vpop.f32.mrb[0].mxu0
    %6292 = vmatprep.mubr.bf16.mxu0 0
    %6293 = vmatmul.mubr.bf16.gmra.mrb[0].mxu0 %v6227
    %v6294 = vpop.f32.mrb[0].mxu0
    %v6295 = vpop.f32.mrb[0].mxu0
    %v6296 = vpop.f32.mrb[0].mxu0
    %v6297 = vpop.f32.mrb[0].mxu0
    %6298 = vmatprep.mubr.bf16.mxu0 0
    %6299 = vmatmul.mubr.bf16.gmra.mrb[0].mxu0 %v6230
    %v6300 = vpop.f32.mrb[0].mxu0
    %v6301 = vpop.f32.mrb[0].mxu0
    %v6302 = vpop.f32.mrb[0].mxu0
    %v6303 = vpop.f32.mrb[0].mxu0
    %6304 = vdwg.mxu0
    %v6305 = vmax.f32 %v6267, 0.0
    %v6306 = vmax.f32 %v6270, 0.0
    %v6307 = vmax.f32 %v6287, 0.0
    %v6308 = vmax.f32 %v6290, 0.0
    %6309 = vst.msk [vmem:[#allocation4 + $0x8] sm:$0xff] %vm226, %v6305
    %6310 = vst.msk [vmem:[#allocation4 + $0x10] sm:$0xff] %vm226, %v6306
    %6311 = vst.msk [vmem:[#allocation4 + $0x18] sm:$0xff] %vm226, 0.0
    %6312 = vst.msk [vmem:[#allocation4 + $0x38] sm:$0xff] %vm226, %v6307
    %6313 = vst.msk [vmem:[#allocation4 + $0x40] sm:$0xff] %vm226, %v6308
    %6314 = vst.msk [vmem:[#allocation4 + $0x48] sm:$0xff] %vm226, 0.0
    %v6315 = vld [vmem:[%s87] sm:$0xf]
    %v6316 = vld [vmem:[%s87 + $0x4] sm:$0xf]
    %v6317 = vld [vmem:[%s87 + $0x8] sm:$0xf]
    %v6318 = vld [vmem:[%s87 + $0xc] sm:$0xf]
    %v6319 = vld [vmem:[%s89] sm:$0x1]
    %v6320 = vld [vmem:[#allocation4 + $0x8] sm:$0xff]
    %v6321 = vld [vmem:[#allocation4 + $0x10] sm:$0xff]
    %v6322 = vld [vmem:[#allocation4 + $0x18] sm:$0xff]
    %v6323 = vld [vmem:[#allocation4 + $0x20] sm:$0xff]
    %v6324 = vld [vmem:[#allocation4 + $0x28] sm:$0xff]
    %v6325 = vld [vmem:[#allocation4 + $0x30] sm:$0xff]
    %v6326 = vld [vmem:[#allocation4 + $0x38] sm:$0xff]
    %v6327 = vld [vmem:[#allocation4 + $0x40] sm:$0xff]
    %v6328 = vld [vmem:[#allocation4 + $0x48] sm:$0xff]
    %v6329 = vld [vmem:[#allocation4 + $0x50] sm:$0xff]
    %v6330 = vld [vmem:[#allocation4 + $0x58] sm:$0xff]
    %v6331 = vld [vmem:[#allocation4 + $0x60] sm:$0xff]
    %v6332 = vpack.c.bf16 %v6321, %v6320
    %v6333 = vpack.c.bf16 %v6323, %v6322
    %v6334 = vpack.c.bf16 %v6325, %v6324
    %v6335 = vpack.c.bf16 %v6327, %v6326
    %v6336 = vpack.c.bf16 %v6329, %v6328
    %v6337 = vpack.c.bf16 %v6331, %v6330
    %v6339 = vlaneseq
    %v6340 = vshrl.u32 %v6339, 7
    %v6341 = vsub.s32 0, %v6340
    %v6342 = vrot.slane %v6319, %v6341
    %v6348 = vunpack.c.l.b16 %v6315
    %v6349 = vunpack.c.l.b16 %v6316
    %v6350 = vunpack.c.l.b16 %v6317
    %v6351 = vunpack.c.l.b16 %v6318
    %v6352 = vpack.c.b16 %v6349, %v6348
    %v6353 = vpack.c.b16 %v6351, %v6350
    %v6357 = vsel %vm226, %v6332, 0
    %v6360 = vsel %vm226, %v6333, 0
    %v6363 = vsel %vm226, %v6334, 0
    %v6366 = vsel %vm226, %v6335, 0
    %v6369 = vsel %vm226, %v6336, 0
    %v6372 = vsel %vm226, %v6337, 0
    %6374 = vmatprep.subr.bf16.mxu0 0
    %6375 = vmatpush1.bf16.msra.mxu0 %v6352
    %6376 = vmatprep.subr.bf16.mxu0 0
    %6377 = vmatpush1.bf16.msra.mxu0 %v6353
    %6378 = vmatprep.subr.bf16.mxu0 0
    %6379 = vmatpush1.bf16.msra.mxu0 0
    %6380 = vmatprep.subr.bf16.mxu0 0
    %6381 = vmatpush1.bf16.msra.mxu0 0
    %6382 = vmatprep.subr.bf16.mxu0 0
    %6383 = vmatpush1.bf16.msra.mxu0 0
    %6384 = vmatprep.subr.bf16.mxu0 0
    %6385 = vmatpush1.bf16.msra.mxu0 0
    %6386 = vmatprep.subr.bf16.mxu0 0
    %6387 = vmatpush1.bf16.msra.mxu0 0
    %6388 = vmatprep.subr.bf16.mxu0 0
    %6389 = vmatpush1.bf16.msra.mxu0 0
    %6390 = vmatprep.subr.bf16.mxu0 0
    %6391 = vmatpush1.bf16.msra.mxu0 0
    %6392 = vmatprep.subr.bf16.mxu0 0
    %6393 = vmatpush1.bf16.msra.mxu0 0
    %6394 = vmatprep.subr.bf16.mxu0 0
    %6395 = vmatpush1.bf16.msra.mxu0 0
    %6396 = vmatprep.subr.bf16.mxu0 0
    %6397 = vmatpush1.bf16.msra.mxu0 0
    %6398 = vmatprep.subr.bf16.mxu0 0
    %6399 = vmatpush1.bf16.msra.mxu0 0
    %6400 = vmatprep.subr.bf16.mxu0 0
    %6401 = vmatpush1.bf16.msra.mxu0 0
    %6402 = vmatprep.subr.bf16.mxu0 0
    %6403 = vmatpush1.bf16.msra.mxu0 0
    %6404 = vmatprep.subr.bf16.mxu0 0
    %6405 = vmatpush1.bf16.msra.mxu0 0
    %6406 = vmatprep.mubr.bf16.mxu0 0
    %6407 = vmatmul.mubr.bf16.gmra.mrb[0].mxu0 %v6357
    %v6408 = vpop.f32.mrb[0].mxu0
    %v6409 = vadd.f32 %v6342, %v6408
    %v6410 = vpop.f32.mrb[0].mxu0
    %v6411 = vpop.f32.mrb[0].mxu0
    %v6412 = vadd.f32 %v6342, %v6411
    %v6413 = vpop.f32.mrb[0].mxu0
    %6414 = vmatprep.mubr.bf16.mxu0 0
    %6415 = vmatmul.mubr.bf16.gmra.mrb[0].mxu0 %v6360
    %v6416 = vpop.f32.mrb[0].mxu0
    %v6417 = vpop.f32.mrb[0].mxu0
    %v6418 = vpop.f32.mrb[0].mxu0
    %v6419 = vpop.f32.mrb[0].mxu0
    %6420 = vmatprep.mubr.bf16.mxu0 0
    %6421 = vmatmul.mubr.bf16.gmra.mrb[0].mxu0 %v6363
    %v6422 = vpop.f32.mrb[0].mxu0
    %v6423 = vpop.f32.mrb[0].mxu0
    %v6424 = vpop.f32.mrb[0].mxu0
    %v6425 = vpop.f32.mrb[0].mxu0
    %6426 = vmatprep.mubr.bf16.mxu0 0
    %6427 = vmatmul.mubr.bf16.gmra.mrb[0].mxu0 %v6366
    %v6428 = vpop.f32.mrb[0].mxu0
    %v6429 = vadd.f32 %v6342, %v6428
    %v6430 = vpop.f32.mrb[0].mxu0
    %v6431 = vpop.f32.mrb[0].mxu0
    %v6432 = vadd.f32 %v6342, %v6431
    %v6433 = vpop.f32.mrb[0].mxu0
    %6434 = vmatprep.mubr.bf16.mxu0 0
    %6435 = vmatmul.mubr.bf16.gmra.mrb[0].mxu0 %v6369
    %v6436 = vpop.f32.mrb[0].mxu0
    %v6437 = vpop.f32.mrb[0].mxu0
    %v6438 = vpop.f32.mrb[0].mxu0
    %v6439 = vpop.f32.mrb[0].mxu0
    %6440 = vmatprep.mubr.bf16.mxu0 0
    %6441 = vmatmul.mubr.bf16.gmra.mrb[0].mxu0 %v6372
    %v6442 = vpop.f32.mrb[0].mxu0
    %v6443 = vpop.f32.mrb[0].mxu0
    %v6444 = vpop.f32.mrb[0].mxu0
    %v6445 = vpop.f32.mrb[0].mxu0
    %6446 = vdwg.mxu0
    %v6447 = vld [vmem:[#allocation3 + $0x8] sm:$0xff]
    %v6448 = vld [vmem:[#allocation3 + $0x10] sm:$0xff]
    %v6449 = vld [vmem:[#allocation3 + $0x38] sm:$0xff]
    %v6450 = vld [vmem:[#allocation3 + $0x40] sm:$0xff]
    %v6451 = vadd.f32 %v6409, %v6447
    %v6452 = vadd.f32 %v6412, %v6448
    %v6453 = vadd.f32 %v6429, %v6449
    %v6454 = vadd.f32 %v6432, %v6450
    %6455 = vst.msk [vmem:[#allocation2 + $0x8] sm:$0xff] %vm226, %v6451
    %6456 = vst.msk [vmem:[#allocation2 + $0x10] sm:$0xff] %vm226, %v6452
    %6457 = vst.msk [vmem:[#allocation2 + $0x18] sm:$0xff] %vm226, 0.0
    %6458 = vst.msk [vmem:[#allocation2 + $0x38] sm:$0xff] %vm226, %v6453
    %6459 = vst.msk [vmem:[#allocation2 + $0x40] sm:$0xff] %vm226, %v6454
    %6460 = vst.msk [vmem:[#allocation2 + $0x48] sm:$0xff] %vm226, 0.0
    %v6461 = vadd.s32 %v5015, 16
    %v6462 = vadd.s32 %v5015, 24
    %vm6463 = vcmp.ge.s32.totalorder %v6461, %v5017
    %vm6464 = vcmp.ge.s32.totalorder %v6462, %v5017
    %vm6465 = vcmp.lt.s32.totalorder %v6461, %v5021
    %vm6466 = vcmp.lt.s32.totalorder %v6462, %v5021
    %vm6467 = vmand %vm6463, %vm6465
    %vm6468 = vmand %vm6464, %vm6466
    %v6469 = vsel %vm6467, 1, 0
    %v6470 = vsel %vm6468, 1, 0
    %v6471 = vcvt.s32.f32 %v6469
    %v6472 = vcvt.s32.f32 %v6470
    %v6473 = vld [vmem:[#allocation2 + $0x8] sm:$0xff]
    %v6474 = vld [vmem:[#allocation2 + $0x10] sm:$0xff]
    %v6475 = vsel %vm243, %v5028, 0
    %v6477 = vsel %vm243, %v5029, 0
    %v6480 = vsel %vm243, %v6471, 0
    %v6483 = vsel %vm243, %v6472, 0
    %6485 = vmatprep.subr.mxu0 0.0
    %6486 = vmatpush1.msra.mxu0 %v6473
    %6487 = vmatprep.subr.mxu0 0.0
    %6488 = vmatpush1.msra.mxu0 %v6474
    %6489 = vmatprep.subr.mxu0 0.0
    %6490 = vmatpush1.msra.mxu0 0.0
    %6491 = vmatprep.subr.mxu0 0.0
    %6492 = vmatpush1.msra.mxu0 0.0
    %6493 = vmatprep.subr.mxu0 0.0
    %6494 = vmatpush1.msra.mxu0 0.0
    %6495 = vmatprep.subr.mxu0 0.0
    %6496 = vmatpush1.msra.mxu0 0.0
    %6497 = vmatprep.subr.mxu0 0.0
    %6498 = vmatpush1.msra.mxu0 0.0
    %6499 = vmatprep.subr.mxu0 0.0
    %6500 = vmatpush1.msra.mxu0 0.0
    %6501 = vmatprep.subr.mxu0 0.0
    %6502 = vmatpush1.msra.mxu0 0.0
    %6503 = vmatprep.subr.mxu0 0.0
    %6504 = vmatpush1.msra.mxu0 0.0
    %6505 = vmatprep.subr.mxu0 0.0
    %6506 = vmatpush1.msra.mxu0 0.0
    %6507 = vmatprep.subr.mxu0 0.0
    %6508 = vmatpush1.msra.mxu0 0.0
    %6509 = vmatprep.subr.mxu0 0.0
    %6510 = vmatpush1.msra.mxu0 0.0
    %6511 = vmatprep.subr.mxu0 0.0
    %6512 = vmatpush1.msra.mxu0 0.0
    %6513 = vmatprep.subr.mxu0 0.0
    %6514 = vmatpush1.msra.mxu0 0.0
    %6515 = vmatprep.subr.mxu0 0.0
    %6516 = vmatpush1.msra.mxu0 0.0
    %6517 = vmatprep.subr.mxu0 0.0
    %6518 = vmatpush1.msra.mxu0 0.0
    %6519 = vmatprep.subr.mxu0 0.0
    %6520 = vmatpush1.msra.mxu0 0.0
    %6521 = vmatprep.subr.mxu0 0.0
    %6522 = vmatpush1.msra.mxu0 0.0
    %6523 = vmatprep.subr.mxu0 0.0
    %6524 = vmatpush1.msra.mxu0 0.0
    %6525 = vmatprep.subr.mxu0 0.0
    %6526 = vmatpush1.msra.mxu0 0.0
    %6527 = vmatprep.subr.mxu0 0.0
    %6528 = vmatpush1.msra.mxu0 0.0
    %6529 = vmatprep.subr.mxu0 0.0
    %6530 = vmatpush1.msra.mxu0 0.0
    %6531 = vmatprep.subr.mxu0 0.0
    %6532 = vmatpush1.msra.mxu0 0.0
    %6533 = vmatprep.subr.mxu0 0.0
    %6534 = vmatpush1.msra.mxu0 0.0
    %6535 = vmatprep.subr.mxu0 0.0
    %6536 = vmatpush1.msra.mxu0 0.0
    %6537 = vmatprep.subr.mxu0 0.0
    %6538 = vmatpush1.msra.mxu0 0.0
    %6539 = vmatprep.subr.mxu0 0.0
    %6540 = vmatpush1.msra.mxu0 0.0
    %6541 = vmatprep.subr.mxu0 0.0
    %6542 = vmatpush1.msra.mxu0 0.0
    %6543 = vmatprep.subr.mxu0 0.0
    %6544 = vmatpush1.msra.mxu0 0.0
    %6545 = vmatprep.subr.mxu0 0.0
    %6546 = vmatpush1.msra.mxu0 0.0
    %6547 = vmatprep.subr.mxu0 0.0
    %6548 = vmatpush1.msra.mxu0 0.0
    %6549 = vmatprep.mubr.f32.mxu0 0.0
    %6550 = vmatmul.mubr.f32.gmra.mrb[0].mxu0 %v6475
    %v6551 = vpop.f32.mrb[0].mxu0
    %v6552 = vadd.f32 0.0, %v6551
    %v6553 = vpop.f32.mrb[0].mxu0
    %6554 = vmatprep.mubr.f32.mxu0 0.0
    %6555 = vmatmul.mubr.f32.gmra.mrb[0].mxu0 %v6477
    %v6556 = vpop.f32.mrb[0].mxu0
    %v6557 = vadd.f32 0.0, %v6556
    %v6558 = vpop.f32.mrb[0].mxu0
    %6559 = vmatprep.mubr.f32.mxu0 0.0
    %6560 = vmatmul.mubr.f32.gmra.mrb[0].mxu0 %v6480
    %v6561 = vpop.f32.mrb[0].mxu0
    %v6562 = vadd.f32 0.0, %v6561
    %v6563 = vpop.f32.mrb[0].mxu0
    %6564 = vmatprep.mubr.f32.mxu0 0.0
    %6565 = vmatmul.mubr.f32.gmra.mrb[0].mxu0 %v6483
    %v6566 = vpop.f32.mrb[0].mxu0
    %v6567 = vadd.f32 0.0, %v6566
    %v6568 = vpop.f32.mrb[0].mxu0
    %6569 = vdwg.mxu0
    %6570 = vst.msk [vmem:[#allocation3 + $0x8] sm:$0xff] %vm226, %v6552
    %6571 = vst.msk [vmem:[#allocation3 + $0x10] sm:$0xff] %vm226, %v6557
    %6572 = vst.msk [vmem:[#allocation3 + $0x18] sm:$0xff] %vm226, %v6562
    %6573 = vst.msk [vmem:[#allocation3 + $0x20] sm:$0xff] %vm226, %v6567
    %6574 = vst.msk [vmem:[#allocation3 + $0x28] sm:$0xff] %vm226, 0.0
    %v6575 = vld [vmem:[#allocation2 + $0x38] sm:$0xff]
    %v6576 = vld [vmem:[#allocation2 + $0x40] sm:$0xff]
    %6577 = vmatprep.subr.mxu0 0.0
    %6578 = vmatpush1.msra.mxu0 %v6575
    %6579 = vmatprep.subr.mxu0 0.0
    %6580 = vmatpush1.msra.mxu0 %v6576
    %6581 = vmatprep.subr.mxu0 0.0
    %6582 = vmatpush1.msra.mxu0 0.0
    %6583 = vmatprep.subr.mxu0 0.0
    %6584 = vmatpush1.msra.mxu0 0.0
    %6585 = vmatprep.subr.mxu0 0.0
    %6586 = vmatpush1.msra.mxu0 0.0
    %6587 = vmatprep.subr.mxu0 0.0
    %6588 = vmatpush1.msra.mxu0 0.0
    %6589 = vmatprep.subr.mxu0 0.0
    %6590 = vmatpush1.msra.mxu0 0.0
    %6591 = vmatprep.subr.mxu0 0.0
    %6592 = vmatpush1.msra.mxu0 0.0
    %6593 = vmatprep.subr.mxu0 0.0
    %6594 = vmatpush1.msra.mxu0 0.0
    %6595 = vmatprep.subr.mxu0 0.0
    %6596 = vmatpush1.msra.mxu0 0.0
    %6597 = vmatprep.subr.mxu0 0.0
    %6598 = vmatpush1.msra.mxu0 0.0
    %6599 = vmatprep.subr.mxu0 0.0
    %6600 = vmatpush1.msra.mxu0 0.0
    %6601 = vmatprep.subr.mxu0 0.0
    %6602 = vmatpush1.msra.mxu0 0.0
    %6603 = vmatprep.subr.mxu0 0.0
    %6604 = vmatpush1.msra.mxu0 0.0
    %6605 = vmatprep.subr.mxu0 0.0
    %6606 = vmatpush1.msra.mxu0 0.0
    %6607 = vmatprep.subr.mxu0 0.0
    %6608 = vmatpush1.msra.mxu0 0.0
    %6609 = vmatprep.subr.mxu0 0.0
    %6610 = vmatpush1.msra.mxu0 0.0
    %6611 = vmatprep.subr.mxu0 0.0
    %6612 = vmatpush1.msra.mxu0 0.0
    %6613 = vmatprep.subr.mxu0 0.0
    %6614 = vmatpush1.msra.mxu0 0.0
    %6615 = vmatprep.subr.mxu0 0.0
    %6616 = vmatpush1.msra.mxu0 0.0
    %6617 = vmatprep.subr.mxu0 0.0
    %6618 = vmatpush1.msra.mxu0 0.0
    %6619 = vmatprep.subr.mxu0 0.0
    %6620 = vmatpush1.msra.mxu0 0.0
    %6621 = vmatprep.subr.mxu0 0.0
    %6622 = vmatpush1.msra.mxu0 0.0
    %6623 = vmatprep.subr.mxu0 0.0
    %6624 = vmatpush1.msra.mxu0 0.0
    %6625 = vmatprep.subr.mxu0 0.0
    %6626 = vmatpush1.msra.mxu0 0.0
    %6627 = vmatprep.subr.mxu0 0.0
    %6628 = vmatpush1.msra.mxu0 0.0
    %6629 = vmatprep.subr.mxu0 0.0
    %6630 = vmatpush1.msra.mxu0 0.0
    %6631 = vmatprep.subr.mxu0 0.0
    %6632 = vmatpush1.msra.mxu0 0.0
    %6633 = vmatprep.subr.mxu0 0.0
    %6634 = vmatpush1.msra.mxu0 0.0
    %6635 = vmatprep.subr.mxu0 0.0
    %6636 = vmatpush1.msra.mxu0 0.0
    %6637 = vmatprep.subr.mxu0 0.0
    %6638 = vmatpush1.msra.mxu0 0.0
    %6639 = vmatprep.subr.mxu0 0.0
    %6640 = vmatpush1.msra.mxu0 0.0
    %6641 = vmatprep.mubr.f32.mxu0 0.0
    %6642 = vmatmul.mubr.f32.gmra.mrb[0].mxu0 %v6475
    %v6643 = vpop.f32.mrb[0].mxu0
    %v6644 = vadd.f32 0.0, %v6643
    %v6645 = vpop.f32.mrb[0].mxu0
    %6646 = vmatprep.mubr.f32.mxu0 0.0
    %6647 = vmatmul.mubr.f32.gmra.mrb[0].mxu0 %v6477
    %v6648 = vpop.f32.mrb[0].mxu0
    %v6649 = vadd.f32 0.0, %v6648
    %v6650 = vpop.f32.mrb[0].mxu0
    %6651 = vmatprep.mubr.f32.mxu0 0.0
    %6652 = vmatmul.mubr.f32.gmra.mrb[0].mxu0 %v6480
    %v6653 = vpop.f32.mrb[0].mxu0
    %v6654 = vadd.f32 0.0, %v6653
    %v6655 = vpop.f32.mrb[0].mxu0
    %6656 = vmatprep.mubr.f32.mxu0 0.0
    %6657 = vmatmul.mubr.f32.gmra.mrb[0].mxu0 %v6483
    %v6658 = vpop.f32.mrb[0].mxu0
    %v6659 = vadd.f32 0.0, %v6658
    %v6660 = vpop.f32.mrb[0].mxu0
    %6661 = vdwg.mxu0
    %6662 = vst.msk [vmem:[#allocation3 + $0x38] sm:$0xff] %vm226, %v6644
    %6663 = vst.msk [vmem:[#allocation3 + $0x40] sm:$0xff] %vm226, %v6649
    %6664 = vst.msk [vmem:[#allocation3 + $0x48] sm:$0xff] %vm226, %v6654
    %6665 = vst.msk [vmem:[#allocation3 + $0x50] sm:$0xff] %vm226, %v6659
    %6666 = vst.msk [vmem:[#allocation3 + $0x58] sm:$0xff] %vm226, 0.0
    %v6667 = vld [vmem:[%s91] sm:$0xf]
    %v6668 = vld [vmem:[%s91 + $0x4] sm:$0xf]
    %v6669 = vld [vmem:[%s91 + $0x8] sm:$0xf]
    %v6670 = vld [vmem:[%s91 + $0xc] sm:$0xf]
    %v6671 = vld [vmem:[%s91 + $0x10] sm:$0xf]
    %v6672 = vld [vmem:[%s91 + $0x14] sm:$0xf]
    %v6673 = vld [vmem:[%s91 + $0x18] sm:$0xf]
    %v6674 = vld [vmem:[%s91 + $0x1c] sm:$0xf]
    %v6675 = vld [vmem:[%s91 + $0x20] sm:$0xf]
    %v6676 = vld [vmem:[%s91 + $0x24] sm:$0xf]
    %v6677 = vld [vmem:[%s91 + $0x28] sm:$0xf]
    %v6678 = vld [vmem:[%s91 + $0x2c] sm:$0xf]
    %v6679 = vld [vmem:[%s93] sm:$0x1]
    %v6680 = vld [vmem:[#allocation3 + $0x7] sm:$0xff]
    %v6681 = vld [vmem:[#allocation3 + $0xf] sm:$0xff]
    %v6682 = vld [vmem:[#allocation3 + $0x17] sm:$0xff]
    %v6683 = vld [vmem:[#allocation3 + $0x1f] sm:$0xff]
    %v6684 = vld [vmem:[#allocation3 + $0x27] sm:$0xff]
    %v6685 = vld [vmem:[#allocation3 + $0x2f] sm:$0xff]
    %v6686 = vld [vmem:[#allocation3 + $0x37] sm:$0xff]
    %v6687 = vld [vmem:[#allocation3 + $0x3f] sm:$0xff]
    %v6688 = vld [vmem:[#allocation3 + $0x47] sm:$0xff]
    %v6689 = vld [vmem:[#allocation3 + $0x4f] sm:$0xff]
    %v6690 = vld [vmem:[#allocation3 + $0x57] sm:$0xff]
    %v6691 = vld [vmem:[#allocation3 + $0x5f] sm:$0xff]
    %v6692 = vld [vmem:[#allocation3 + $0x8] sm:$0xff]
    %v6693 = vld [vmem:[#allocation3 + $0x10] sm:$0xff]
    %v6694 = vld [vmem:[#allocation3 + $0x18] sm:$0xff]
    %v6695 = vld [vmem:[#allocation3 + $0x20] sm:$0xff]
    %v6696 = vld [vmem:[#allocation3 + $0x28] sm:$0xff]
    %v6697 = vld [vmem:[#allocation3 + $0x30] sm:$0xff]
    %v6698 = vld [vmem:[#allocation3 + $0x38] sm:$0xff]
    %v6699 = vld [vmem:[#allocation3 + $0x40] sm:$0xff]
    %v6700 = vld [vmem:[#allocation3 + $0x48] sm:$0xff]
    %v6701 = vld [vmem:[#allocation3 + $0x50] sm:$0xff]
    %v6702 = vld [vmem:[#allocation3 + $0x58] sm:$0xff]
    %v6703 = vld [vmem:[#allocation3 + $0x60] sm:$0xff]
    %v6704 = vld [vmem:[#allocation3 + $0x9] sm:$0xff]
    %v6705 = vld [vmem:[#allocation3 + $0x11] sm:$0xff]
    %v6706 = vld [vmem:[#allocation3 + $0x19] sm:$0xff]
    %v6707 = vld [vmem:[#allocation3 + $0x21] sm:$0xff]
    %v6708 = vld [vmem:[#allocation3 + $0x29] sm:$0xff]
    %v6709 = vld [vmem:[#allocation3 + $0x31] sm:$0xff]
    %v6710 = vld [vmem:[#allocation3 + $0x39] sm:$0xff]
    %v6711 = vld [vmem:[#allocation3 + $0x41] sm:$0xff]
    %v6712 = vld [vmem:[#allocation3 + $0x49] sm:$0xff]
    %v6713 = vld [vmem:[#allocation3 + $0x51] sm:$0xff]
    %v6714 = vld [vmem:[#allocation3 + $0x59] sm:$0xff]
    %v6715 = vld [vmem:[#allocation3 + $0x61] sm:$0xff]
    %6728 = vrot.lane.b32.xlu0 %v6692, 32
    %v6729 = vpop.permute.xlu0 %6728
    %6730 = vrot.lane.b32.xlu0 %v6693, 32
    %v6731 = vpop.permute.xlu0 %6730
    %6732 = vrot.lane.b32.xlu0 %v6694, 32
    %v6733 = vpop.permute.xlu0 %6732
    %6734 = vrot.lane.b32.xlu0 %v6695, 32
    %v6735 = vpop.permute.xlu0 %6734
    %6736 = vrot.lane.b32.xlu0 %v6696, 32
    %v6737 = vpop.permute.xlu0 %6736
    %6738 = vrot.lane.b32.xlu0 %v6697, 32
    %v6739 = vpop.permute.xlu0 %6738
    %6740 = vrot.lane.b32.xlu0 %v6698, 32
    %v6741 = vpop.permute.xlu0 %6740
    %6742 = vrot.lane.b32.xlu0 %v6699, 32
    %v6743 = vpop.permute.xlu0 %6742
    %6744 = vrot.lane.b32.xlu0 %v6700, 32
    %v6745 = vpop.permute.xlu0 %6744
    %6746 = vrot.lane.b32.xlu0 %v6701, 32
    %v6747 = vpop.permute.xlu0 %6746
    %6748 = vrot.lane.b32.xlu0 %v6702, 32
    %v6749 = vpop.permute.xlu0 %6748
    %6750 = vrot.lane.b32.xlu0 %v6703, 32
    %v6751 = vpop.permute.xlu0 %6750
    %6776 = vrot.lane.b32.xlu0 %v6704, 64
    %v6777 = vpop.permute.xlu0 %6776
    %6778 = vrot.lane.b32.xlu0 %v6705, 64
    %v6779 = vpop.permute.xlu0 %6778
    %6780 = vrot.lane.b32.xlu0 %v6706, 64
    %v6781 = vpop.permute.xlu0 %6780
    %6782 = vrot.lane.b32.xlu0 %v6707, 64
    %v6783 = vpop.permute.xlu0 %6782
    %6784 = vrot.lane.b32.xlu0 %v6708, 64
    %v6785 = vpop.permute.xlu0 %6784
    %6786 = vrot.lane.b32.xlu0 %v6709, 64
    %v6787 = vpop.permute.xlu0 %6786
    %6788 = vrot.lane.b32.xlu0 %v6710, 64
    %v6789 = vpop.permute.xlu0 %6788
    %6790 = vrot.lane.b32.xlu0 %v6711, 64
    %v6791 = vpop.permute.xlu0 %6790
    %6792 = vrot.lane.b32.xlu0 %v6712, 64
    %v6793 = vpop.permute.xlu0 %6792
    %6794 = vrot.lane.b32.xlu0 %v6713, 64
    %v6795 = vpop.permute.xlu0 %6794
    %6796 = vrot.lane.b32.xlu0 %v6714, 64
    %v6797 = vpop.permute.xlu0 %6796
    %6798 = vrot.lane.b32.xlu0 %v6715, 64
    %v6799 = vpop.permute.xlu0 %6798
    %v6812 = vsel %vm226, %v6680, %v6729
    %v6813 = vsel %vm226, %v6681, %v6731
    %v6814 = vsel %vm226, %v6682, %v6733
    %v6815 = vsel %vm226, %v6683, %v6735
    %v6816 = vsel %vm226, %v6684, %v6737
    %v6817 = vsel %vm226, %v6685, %v6739
    %v6818 = vsel %vm226, %v6686, %v6741
    %v6819 = vsel %vm226, %v6687, %v6743
    %v6820 = vsel %vm226, %v6688, %v6745
    %v6821 = vsel %vm226, %v6689, %v6747
    %v6822 = vsel %vm226, %v6690, %v6749
    %v6823 = vsel %vm226, %v6691, %v6751
    %v6824 = vsel %vm709, %v6812, %v6777
    %v6825 = vsel %vm709, %v6813, %v6779
    %v6826 = vsel %vm709, %v6814, %v6781
    %v6827 = vsel %vm709, %v6815, %v6783
    %v6828 = vsel %vm709, %v6816, %v6785
    %v6829 = vsel %vm709, %v6817, %v6787
    %v6830 = vsel %vm709, %v6818, %v6789
    %v6831 = vsel %vm709, %v6819, %v6791
    %v6832 = vsel %vm709, %v6820, %v6793
    %v6833 = vsel %vm709, %v6821, %v6795
    %v6834 = vsel %vm709, %v6822, %v6797
    %v6835 = vsel %vm709, %v6823, %v6799
    %v6836 = vpack.c.bf16 %v6825, %v6824
    %v6837 = vpack.c.bf16 %v6827, %v6826
    %v6838 = vpack.c.bf16 %v6829, %v6828
    %v6839 = vpack.c.bf16 %v6831, %v6830
    %v6840 = vpack.c.bf16 %v6833, %v6832
    %v6841 = vpack.c.bf16 %v6835, %v6834
    %v6843 = vlaneseq
    %v6844 = vshrl.u32 %v6843, 7
    %v6845 = vsub.s32 0, %v6844
    %v6846 = vrot.slane %v6679, %v6845
    %v6860 = vunpack.c.l.b16 %v6667
    %v6861 = vunpack.c.l.b16 %v6668
    %v6862 = vunpack.c.l.b16 %v6669
    %v6863 = vunpack.c.l.b16 %v6670
    %v6864 = vunpack.c.l.b16 %v6671
    %v6865 = vunpack.c.l.b16 %v6672
    %v6866 = vunpack.c.l.b16 %v6673
    %v6867 = vunpack.c.l.b16 %v6674
    %v6868 = vunpack.c.l.b16 %v6675
    %v6869 = vunpack.c.l.b16 %v6676
    %v6870 = vunpack.c.l.b16 %v6677
    %v6871 = vunpack.c.l.b16 %v6678
    %v6872 = vpack.c.b16 %v6861, %v6860
    %v6873 = vpack.c.b16 %v6863, %v6862
    %v6874 = vpack.c.b16 %v6865, %v6864
    %v6875 = vpack.c.b16 %v6867, %v6866
    %v6876 = vpack.c.b16 %v6869, %v6868
    %v6877 = vpack.c.b16 %v6871, %v6870
    %v6885 = vsel %vm716, %v6836, 0
    %v6888 = vsel %vm716, %v6837, 0
    %v6891 = vsel %vm716, %v6838, 0
    %v6894 = vsel %vm716, %v6839, 0
    %v6897 = vsel %vm716, %v6840, 0
    %v6900 = vsel %vm716, %v6841, 0
    %6902 = vmatprep.subr.bf16.mxu0 0
    %6903 = vmatpush1.bf16.msra.mxu0 %v6872
    %6904 = vmatprep.subr.bf16.mxu0 0
    %6905 = vmatpush1.bf16.msra.mxu0 %v6873
    %6906 = vmatprep.subr.bf16.mxu0 0
    %6907 = vmatpush1.bf16.msra.mxu0 %v6874
    %6908 = vmatprep.subr.bf16.mxu0 0
    %6909 = vmatpush1.bf16.msra.mxu0 %v6875
    %6910 = vmatprep.subr.bf16.mxu0 0
    %6911 = vmatpush1.bf16.msra.mxu0 %v6876
    %6912 = vmatprep.subr.bf16.mxu0 0
    %6913 = vmatpush1.bf16.msra.mxu0 %v6877
    %6914 = vmatprep.subr.bf16.mxu0 0
    %6915 = vmatpush1.bf16.msra.mxu0 0
    %6916 = vmatprep.subr.bf16.mxu0 0
    %6917 = vmatpush1.bf16.msra.mxu0 0
    %6918 = vmatprep.subr.bf16.mxu0 0
    %6919 = vmatpush1.bf16.msra.mxu0 0
    %6920 = vmatprep.subr.bf16.mxu0 0
    %6921 = vmatpush1.bf16.msra.mxu0 0
    %6922 = vmatprep.subr.bf16.mxu0 0
    %6923 = vmatpush1.bf16.msra.mxu0 0
    %6924 = vmatprep.subr.bf16.mxu0 0
    %6925 = vmatpush1.bf16.msra.mxu0 0
    %6926 = vmatprep.subr.bf16.mxu0 0
    %6927 = vmatpush1.bf16.msra.mxu0 0
    %6928 = vmatprep.subr.bf16.mxu0 0
    %6929 = vmatpush1.bf16.msra.mxu0 0
    %6930 = vmatprep.subr.bf16.mxu0 0
    %6931 = vmatpush1.bf16.msra.mxu0 0
    %6932 = vmatprep.subr.bf16.mxu0 0
    %6933 = vmatpush1.bf16.msra.mxu0 0
    %6934 = vmatprep.mubr.bf16.mxu0 0
    %6935 = vmatmul.mubr.bf16.gmra.mrb[0].mxu0 %v6885
    %v6936 = vpop.f32.mrb[0].mxu0
    %v6937 = vadd.f32 %v6846, %v6936
    %v6938 = vpop.f32.mrb[0].mxu0
    %v6939 = vpop.f32.mrb[0].mxu0
    %v6940 = vadd.f32 %v6846, %v6939
    %v6941 = vpop.f32.mrb[0].mxu0
    %6942 = vmatprep.mubr.bf16.mxu0 0
    %6943 = vmatmul.mubr.bf16.gmra.mrb[0].mxu0 %v6888
    %v6944 = vpop.f32.mrb[0].mxu0
    %v6945 = vadd.f32 %v6846, %v6944
    %v6946 = vpop.f32.mrb[0].mxu0
    %v6947 = vpop.f32.mrb[0].mxu0
    %v6948 = vadd.f32 %v6846, %v6947
    %v6949 = vpop.f32.mrb[0].mxu0
    %6950 = vmatprep.mubr.bf16.mxu0 0
    %6951 = vmatmul.mubr.bf16.gmra.mrb[0].mxu0 %v6891
    %v6952 = vpop.f32.mrb[0].mxu0
    %v6953 = vpop.f32.mrb[0].mxu0
    %v6954 = vpop.f32.mrb[0].mxu0
    %v6955 = vpop.f32.mrb[0].mxu0
    %6956 = vmatprep.mubr.bf16.mxu0 0
    %6957 = vmatmul.mubr.bf16.gmra.mrb[0].mxu0 %v6894
    %v6958 = vpop.f32.mrb[0].mxu0
    %v6959 = vadd.f32 %v6846, %v6958
    %v6960 = vpop.f32.mrb[0].mxu0
    %v6961 = vpop.f32.mrb[0].mxu0
    %v6962 = vadd.f32 %v6846, %v6961
    %v6963 = vpop.f32.mrb[0].mxu0
    %6964 = vmatprep.mubr.bf16.mxu0 0
    %6965 = vmatmul.mubr.bf16.gmra.mrb[0].mxu0 %v6897
    %v6966 = vpop.f32.mrb[0].mxu0
    %v6967 = vadd.f32 %v6846, %v6966
    %v6968 = vpop.f32.mrb[0].mxu0
    %v6969 = vpop.f32.mrb[0].mxu0
    %v6970 = vadd.f32 %v6846, %v6969
    %v6971 = vpop.f32.mrb[0].mxu0
    %6972 = vmatprep.mubr.bf16.mxu0 0
    %6973 = vmatmul.mubr.bf16.gmra.mrb[0].mxu0 %v6900
    %v6974 = vpop.f32.mrb[0].mxu0
    %v6975 = vpop.f32.mrb[0].mxu0
    %v6976 = vpop.f32.mrb[0].mxu0
    %v6977 = vpop.f32.mrb[0].mxu0
    %6978 = vdwg.mxu0
    %6979 = vst.msk [vmem:[#allocation4 + $0x8] sm:$0xff] %vm226, %v6937
    %6980 = vst.msk [vmem:[#allocation4 + $0x10] sm:$0xff] %vm226, %v6940
    %6981 = vst.msk [vmem:[#allocation4 + $0x18] sm:$0xff] %vm226, %v6945
    %6982 = vst.msk [vmem:[#allocation4 + $0x20] sm:$0xff] %vm226, %v6948
    %6983 = vst.msk [vmem:[#allocation4 + $0x28] sm:$0xff] %vm226, 0.0
    %6984 = vst.msk [vmem:[#allocation4 + $0x38] sm:$0xff] %vm226, %v6959
    %6985 = vst.msk [vmem:[#allocation4 + $0x40] sm:$0xff] %vm226, %v6962
    %6986 = vst.msk [vmem:[#allocation4 + $0x48] sm:$0xff] %vm226, %v6967
    %6987 = vst.msk [vmem:[#allocation4 + $0x50] sm:$0xff] %vm226, %v6970
    %6988 = vst.msk [vmem:[#allocation4 + $0x58] sm:$0xff] %vm226, 0.0
    %v6989 = vld [vmem:[%s95] sm:$0xf]
    %v6990 = vld [vmem:[%s95 + $0x4] sm:$0xf]
    %v6991 = vld [vmem:[%s95 + $0x8] sm:$0xf]
    %v6992 = vld [vmem:[%s95 + $0xc] sm:$0xf]
    %v6993 = vld [vmem:[%s95 + $0x10] sm:$0xf]
    %v6994 = vld [vmem:[%s95 + $0x14] sm:$0xf]
    %v6995 = vld [vmem:[%s95 + $0x18] sm:$0xf]
    %v6996 = vld [vmem:[%s95 + $0x1c] sm:$0xf]
    %v6997 = vld [vmem:[%s95 + $0x20] sm:$0xf]
    %v6998 = vld [vmem:[%s95 + $0x24] sm:$0xf]
    %v6999 = vld [vmem:[%s95 + $0x28] sm:$0xf]
    %v7000 = vld [vmem:[%s95 + $0x2c] sm:$0xf]
    %v7001 = vld [vmem:[%s97] sm:$0x1]
    %v7002 = vld [vmem:[#allocation4 + $0x7] sm:$0xff]
    %v7003 = vld [vmem:[#allocation4 + $0xf] sm:$0xff]
    %v7004 = vld [vmem:[#allocation4 + $0x17] sm:$0xff]
    %v7005 = vld [vmem:[#allocation4 + $0x1f] sm:$0xff]
    %v7006 = vld [vmem:[#allocation4 + $0x27] sm:$0xff]
    %v7007 = vld [vmem:[#allocation4 + $0x2f] sm:$0xff]
    %v7008 = vld [vmem:[#allocation4 + $0x37] sm:$0xff]
    %v7009 = vld [vmem:[#allocation4 + $0x3f] sm:$0xff]
    %v7010 = vld [vmem:[#allocation4 + $0x47] sm:$0xff]
    %v7011 = vld [vmem:[#allocation4 + $0x4f] sm:$0xff]
    %v7012 = vld [vmem:[#allocation4 + $0x57] sm:$0xff]
    %v7013 = vld [vmem:[#allocation4 + $0x5f] sm:$0xff]
    %v7014 = vld [vmem:[#allocation4 + $0x8] sm:$0xff]
    %v7015 = vld [vmem:[#allocation4 + $0x10] sm:$0xff]
    %v7016 = vld [vmem:[#allocation4 + $0x18] sm:$0xff]
    %v7017 = vld [vmem:[#allocation4 + $0x20] sm:$0xff]
    %v7018 = vld [vmem:[#allocation4 + $0x28] sm:$0xff]
    %v7019 = vld [vmem:[#allocation4 + $0x30] sm:$0xff]
    %v7020 = vld [vmem:[#allocation4 + $0x38] sm:$0xff]
    %v7021 = vld [vmem:[#allocation4 + $0x40] sm:$0xff]
    %v7022 = vld [vmem:[#allocation4 + $0x48] sm:$0xff]
    %v7023 = vld [vmem:[#allocation4 + $0x50] sm:$0xff]
    %v7024 = vld [vmem:[#allocation4 + $0x58] sm:$0xff]
    %v7025 = vld [vmem:[#allocation4 + $0x60] sm:$0xff]
    %v7026 = vld [vmem:[#allocation4 + $0x9] sm:$0xff]
    %v7027 = vld [vmem:[#allocation4 + $0x11] sm:$0xff]
    %v7028 = vld [vmem:[#allocation4 + $0x19] sm:$0xff]
    %v7029 = vld [vmem:[#allocation4 + $0x21] sm:$0xff]
    %v7030 = vld [vmem:[#allocation4 + $0x29] sm:$0xff]
    %v7031 = vld [vmem:[#allocation4 + $0x31] sm:$0xff]
    %v7032 = vld [vmem:[#allocation4 + $0x39] sm:$0xff]
    %v7033 = vld [vmem:[#allocation4 + $0x41] sm:$0xff]
    %v7034 = vld [vmem:[#allocation4 + $0x49] sm:$0xff]
    %v7035 = vld [vmem:[#allocation4 + $0x51] sm:$0xff]
    %v7036 = vld [vmem:[#allocation4 + $0x59] sm:$0xff]
    %v7037 = vld [vmem:[#allocation4 + $0x61] sm:$0xff]
    %7050 = vrot.lane.b32.xlu0 %v7014, 32
    %v7051 = vpop.permute.xlu0 %7050
    %7052 = vrot.lane.b32.xlu0 %v7015, 32
    %v7053 = vpop.permute.xlu0 %7052
    %7054 = vrot.lane.b32.xlu0 %v7016, 32
    %v7055 = vpop.permute.xlu0 %7054
    %7056 = vrot.lane.b32.xlu0 %v7017, 32
    %v7057 = vpop.permute.xlu0 %7056
    %7058 = vrot.lane.b32.xlu0 %v7018, 32
    %v7059 = vpop.permute.xlu0 %7058
    %7060 = vrot.lane.b32.xlu0 %v7019, 32
    %v7061 = vpop.permute.xlu0 %7060
    %7062 = vrot.lane.b32.xlu0 %v7020, 32
    %v7063 = vpop.permute.xlu0 %7062
    %7064 = vrot.lane.b32.xlu0 %v7021, 32
    %v7065 = vpop.permute.xlu0 %7064
    %7066 = vrot.lane.b32.xlu0 %v7022, 32
    %v7067 = vpop.permute.xlu0 %7066
    %7068 = vrot.lane.b32.xlu0 %v7023, 32
    %v7069 = vpop.permute.xlu0 %7068
    %7070 = vrot.lane.b32.xlu0 %v7024, 32
    %v7071 = vpop.permute.xlu0 %7070
    %7072 = vrot.lane.b32.xlu0 %v7025, 32
    %v7073 = vpop.permute.xlu0 %7072
    %7098 = vrot.lane.b32.xlu0 %v7026, 64
    %v7099 = vpop.permute.xlu0 %7098
    %7100 = vrot.lane.b32.xlu0 %v7027, 64
    %v7101 = vpop.permute.xlu0 %7100
    %7102 = vrot.lane.b32.xlu0 %v7028, 64
    %v7103 = vpop.permute.xlu0 %7102
    %7104 = vrot.lane.b32.xlu0 %v7029, 64
    %v7105 = vpop.permute.xlu0 %7104
    %7106 = vrot.lane.b32.xlu0 %v7030, 64
    %v7107 = vpop.permute.xlu0 %7106
    %7108 = vrot.lane.b32.xlu0 %v7031, 64
    %v7109 = vpop.permute.xlu0 %7108
    %7110 = vrot.lane.b32.xlu0 %v7032, 64
    %v7111 = vpop.permute.xlu0 %7110
    %7112 = vrot.lane.b32.xlu0 %v7033, 64
    %v7113 = vpop.permute.xlu0 %7112
    %7114 = vrot.lane.b32.xlu0 %v7034, 64
    %v7115 = vpop.permute.xlu0 %7114
    %7116 = vrot.lane.b32.xlu0 %v7035, 64
    %v7117 = vpop.permute.xlu0 %7116
    %7118 = vrot.lane.b32.xlu0 %v7036, 64
    %v7119 = vpop.permute.xlu0 %7118
    %7120 = vrot.lane.b32.xlu0 %v7037, 64
    %v7121 = vpop.permute.xlu0 %7120
    %v7134 = vsel %vm226, %v7002, %v7051
    %v7135 = vsel %vm226, %v7003, %v7053
    %v7136 = vsel %vm226, %v7004, %v7055
    %v7137 = vsel %vm226, %v7005, %v7057
    %v7138 = vsel %vm226, %v7006, %v7059
    %v7139 = vsel %vm226, %v7007, %v7061
    %v7140 = vsel %vm226, %v7008, %v7063
    %v7141 = vsel %vm226, %v7009, %v7065
    %v7142 = vsel %vm226, %v7010, %v7067
    %v7143 = vsel %vm226, %v7011, %v7069
    %v7144 = vsel %vm226, %v7012, %v7071
    %v7145 = vsel %vm226, %v7013, %v7073
    %v7146 = vsel %vm709, %v7134, %v7099
    %v7147 = vsel %vm709, %v7135, %v7101
    %v7148 = vsel %vm709, %v7136, %v7103
    %v7149 = vsel %vm709, %v7137, %v7105
    %v7150 = vsel %vm709, %v7138, %v7107
    %v7151 = vsel %vm709, %v7139, %v7109
    %v7152 = vsel %vm709, %v7140, %v7111
    %v7153 = vsel %vm709, %v7141, %v7113
    %v7154 = vsel %vm709, %v7142, %v7115
    %v7155 = vsel %vm709, %v7143, %v7117
    %v7156 = vsel %vm709, %v7144, %v7119
    %v7157 = vsel %vm709, %v7145, %v7121
    %v7158 = vpack.c.bf16 %v7147, %v7146
    %v7159 = vpack.c.bf16 %v7149, %v7148
    %v7160 = vpack.c.bf16 %v7151, %v7150
    %v7161 = vpack.c.bf16 %v7153, %v7152
    %v7162 = vpack.c.bf16 %v7155, %v7154
    %v7163 = vpack.c.bf16 %v7157, %v7156
    %v7165 = vlaneseq
    %v7166 = vshrl.u32 %v7165, 7
    %v7167 = vsub.s32 0, %v7166
    %v7168 = vrot.slane %v7001, %v7167
    %v7182 = vunpack.c.l.b16 %v6989
    %v7183 = vunpack.c.l.b16 %v6990
    %v7184 = vunpack.c.l.b16 %v6991
    %v7185 = vunpack.c.l.b16 %v6992
    %v7186 = vunpack.c.l.b16 %v6993
    %v7187 = vunpack.c.l.b16 %v6994
    %v7188 = vunpack.c.l.b16 %v6995
    %v7189 = vunpack.c.l.b16 %v6996
    %v7190 = vunpack.c.l.b16 %v6997
    %v7191 = vunpack.c.l.b16 %v6998
    %v7192 = vunpack.c.l.b16 %v6999
    %v7193 = vunpack.c.l.b16 %v7000
    %v7194 = vpack.c.b16 %v7183, %v7182
    %v7195 = vpack.c.b16 %v7185, %v7184
    %v7196 = vpack.c.b16 %v7187, %v7186
    %v7197 = vpack.c.b16 %v7189, %v7188
    %v7198 = vpack.c.b16 %v7191, %v7190
    %v7199 = vpack.c.b16 %v7193, %v7192
    %v7207 = vsel %vm716, %v7158, 0
    %v7210 = vsel %vm716, %v7159, 0
    %v7213 = vsel %vm716, %v7160, 0
    %v7216 = vsel %vm716, %v7161, 0
    %v7219 = vsel %vm716, %v7162, 0
    %v7222 = vsel %vm716, %v7163, 0
    %7224 = vmatprep.subr.bf16.mxu0 0
    %7225 = vmatpush1.bf16.msra.mxu0 %v7194
    %7226 = vmatprep.subr.bf16.mxu0 0
    %7227 = vmatpush1.bf16.msra.mxu0 %v7195
    %7228 = vmatprep.subr.bf16.mxu0 0
    %7229 = vmatpush1.bf16.msra.mxu0 %v7196
    %7230 = vmatprep.subr.bf16.mxu0 0
    %7231 = vmatpush1.bf16.msra.mxu0 %v7197
    %7232 = vmatprep.subr.bf16.mxu0 0
    %7233 = vmatpush1.bf16.msra.mxu0 %v7198
    %7234 = vmatprep.subr.bf16.mxu0 0
    %7235 = vmatpush1.bf16.msra.mxu0 %v7199
    %7236 = vmatprep.subr.bf16.mxu0 0
    %7237 = vmatpush1.bf16.msra.mxu0 0
    %7238 = vmatprep.subr.bf16.mxu0 0
    %7239 = vmatpush1.bf16.msra.mxu0 0
    %7240 = vmatprep.subr.bf16.mxu0 0
    %7241 = vmatpush1.bf16.msra.mxu0 0
    %7242 = vmatprep.subr.bf16.mxu0 0
    %7243 = vmatpush1.bf16.msra.mxu0 0
    %7244 = vmatprep.subr.bf16.mxu0 0
    %7245 = vmatpush1.bf16.msra.mxu0 0
    %7246 = vmatprep.subr.bf16.mxu0 0
    %7247 = vmatpush1.bf16.msra.mxu0 0
    %7248 = vmatprep.subr.bf16.mxu0 0
    %7249 = vmatpush1.bf16.msra.mxu0 0
    %7250 = vmatprep.subr.bf16.mxu0 0
    %7251 = vmatpush1.bf16.msra.mxu0 0
    %7252 = vmatprep.subr.bf16.mxu0 0
    %7253 = vmatpush1.bf16.msra.mxu0 0
    %7254 = vmatprep.subr.bf16.mxu0 0
    %7255 = vmatpush1.bf16.msra.mxu0 0
    %7256 = vmatprep.mubr.bf16.mxu0 0
    %7257 = vmatmul.mubr.bf16.gmra.mrb[0].mxu0 %v7207
    %v7258 = vpop.f32.mrb[0].mxu0
    %v7259 = vadd.f32 %v7168, %v7258
    %v7260 = vpop.f32.mrb[0].mxu0
    %v7261 = vpop.f32.mrb[0].mxu0
    %v7262 = vadd.f32 %v7168, %v7261
    %v7263 = vpop.f32.mrb[0].mxu0
    %7264 = vmatprep.mubr.bf16.mxu0 0
    %7265 = vmatmul.mubr.bf16.gmra.mrb[0].mxu0 %v7210
    %v7266 = vpop.f32.mrb[0].mxu0
    %v7267 = vadd.f32 %v7168, %v7266
    %v7268 = vpop.f32.mrb[0].mxu0
    %v7269 = vpop.f32.mrb[0].mxu0
    %v7270 = vadd.f32 %v7168, %v7269
    %v7271 = vpop.f32.mrb[0].mxu0
    %7272 = vmatprep.mubr.bf16.mxu0 0
    %7273 = vmatmul.mubr.bf16.gmra.mrb[0].mxu0 %v7213
    %v7274 = vpop.f32.mrb[0].mxu0
    %v7275 = vpop.f32.mrb[0].mxu0
    %v7276 = vpop.f32.mrb[0].mxu0
    %v7277 = vpop.f32.mrb[0].mxu0
    %7278 = vmatprep.mubr.bf16.mxu0 0
    %7279 = vmatmul.mubr.bf16.gmra.mrb[0].mxu0 %v7216
    %v7280 = vpop.f32.mrb[0].mxu0
    %v7281 = vadd.f32 %v7168, %v7280
    %v7282 = vpop.f32.mrb[0].mxu0
    %v7283 = vpop.f32.mrb[0].mxu0
    %v7284 = vadd.f32 %v7168, %v7283
    %v7285 = vpop.f32.mrb[0].mxu0
    %7286 = vmatprep.mubr.bf16.mxu0 0
    %7287 = vmatmul.mubr.bf16.gmra.mrb[0].mxu0 %v7219
    %v7288 = vpop.f32.mrb[0].mxu0
    %v7289 = vadd.f32 %v7168, %v7288
    %v7290 = vpop.f32.mrb[0].mxu0
    %v7291 = vpop.f32.mrb[0].mxu0
    %v7292 = vadd.f32 %v7168, %v7291
    %v7293 = vpop.f32.mrb[0].mxu0
    %7294 = vmatprep.mubr.bf16.mxu0 0
    %7295 = vmatmul.mubr.bf16.gmra.mrb[0].mxu0 %v7222
    %v7296 = vpop.f32.mrb[0].mxu0
    %v7297 = vpop.f32.mrb[0].mxu0
    %v7298 = vpop.f32.mrb[0].mxu0
    %v7299 = vpop.f32.mrb[0].mxu0
    %7300 = vdwg.mxu0
    %v7301 = vmax.f32 %v7259, 0.0
    %v7302 = vmax.f32 %v7262, 0.0
    %v7303 = vmax.f32 %v7267, 0.0
    %v7304 = vmax.f32 %v7270, 0.0
    %v7305 = vmax.f32 %v7281, 0.0
    %v7306 = vmax.f32 %v7284, 0.0
    %v7307 = vmax.f32 %v7289, 0.0
    %v7308 = vmax.f32 %v7292, 0.0
    %7309 = vst.msk [vmem:[#allocation2 + $0x8] sm:$0xff] %vm226, %v7301
    %7310 = vst.msk [vmem:[#allocation2 + $0x10] sm:$0xff] %vm226, %v7302
    %7311 = vst.msk [vmem:[#allocation2 + $0x18] sm:$0xff] %vm226, %v7303
    %7312 = vst.msk [vmem:[#allocation2 + $0x20] sm:$0xff] %vm226, %v7304
    %7313 = vst.msk [vmem:[#allocation2 + $0x28] sm:$0xff] %vm226, 0.0
    %7314 = vst.msk [vmem:[#allocation2 + $0x38] sm:$0xff] %vm226, %v7305
    %7315 = vst.msk [vmem:[#allocation2 + $0x40] sm:$0xff] %vm226, %v7306
    %7316 = vst.msk [vmem:[#allocation2 + $0x48] sm:$0xff] %vm226, %v7307
    %7317 = vst.msk [vmem:[#allocation2 + $0x50] sm:$0xff] %vm226, %v7308
    %7318 = vst.msk [vmem:[#allocation2 + $0x58] sm:$0xff] %vm226, 0.0
    %v7319 = vld [vmem:[%s99] sm:$0xf]
    %v7320 = vld [vmem:[%s99 + $0x4] sm:$0xf]
    %v7321 = vld [vmem:[%s99 + $0x8] sm:$0xf]
    %v7322 = vld [vmem:[%s99 + $0xc] sm:$0xf]
    %v7323 = vld [vmem:[%s99 + $0x10] sm:$0xf]
    %v7324 = vld [vmem:[%s99 + $0x14] sm:$0xf]
    %v7325 = vld [vmem:[%s99 + $0x18] sm:$0xf]
    %v7326 = vld [vmem:[%s99 + $0x1c] sm:$0xf]
    %v7327 = vld [vmem:[%s99 + $0x20] sm:$0xf]
    %v7328 = vld [vmem:[%s99 + $0x24] sm:$0xf]
    %v7329 = vld [vmem:[%s99 + $0x28] sm:$0xf]
    %v7330 = vld [vmem:[%s99 + $0x2c] sm:$0xf]
    %v7331 = vld [vmem:[%s101] sm:$0x1]
    %v7332 = vld [vmem:[#allocation2 + $0x7] sm:$0xff]
    %v7333 = vld [vmem:[#allocation2 + $0xf] sm:$0xff]
    %v7334 = vld [vmem:[#allocation2 + $0x17] sm:$0xff]
    %v7335 = vld [vmem:[#allocation2 + $0x1f] sm:$0xff]
    %v7336 = vld [vmem:[#allocation2 + $0x27] sm:$0xff]
    %v7337 = vld [vmem:[#allocation2 + $0x2f] sm:$0xff]
    %v7338 = vld [vmem:[#allocation2 + $0x37] sm:$0xff]
    %v7339 = vld [vmem:[#allocation2 + $0x3f] sm:$0xff]
    %v7340 = vld [vmem:[#allocation2 + $0x47] sm:$0xff]
    %v7341 = vld [vmem:[#allocation2 + $0x4f] sm:$0xff]
    %v7342 = vld [vmem:[#allocation2 + $0x57] sm:$0xff]
    %v7343 = vld [vmem:[#allocation2 + $0x5f] sm:$0xff]
    %v7344 = vld [vmem:[#allocation2 + $0x8] sm:$0xff]
    %v7345 = vld [vmem:[#allocation2 + $0x10] sm:$0xff]
    %v7346 = vld [vmem:[#allocation2 + $0x18] sm:$0xff]
    %v7347 = vld [vmem:[#allocation2 + $0x20] sm:$0xff]
    %v7348 = vld [vmem:[#allocation2 + $0x28] sm:$0xff]
    %v7349 = vld [vmem:[#allocation2 + $0x30] sm:$0xff]
    %v7350 = vld [vmem:[#allocation2 + $0x38] sm:$0xff]
    %v7351 = vld [vmem:[#allocation2 + $0x40] sm:$0xff]
    %v7352 = vld [vmem:[#allocation2 + $0x48] sm:$0xff]
    %v7353 = vld [vmem:[#allocation2 + $0x50] sm:$0xff]
    %v7354 = vld [vmem:[#allocation2 + $0x58] sm:$0xff]
    %v7355 = vld [vmem:[#allocation2 + $0x60] sm:$0xff]
    %v7356 = vld [vmem:[#allocation2 + $0x9] sm:$0xff]
    %v7357 = vld [vmem:[#allocation2 + $0x11] sm:$0xff]
    %v7358 = vld [vmem:[#allocation2 + $0x19] sm:$0xff]
    %v7359 = vld [vmem:[#allocation2 + $0x21] sm:$0xff]
    %v7360 = vld [vmem:[#allocation2 + $0x29] sm:$0xff]
    %v7361 = vld [vmem:[#allocation2 + $0x31] sm:$0xff]
    %v7362 = vld [vmem:[#allocation2 + $0x39] sm:$0xff]
    %v7363 = vld [vmem:[#allocation2 + $0x41] sm:$0xff]
    %v7364 = vld [vmem:[#allocation2 + $0x49] sm:$0xff]
    %v7365 = vld [vmem:[#allocation2 + $0x51] sm:$0xff]
    %v7366 = vld [vmem:[#allocation2 + $0x59] sm:$0xff]
    %v7367 = vld [vmem:[#allocation2 + $0x61] sm:$0xff]
    %7380 = vrot.lane.b32.xlu0 %v7344, 32
    %v7381 = vpop.permute.xlu0 %7380
    %7382 = vrot.lane.b32.xlu0 %v7345, 32
    %v7383 = vpop.permute.xlu0 %7382
    %7384 = vrot.lane.b32.xlu0 %v7346, 32
    %v7385 = vpop.permute.xlu0 %7384
    %7386 = vrot.lane.b32.xlu0 %v7347, 32
    %v7387 = vpop.permute.xlu0 %7386
    %7388 = vrot.lane.b32.xlu0 %v7348, 32
    %v7389 = vpop.permute.xlu0 %7388
    %7390 = vrot.lane.b32.xlu0 %v7349, 32
    %v7391 = vpop.permute.xlu0 %7390
    %7392 = vrot.lane.b32.xlu0 %v7350, 32
    %v7393 = vpop.permute.xlu0 %7392
    %7394 = vrot.lane.b32.xlu0 %v7351, 32
    %v7395 = vpop.permute.xlu0 %7394
    %7396 = vrot.lane.b32.xlu0 %v7352, 32
    %v7397 = vpop.permute.xlu0 %7396
    %7398 = vrot.lane.b32.xlu0 %v7353, 32
    %v7399 = vpop.permute.xlu0 %7398
    %7400 = vrot.lane.b32.xlu0 %v7354, 32
    %v7401 = vpop.permute.xlu0 %7400
    %7402 = vrot.lane.b32.xlu0 %v7355, 32
    %v7403 = vpop.permute.xlu0 %7402
    %7428 = vrot.lane.b32.xlu0 %v7356, 64
    %v7429 = vpop.permute.xlu0 %7428
    %7430 = vrot.lane.b32.xlu0 %v7357, 64
    %v7431 = vpop.permute.xlu0 %7430
    %7432 = vrot.lane.b32.xlu0 %v7358, 64
    %v7433 = vpop.permute.xlu0 %7432
    %7434 = vrot.lane.b32.xlu0 %v7359, 64
    %v7435 = vpop.permute.xlu0 %7434
    %7436 = vrot.lane.b32.xlu0 %v7360, 64
    %v7437 = vpop.permute.xlu0 %7436
    %7438 = vrot.lane.b32.xlu0 %v7361, 64
    %v7439 = vpop.permute.xlu0 %7438
    %7440 = vrot.lane.b32.xlu0 %v7362, 64
    %v7441 = vpop.permute.xlu0 %7440
    %7442 = vrot.lane.b32.xlu0 %v7363, 64
    %v7443 = vpop.permute.xlu0 %7442
    %7444 = vrot.lane.b32.xlu0 %v7364, 64
    %v7445 = vpop.permute.xlu0 %7444
    %7446 = vrot.lane.b32.xlu0 %v7365, 64
    %v7447 = vpop.permute.xlu0 %7446
    %7448 = vrot.lane.b32.xlu0 %v7366, 64
    %v7449 = vpop.permute.xlu0 %7448
    %7450 = vrot.lane.b32.xlu0 %v7367, 64
    %v7451 = vpop.permute.xlu0 %7450
    %v7464 = vsel %vm226, %v7332, %v7381
    %v7465 = vsel %vm226, %v7333, %v7383
    %v7466 = vsel %vm226, %v7334, %v7385
    %v7467 = vsel %vm226, %v7335, %v7387
    %v7468 = vsel %vm226, %v7336, %v7389
    %v7469 = vsel %vm226, %v7337, %v7391
    %v7470 = vsel %vm226, %v7338, %v7393
    %v7471 = vsel %vm226, %v7339, %v7395
    %v7472 = vsel %vm226, %v7340, %v7397
    %v7473 = vsel %vm226, %v7341, %v7399
    %v7474 = vsel %vm226, %v7342, %v7401
    %v7475 = vsel %vm226, %v7343, %v7403
    %v7476 = vsel %vm709, %v7464, %v7429
    %v7477 = vsel %vm709, %v7465, %v7431
    %v7478 = vsel %vm709, %v7466, %v7433
    %v7479 = vsel %vm709, %v7467, %v7435
    %v7480 = vsel %vm709, %v7468, %v7437
    %v7481 = vsel %vm709, %v7469, %v7439
    %v7482 = vsel %vm709, %v7470, %v7441
    %v7483 = vsel %vm709, %v7471, %v7443
    %v7484 = vsel %vm709, %v7472, %v7445
    %v7485 = vsel %vm709, %v7473, %v7447
    %v7486 = vsel %vm709, %v7474, %v7449
    %v7487 = vsel %vm709, %v7475, %v7451
    %v7488 = vpack.c.bf16 %v7477, %v7476
    %v7489 = vpack.c.bf16 %v7479, %v7478
    %v7490 = vpack.c.bf16 %v7481, %v7480
    %v7491 = vpack.c.bf16 %v7483, %v7482
    %v7492 = vpack.c.bf16 %v7485, %v7484
    %v7493 = vpack.c.bf16 %v7487, %v7486
    %v7495 = vlaneseq
    %v7496 = vshrl.u32 %v7495, 7
    %v7497 = vsub.s32 0, %v7496
    %v7498 = vrot.slane %v7331, %v7497
    %v7512 = vunpack.c.l.b16 %v7319
    %v7513 = vunpack.c.l.b16 %v7320
    %v7514 = vunpack.c.l.b16 %v7321
    %v7515 = vunpack.c.l.b16 %v7322
    %v7516 = vunpack.c.l.b16 %v7323
    %v7517 = vunpack.c.l.b16 %v7324
    %v7518 = vunpack.c.l.b16 %v7325
    %v7519 = vunpack.c.l.b16 %v7326
    %v7520 = vunpack.c.l.b16 %v7327
    %v7521 = vunpack.c.l.b16 %v7328
    %v7522 = vunpack.c.l.b16 %v7329
    %v7523 = vunpack.c.l.b16 %v7330
    %v7524 = vpack.c.b16 %v7513, %v7512
    %v7525 = vpack.c.b16 %v7515, %v7514
    %v7526 = vpack.c.b16 %v7517, %v7516
    %v7527 = vpack.c.b16 %v7519, %v7518
    %v7528 = vpack.c.b16 %v7521, %v7520
    %v7529 = vpack.c.b16 %v7523, %v7522
    %v7537 = vsel %vm716, %v7488, 0
    %v7540 = vsel %vm716, %v7489, 0
    %v7543 = vsel %vm716, %v7490, 0
    %v7546 = vsel %vm716, %v7491, 0
    %v7549 = vsel %vm716, %v7492, 0
    %v7552 = vsel %vm716, %v7493, 0
    %7554 = vmatprep.subr.bf16.mxu0 0
    %7555 = vmatpush1.bf16.msra.mxu0 %v7524
    %7556 = vmatprep.subr.bf16.mxu0 0
    %7557 = vmatpush1.bf16.msra.mxu0 %v7525
    %7558 = vmatprep.subr.bf16.mxu0 0
    %7559 = vmatpush1.bf16.msra.mxu0 %v7526
    %7560 = vmatprep.subr.bf16.mxu0 0
    %7561 = vmatpush1.bf16.msra.mxu0 %v7527
    %7562 = vmatprep.subr.bf16.mxu0 0
    %7563 = vmatpush1.bf16.msra.mxu0 %v7528
    %7564 = vmatprep.subr.bf16.mxu0 0
    %7565 = vmatpush1.bf16.msra.mxu0 %v7529
    %7566 = vmatprep.subr.bf16.mxu0 0
    %7567 = vmatpush1.bf16.msra.mxu0 0
    %7568 = vmatprep.subr.bf16.mxu0 0
    %7569 = vmatpush1.bf16.msra.mxu0 0
    %7570 = vmatprep.subr.bf16.mxu0 0
    %7571 = vmatpush1.bf16.msra.mxu0 0
    %7572 = vmatprep.subr.bf16.mxu0 0
    %7573 = vmatpush1.bf16.msra.mxu0 0
    %7574 = vmatprep.subr.bf16.mxu0 0
    %7575 = vmatpush1.bf16.msra.mxu0 0
    %7576 = vmatprep.subr.bf16.mxu0 0
    %7577 = vmatpush1.bf16.msra.mxu0 0
    %7578 = vmatprep.subr.bf16.mxu0 0
    %7579 = vmatpush1.bf16.msra.mxu0 0
    %7580 = vmatprep.subr.bf16.mxu0 0
    %7581 = vmatpush1.bf16.msra.mxu0 0
    %7582 = vmatprep.subr.bf16.mxu0 0
    %7583 = vmatpush1.bf16.msra.mxu0 0
    %7584 = vmatprep.subr.bf16.mxu0 0
    %7585 = vmatpush1.bf16.msra.mxu0 0
    %7586 = vmatprep.mubr.bf16.mxu0 0
    %7587 = vmatmul.mubr.bf16.gmra.mrb[0].mxu0 %v7537
    %v7588 = vpop.f32.mrb[0].mxu0
    %v7589 = vadd.f32 %v7498, %v7588
    %v7590 = vpop.f32.mrb[0].mxu0
    %v7591 = vpop.f32.mrb[0].mxu0
    %v7592 = vadd.f32 %v7498, %v7591
    %v7593 = vpop.f32.mrb[0].mxu0
    %7594 = vmatprep.mubr.bf16.mxu0 0
    %7595 = vmatmul.mubr.bf16.gmra.mrb[0].mxu0 %v7540
    %v7596 = vpop.f32.mrb[0].mxu0
    %v7597 = vadd.f32 %v7498, %v7596
    %v7598 = vpop.f32.mrb[0].mxu0
    %v7599 = vpop.f32.mrb[0].mxu0
    %v7600 = vadd.f32 %v7498, %v7599
    %v7601 = vpop.f32.mrb[0].mxu0
    %7602 = vmatprep.mubr.bf16.mxu0 0
    %7603 = vmatmul.mubr.bf16.gmra.mrb[0].mxu0 %v7543
    %v7604 = vpop.f32.mrb[0].mxu0
    %v7605 = vpop.f32.mrb[0].mxu0
    %v7606 = vpop.f32.mrb[0].mxu0
    %v7607 = vpop.f32.mrb[0].mxu0
    %7608 = vmatprep.mubr.bf16.mxu0 0
    %7609 = vmatmul.mubr.bf16.gmra.mrb[0].mxu0 %v7546
    %v7610 = vpop.f32.mrb[0].mxu0
    %v7611 = vadd.f32 %v7498, %v7610
    %v7612 = vpop.f32.mrb[0].mxu0
    %v7613 = vpop.f32.mrb[0].mxu0
    %v7614 = vadd.f32 %v7498, %v7613
    %v7615 = vpop.f32.mrb[0].mxu0
    %7616 = vmatprep.mubr.bf16.mxu0 0
    %7617 = vmatmul.mubr.bf16.gmra.mrb[0].mxu0 %v7549
    %v7618 = vpop.f32.mrb[0].mxu0
    %v7619 = vadd.f32 %v7498, %v7618
    %v7620 = vpop.f32.mrb[0].mxu0
    %v7621 = vpop.f32.mrb[0].mxu0
    %v7622 = vadd.f32 %v7498, %v7621
    %v7623 = vpop.f32.mrb[0].mxu0
    %7624 = vmatprep.mubr.bf16.mxu0 0
    %7625 = vmatmul.mubr.bf16.gmra.mrb[0].mxu0 %v7552
    %v7626 = vpop.f32.mrb[0].mxu0
    %v7627 = vpop.f32.mrb[0].mxu0
    %v7628 = vpop.f32.mrb[0].mxu0
    %v7629 = vpop.f32.mrb[0].mxu0
    %7630 = vdwg.mxu0
    %7631 = vst.msk [vmem:[%s105] sm:$0xff] %vm243, %v7589
    %7632 = vst.msk [vmem:[%s105 + $0x8] sm:$0xff] %vm243, %v7592
    %7633 = vst.msk [vmem:[%s105 + $0x10] sm:$0xff] %vm243, %v7597
    %7634 = vst.msk [vmem:[%s105 + $0x18] sm:$0xff] %vm243, %v7600
    %s7635 = scalar_lea.vmem %s105, 32
    %7636 = vst.msk [vmem:[%s7635] sm:$0xff] %vm243, %v7611
    %7637 = vst.msk [vmem:[%s7635 + $0x8] sm:$0xff] %vm243, %v7614
    %7638 = vst.msk [vmem:[%s7635 + $0x10] sm:$0xff] %vm243, %v7619
    %7639 = vst.msk [vmem:[%s7635 + $0x18] sm:$0xff] %vm243, %v7622
    // Predicated region
    $region210: #{vqvae_forward.1} parent=1 // pred_check
      _
    $region211: #{vqvae_forward.1} parent=1 // pred_check_branch
      %7641 = sbr.rel (0) target = $region213
    $region212: #{vqvae_forward.1} parent=1 // pred_region
      _
    $region213: #{vqvae_forward.1} parent=1 // pred_fallthru
      _
    // Predicated region
    $region214: #{vqvae_forward.1} parent=1 // pred_check
      _
    $region215: #{vqvae_forward.1} parent=1 // pred_check_branch
      %7643 = sbr.rel (0) target = $region217
    $region216: #{vqvae_forward.1} parent=1 // pred_region
      _
    $region217: #{vqvae_forward.1} parent=1 // pred_fallthru
      _
    // Predicated region
    $region218: #{vqvae_forward.1} parent=1 // pred_check
      _
    $region219: #{vqvae_forward.1} parent=1 // pred_check_branch
      %7645 = sbr.rel (0) target = $region221
    $region220: #{vqvae_forward.1} parent=1 // pred_region
      %s7647 = ssub.s32 16, 16
      %7648 = vsyncadd [#allocation6], %s7647
      %s7650 = sshll.u32 [#allocation5], 4
      %s7651 = int_to_ptr.vmem [resolvable:$true] %s7650
      %7653 = dma.vmem_to_hbm [thread:$0]  %s7651, 16, %s109, [#allocation6]
    $region221: #{vqvae_forward.1} parent=1 // pred_fallthru
      _
    // Predicated region
    $region222: #{vqvae_forward.1} parent=1 // pred_check
      _
    $region223: #{vqvae_forward.1} parent=1 // pred_check_branch
      %7655 = sbr.rel (0) target = $region225
    $region224: #{vqvae_forward.1} parent=1 // pred_region
      %s7657 = ssub.s32 16, 16
      %7658 = vsyncadd [#allocation8], %s7657
      %s7660 = sshll.u32 [#allocation7], 4
      %s7661 = int_to_ptr.vmem [resolvable:$true] %s7660
      %7663 = dma.vmem_to_hbm [thread:$0]  %s7661, 16, %s111, [#allocation8]
    $region225: #{vqvae_forward.1} parent=1 // pred_fallthru
      _
    // Predicated region
    $region226: #{vqvae_forward.1} parent=1 // pred_check
      _
    $region227: #{vqvae_forward.1} parent=1 // pred_check_branch
      %7665 = sbr.rel (0) target = $region229
    $region228: #{vqvae_forward.1} parent=1 // pred_region
      %s7667 = ssub.s32 256, 256
      %7668 = vsyncadd [#allocation8], %s7667
      %s7669 = sshll.u32 [#allocation9], 4
      %s7670 = int_to_ptr.vmem [resolvable:$true] %s7669
      %7675 = dma.vmem_to_hbm [thread:$0]  %s7670, 256, %s113, [#allocation8], 128, 128, 8
    $region229: #{vqvae_forward.1} parent=1 // pred_fallthru
      _
    // Predicated region
    $region230: #{vqvae_forward.1} parent=1 // pred_check
      _
    $region231: #{vqvae_forward.1} parent=1 // pred_check_branch
      %7677 = sbr.rel (0) target = $region233
    $region232: #{vqvae_forward.1} parent=1 // pred_region
      _
    $region233: #{vqvae_forward.1} parent=1 // pred_fallthru
      _
    // Predicated region
    $region234: #{vqvae_forward.1} parent=1 // pred_check
      _
    $region235: #{vqvae_forward.1} parent=1 // pred_check_branch
      %7679 = sbr.rel (0) target = $region237
    $region236: #{vqvae_forward.1} parent=1 // pred_region
      _
    $region237: #{vqvae_forward.1} parent=1 // pred_fallthru
      _
    // Predicated region
    $region238: #{vqvae_forward.1} parent=1 // pred_check
      _
    $region239: #{vqvae_forward.1} parent=1 // pred_check_branch
      %7681 = sbr.rel (0) target = $region241
    $region240: #{vqvae_forward.1} parent=1 // pred_region
      %7682 = dma.done [#allocation6], 16
    $region241: #{vqvae_forward.1} parent=1 // pred_fallthru
      _
    // Predicated region
    $region242: #{vqvae_forward.1} parent=1 // pred_check
      _
    $region243: #{vqvae_forward.1} parent=1 // pred_check_branch
      %7684 = sbr.rel (0) target = $region245
    $region244: #{vqvae_forward.1} parent=1 // pred_region
      %7685 = dma.done [#allocation8], 16
    $region245: #{vqvae_forward.1} parent=1 // pred_fallthru
      _
    // Predicated region
    $region246: #{vqvae_forward.1} parent=1 // pred_check
      _
    $region247: #{vqvae_forward.1} parent=1 // pred_check_branch
      %7687 = sbr.rel (0) target = $region249
    $region248: #{vqvae_forward.1} parent=1 // pred_region
      %7688 = dma.done [#allocation8], 256
    $region249: #{vqvae_forward.1} parent=1 // pred_fallthru
      _
    %7689 = vsyncpa [#allocation6], 1
    %7690 = vsyncpa [#allocation8], 1

</llo_original>
